<compile_context>
chip_gen: v5e
topology: v5e:2x2
jax: 0.10.0
libtpu: 0.0.40
codegen_flags: <defaults>
</compile_context>

<pallas_src>
import functools

import jax
import jax.numpy as jnp
from jax.experimental import pallas as pl
from jax.experimental.pallas import tpu as pltpu

SOS_token = 1

# ----------------------- model sizes (small, deterministic) -----------------------
HIDDEN = 32          # hidden_size == embedding dim (tutorial uses a shared embedding)
VOCAB = 64           # output vocabulary size
N_LAYERS = 2         # encoder.n_layers == decoder.n_layers
SEQ_LEN = 8          # encoder input length (batch = 1)
MAX_LENGTH = 6       # greedy decode steps

_VMEM = pl.BlockSpec(memory_space=pltpu.MemorySpace.VMEM)
_SMEM = pl.BlockSpec(memory_space=pltpu.MemorySpace.SMEM)


def _gru_cell(gi, h, whh, bhh):
    """One GRU cell with the input-side gates `gi` precomputed (hoisted).

    Torch gate order (r, z, n), packed along the lane axis as [r | z | n].
    gi:(1,3H)  h:(1,H)  whh:(H,3H)  bhh:(1,3H)."""
    H = h.shape[-1]
    gh = jnp.dot(h, whh, preferred_element_type=jnp.float32) + bhh       # (1, 3H)
    r = jax.nn.sigmoid(gi[:, 0:H] + gh[:, 0:H])
    z = jax.nn.sigmoid(gi[:, H:2 * H] + gh[:, H:2 * H])
    n = jnp.tanh(gi[:, 2 * H:3 * H] + r * gh[:, 2 * H:3 * H])
    return (1.0 - z) * n + z * h


# ======================= fused encoder + greedy-decode kernel =======================

def greedy_kernel(len_ref, seq_ref, emb_ref,
                  enc_wih_ref, enc_whh_ref, enc_b_ref,
                  dec_w_ref, dec_b_ref,
                  wc_ref, bc_ref, wout_ref, bout_ref,
                  tok_ref, score_ref,
                  l0_scr, l1_scr):
    """Whole GreedySearchDecoder.forward for batch=1 in one kernel.

    len:(1,) SMEM int32; seq:(T,) SMEM int32 token ids; emb:(V,H);
    enc_wih:(2,3H,3H) per direction [rows 0:H layer0-Wih^T | H:3H layer1-Wih^T];
    enc_whh:(2,2H,3H) per direction [rows 0:H layer0-Whh^T | H:2H layer1-Whh^T];
    enc_b:(2,4,3H) per direction [b0_ih, b0_hh, b1_ih, b1_hh];
    dec_w:(L,2H,3H) per layer [rows 0:H Wih^T | H:2H Whh^T]; dec_b:(L,2,3H) [bih, bhh];
    wc:(2H,H) concat.weight^T; bc:(1,H); wout:(H,V) out.weight^T; bout:(1,V).
    Outputs: tok:(1,ML) int32 argmax tokens, score:(1,ML) f32 max softmax probabilities.
    Scratch: l0_scr/l1_scr:(T,2H) f32 — per-layer bidirectional outputs [fwd | bwd]."""
    T = seq_ref.shape[0]
    V, H = emb_ref.shape
    ML = tok_ref.shape[-1]

    length = len_ref[0]
    emb = emb_ref[...]                                                   # (V, H) resident

    lane_v = jax.lax.broadcasted_iota(jnp.int32, (1, V), 1)

    # ---- input embedding in-kernel: onehot(T,V) @ emb on the MXU (no XLA gather) ----
    onehot_seq = jnp.concatenate(
        [(lane_v == seq_ref[t]).astype(jnp.float32) for t in range(T)], axis=0)   # (T, V)
    x_seq = jnp.dot(onehot_seq, emb, preferred_element_type=jnp.float32)          # (T, H)

    # ======================= encoder: 2-layer bidirectional GRU =======================
    # TODO(synk): full pack_padded_sequence semantics for input_length < T (encoder truncation /
    # backward scan starting at length-1); only decoder attention masking is applied.
    zero = jnp.zeros((1, H), jnp.float32)

    # ---- layer 0: input-side gates hoisted (one M=T matmul per direction) ----
    w0hh_f = enc_whh_ref[0, 0:H, :]
    w0hh_b = enc_whh_ref[1, 0:H, :]
    b0hh_f = enc_b_ref[0, 1:2, :]
    b0hh_b = enc_b_ref[1, 1:2, :]
    gi0_f = (jnp.dot(x_seq, enc_wih_ref[0, 0:H, :], preferred_element_type=jnp.float32)
             + enc_b_ref[0, 0:1, :])                                     # (T, 3H)
    gi0_b = (jnp.dot(x_seq, enc_wih_ref[1, 0:H, :], preferred_element_type=jnp.float32)
             + enc_b_ref[1, 0:1, :])                                     # (T, 3H)

    hf, hb = zero, zero
    for s in range(T):
        hf = _gru_cell(gi0_f[s:s + 1, :], hf, w0hh_f, b0hh_f)
        hb = _gru_cell(gi0_b[T - 1 - s:T - s, :], hb, w0hh_b, b0hh_b)
        l0_scr[s:s + 1, 0:H] = hf
        l0_scr[T - 1 - s:T - s, H:2 * H] = hb
    # decoder_hidden = encoder_hidden[:decoder.n_layers] = [layer0_fwd_final, layer0_bwd_final]
    dec_h0 = hf
    dec_h1 = hb

    # ---- layer 1: input = concat(fwd, bwd) of layer-0 outputs; GI hoisted again ----
    x1 = l0_scr[...]                                                     # (T, 2H) bulk load
    w1hh_f = enc_whh_ref[0, H:2 * H, :]
    w1hh_b = enc_whh_ref[1, H:2 * H, :]
    b1hh_f = enc_b_ref[0, 3:4, :]
    b1hh_b = enc_b_ref[1, 3:4, :]
    gi1_f = (jnp.dot(x1, enc_wih_ref[0, H:3 * H, :], preferred_element_type=jnp.float32)
             + enc_b_ref[0, 2:3, :])                                     # (T, 3H)
    gi1_b = (jnp.dot(x1, enc_wih_ref[1, H:3 * H, :], preferred_element_type=jnp.float32)
             + enc_b_ref[1, 2:3, :])                                     # (T, 3H)

    hf, hb = zero, zero
    for s in range(T):
        hf = _gru_cell(gi1_f[s:s + 1, :], hf, w1hh_f, b1hh_f)
        hb = _gru_cell(gi1_b[T - 1 - s:T - s, :], hb, w1hh_b, b1hh_b)
        l1_scr[s:s + 1, 0:H] = hf
        l1_scr[T - 1 - s:T - s, H:2 * H] = hb

    enc = l1_scr[:, 0:H] + l1_scr[:, H:2 * H]                            # (T, H) encoder outputs
    enc_t = enc.T                                                        # (H, T) hoisted once

    # ======================= decoder: max_length greedy steps =======================
    # hoist every loop-invariant weight read / iota / broadcast above the unrolled loop
    d_wih0 = dec_w_ref[0, 0:H, :]
    d_whh0 = dec_w_ref[0, H:2 * H, :]
    d_wih1 = dec_w_ref[1, 0:H, :]
    d_whh1 = dec_w_ref[1, H:2 * H, :]
    d_bih0 = dec_b_ref[0, 0:1, :]
    d_bhh0 = dec_b_ref[0, 1:2, :]
    d_bih1 = dec_b_ref[1, 0:1, :]
    d_bhh1 = dec_b_ref[1, 1:2, :]
    wc = wc_ref[...]
    bc = bc_ref[...]
    wout = wout_ref[...]
    bout = bout_ref[...]

    t_iota = jax.lax.broadcasted_iota(jnp.int32, (1, T), 1)
    lane_ml = jax.lax.broadcasted_iota(jnp.int32, (1, ML), 1)
    neg = jnp.float32(-1e30)

    # SOS embedding computed in-kernel (onehot @ emb)
    x = jnp.dot((lane_v == SOS_token).astype(jnp.float32), emb,
                preferred_element_type=jnp.float32)                      # (1, H)
    h0, h1 = dec_h0, dec_h1

    tokens = jnp.zeros((1, ML), jnp.int32)
    scores = jnp.zeros((1, ML), jnp.float32)

    for step in range(ML):
        # ---- 2-layer unidirectional GRU step (eval mode, dropout = 0) ----
        gi = jnp.dot(x, d_wih0, preferred_element_type=jnp.float32) + d_bih0
        h0 = _gru_cell(gi, h0, d_whh0, d_bhh0)
        gi = jnp.dot(h0, d_wih1, preferred_element_type=jnp.float32) + d_bih1
        h1 = _gru_cell(gi, h1, d_whh1, d_bhh1)
        rnn_out = h1                                                     # (1, H)

        # ---- Luong "dot" attention (enc pre-transposed; masked past input_length) ----
        att = jnp.dot(rnn_out, enc_t, preferred_element_type=jnp.float32)   # (1, T)
        att = jnp.where(t_iota < length, att, neg)
        m = jnp.max(att, axis=-1, keepdims=True)
        e = jnp.exp(att - m)
        attn = e * pl.reciprocal(jnp.sum(e, axis=-1, keepdims=True), approx=True)
        context = jnp.dot(attn, enc, preferred_element_type=jnp.float32)    # (1, H)

        # ---- concat -> Linear(2H,H) -> tanh ----
        cat = jnp.concatenate([rnn_out, context], axis=-1)                  # (1, 2H)
        concat_out = jnp.tanh(
            jnp.dot(cat, wc, preferred_element_type=jnp.float32) + bc)

        # ---- out Linear(H,V); max/argmax without materializing the softmax ----
        logits = (jnp.dot(concat_out, wout, preferred_element_type=jnp.float32)
                  + bout)                                                    # (1, V)
        lmax = jnp.max(logits, axis=-1, keepdims=True)
        denom = jnp.sum(jnp.exp(logits - lmax), axis=-1, keepdims=True)
        best_p = pl.reciprocal(denom, approx=True)        # == max softmax probability
        idx = jnp.min(jnp.where(logits == lmax, lane_v, V),
                      axis=-1, keepdims=True).astype(jnp.int32)              # first argmax

        tokens = jnp.where(lane_ml == step, idx, tokens)
        scores = jnp.where(lane_ml == step, best_p, scores)

        # ---- on-chip feedback: next-token embedding = onehot(idx) @ emb ----
        x = jnp.dot((lane_v == idx).astype(jnp.float32), emb,
                    preferred_element_type=jnp.float32)                      # (1, H)

    tok_ref[...] = tokens
    score_ref[...] = scores


# ======================= pallas_call wrapper =======================

def _greedy_call(length, seq, p, max_length):
    T = seq.shape[0]
    return pl.pallas_call(
        greedy_kernel,
        out_shape=(jax.ShapeDtypeStruct((1, max_length), jnp.int32),
                   jax.ShapeDtypeStruct((1, max_length), jnp.float32)),
        in_specs=[_SMEM, _SMEM] + [_VMEM] * 10,
        out_specs=(_VMEM, _VMEM),
        scratch_shapes=[pltpu.VMEM((T, 2 * HIDDEN), jnp.float32),
                        pltpu.VMEM((T, 2 * HIDDEN), jnp.float32)],
    )(length, seq,
      p['emb'], p['enc_wih'], p['enc_whh'], p['enc_b'],
      p['dec_w'], p['dec_b'],
      p['wc'], p['bc'], p['wout'], p['bout'])


# ======================= GreedySearchDecoder.forward =======================

@functools.partial(jax.jit, static_argnames=("max_length",))
def greedy_search_decode(params, input_seq, input_length, max_length):
    """input_seq: (T,1) int32, input_length: (1,) int32, max_length: python int.
    Returns (all_tokens (max_length,) int32, all_scores (max_length,) float32)."""
    seq = input_seq[:, 0].astype(jnp.int32)                              # (T,)
    length = jnp.asarray(input_length, jnp.int32).reshape((1,))
    tokens, scores = _greedy_call(length, seq, params, max_length)
    return tokens[0], scores[0]


# ======================= parameter init (deterministic, PyTorch-style) =======================

def _uniform(key, shape, k):
    return jax.random.uniform(key, shape, jnp.float32, minval=-k, maxval=k)


def init_params(key):
    H, V = HIDDEN, VOCAB
    k = 1.0 / jnp.sqrt(H)
    kc = 1.0 / jnp.sqrt(2 * H)
    keys = iter(jax.random.split(key, 16))

    emb = jax.random.normal(next(keys), (V, H), jnp.float32)

    # Encoder (2-layer bidirectional GRU), gate-packed [r|z|n], consolidated per direction:
    #   enc_wih[dir]: rows 0:H  = layer0 Wih^T (H,3H); rows H:3H = layer1 Wih^T (2H,3H)
    #   enc_whh[dir]: rows 0:H  = layer0 Whh^T;        rows H:2H = layer1 Whh^T
    #   enc_b[dir]  : [b0_ih, b0_hh, b1_ih, b1_hh]
    enc_wih = _uniform(next(keys), (2, 3 * H, 3 * H), k)
    enc_whh = _uniform(next(keys), (2, 2 * H, 3 * H), k)
    enc_b = _uniform(next(keys), (2, 4, 3 * H), k)

    # Decoder (2-layer unidirectional GRU), consolidated per layer:
    #   dec_w[l]: rows 0:H = Wih^T; rows H:2H = Whh^T ; dec_b[l]: [bih, bhh]
    dec_w = _uniform(next(keys), (N_LAYERS, 2 * H, 3 * H), k)
    dec_b = _uniform(next(keys), (N_LAYERS, 2, 3 * H), k)

    # concat: Linear(2H, H) transposed; out: Linear(H, V) transposed.
    wc = _uniform(next(keys), (2 * H, H), kc)
    bc = _uniform(next(keys), (1, H), kc)
    wout = _uniform(next(keys), (H, V), k)
    bout = _uniform(next(keys), (1, V), k)

    return dict(emb=emb, enc_wih=enc_wih, enc_whh=enc_whh, enc_b=enc_b,
                dec_w=dec_w, dec_b=dec_b, wc=wc, bc=bc, wout=wout, bout=bout)


if __name__ == "__main__":
    key = jax.random.PRNGKey(0)
    pkey, skey = jax.random.split(key)
    params = init_params(pkey)

    input_seq = jax.random.randint(skey, (SEQ_LEN, 1), 3, VOCAB, dtype=jnp.int32)
    input_length = jnp.array([SEQ_LEN], dtype=jnp.int32)

    all_tokens, all_scores = greedy_search_decode(params, input_seq, input_length, MAX_LENGTH)
    jax.block_until_ready((all_tokens, all_scores))

    assert all_tokens.shape == (MAX_LENGTH,) and all_tokens.dtype == jnp.int32
    assert all_scores.shape == (MAX_LENGTH,) and all_scores.dtype == jnp.float32
    assert bool(jnp.all(all_scores > 0.0) & jnp.all(all_scores <= 1.0 + 1e-3))
    assert bool(jnp.all(all_tokens >= 0) & jnp.all(all_tokens < VOCAB))
    print("KERNEL_OK")
</pallas_src>

<mosaic_0001>
module attributes {stable_mosaic.version = 11 : i64} {
  func.func @greedy_kernel(%arg0: memref<1xi32, #tpu.memory_space<smem>>, %arg1: memref<8xi32, #tpu.memory_space<smem>>, %arg2: memref<64x32xf32, #tpu.memory_space<vmem>>, %arg3: memref<2x96x96xf32, #tpu.memory_space<vmem>>, %arg4: memref<2x64x96xf32, #tpu.memory_space<vmem>>, %arg5: memref<2x4x96xf32, #tpu.memory_space<vmem>>, %arg6: memref<2x64x96xf32, #tpu.memory_space<vmem>>, %arg7: memref<2x2x96xf32, #tpu.memory_space<vmem>>, %arg8: memref<64x32xf32, #tpu.memory_space<vmem>>, %arg9: memref<1x32xf32, #tpu.memory_space<vmem>>, %arg10: memref<32x64xf32, #tpu.memory_space<vmem>>, %arg11: memref<1x64xf32, #tpu.memory_space<vmem>>, %arg12: memref<1x6xi32, #tpu.memory_space<vmem>>, %arg13: memref<1x6xf32, #tpu.memory_space<vmem>>, %arg14: memref<8x64xf32, #tpu.memory_space<vmem>>, %arg15: memref<8x64xf32, #tpu.memory_space<vmem>>) attributes {dimension_semantics = [], scalar_prefetch = 0 : i64, scratch_operands = 2 : i64, tpu.core_type = #tpu.core_type<tc>} {
    %c0 = arith.constant 0 : index
    %0 = memref.load %arg0[%c0] : memref<1xi32, #tpu.memory_space<smem>>
    %c0_0 = arith.constant 0 : index
    %c0_1 = arith.constant 0 : index
    %1 = vector.load %arg2[%c0_0, %c0_1] : memref<64x32xf32, #tpu.memory_space<vmem>>, vector<64x32xf32>
    %2 = tpu.iota {dimensions = array<i32: 1>} : vector<1x64xi32>
    %c0_2 = arith.constant 0 : index
    %3 = memref.load %arg1[%c0_2] : memref<8xi32, #tpu.memory_space<smem>>
    %4 = vector.broadcast %3 : i32 to vector<1x64xi32>
    %5 = arith.cmpi eq, %2, %4 : vector<1x64xi32>
    %6 = arith.extui %5 : vector<1x64xi1> to vector<1x64xi32>
    %7 = arith.sitofp %6 : vector<1x64xi32> to vector<1x64xf32>
    %c1 = arith.constant 1 : index
    %8 = memref.load %arg1[%c1] : memref<8xi32, #tpu.memory_space<smem>>
    %9 = vector.broadcast %8 : i32 to vector<1x64xi32>
    %10 = arith.cmpi eq, %2, %9 : vector<1x64xi32>
    %11 = arith.extui %10 : vector<1x64xi1> to vector<1x64xi32>
    %12 = arith.sitofp %11 : vector<1x64xi32> to vector<1x64xf32>
    %c2 = arith.constant 2 : index
    %13 = memref.load %arg1[%c2] : memref<8xi32, #tpu.memory_space<smem>>
    %14 = vector.broadcast %13 : i32 to vector<1x64xi32>
    %15 = arith.cmpi eq, %2, %14 : vector<1x64xi32>
    %16 = arith.extui %15 : vector<1x64xi1> to vector<1x64xi32>
    %17 = arith.sitofp %16 : vector<1x64xi32> to vector<1x64xf32>
    %c3 = arith.constant 3 : index
    %18 = memref.load %arg1[%c3] : memref<8xi32, #tpu.memory_space<smem>>
    %19 = vector.broadcast %18 : i32 to vector<1x64xi32>
    %20 = arith.cmpi eq, %2, %19 : vector<1x64xi32>
    %21 = arith.extui %20 : vector<1x64xi1> to vector<1x64xi32>
    %22 = arith.sitofp %21 : vector<1x64xi32> to vector<1x64xf32>
    %c4 = arith.constant 4 : index
    %23 = memref.load %arg1[%c4] : memref<8xi32, #tpu.memory_space<smem>>
    %24 = vector.broadcast %23 : i32 to vector<1x64xi32>
    %25 = arith.cmpi eq, %2, %24 : vector<1x64xi32>
    %26 = arith.extui %25 : vector<1x64xi1> to vector<1x64xi32>
    %27 = arith.sitofp %26 : vector<1x64xi32> to vector<1x64xf32>
    %c5 = arith.constant 5 : index
    %28 = memref.load %arg1[%c5] : memref<8xi32, #tpu.memory_space<smem>>
    %29 = vector.broadcast %28 : i32 to vector<1x64xi32>
    %30 = arith.cmpi eq, %2, %29 : vector<1x64xi32>
    %31 = arith.extui %30 : vector<1x64xi1> to vector<1x64xi32>
    %32 = arith.sitofp %31 : vector<1x64xi32> to vector<1x64xf32>
    %c6 = arith.constant 6 : index
    %33 = memref.load %arg1[%c6] : memref<8xi32, #tpu.memory_space<smem>>
    %34 = vector.broadcast %33 : i32 to vector<1x64xi32>
    %35 = arith.cmpi eq, %2, %34 : vector<1x64xi32>
    %36 = arith.extui %35 : vector<1x64xi1> to vector<1x64xi32>
    %37 = arith.sitofp %36 : vector<1x64xi32> to vector<1x64xf32>
    %c7 = arith.constant 7 : index
    %38 = memref.load %arg1[%c7] : memref<8xi32, #tpu.memory_space<smem>>
    %39 = vector.broadcast %38 : i32 to vector<1x64xi32>
    %40 = arith.cmpi eq, %2, %39 : vector<1x64xi32>
    %41 = arith.extui %40 : vector<1x64xi1> to vector<1x64xi32>
    %42 = arith.sitofp %41 : vector<1x64xi32> to vector<1x64xf32>
    %43 = tpu.concatenate %7, %12, %17, %22, %27, %32, %37, %42 in 0 : vector<1x64xf32>, vector<1x64xf32>, vector<1x64xf32>, vector<1x64xf32>, vector<1x64xf32>, vector<1x64xf32>, vector<1x64xf32>, vector<1x64xf32> -> vector<8x64xf32>
    %cst = arith.constant dense<0.000000e+00> : vector<8x32xf32>
    %44 = tpu.matmul %43, %1, %cst {dimension_numbers = #tpu.dot_dimension_numbers<[1], [0], [0], [1], [0, 0, 1, 1], [], []>} : vector<8x64xf32>, vector<64x32xf32>, vector<8x32xf32> -> vector<8x32xf32>
    %cst_3 = arith.constant 0.000000e+00 : f32
    %45 = vector.broadcast %cst_3 : f32 to vector<1x32xf32>
    %c0_4 = arith.constant 0 : index
    %c0_5 = arith.constant 0 : index
    %c0_6 = arith.constant 0 : index
    %46 = vector.load %arg4[%c0_4, %c0_5, %c0_6] : memref<2x64x96xf32, #tpu.memory_space<vmem>>, vector<1x32x96xf32>
    %47 = vector.shape_cast %46 : vector<1x32x96xf32> to vector<32x96xf32>
    %c1_7 = arith.constant 1 : index
    %c0_8 = arith.constant 0 : index
    %c0_9 = arith.constant 0 : index
    %48 = vector.load %arg4[%c1_7, %c0_8, %c0_9] : memref<2x64x96xf32, #tpu.memory_space<vmem>>, vector<1x32x96xf32>
    %49 = vector.shape_cast %48 : vector<1x32x96xf32> to vector<32x96xf32>
    %c0_10 = arith.constant 0 : index
    %c1_11 = arith.constant 1 : index
    %c0_12 = arith.constant 0 : index
    %50 = vector.load %arg5[%c0_10, %c1_11, %c0_12] : memref<2x4x96xf32, #tpu.memory_space<vmem>>, vector<1x1x96xf32>
    %51 = vector.shape_cast %50 : vector<1x1x96xf32> to vector<1x96xf32>
    %c1_13 = arith.constant 1 : index
    %c1_14 = arith.constant 1 : index
    %c0_15 = arith.constant 0 : index
    %52 = vector.load %arg5[%c1_13, %c1_14, %c0_15] : memref<2x4x96xf32, #tpu.memory_space<vmem>>, vector<1x1x96xf32>
    %53 = vector.shape_cast %52 : vector<1x1x96xf32> to vector<1x96xf32>
    %c0_16 = arith.constant 0 : index
    %c0_17 = arith.constant 0 : index
    %c0_18 = arith.constant 0 : index
    %54 = vector.load %arg3[%c0_16, %c0_17, %c0_18] : memref<2x96x96xf32, #tpu.memory_space<vmem>>, vector<1x32x96xf32>
    %55 = vector.shape_cast %54 : vector<1x32x96xf32> to vector<32x96xf32>
    %cst_19 = arith.constant dense<0.000000e+00> : vector<8x96xf32>
    %56 = tpu.matmul %44, %55, %cst_19 {dimension_numbers = #tpu.dot_dimension_numbers<[1], [0], [0], [1], [0, 0, 1, 1], [], []>} : vector<8x32xf32>, vector<32x96xf32>, vector<8x96xf32> -> vector<8x96xf32>
    %c0_20 = arith.constant 0 : index
    %c0_21 = arith.constant 0 : index
    %c0_22 = arith.constant 0 : index
    %57 = vector.load %arg5[%c0_20, %c0_21, %c0_22] : memref<2x4x96xf32, #tpu.memory_space<vmem>>, vector<1x1x96xf32>
    %58 = vector.shape_cast %57 : vector<1x1x96xf32> to vector<1x96xf32>
    %59 = vector.broadcast %58 : vector<1x96xf32> to vector<8x96xf32>
    %60 = arith.addf %56, %59 : vector<8x96xf32>
    %c1_23 = arith.constant 1 : index
    %c0_24 = arith.constant 0 : index
    %c0_25 = arith.constant 0 : index
    %61 = vector.load %arg3[%c1_23, %c0_24, %c0_25] : memref<2x96x96xf32, #tpu.memory_space<vmem>>, vector<1x32x96xf32>
    %62 = vector.shape_cast %61 : vector<1x32x96xf32> to vector<32x96xf32>
    %cst_26 = arith.constant dense<0.000000e+00> : vector<8x96xf32>
    %63 = tpu.matmul %44, %62, %cst_26 {dimension_numbers = #tpu.dot_dimension_numbers<[1], [0], [0], [1], [0, 0, 1, 1], [], []>} : vector<8x32xf32>, vector<32x96xf32>, vector<8x96xf32> -> vector<8x96xf32>
    %c1_27 = arith.constant 1 : index
    %c0_28 = arith.constant 0 : index
    %c0_29 = arith.constant 0 : index
    %64 = vector.load %arg5[%c1_27, %c0_28, %c0_29] : memref<2x4x96xf32, #tpu.memory_space<vmem>>, vector<1x1x96xf32>
    %65 = vector.shape_cast %64 : vector<1x1x96xf32> to vector<1x96xf32>
    %66 = vector.broadcast %65 : vector<1x96xf32> to vector<8x96xf32>
    %67 = arith.addf %63, %66 : vector<8x96xf32>
    %68 = vector.extract_strided_slice %60 {offsets = [0, 0], sizes = [1, 96], strides = [1, 1]} : vector<8x96xf32> to vector<1x96xf32>
    %cst_30 = arith.constant dense<0.000000e+00> : vector<1x96xf32>
    %69 = tpu.matmul %45, %47, %cst_30 {dimension_numbers = #tpu.dot_dimension_numbers<[1], [0], [0], [1], [0, 0, 1, 1], [], []>} : vector<1x32xf32>, vector<32x96xf32>, vector<1x96xf32> -> vector<1x96xf32>
    %70 = arith.addf %69, %51 : vector<1x96xf32>
    %71 = vector.extract_strided_slice %68 {offsets = [0, 0], sizes = [1, 32], strides = [1, 1]} : vector<1x96xf32> to vector<1x32xf32>
    %72 = vector.extract_strided_slice %70 {offsets = [0, 0], sizes = [1, 32], strides = [1, 1]} : vector<1x96xf32> to vector<1x32xf32>
    %73 = arith.addf %71, %72 : vector<1x32xf32>
    %74 = arith.negf %73 : vector<1x32xf32>
    %75 = math.exp %74 : vector<1x32xf32>
    %cst_31 = arith.constant 1.000000e+00 : f32
    %76 = vector.broadcast %cst_31 : f32 to vector<1x32xf32>
    %77 = arith.addf %76, %75 : vector<1x32xf32>
    %78 = arith.divf %76, %77 : vector<1x32xf32>
    %79 = vector.extract_strided_slice %68 {offsets = [0, 32], sizes = [1, 32], strides = [1, 1]} : vector<1x96xf32> to vector<1x32xf32>
    %80 = vector.extract_strided_slice %70 {offsets = [0, 32], sizes = [1, 32], strides = [1, 1]} : vector<1x96xf32> to vector<1x32xf32>
    %81 = arith.addf %79, %80 : vector<1x32xf32>
    %82 = arith.negf %81 : vector<1x32xf32>
    %83 = math.exp %82 : vector<1x32xf32>
    %cst_32 = arith.constant 1.000000e+00 : f32
    %84 = vector.broadcast %cst_32 : f32 to vector<1x32xf32>
    %85 = arith.addf %84, %83 : vector<1x32xf32>
    %86 = arith.divf %84, %85 : vector<1x32xf32>
    %87 = vector.extract_strided_slice %68 {offsets = [0, 64], sizes = [1, 32], strides = [1, 1]} : vector<1x96xf32> to vector<1x32xf32>
    %88 = vector.extract_strided_slice %70 {offsets = [0, 64], sizes = [1, 32], strides = [1, 1]} : vector<1x96xf32> to vector<1x32xf32>
    %89 = arith.mulf %78, %88 : vector<1x32xf32>
    %90 = arith.addf %87, %89 : vector<1x32xf32>
    %91 = math.tanh %90 : vector<1x32xf32>
    %cst_33 = arith.constant 1.000000e+00 : f32
    %92 = vector.broadcast %cst_33 : f32 to vector<1x32xf32>
    %93 = arith.subf %92, %86 : vector<1x32xf32>
    %94 = arith.mulf %93, %91 : vector<1x32xf32>
    %95 = arith.mulf %86, %45 : vector<1x32xf32>
    %96 = arith.addf %94, %95 : vector<1x32xf32>
    %97 = vector.extract_strided_slice %67 {offsets = [7, 0], sizes = [1, 96], strides = [1, 1]} : vector<8x96xf32> to vector<1x96xf32>
    %cst_34 = arith.constant dense<0.000000e+00> : vector<1x96xf32>
    %98 = tpu.matmul %45, %49, %cst_34 {dimension_numbers = #tpu.dot_dimension_numbers<[1], [0], [0], [1], [0, 0, 1, 1], [], []>} : vector<1x32xf32>, vector<32x96xf32>, vector<1x96xf32> -> vector<1x96xf32>
    %99 = arith.addf %98, %53 : vector<1x96xf32>
    %100 = vector.extract_strided_slice %97 {offsets = [0, 0], sizes = [1, 32], strides = [1, 1]} : vector<1x96xf32> to vector<1x32xf32>
    %101 = vector.extract_strided_slice %99 {offsets = [0, 0], sizes = [1, 32], strides = [1, 1]} : vector<1x96xf32> to vector<1x32xf32>
    %102 = arith.addf %100, %101 : vector<1x32xf32>
    %103 = arith.negf %102 : vector<1x32xf32>
    %104 = math.exp %103 : vector<1x32xf32>
    %cst_35 = arith.constant 1.000000e+00 : f32
    %105 = vector.broadcast %cst_35 : f32 to vector<1x32xf32>
    %106 = arith.addf %105, %104 : vector<1x32xf32>
    %107 = arith.divf %105, %106 : vector<1x32xf32>
    %108 = vector.extract_strided_slice %97 {offsets = [0, 32], sizes = [1, 32], strides = [1, 1]} : vector<1x96xf32> to vector<1x32xf32>
    %109 = vector.extract_strided_slice %99 {offsets = [0, 32], sizes = [1, 32], strides = [1, 1]} : vector<1x96xf32> to vector<1x32xf32>
    %110 = arith.addf %108, %109 : vector<1x32xf32>
    %111 = arith.negf %110 : vector<1x32xf32>
    %112 = math.exp %111 : vector<1x32xf32>
    %cst_36 = arith.constant 1.000000e+00 : f32
    %113 = vector.broadcast %cst_36 : f32 to vector<1x32xf32>
    %114 = arith.addf %113, %112 : vector<1x32xf32>
    %115 = arith.divf %113, %114 : vector<1x32xf32>
    %116 = vector.extract_strided_slice %97 {offsets = [0, 64], sizes = [1, 32], strides = [1, 1]} : vector<1x96xf32> to vector<1x32xf32>
    %117 = vector.extract_strided_slice %99 {offsets = [0, 64], sizes = [1, 32], strides = [1, 1]} : vector<1x96xf32> to vector<1x32xf32>
    %118 = arith.mulf %107, %117 : vector<1x32xf32>
    %119 = arith.addf %116, %118 : vector<1x32xf32>
    %120 = math.tanh %119 : vector<1x32xf32>
    %cst_37 = arith.constant 1.000000e+00 : f32
    %121 = vector.broadcast %cst_37 : f32 to vector<1x32xf32>
    %122 = arith.subf %121, %115 : vector<1x32xf32>
    %123 = arith.mulf %122, %120 : vector<1x32xf32>
    %124 = arith.mulf %115, %45 : vector<1x32xf32>
    %125 = arith.addf %123, %124 : vector<1x32xf32>
    %c0_38 = arith.constant 0 : index
    %c0_39 = arith.constant 0 : index
    %126 = vector.load %arg14[%c0_38, %c0_39] : memref<8x64xf32, #tpu.memory_space<vmem>>, vector<1x32xf32>
    tpu.vector_store %arg14[%c0_38, %c0_39], %96 {strides = array<i32>} : memref<8x64xf32, #tpu.memory_space<vmem>>, vector<1x32xf32>,
    %c7_40 = arith.constant 7 : index
    %c32 = arith.constant 32 : index
    %127 = vector.load %arg14[%c7_40, %c32] : memref<8x64xf32, #tpu.memory_space<vmem>>, vector<1x32xf32>
    tpu.vector_store %arg14[%c7_40, %c32], %125 {strides = array<i32>} : memref<8x64xf32, #tpu.memory_space<vmem>>, vector<1x32xf32>,
    %128 = vector.extract_strided_slice %60 {offsets = [1, 0], sizes = [1, 96], strides = [1, 1]} : vector<8x96xf32> to vector<1x96xf32>
    %cst_41 = arith.constant dense<0.000000e+00> : vector<1x96xf32>
    %129 = tpu.matmul %96, %47, %cst_41 {dimension_numbers = #tpu.dot_dimension_numbers<[1], [0], [0], [1], [0, 0, 1, 1], [], []>} : vector<1x32xf32>, vector<32x96xf32>, vector<1x96xf32> -> vector<1x96xf32>
    %130 = arith.addf %129, %51 : vector<1x96xf32>
    %131 = vector.extract_strided_slice %128 {offsets = [0, 0], sizes = [1, 32], strides = [1, 1]} : vector<1x96xf32> to vector<1x32xf32>
    %132 = vector.extract_strided_slice %130 {offsets = [0, 0], sizes = [1, 32], strides = [1, 1]} : vector<1x96xf32> to vector<1x32xf32>
    %133 = arith.addf %131, %132 : vector<1x32xf32>
    %134 = arith.negf %133 : vector<1x32xf32>
    %135 = math.exp %134 : vector<1x32xf32>
    %cst_42 = arith.constant 1.000000e+00 : f32
    %136 = vector.broadcast %cst_42 : f32 to vector<1x32xf32>
    %137 = arith.addf %136, %135 : vector<1x32xf32>
    %138 = arith.divf %136, %137 : vector<1x32xf32>
    %139 = vector.extract_strided_slice %128 {offsets = [0, 32], sizes = [1, 32], strides = [1, 1]} : vector<1x96xf32> to vector<1x32xf32>
    %140 = vector.extract_strided_slice %130 {offsets = [0, 32], sizes = [1, 32], strides = [1, 1]} : vector<1x96xf32> to vector<1x32xf32>
    %141 = arith.addf %139, %140 : vector<1x32xf32>
    %142 = arith.negf %141 : vector<1x32xf32>
    %143 = math.exp %142 : vector<1x32xf32>
    %cst_43 = arith.constant 1.000000e+00 : f32
    %144 = vector.broadcast %cst_43 : f32 to vector<1x32xf32>
    %145 = arith.addf %144, %143 : vector<1x32xf32>
    %146 = arith.divf %144, %145 : vector<1x32xf32>
    %147 = vector.extract_strided_slice %128 {offsets = [0, 64], sizes = [1, 32], strides = [1, 1]} : vector<1x96xf32> to vector<1x32xf32>
    %148 = vector.extract_strided_slice %130 {offsets = [0, 64], sizes = [1, 32], strides = [1, 1]} : vector<1x96xf32> to vector<1x32xf32>
    %149 = arith.mulf %138, %148 : vector<1x32xf32>
    %150 = arith.addf %147, %149 : vector<1x32xf32>
    %151 = math.tanh %150 : vector<1x32xf32>
    %cst_44 = arith.constant 1.000000e+00 : f32
    %152 = vector.broadcast %cst_44 : f32 to vector<1x32xf32>
    %153 = arith.subf %152, %146 : vector<1x32xf32>
    %154 = arith.mulf %153, %151 : vector<1x32xf32>
    %155 = arith.mulf %146, %96 : vector<1x32xf32>
    %156 = arith.addf %154, %155 : vector<1x32xf32>
    %157 = vector.extract_strided_slice %67 {offsets = [6, 0], sizes = [1, 96], strides = [1, 1]} : vector<8x96xf32> to vector<1x96xf32>
    %cst_45 = arith.constant dense<0.000000e+00> : vector<1x96xf32>
    %158 = tpu.matmul %125, %49, %cst_45 {dimension_numbers = #tpu.dot_dimension_numbers<[1], [0], [0], [1], [0, 0, 1, 1], [], []>} : vector<1x32xf32>, vector<32x96xf32>, vector<1x96xf32> -> vector<1x96xf32>
    %159 = arith.addf %158, %53 : vector<1x96xf32>
    %160 = vector.extract_strided_slice %157 {offsets = [0, 0], sizes = [1, 32], strides = [1, 1]} : vector<1x96xf32> to vector<1x32xf32>
    %161 = vector.extract_strided_slice %159 {offsets = [0, 0], sizes = [1, 32], strides = [1, 1]} : vector<1x96xf32> to vector<1x32xf32>
    %162 = arith.addf %160, %161 : vector<1x32xf32>
    %163 = arith.negf %162 : vector<1x32xf32>
    %164 = math.exp %163 : vector<1x32xf32>
    %cst_46 = arith.constant 1.000000e+00 : f32
    %165 = vector.broadcast %cst_46 : f32 to vector<1x32xf32>
    %166 = arith.addf %165, %164 : vector<1x32xf32>
    %167 = arith.divf %165, %166 : vector<1x32xf32>
    %168 = vector.extract_strided_slice %157 {offsets = [0, 32], sizes = [1, 32], strides = [1, 1]} : vector<1x96xf32> to vector<1x32xf32>
    %169 = vector.extract_strided_slice %159 {offsets = [0, 32], sizes = [1, 32], strides = [1, 1]} : vector<1x96xf32> to vector<1x32xf32>
    %170 = arith.addf %168, %169 : vector<1x32xf32>
    %171 = arith.negf %170 : vector<1x32xf32>
    %172 = math.exp %171 : vector<1x32xf32>
    %cst_47 = arith.constant 1.000000e+00 : f32
    %173 = vector.broadcast %cst_47 : f32 to vector<1x32xf32>
    %174 = arith.addf %173, %172 : vector<1x32xf32>
    %175 = arith.divf %173, %174 : vector<1x32xf32>
    %176 = vector.extract_strided_slice %157 {offsets = [0, 64], sizes = [1, 32], strides = [1, 1]} : vector<1x96xf32> to vector<1x32xf32>
    %177 = vector.extract_strided_slice %159 {offsets = [0, 64], sizes = [1, 32], strides = [1, 1]} : vector<1x96xf32> to vector<1x32xf32>
    %178 = arith.mulf %167, %177 : vector<1x32xf32>
    %179 = arith.addf %176, %178 : vector<1x32xf32>
    %180 = math.tanh %179 : vector<1x32xf32>
    %cst_48 = arith.constant 1.000000e+00 : f32
    %181 = vector.broadcast %cst_48 : f32 to vector<1x32xf32>
    %182 = arith.subf %181, %175 : vector<1x32xf32>
    %183 = arith.mulf %182, %180 : vector<1x32xf32>
    %184 = arith.mulf %175, %125 : vector<1x32xf32>
    %185 = arith.addf %183, %184 : vector<1x32xf32>
    %c1_49 = arith.constant 1 : index
    %c0_50 = arith.constant 0 : index
    %186 = vector.load %arg14[%c1_49, %c0_50] : memref<8x64xf32, #tpu.memory_space<vmem>>, vector<1x32xf32>
    tpu.vector_store %arg14[%c1_49, %c0_50], %156 {strides = array<i32>} : memref<8x64xf32, #tpu.memory_space<vmem>>, vector<1x32xf32>,
    %c6_51 = arith.constant 6 : index
    %c32_52 = arith.constant 32 : index
    %187 = vector.load %arg14[%c6_51, %c32_52] : memref<8x64xf32, #tpu.memory_space<vmem>>, vector<1x32xf32>
    tpu.vector_store %arg14[%c6_51, %c32_52], %185 {strides = array<i32>} : memref<8x64xf32, #tpu.memory_space<vmem>>, vector<1x32xf32>,
    %188 = vector.extract_strided_slice %60 {offsets = [2, 0], sizes = [1, 96], strides = [1, 1]} : vector<8x96xf32> to vector<1x96xf32>
    %cst_53 = arith.constant dense<0.000000e+00> : vector<1x96xf32>
    %189 = tpu.matmul %156, %47, %cst_53 {dimension_numbers = #tpu.dot_dimension_numbers<[1], [0], [0], [1], [0, 0, 1, 1], [], []>} : vector<1x32xf32>, vector<32x96xf32>, vector<1x96xf32> -> vector<1x96xf32>
    %190 = arith.addf %189, %51 : vector<1x96xf32>
    %191 = vector.extract_strided_slice %188 {offsets = [0, 0], sizes = [1, 32], strides = [1, 1]} : vector<1x96xf32> to vector<1x32xf32>
    %192 = vector.extract_strided_slice %190 {offsets = [0, 0], sizes = [1, 32], strides = [1, 1]} : vector<1x96xf32> to vector<1x32xf32>
    %193 = arith.addf %191, %192 : vector<1x32xf32>
    %194 = arith.negf %193 : vector<1x32xf32>
    %195 = math.exp %194 : vector<1x32xf32>
    %cst_54 = arith.constant 1.000000e+00 : f32
    %196 = vector.broadcast %cst_54 : f32 to vector<1x32xf32>
    %197 = arith.addf %196, %195 : vector<1x32xf32>
    %198 = arith.divf %196, %197 : vector<1x32xf32>
    %199 = vector.extract_strided_slice %188 {offsets = [0, 32], sizes = [1, 32], strides = [1, 1]} : vector<1x96xf32> to vector<1x32xf32>
    %200 = vector.extract_strided_slice %190 {offsets = [0, 32], sizes = [1, 32], strides = [1, 1]} : vector<1x96xf32> to vector<1x32xf32>
    %201 = arith.addf %199, %200 : vector<1x32xf32>
    %202 = arith.negf %201 : vector<1x32xf32>
    %203 = math.exp %202 : vector<1x32xf32>
    %cst_55 = arith.constant 1.000000e+00 : f32
    %204 = vector.broadcast %cst_55 : f32 to vector<1x32xf32>
    %205 = arith.addf %204, %203 : vector<1x32xf32>
    %206 = arith.divf %204, %205 : vector<1x32xf32>
    %207 = vector.extract_strided_slice %188 {offsets = [0, 64], sizes = [1, 32], strides = [1, 1]} : vector<1x96xf32> to vector<1x32xf32>
    %208 = vector.extract_strided_slice %190 {offsets = [0, 64], sizes = [1, 32], strides = [1, 1]} : vector<1x96xf32> to vector<1x32xf32>
    %209 = arith.mulf %198, %208 : vector<1x32xf32>
    %210 = arith.addf %207, %209 : vector<1x32xf32>
    %211 = math.tanh %210 : vector<1x32xf32>
    %cst_56 = arith.constant 1.000000e+00 : f32
    %212 = vector.broadcast %cst_56 : f32 to vector<1x32xf32>
    %213 = arith.subf %212, %206 : vector<1x32xf32>
    %214 = arith.mulf %213, %211 : vector<1x32xf32>
    %215 = arith.mulf %206, %156 : vector<1x32xf32>
    %216 = arith.addf %214, %215 : vector<1x32xf32>
    %217 = vector.extract_strided_slice %67 {offsets = [5, 0], sizes = [1, 96], strides = [1, 1]} : vector<8x96xf32> to vector<1x96xf32>
    %cst_57 = arith.constant dense<0.000000e+00> : vector<1x96xf32>
    %218 = tpu.matmul %185, %49, %cst_57 {dimension_numbers = #tpu.dot_dimension_numbers<[1], [0], [0], [1], [0, 0, 1, 1], [], []>} : vector<1x32xf32>, vector<32x96xf32>, vector<1x96xf32> -> vector<1x96xf32>
    %219 = arith.addf %218, %53 : vector<1x96xf32>
    %220 = vector.extract_strided_slice %217 {offsets = [0, 0], sizes = [1, 32], strides = [1, 1]} : vector<1x96xf32> to vector<1x32xf32>
    %221 = vector.extract_strided_slice %219 {offsets = [0, 0], sizes = [1, 32], strides = [1, 1]} : vector<1x96xf32> to vector<1x32xf32>
    %222 = arith.addf %220, %221 : vector<1x32xf32>
    %223 = arith.negf %222 : vector<1x32xf32>
    %224 = math.exp %223 : vector<1x32xf32>
    %cst_58 = arith.constant 1.000000e+00 : f32
    %225 = vector.broadcast %cst_58 : f32 to vector<1x32xf32>
    %226 = arith.addf %225, %224 : vector<1x32xf32>
    %227 = arith.divf %225, %226 : vector<1x32xf32>
    %228 = vector.extract_strided_slice %217 {offsets = [0, 32], sizes = [1, 32], strides = [1, 1]} : vector<1x96xf32> to vector<1x32xf32>
    %229 = vector.extract_strided_slice %219 {offsets = [0, 32], sizes = [1, 32], strides = [1, 1]} : vector<1x96xf32> to vector<1x32xf32>
    %230 = arith.addf %228, %229 : vector<1x32xf32>
    %231 = arith.negf %230 : vector<1x32xf32>
    %232 = math.exp %231 : vector<1x32xf32>
    %cst_59 = arith.constant 1.000000e+00 : f32
    %233 = vector.broadcast %cst_59 : f32 to vector<1x32xf32>
    %234 = arith.addf %233, %232 : vector<1x32xf32>
    %235 = arith.divf %233, %234 : vector<1x32xf32>
    %236 = vector.extract_strided_slice %217 {offsets = [0, 64], sizes = [1, 32], strides = [1, 1]} : vector<1x96xf32> to vector<1x32xf32>
    %237 = vector.extract_strided_slice %219 {offsets = [0, 64], sizes = [1, 32], strides = [1, 1]} : vector<1x96xf32> to vector<1x32xf32>
    %238 = arith.mulf %227, %237 : vector<1x32xf32>
    %239 = arith.addf %236, %238 : vector<1x32xf32>
    %240 = math.tanh %239 : vector<1x32xf32>
    %cst_60 = arith.constant 1.000000e+00 : f32
    %241 = vector.broadcast %cst_60 : f32 to vector<1x32xf32>
    %242 = arith.subf %241, %235 : vector<1x32xf32>
    %243 = arith.mulf %242, %240 : vector<1x32xf32>
    %244 = arith.mulf %235, %185 : vector<1x32xf32>
    %245 = arith.addf %243, %244 : vector<1x32xf32>
    %c2_61 = arith.constant 2 : index
    %c0_62 = arith.constant 0 : index
    %246 = vector.load %arg14[%c2_61, %c0_62] : memref<8x64xf32, #tpu.memory_space<vmem>>, vector<1x32xf32>
    tpu.vector_store %arg14[%c2_61, %c0_62], %216 {strides = array<i32>} : memref<8x64xf32, #tpu.memory_space<vmem>>, vector<1x32xf32>,
    %c5_63 = arith.constant 5 : index
    %c32_64 = arith.constant 32 : index
    %247 = vector.load %arg14[%c5_63, %c32_64] : memref<8x64xf32, #tpu.memory_space<vmem>>, vector<1x32xf32>
    tpu.vector_store %arg14[%c5_63, %c32_64], %245 {strides = array<i32>} : memref<8x64xf32, #tpu.memory_space<vmem>>, vector<1x32xf32>,
    %248 = vector.extract_strided_slice %60 {offsets = [3, 0], sizes = [1, 96], strides = [1, 1]} : vector<8x96xf32> to vector<1x96xf32>
    %cst_65 = arith.constant dense<0.000000e+00> : vector<1x96xf32>
    %249 = tpu.matmul %216, %47, %cst_65 {dimension_numbers = #tpu.dot_dimension_numbers<[1], [0], [0], [1], [0, 0, 1, 1], [], []>} : vector<1x32xf32>, vector<32x96xf32>, vector<1x96xf32> -> vector<1x96xf32>
    %250 = arith.addf %249, %51 : vector<1x96xf32>
    %251 = vector.extract_strided_slice %248 {offsets = [0, 0], sizes = [1, 32], strides = [1, 1]} : vector<1x96xf32> to vector<1x32xf32>
    %252 = vector.extract_strided_slice %250 {offsets = [0, 0], sizes = [1, 32], strides = [1, 1]} : vector<1x96xf32> to vector<1x32xf32>
    %253 = arith.addf %251, %252 : vector<1x32xf32>
    %254 = arith.negf %253 : vector<1x32xf32>
    %255 = math.exp %254 : vector<1x32xf32>
    %cst_66 = arith.constant 1.000000e+00 : f32
    %256 = vector.broadcast %cst_66 : f32 to vector<1x32xf32>
    %257 = arith.addf %256, %255 : vector<1x32xf32>
    %258 = arith.divf %256, %257 : vector<1x32xf32>
    %259 = vector.extract_strided_slice %248 {offsets = [0, 32], sizes = [1, 32], strides = [1, 1]} : vector<1x96xf32> to vector<1x32xf32>
    %260 = vector.extract_strided_slice %250 {offsets = [0, 32], sizes = [1, 32], strides = [1, 1]} : vector<1x96xf32> to vector<1x32xf32>
    %261 = arith.addf %259, %260 : vector<1x32xf32>
    %262 = arith.negf %261 : vector<1x32xf32>
    %263 = math.exp %262 : vector<1x32xf32>
    %cst_67 = arith.constant 1.000000e+00 : f32
    %264 = vector.broadcast %cst_67 : f32 to vector<1x32xf32>
    %265 = arith.addf %264, %263 : vector<1x32xf32>
    %266 = arith.divf %264, %265 : vector<1x32xf32>
    %267 = vector.extract_strided_slice %248 {offsets = [0, 64], sizes = [1, 32], strides = [1, 1]} : vector<1x96xf32> to vector<1x32xf32>
    %268 = vector.extract_strided_slice %250 {offsets = [0, 64], sizes = [1, 32], strides = [1, 1]} : vector<1x96xf32> to vector<1x32xf32>
    %269 = arith.mulf %258, %268 : vector<1x32xf32>
    %270 = arith.addf %267, %269 : vector<1x32xf32>
    %271 = math.tanh %270 : vector<1x32xf32>
    %cst_68 = arith.constant 1.000000e+00 : f32
    %272 = vector.broadcast %cst_68 : f32 to vector<1x32xf32>
    %273 = arith.subf %272, %266 : vector<1x32xf32>
    %274 = arith.mulf %273, %271 : vector<1x32xf32>
    %275 = arith.mulf %266, %216 : vector<1x32xf32>
    %276 = arith.addf %274, %275 : vector<1x32xf32>
    %277 = vector.extract_strided_slice %67 {offsets = [4, 0], sizes = [1, 96], strides = [1, 1]} : vector<8x96xf32> to vector<1x96xf32>
    %cst_69 = arith.constant dense<0.000000e+00> : vector<1x96xf32>
    %278 = tpu.matmul %245, %49, %cst_69 {dimension_numbers = #tpu.dot_dimension_numbers<[1], [0], [0], [1], [0, 0, 1, 1], [], []>} : vector<1x32xf32>, vector<32x96xf32>, vector<1x96xf32> -> vector<1x96xf32>
    %279 = arith.addf %278, %53 : vector<1x96xf32>
    %280 = vector.extract_strided_slice %277 {offsets = [0, 0], sizes = [1, 32], strides = [1, 1]} : vector<1x96xf32> to vector<1x32xf32>
    %281 = vector.extract_strided_slice %279 {offsets = [0, 0], sizes = [1, 32], strides = [1, 1]} : vector<1x96xf32> to vector<1x32xf32>
    %282 = arith.addf %280, %281 : vector<1x32xf32>
    %283 = arith.negf %282 : vector<1x32xf32>
    %284 = math.exp %283 : vector<1x32xf32>
    %cst_70 = arith.constant 1.000000e+00 : f32
    %285 = vector.broadcast %cst_70 : f32 to vector<1x32xf32>
    %286 = arith.addf %285, %284 : vector<1x32xf32>
    %287 = arith.divf %285, %286 : vector<1x32xf32>
    %288 = vector.extract_strided_slice %277 {offsets = [0, 32], sizes = [1, 32], strides = [1, 1]} : vector<1x96xf32> to vector<1x32xf32>
    %289 = vector.extract_strided_slice %279 {offsets = [0, 32], sizes = [1, 32], strides = [1, 1]} : vector<1x96xf32> to vector<1x32xf32>
    %290 = arith.addf %288, %289 : vector<1x32xf32>
    %291 = arith.negf %290 : vector<1x32xf32>
    %292 = math.exp %291 : vector<1x32xf32>
    %cst_71 = arith.constant 1.000000e+00 : f32
    %293 = vector.broadcast %cst_71 : f32 to vector<1x32xf32>
    %294 = arith.addf %293, %292 : vector<1x32xf32>
    %295 = arith.divf %293, %294 : vector<1x32xf32>
    %296 = vector.extract_strided_slice %277 {offsets = [0, 64], sizes = [1, 32], strides = [1, 1]} : vector<1x96xf32> to vector<1x32xf32>
    %297 = vector.extract_strided_slice %279 {offsets = [0, 64], sizes = [1, 32], strides = [1, 1]} : vector<1x96xf32> to vector<1x32xf32>
    %298 = arith.mulf %287, %297 : vector<1x32xf32>
    %299 = arith.addf %296, %298 : vector<1x32xf32>
    %300 = math.tanh %299 : vector<1x32xf32>
    %cst_72 = arith.constant 1.000000e+00 : f32
    %301 = vector.broadcast %cst_72 : f32 to vector<1x32xf32>
    %302 = arith.subf %301, %295 : vector<1x32xf32>
    %303 = arith.mulf %302, %300 : vector<1x32xf32>
    %304 = arith.mulf %295, %245 : vector<1x32xf32>
    %305 = arith.addf %303, %304 : vector<1x32xf32>
    %c3_73 = arith.constant 3 : index
    %c0_74 = arith.constant 0 : index
    %306 = vector.load %arg14[%c3_73, %c0_74] : memref<8x64xf32, #tpu.memory_space<vmem>>, vector<1x32xf32>
    tpu.vector_store %arg14[%c3_73, %c0_74], %276 {strides = array<i32>} : memref<8x64xf32, #tpu.memory_space<vmem>>, vector<1x32xf32>,
    %c4_75 = arith.constant 4 : index
    %c32_76 = arith.constant 32 : index
    %307 = vector.load %arg14[%c4_75, %c32_76] : memref<8x64xf32, #tpu.memory_space<vmem>>, vector<1x32xf32>
    tpu.vector_store %arg14[%c4_75, %c32_76], %305 {strides = array<i32>} : memref<8x64xf32, #tpu.memory_space<vmem>>, vector<1x32xf32>,
    %308 = vector.extract_strided_slice %60 {offsets = [4, 0], sizes = [1, 96], strides = [1, 1]} : vector<8x96xf32> to vector<1x96xf32>
    %cst_77 = arith.constant dense<0.000000e+00> : vector<1x96xf32>
    %309 = tpu.matmul %276, %47, %cst_77 {dimension_numbers = #tpu.dot_dimension_numbers<[1], [0], [0], [1], [0, 0, 1, 1], [], []>} : vector<1x32xf32>, vector<32x96xf32>, vector<1x96xf32> -> vector<1x96xf32>
    %310 = arith.addf %309, %51 : vector<1x96xf32>
    %311 = vector.extract_strided_slice %308 {offsets = [0, 0], sizes = [1, 32], strides = [1, 1]} : vector<1x96xf32> to vector<1x32xf32>
    %312 = vector.extract_strided_slice %310 {offsets = [0, 0], sizes = [1, 32], strides = [1, 1]} : vector<1x96xf32> to vector<1x32xf32>
    %313 = arith.addf %311, %312 : vector<1x32xf32>
    %314 = arith.negf %313 : vector<1x32xf32>
    %315 = math.exp %314 : vector<1x32xf32>
    %cst_78 = arith.constant 1.000000e+00 : f32
    %316 = vector.broadcast %cst_78 : f32 to vector<1x32xf32>
    %317 = arith.addf %316, %315 : vector<1x32xf32>
    %318 = arith.divf %316, %317 : vector<1x32xf32>
    %319 = vector.extract_strided_slice %308 {offsets = [0, 32], sizes = [1, 32], strides = [1, 1]} : vector<1x96xf32> to vector<1x32xf32>
    %320 = vector.extract_strided_slice %310 {offsets = [0, 32], sizes = [1, 32], strides = [1, 1]} : vector<1x96xf32> to vector<1x32xf32>
    %321 = arith.addf %319, %320 : vector<1x32xf32>
    %322 = arith.negf %321 : vector<1x32xf32>
    %323 = math.exp %322 : vector<1x32xf32>
    %cst_79 = arith.constant 1.000000e+00 : f32
    %324 = vector.broadcast %cst_79 : f32 to vector<1x32xf32>
    %325 = arith.addf %324, %323 : vector<1x32xf32>
    %326 = arith.divf %324, %325 : vector<1x32xf32>
    %327 = vector.extract_strided_slice %308 {offsets = [0, 64], sizes = [1, 32], strides = [1, 1]} : vector<1x96xf32> to vector<1x32xf32>
    %328 = vector.extract_strided_slice %310 {offsets = [0, 64], sizes = [1, 32], strides = [1, 1]} : vector<1x96xf32> to vector<1x32xf32>
    %329 = arith.mulf %318, %328 : vector<1x32xf32>
    %330 = arith.addf %327, %329 : vector<1x32xf32>
    %331 = math.tanh %330 : vector<1x32xf32>
    %cst_80 = arith.constant 1.000000e+00 : f32
    %332 = vector.broadcast %cst_80 : f32 to vector<1x32xf32>
    %333 = arith.subf %332, %326 : vector<1x32xf32>
    %334 = arith.mulf %333, %331 : vector<1x32xf32>
    %335 = arith.mulf %326, %276 : vector<1x32xf32>
    %336 = arith.addf %334, %335 : vector<1x32xf32>
    %337 = vector.extract_strided_slice %67 {offsets = [3, 0], sizes = [1, 96], strides = [1, 1]} : vector<8x96xf32> to vector<1x96xf32>
    %cst_81 = arith.constant dense<0.000000e+00> : vector<1x96xf32>
    %338 = tpu.matmul %305, %49, %cst_81 {dimension_numbers = #tpu.dot_dimension_numbers<[1], [0], [0], [1], [0, 0, 1, 1], [], []>} : vector<1x32xf32>, vector<32x96xf32>, vector<1x96xf32> -> vector<1x96xf32>
    %339 = arith.addf %338, %53 : vector<1x96xf32>
    %340 = vector.extract_strided_slice %337 {offsets = [0, 0], sizes = [1, 32], strides = [1, 1]} : vector<1x96xf32> to vector<1x32xf32>
    %341 = vector.extract_strided_slice %339 {offsets = [0, 0], sizes = [1, 32], strides = [1, 1]} : vector<1x96xf32> to vector<1x32xf32>
    %342 = arith.addf %340, %341 : vector<1x32xf32>
    %343 = arith.negf %342 : vector<1x32xf32>
    %344 = math.exp %343 : vector<1x32xf32>
    %cst_82 = arith.constant 1.000000e+00 : f32
    %345 = vector.broadcast %cst_82 : f32 to vector<1x32xf32>
    %346 = arith.addf %345, %344 : vector<1x32xf32>
    %347 = arith.divf %345, %346 : vector<1x32xf32>
    %348 = vector.extract_strided_slice %337 {offsets = [0, 32], sizes = [1, 32], strides = [1, 1]} : vector<1x96xf32> to vector<1x32xf32>
    %349 = vector.extract_strided_slice %339 {offsets = [0, 32], sizes = [1, 32], strides = [1, 1]} : vector<1x96xf32> to vector<1x32xf32>
    %350 = arith.addf %348, %349 : vector<1x32xf32>
    %351 = arith.negf %350 : vector<1x32xf32>
    %352 = math.exp %351 : vector<1x32xf32>
    %cst_83 = arith.constant 1.000000e+00 : f32
    %353 = vector.broadcast %cst_83 : f32 to vector<1x32xf32>
    %354 = arith.addf %353, %352 : vector<1x32xf32>
    %355 = arith.divf %353, %354 : vector<1x32xf32>
    %356 = vector.extract_strided_slice %337 {offsets = [0, 64], sizes = [1, 32], strides = [1, 1]} : vector<1x96xf32> to vector<1x32xf32>
    %357 = vector.extract_strided_slice %339 {offsets = [0, 64], sizes = [1, 32], strides = [1, 1]} : vector<1x96xf32> to vector<1x32xf32>
    %358 = arith.mulf %347, %357 : vector<1x32xf32>
    %359 = arith.addf %356, %358 : vector<1x32xf32>
    %360 = math.tanh %359 : vector<1x32xf32>
    %cst_84 = arith.constant 1.000000e+00 : f32
    %361 = vector.broadcast %cst_84 : f32 to vector<1x32xf32>
    %362 = arith.subf %361, %355 : vector<1x32xf32>
    %363 = arith.mulf %362, %360 : vector<1x32xf32>
    %364 = arith.mulf %355, %305 : vector<1x32xf32>
    %365 = arith.addf %363, %364 : vector<1x32xf32>
    %c4_85 = arith.constant 4 : index
    %c0_86 = arith.constant 0 : index
    %366 = vector.load %arg14[%c4_85, %c0_86] : memref<8x64xf32, #tpu.memory_space<vmem>>, vector<1x32xf32>
    tpu.vector_store %arg14[%c4_85, %c0_86], %336 {strides = array<i32>} : memref<8x64xf32, #tpu.memory_space<vmem>>, vector<1x32xf32>,
    %c3_87 = arith.constant 3 : index
    %c32_88 = arith.constant 32 : index
    %367 = vector.load %arg14[%c3_87, %c32_88] : memref<8x64xf32, #tpu.memory_space<vmem>>, vector<1x32xf32>
    tpu.vector_store %arg14[%c3_87, %c32_88], %365 {strides = array<i32>} : memref<8x64xf32, #tpu.memory_space<vmem>>, vector<1x32xf32>,
    %368 = vector.extract_strided_slice %60 {offsets = [5, 0], sizes = [1, 96], strides = [1, 1]} : vector<8x96xf32> to vector<1x96xf32>
    %cst_89 = arith.constant dense<0.000000e+00> : vector<1x96xf32>
    %369 = tpu.matmul %336, %47, %cst_89 {dimension_numbers = #tpu.dot_dimension_numbers<[1], [0], [0], [1], [0, 0, 1, 1], [], []>} : vector<1x32xf32>, vector<32x96xf32>, vector<1x96xf32> -> vector<1x96xf32>
    %370 = arith.addf %369, %51 : vector<1x96xf32>
    %371 = vector.extract_strided_slice %368 {offsets = [0, 0], sizes = [1, 32], strides = [1, 1]} : vector<1x96xf32> to vector<1x32xf32>
    %372 = vector.extract_strided_slice %370 {offsets = [0, 0], sizes = [1, 32], strides = [1, 1]} : vector<1x96xf32> to vector<1x32xf32>
    %373 = arith.addf %371, %372 : vector<1x32xf32>
    %374 = arith.negf %373 : vector<1x32xf32>
    %375 = math.exp %374 : vector<1x32xf32>
    %cst_90 = arith.constant 1.000000e+00 : f32
    %376 = vector.broadcast %cst_90 : f32 to vector<1x32xf32>
    %377 = arith.addf %376, %375 : vector<1x32xf32>
    %378 = arith.divf %376, %377 : vector<1x32xf32>
    %379 = vector.extract_strided_slice %368 {offsets = [0, 32], sizes = [1, 32], strides = [1, 1]} : vector<1x96xf32> to vector<1x32xf32>
    %380 = vector.extract_strided_slice %370 {offsets = [0, 32], sizes = [1, 32], strides = [1, 1]} : vector<1x96xf32> to vector<1x32xf32>
    %381 = arith.addf %379, %380 : vector<1x32xf32>
    %382 = arith.negf %381 : vector<1x32xf32>
    %383 = math.exp %382 : vector<1x32xf32>
    %cst_91 = arith.constant 1.000000e+00 : f32
    %384 = vector.broadcast %cst_91 : f32 to vector<1x32xf32>
    %385 = arith.addf %384, %383 : vector<1x32xf32>
    %386 = arith.divf %384, %385 : vector<1x32xf32>
    %387 = vector.extract_strided_slice %368 {offsets = [0, 64], sizes = [1, 32], strides = [1, 1]} : vector<1x96xf32> to vector<1x32xf32>
    %388 = vector.extract_strided_slice %370 {offsets = [0, 64], sizes = [1, 32], strides = [1, 1]} : vector<1x96xf32> to vector<1x32xf32>
    %389 = arith.mulf %378, %388 : vector<1x32xf32>
    %390 = arith.addf %387, %389 : vector<1x32xf32>
    %391 = math.tanh %390 : vector<1x32xf32>
    %cst_92 = arith.constant 1.000000e+00 : f32
    %392 = vector.broadcast %cst_92 : f32 to vector<1x32xf32>
    %393 = arith.subf %392, %386 : vector<1x32xf32>
    %394 = arith.mulf %393, %391 : vector<1x32xf32>
    %395 = arith.mulf %386, %336 : vector<1x32xf32>
    %396 = arith.addf %394, %395 : vector<1x32xf32>
    %397 = vector.extract_strided_slice %67 {offsets = [2, 0], sizes = [1, 96], strides = [1, 1]} : vector<8x96xf32> to vector<1x96xf32>
    %cst_93 = arith.constant dense<0.000000e+00> : vector<1x96xf32>
    %398 = tpu.matmul %365, %49, %cst_93 {dimension_numbers = #tpu.dot_dimension_numbers<[1], [0], [0], [1], [0, 0, 1, 1], [], []>} : vector<1x32xf32>, vector<32x96xf32>, vector<1x96xf32> -> vector<1x96xf32>
    %399 = arith.addf %398, %53 : vector<1x96xf32>
    %400 = vector.extract_strided_slice %397 {offsets = [0, 0], sizes = [1, 32], strides = [1, 1]} : vector<1x96xf32> to vector<1x32xf32>
    %401 = vector.extract_strided_slice %399 {offsets = [0, 0], sizes = [1, 32], strides = [1, 1]} : vector<1x96xf32> to vector<1x32xf32>
    %402 = arith.addf %400, %401 : vector<1x32xf32>
    %403 = arith.negf %402 : vector<1x32xf32>
    %404 = math.exp %403 : vector<1x32xf32>
    %cst_94 = arith.constant 1.000000e+00 : f32
    %405 = vector.broadcast %cst_94 : f32 to vector<1x32xf32>
    %406 = arith.addf %405, %404 : vector<1x32xf32>
    %407 = arith.divf %405, %406 : vector<1x32xf32>
    %408 = vector.extract_strided_slice %397 {offsets = [0, 32], sizes = [1, 32], strides = [1, 1]} : vector<1x96xf32> to vector<1x32xf32>
    %409 = vector.extract_strided_slice %399 {offsets = [0, 32], sizes = [1, 32], strides = [1, 1]} : vector<1x96xf32> to vector<1x32xf32>
    %410 = arith.addf %408, %409 : vector<1x32xf32>
    %411 = arith.negf %410 : vector<1x32xf32>
    %412 = math.exp %411 : vector<1x32xf32>
    %cst_95 = arith.constant 1.000000e+00 : f32
    %413 = vector.broadcast %cst_95 : f32 to vector<1x32xf32>
    %414 = arith.addf %413, %412 : vector<1x32xf32>
    %415 = arith.divf %413, %414 : vector<1x32xf32>
    %416 = vector.extract_strided_slice %397 {offsets = [0, 64], sizes = [1, 32], strides = [1, 1]} : vector<1x96xf32> to vector<1x32xf32>
    %417 = vector.extract_strided_slice %399 {offsets = [0, 64], sizes = [1, 32], strides = [1, 1]} : vector<1x96xf32> to vector<1x32xf32>
    %418 = arith.mulf %407, %417 : vector<1x32xf32>
    %419 = arith.addf %416, %418 : vector<1x32xf32>
    %420 = math.tanh %419 : vector<1x32xf32>
    %cst_96 = arith.constant 1.000000e+00 : f32
    %421 = vector.broadcast %cst_96 : f32 to vector<1x32xf32>
    %422 = arith.subf %421, %415 : vector<1x32xf32>
    %423 = arith.mulf %422, %420 : vector<1x32xf32>
    %424 = arith.mulf %415, %365 : vector<1x32xf32>
    %425 = arith.addf %423, %424 : vector<1x32xf32>
    %c5_97 = arith.constant 5 : index
    %c0_98 = arith.constant 0 : index
    %426 = vector.load %arg14[%c5_97, %c0_98] : memref<8x64xf32, #tpu.memory_space<vmem>>, vector<1x32xf32>
    tpu.vector_store %arg14[%c5_97, %c0_98], %396 {strides = array<i32>} : memref<8x64xf32, #tpu.memory_space<vmem>>, vector<1x32xf32>,
    %c2_99 = arith.constant 2 : index
    %c32_100 = arith.constant 32 : index
    %427 = vector.load %arg14[%c2_99, %c32_100] : memref<8x64xf32, #tpu.memory_space<vmem>>, vector<1x32xf32>
    tpu.vector_store %arg14[%c2_99, %c32_100], %425 {strides = array<i32>} : memref<8x64xf32, #tpu.memory_space<vmem>>, vector<1x32xf32>,
    %428 = vector.extract_strided_slice %60 {offsets = [6, 0], sizes = [1, 96], strides = [1, 1]} : vector<8x96xf32> to vector<1x96xf32>
    %cst_101 = arith.constant dense<0.000000e+00> : vector<1x96xf32>
    %429 = tpu.matmul %396, %47, %cst_101 {dimension_numbers = #tpu.dot_dimension_numbers<[1], [0], [0], [1], [0, 0, 1, 1], [], []>} : vector<1x32xf32>, vector<32x96xf32>, vector<1x96xf32> -> vector<1x96xf32>
    %430 = arith.addf %429, %51 : vector<1x96xf32>
    %431 = vector.extract_strided_slice %428 {offsets = [0, 0], sizes = [1, 32], strides = [1, 1]} : vector<1x96xf32> to vector<1x32xf32>
    %432 = vector.extract_strided_slice %430 {offsets = [0, 0], sizes = [1, 32], strides = [1, 1]} : vector<1x96xf32> to vector<1x32xf32>
    %433 = arith.addf %431, %432 : vector<1x32xf32>
    %434 = arith.negf %433 : vector<1x32xf32>
    %435 = math.exp %434 : vector<1x32xf32>
    %cst_102 = arith.constant 1.000000e+00 : f32
    %436 = vector.broadcast %cst_102 : f32 to vector<1x32xf32>
    %437 = arith.addf %436, %435 : vector<1x32xf32>
    %438 = arith.divf %436, %437 : vector<1x32xf32>
    %439 = vector.extract_strided_slice %428 {offsets = [0, 32], sizes = [1, 32], strides = [1, 1]} : vector<1x96xf32> to vector<1x32xf32>
    %440 = vector.extract_strided_slice %430 {offsets = [0, 32], sizes = [1, 32], strides = [1, 1]} : vector<1x96xf32> to vector<1x32xf32>
    %441 = arith.addf %439, %440 : vector<1x32xf32>
    %442 = arith.negf %441 : vector<1x32xf32>
    %443 = math.exp %442 : vector<1x32xf32>
    %cst_103 = arith.constant 1.000000e+00 : f32
    %444 = vector.broadcast %cst_103 : f32 to vector<1x32xf32>
    %445 = arith.addf %444, %443 : vector<1x32xf32>
    %446 = arith.divf %444, %445 : vector<1x32xf32>
    %447 = vector.extract_strided_slice %428 {offsets = [0, 64], sizes = [1, 32], strides = [1, 1]} : vector<1x96xf32> to vector<1x32xf32>
    %448 = vector.extract_strided_slice %430 {offsets = [0, 64], sizes = [1, 32], strides = [1, 1]} : vector<1x96xf32> to vector<1x32xf32>
    %449 = arith.mulf %438, %448 : vector<1x32xf32>
    %450 = arith.addf %447, %449 : vector<1x32xf32>
    %451 = math.tanh %450 : vector<1x32xf32>
    %cst_104 = arith.constant 1.000000e+00 : f32
    %452 = vector.broadcast %cst_104 : f32 to vector<1x32xf32>
    %453 = arith.subf %452, %446 : vector<1x32xf32>
    %454 = arith.mulf %453, %451 : vector<1x32xf32>
    %455 = arith.mulf %446, %396 : vector<1x32xf32>
    %456 = arith.addf %454, %455 : vector<1x32xf32>
    %457 = vector.extract_strided_slice %67 {offsets = [1, 0], sizes = [1, 96], strides = [1, 1]} : vector<8x96xf32> to vector<1x96xf32>
    %cst_105 = arith.constant dense<0.000000e+00> : vector<1x96xf32>
    %458 = tpu.matmul %425, %49, %cst_105 {dimension_numbers = #tpu.dot_dimension_numbers<[1], [0], [0], [1], [0, 0, 1, 1], [], []>} : vector<1x32xf32>, vector<32x96xf32>, vector<1x96xf32> -> vector<1x96xf32>
    %459 = arith.addf %458, %53 : vector<1x96xf32>
    %460 = vector.extract_strided_slice %457 {offsets = [0, 0], sizes = [1, 32], strides = [1, 1]} : vector<1x96xf32> to vector<1x32xf32>
    %461 = vector.extract_strided_slice %459 {offsets = [0, 0], sizes = [1, 32], strides = [1, 1]} : vector<1x96xf32> to vector<1x32xf32>
    %462 = arith.addf %460, %461 : vector<1x32xf32>
    %463 = arith.negf %462 : vector<1x32xf32>
    %464 = math.exp %463 : vector<1x32xf32>
    %cst_106 = arith.constant 1.000000e+00 : f32
    %465 = vector.broadcast %cst_106 : f32 to vector<1x32xf32>
    %466 = arith.addf %465, %464 : vector<1x32xf32>
    %467 = arith.divf %465, %466 : vector<1x32xf32>
    %468 = vector.extract_strided_slice %457 {offsets = [0, 32], sizes = [1, 32], strides = [1, 1]} : vector<1x96xf32> to vector<1x32xf32>
    %469 = vector.extract_strided_slice %459 {offsets = [0, 32], sizes = [1, 32], strides = [1, 1]} : vector<1x96xf32> to vector<1x32xf32>
    %470 = arith.addf %468, %469 : vector<1x32xf32>
    %471 = arith.negf %470 : vector<1x32xf32>
    %472 = math.exp %471 : vector<1x32xf32>
    %cst_107 = arith.constant 1.000000e+00 : f32
    %473 = vector.broadcast %cst_107 : f32 to vector<1x32xf32>
    %474 = arith.addf %473, %472 : vector<1x32xf32>
    %475 = arith.divf %473, %474 : vector<1x32xf32>
    %476 = vector.extract_strided_slice %457 {offsets = [0, 64], sizes = [1, 32], strides = [1, 1]} : vector<1x96xf32> to vector<1x32xf32>
    %477 = vector.extract_strided_slice %459 {offsets = [0, 64], sizes = [1, 32], strides = [1, 1]} : vector<1x96xf32> to vector<1x32xf32>
    %478 = arith.mulf %467, %477 : vector<1x32xf32>
    %479 = arith.addf %476, %478 : vector<1x32xf32>
    %480 = math.tanh %479 : vector<1x32xf32>
    %cst_108 = arith.constant 1.000000e+00 : f32
    %481 = vector.broadcast %cst_108 : f32 to vector<1x32xf32>
    %482 = arith.subf %481, %475 : vector<1x32xf32>
    %483 = arith.mulf %482, %480 : vector<1x32xf32>
    %484 = arith.mulf %475, %425 : vector<1x32xf32>
    %485 = arith.addf %483, %484 : vector<1x32xf32>
    %c6_109 = arith.constant 6 : index
    %c0_110 = arith.constant 0 : index
    %486 = vector.load %arg14[%c6_109, %c0_110] : memref<8x64xf32, #tpu.memory_space<vmem>>, vector<1x32xf32>
    tpu.vector_store %arg14[%c6_109, %c0_110], %456 {strides = array<i32>} : memref<8x64xf32, #tpu.memory_space<vmem>>, vector<1x32xf32>,
    %c1_111 = arith.constant 1 : index
    %c32_112 = arith.constant 32 : index
    %487 = vector.load %arg14[%c1_111, %c32_112] : memref<8x64xf32, #tpu.memory_space<vmem>>, vector<1x32xf32>
    tpu.vector_store %arg14[%c1_111, %c32_112], %485 {strides = array<i32>} : memref<8x64xf32, #tpu.memory_space<vmem>>, vector<1x32xf32>,
    %488 = vector.extract_strided_slice %60 {offsets = [7, 0], sizes = [1, 96], strides = [1, 1]} : vector<8x96xf32> to vector<1x96xf32>
    %cst_113 = arith.constant dense<0.000000e+00> : vector<1x96xf32>
    %489 = tpu.matmul %456, %47, %cst_113 {dimension_numbers = #tpu.dot_dimension_numbers<[1], [0], [0], [1], [0, 0, 1, 1], [], []>} : vector<1x32xf32>, vector<32x96xf32>, vector<1x96xf32> -> vector<1x96xf32>
    %490 = arith.addf %489, %51 : vector<1x96xf32>
    %491 = vector.extract_strided_slice %488 {offsets = [0, 0], sizes = [1, 32], strides = [1, 1]} : vector<1x96xf32> to vector<1x32xf32>
    %492 = vector.extract_strided_slice %490 {offsets = [0, 0], sizes = [1, 32], strides = [1, 1]} : vector<1x96xf32> to vector<1x32xf32>
    %493 = arith.addf %491, %492 : vector<1x32xf32>
    %494 = arith.negf %493 : vector<1x32xf32>
    %495 = math.exp %494 : vector<1x32xf32>
    %cst_114 = arith.constant 1.000000e+00 : f32
    %496 = vector.broadcast %cst_114 : f32 to vector<1x32xf32>
    %497 = arith.addf %496, %495 : vector<1x32xf32>
    %498 = arith.divf %496, %497 : vector<1x32xf32>
    %499 = vector.extract_strided_slice %488 {offsets = [0, 32], sizes = [1, 32], strides = [1, 1]} : vector<1x96xf32> to vector<1x32xf32>
    %500 = vector.extract_strided_slice %490 {offsets = [0, 32], sizes = [1, 32], strides = [1, 1]} : vector<1x96xf32> to vector<1x32xf32>
    %501 = arith.addf %499, %500 : vector<1x32xf32>
    %502 = arith.negf %501 : vector<1x32xf32>
    %503 = math.exp %502 : vector<1x32xf32>
    %cst_115 = arith.constant 1.000000e+00 : f32
    %504 = vector.broadcast %cst_115 : f32 to vector<1x32xf32>
    %505 = arith.addf %504, %503 : vector<1x32xf32>
    %506 = arith.divf %504, %505 : vector<1x32xf32>
    %507 = vector.extract_strided_slice %488 {offsets = [0, 64], sizes = [1, 32], strides = [1, 1]} : vector<1x96xf32> to vector<1x32xf32>
    %508 = vector.extract_strided_slice %490 {offsets = [0, 64], sizes = [1, 32], strides = [1, 1]} : vector<1x96xf32> to vector<1x32xf32>
    %509 = arith.mulf %498, %508 : vector<1x32xf32>
    %510 = arith.addf %507, %509 : vector<1x32xf32>
    %511 = math.tanh %510 : vector<1x32xf32>
    %cst_116 = arith.constant 1.000000e+00 : f32
    %512 = vector.broadcast %cst_116 : f32 to vector<1x32xf32>
    %513 = arith.subf %512, %506 : vector<1x32xf32>
    %514 = arith.mulf %513, %511 : vector<1x32xf32>
    %515 = arith.mulf %506, %456 : vector<1x32xf32>
    %516 = arith.addf %514, %515 : vector<1x32xf32>
    %517 = vector.extract_strided_slice %67 {offsets = [0, 0], sizes = [1, 96], strides = [1, 1]} : vector<8x96xf32> to vector<1x96xf32>
    %cst_117 = arith.constant dense<0.000000e+00> : vector<1x96xf32>
    %518 = tpu.matmul %485, %49, %cst_117 {dimension_numbers = #tpu.dot_dimension_numbers<[1], [0], [0], [1], [0, 0, 1, 1], [], []>} : vector<1x32xf32>, vector<32x96xf32>, vector<1x96xf32> -> vector<1x96xf32>
    %519 = arith.addf %518, %53 : vector<1x96xf32>
    %520 = vector.extract_strided_slice %517 {offsets = [0, 0], sizes = [1, 32], strides = [1, 1]} : vector<1x96xf32> to vector<1x32xf32>
    %521 = vector.extract_strided_slice %519 {offsets = [0, 0], sizes = [1, 32], strides = [1, 1]} : vector<1x96xf32> to vector<1x32xf32>
    %522 = arith.addf %520, %521 : vector<1x32xf32>
    %523 = arith.negf %522 : vector<1x32xf32>
    %524 = math.exp %523 : vector<1x32xf32>
    %cst_118 = arith.constant 1.000000e+00 : f32
    %525 = vector.broadcast %cst_118 : f32 to vector<1x32xf32>
    %526 = arith.addf %525, %524 : vector<1x32xf32>
    %527 = arith.divf %525, %526 : vector<1x32xf32>
    %528 = vector.extract_strided_slice %517 {offsets = [0, 32], sizes = [1, 32], strides = [1, 1]} : vector<1x96xf32> to vector<1x32xf32>
    %529 = vector.extract_strided_slice %519 {offsets = [0, 32], sizes = [1, 32], strides = [1, 1]} : vector<1x96xf32> to vector<1x32xf32>
    %530 = arith.addf %528, %529 : vector<1x32xf32>
    %531 = arith.negf %530 : vector<1x32xf32>
    %532 = math.exp %531 : vector<1x32xf32>
    %cst_119 = arith.constant 1.000000e+00 : f32
    %533 = vector.broadcast %cst_119 : f32 to vector<1x32xf32>
    %534 = arith.addf %533, %532 : vector<1x32xf32>
    %535 = arith.divf %533, %534 : vector<1x32xf32>
    %536 = vector.extract_strided_slice %517 {offsets = [0, 64], sizes = [1, 32], strides = [1, 1]} : vector<1x96xf32> to vector<1x32xf32>
    %537 = vector.extract_strided_slice %519 {offsets = [0, 64], sizes = [1, 32], strides = [1, 1]} : vector<1x96xf32> to vector<1x32xf32>
    %538 = arith.mulf %527, %537 : vector<1x32xf32>
    %539 = arith.addf %536, %538 : vector<1x32xf32>
    %540 = math.tanh %539 : vector<1x32xf32>
    %cst_120 = arith.constant 1.000000e+00 : f32
    %541 = vector.broadcast %cst_120 : f32 to vector<1x32xf32>
    %542 = arith.subf %541, %535 : vector<1x32xf32>
    %543 = arith.mulf %542, %540 : vector<1x32xf32>
    %544 = arith.mulf %535, %485 : vector<1x32xf32>
    %545 = arith.addf %543, %544 : vector<1x32xf32>
    %c7_121 = arith.constant 7 : index
    %c0_122 = arith.constant 0 : index
    %546 = vector.load %arg14[%c7_121, %c0_122] : memref<8x64xf32, #tpu.memory_space<vmem>>, vector<1x32xf32>
    tpu.vector_store %arg14[%c7_121, %c0_122], %516 {strides = array<i32>} : memref<8x64xf32, #tpu.memory_space<vmem>>, vector<1x32xf32>,
    %c0_123 = arith.constant 0 : index
    %c32_124 = arith.constant 32 : index
    %547 = vector.load %arg14[%c0_123, %c32_124] : memref<8x64xf32, #tpu.memory_space<vmem>>, vector<1x32xf32>
    tpu.vector_store %arg14[%c0_123, %c32_124], %545 {strides = array<i32>} : memref<8x64xf32, #tpu.memory_space<vmem>>, vector<1x32xf32>,
    %c0_125 = arith.constant 0 : index
    %c0_126 = arith.constant 0 : index
    %548 = vector.load %arg14[%c0_125, %c0_126] : memref<8x64xf32, #tpu.memory_space<vmem>>, vector<8x64xf32>
    %c0_127 = arith.constant 0 : index
    %c32_128 = arith.constant 32 : index
    %c0_129 = arith.constant 0 : index
    %549 = vector.load %arg4[%c0_127, %c32_128, %c0_129] : memref<2x64x96xf32, #tpu.memory_space<vmem>>, vector<1x32x96xf32>
    %550 = vector.shape_cast %549 : vector<1x32x96xf32> to vector<32x96xf32>
    %c1_130 = arith.constant 1 : index
    %c32_131 = arith.constant 32 : index
    %c0_132 = arith.constant 0 : index
    %551 = vector.load %arg4[%c1_130, %c32_131, %c0_132] : memref<2x64x96xf32, #tpu.memory_space<vmem>>, vector<1x32x96xf32>
    %552 = vector.shape_cast %551 : vector<1x32x96xf32> to vector<32x96xf32>
    %c0_133 = arith.constant 0 : index
    %c3_134 = arith.constant 3 : index
    %c0_135 = arith.constant 0 : index
    %553 = vector.load %arg5[%c0_133, %c3_134, %c0_135] : memref<2x4x96xf32, #tpu.memory_space<vmem>>, vector<1x1x96xf32>
    %554 = vector.shape_cast %553 : vector<1x1x96xf32> to vector<1x96xf32>
    %c1_136 = arith.constant 1 : index
    %c3_137 = arith.constant 3 : index
    %c0_138 = arith.constant 0 : index
    %555 = vector.load %arg5[%c1_136, %c3_137, %c0_138] : memref<2x4x96xf32, #tpu.memory_space<vmem>>, vector<1x1x96xf32>
    %556 = vector.shape_cast %555 : vector<1x1x96xf32> to vector<1x96xf32>
    %c0_139 = arith.constant 0 : index
    %c32_140 = arith.constant 32 : index
    %c0_141 = arith.constant 0 : index
    %557 = vector.load %arg3[%c0_139, %c32_140, %c0_141] : memref<2x96x96xf32, #tpu.memory_space<vmem>>, vector<1x64x96xf32>
    %558 = vector.shape_cast %557 : vector<1x64x96xf32> to vector<64x96xf32>
    %cst_142 = arith.constant dense<0.000000e+00> : vector<8x96xf32>
    %559 = tpu.matmul %548, %558, %cst_142 {dimension_numbers = #tpu.dot_dimension_numbers<[1], [0], [0], [1], [0, 0, 1, 1], [], []>} : vector<8x64xf32>, vector<64x96xf32>, vector<8x96xf32> -> vector<8x96xf32>
    %c0_143 = arith.constant 0 : index
    %c2_144 = arith.constant 2 : index
    %c0_145 = arith.constant 0 : index
    %560 = vector.load %arg5[%c0_143, %c2_144, %c0_145] : memref<2x4x96xf32, #tpu.memory_space<vmem>>, vector<1x1x96xf32>
    %561 = vector.shape_cast %560 : vector<1x1x96xf32> to vector<1x96xf32>
    %562 = vector.broadcast %561 : vector<1x96xf32> to vector<8x96xf32>
    %563 = arith.addf %559, %562 : vector<8x96xf32>
    %c1_146 = arith.constant 1 : index
    %c32_147 = arith.constant 32 : index
    %c0_148 = arith.constant 0 : index
    %564 = vector.load %arg3[%c1_146, %c32_147, %c0_148] : memref<2x96x96xf32, #tpu.memory_space<vmem>>, vector<1x64x96xf32>
    %565 = vector.shape_cast %564 : vector<1x64x96xf32> to vector<64x96xf32>
    %cst_149 = arith.constant dense<0.000000e+00> : vector<8x96xf32>
    %566 = tpu.matmul %548, %565, %cst_149 {dimension_numbers = #tpu.dot_dimension_numbers<[1], [0], [0], [1], [0, 0, 1, 1], [], []>} : vector<8x64xf32>, vector<64x96xf32>, vector<8x96xf32> -> vector<8x96xf32>
    %c1_150 = arith.constant 1 : index
    %c2_151 = arith.constant 2 : index
    %c0_152 = arith.constant 0 : index
    %567 = vector.load %arg5[%c1_150, %c2_151, %c0_152] : memref<2x4x96xf32, #tpu.memory_space<vmem>>, vector<1x1x96xf32>
    %568 = vector.shape_cast %567 : vector<1x1x96xf32> to vector<1x96xf32>
    %569 = vector.broadcast %568 : vector<1x96xf32> to vector<8x96xf32>
    %570 = arith.addf %566, %569 : vector<8x96xf32>
    %571 = vector.extract_strided_slice %563 {offsets = [0, 0], sizes = [1, 96], strides = [1, 1]} : vector<8x96xf32> to vector<1x96xf32>
    %cst_153 = arith.constant dense<0.000000e+00> : vector<1x96xf32>
    %572 = tpu.matmul %45, %550, %cst_153 {dimension_numbers = #tpu.dot_dimension_numbers<[1], [0], [0], [1], [0, 0, 1, 1], [], []>} : vector<1x32xf32>, vector<32x96xf32>, vector<1x96xf32> -> vector<1x96xf32>
    %573 = arith.addf %572, %554 : vector<1x96xf32>
    %574 = vector.extract_strided_slice %571 {offsets = [0, 0], sizes = [1, 32], strides = [1, 1]} : vector<1x96xf32> to vector<1x32xf32>
    %575 = vector.extract_strided_slice %573 {offsets = [0, 0], sizes = [1, 32], strides = [1, 1]} : vector<1x96xf32> to vector<1x32xf32>
    %576 = arith.addf %574, %575 : vector<1x32xf32>
    %577 = arith.negf %576 : vector<1x32xf32>
    %578 = math.exp %577 : vector<1x32xf32>
    %cst_154 = arith.constant 1.000000e+00 : f32
    %579 = vector.broadcast %cst_154 : f32 to vector<1x32xf32>
    %580 = arith.addf %579, %578 : vector<1x32xf32>
    %581 = arith.divf %579, %580 : vector<1x32xf32>
    %582 = vector.extract_strided_slice %571 {offsets = [0, 32], sizes = [1, 32], strides = [1, 1]} : vector<1x96xf32> to vector<1x32xf32>
    %583 = vector.extract_strided_slice %573 {offsets = [0, 32], sizes = [1, 32], strides = [1, 1]} : vector<1x96xf32> to vector<1x32xf32>
    %584 = arith.addf %582, %583 : vector<1x32xf32>
    %585 = arith.negf %584 : vector<1x32xf32>
    %586 = math.exp %585 : vector<1x32xf32>
    %cst_155 = arith.constant 1.000000e+00 : f32
    %587 = vector.broadcast %cst_155 : f32 to vector<1x32xf32>
    %588 = arith.addf %587, %586 : vector<1x32xf32>
    %589 = arith.divf %587, %588 : vector<1x32xf32>
    %590 = vector.extract_strided_slice %571 {offsets = [0, 64], sizes = [1, 32], strides = [1, 1]} : vector<1x96xf32> to vector<1x32xf32>
    %591 = vector.extract_strided_slice %573 {offsets = [0, 64], sizes = [1, 32], strides = [1, 1]} : vector<1x96xf32> to vector<1x32xf32>
    %592 = arith.mulf %581, %591 : vector<1x32xf32>
    %593 = arith.addf %590, %592 : vector<1x32xf32>
    %594 = math.tanh %593 : vector<1x32xf32>
    %cst_156 = arith.constant 1.000000e+00 : f32
    %595 = vector.broadcast %cst_156 : f32 to vector<1x32xf32>
    %596 = arith.subf %595, %589 : vector<1x32xf32>
    %597 = arith.mulf %596, %594 : vector<1x32xf32>
    %598 = arith.mulf %589, %45 : vector<1x32xf32>
    %599 = arith.addf %597, %598 : vector<1x32xf32>
    %600 = vector.extract_strided_slice %570 {offsets = [7, 0], sizes = [1, 96], strides = [1, 1]} : vector<8x96xf32> to vector<1x96xf32>
    %cst_157 = arith.constant dense<0.000000e+00> : vector<1x96xf32>
    %601 = tpu.matmul %45, %552, %cst_157 {dimension_numbers = #tpu.dot_dimension_numbers<[1], [0], [0], [1], [0, 0, 1, 1], [], []>} : vector<1x32xf32>, vector<32x96xf32>, vector<1x96xf32> -> vector<1x96xf32>
    %602 = arith.addf %601, %556 : vector<1x96xf32>
    %603 = vector.extract_strided_slice %600 {offsets = [0, 0], sizes = [1, 32], strides = [1, 1]} : vector<1x96xf32> to vector<1x32xf32>
    %604 = vector.extract_strided_slice %602 {offsets = [0, 0], sizes = [1, 32], strides = [1, 1]} : vector<1x96xf32> to vector<1x32xf32>
    %605 = arith.addf %603, %604 : vector<1x32xf32>
    %606 = arith.negf %605 : vector<1x32xf32>
    %607 = math.exp %606 : vector<1x32xf32>
    %cst_158 = arith.constant 1.000000e+00 : f32
    %608 = vector.broadcast %cst_158 : f32 to vector<1x32xf32>
    %609 = arith.addf %608, %607 : vector<1x32xf32>
    %610 = arith.divf %608, %609 : vector<1x32xf32>
    %611 = vector.extract_strided_slice %600 {offsets = [0, 32], sizes = [1, 32], strides = [1, 1]} : vector<1x96xf32> to vector<1x32xf32>
    %612 = vector.extract_strided_slice %602 {offsets = [0, 32], sizes = [1, 32], strides = [1, 1]} : vector<1x96xf32> to vector<1x32xf32>
    %613 = arith.addf %611, %612 : vector<1x32xf32>
    %614 = arith.negf %613 : vector<1x32xf32>
    %615 = math.exp %614 : vector<1x32xf32>
    %cst_159 = arith.constant 1.000000e+00 : f32
    %616 = vector.broadcast %cst_159 : f32 to vector<1x32xf32>
    %617 = arith.addf %616, %615 : vector<1x32xf32>
    %618 = arith.divf %616, %617 : vector<1x32xf32>
    %619 = vector.extract_strided_slice %600 {offsets = [0, 64], sizes = [1, 32], strides = [1, 1]} : vector<1x96xf32> to vector<1x32xf32>
    %620 = vector.extract_strided_slice %602 {offsets = [0, 64], sizes = [1, 32], strides = [1, 1]} : vector<1x96xf32> to vector<1x32xf32>
    %621 = arith.mulf %610, %620 : vector<1x32xf32>
    %622 = arith.addf %619, %621 : vector<1x32xf32>
    %623 = math.tanh %622 : vector<1x32xf32>
    %cst_160 = arith.constant 1.000000e+00 : f32
    %624 = vector.broadcast %cst_160 : f32 to vector<1x32xf32>
    %625 = arith.subf %624, %618 : vector<1x32xf32>
    %626 = arith.mulf %625, %623 : vector<1x32xf32>
    %627 = arith.mulf %618, %45 : vector<1x32xf32>
    %628 = arith.addf %626, %627 : vector<1x32xf32>
    %c0_161 = arith.constant 0 : index
    %c0_162 = arith.constant 0 : index
    %629 = vector.load %arg15[%c0_161, %c0_162] : memref<8x64xf32, #tpu.memory_space<vmem>>, vector<1x32xf32>
    tpu.vector_store %arg15[%c0_161, %c0_162], %599 {strides = array<i32>} : memref<8x64xf32, #tpu.memory_space<vmem>>, vector<1x32xf32>,
    %c7_163 = arith.constant 7 : index
    %c32_164 = arith.constant 32 : index
    %630 = vector.load %arg15[%c7_163, %c32_164] : memref<8x64xf32, #tpu.memory_space<vmem>>, vector<1x32xf32>
    tpu.vector_store %arg15[%c7_163, %c32_164], %628 {strides = array<i32>} : memref<8x64xf32, #tpu.memory_space<vmem>>, vector<1x32xf32>,
    %631 = vector.extract_strided_slice %563 {offsets = [1, 0], sizes = [1, 96], strides = [1, 1]} : vector<8x96xf32> to vector<1x96xf32>
    %cst_165 = arith.constant dense<0.000000e+00> : vector<1x96xf32>
    %632 = tpu.matmul %599, %550, %cst_165 {dimension_numbers = #tpu.dot_dimension_numbers<[1], [0], [0], [1], [0, 0, 1, 1], [], []>} : vector<1x32xf32>, vector<32x96xf32>, vector<1x96xf32> -> vector<1x96xf32>
    %633 = arith.addf %632, %554 : vector<1x96xf32>
    %634 = vector.extract_strided_slice %631 {offsets = [0, 0], sizes = [1, 32], strides = [1, 1]} : vector<1x96xf32> to vector<1x32xf32>
    %635 = vector.extract_strided_slice %633 {offsets = [0, 0], sizes = [1, 32], strides = [1, 1]} : vector<1x96xf32> to vector<1x32xf32>
    %636 = arith.addf %634, %635 : vector<1x32xf32>
    %637 = arith.negf %636 : vector<1x32xf32>
    %638 = math.exp %637 : vector<1x32xf32>
    %cst_166 = arith.constant 1.000000e+00 : f32
    %639 = vector.broadcast %cst_166 : f32 to vector<1x32xf32>
    %640 = arith.addf %639, %638 : vector<1x32xf32>
    %641 = arith.divf %639, %640 : vector<1x32xf32>
    %642 = vector.extract_strided_slice %631 {offsets = [0, 32], sizes = [1, 32], strides = [1, 1]} : vector<1x96xf32> to vector<1x32xf32>
    %643 = vector.extract_strided_slice %633 {offsets = [0, 32], sizes = [1, 32], strides = [1, 1]} : vector<1x96xf32> to vector<1x32xf32>
    %644 = arith.addf %642, %643 : vector<1x32xf32>
    %645 = arith.negf %644 : vector<1x32xf32>
    %646 = math.exp %645 : vector<1x32xf32>
    %cst_167 = arith.constant 1.000000e+00 : f32
    %647 = vector.broadcast %cst_167 : f32 to vector<1x32xf32>
    %648 = arith.addf %647, %646 : vector<1x32xf32>
    %649 = arith.divf %647, %648 : vector<1x32xf32>
    %650 = vector.extract_strided_slice %631 {offsets = [0, 64], sizes = [1, 32], strides = [1, 1]} : vector<1x96xf32> to vector<1x32xf32>
    %651 = vector.extract_strided_slice %633 {offsets = [0, 64], sizes = [1, 32], strides = [1, 1]} : vector<1x96xf32> to vector<1x32xf32>
    %652 = arith.mulf %641, %651 : vector<1x32xf32>
    %653 = arith.addf %650, %652 : vector<1x32xf32>
    %654 = math.tanh %653 : vector<1x32xf32>
    %cst_168 = arith.constant 1.000000e+00 : f32
    %655 = vector.broadcast %cst_168 : f32 to vector<1x32xf32>
    %656 = arith.subf %655, %649 : vector<1x32xf32>
    %657 = arith.mulf %656, %654 : vector<1x32xf32>
    %658 = arith.mulf %649, %599 : vector<1x32xf32>
    %659 = arith.addf %657, %658 : vector<1x32xf32>
    %660 = vector.extract_strided_slice %570 {offsets = [6, 0], sizes = [1, 96], strides = [1, 1]} : vector<8x96xf32> to vector<1x96xf32>
    %cst_169 = arith.constant dense<0.000000e+00> : vector<1x96xf32>
    %661 = tpu.matmul %628, %552, %cst_169 {dimension_numbers = #tpu.dot_dimension_numbers<[1], [0], [0], [1], [0, 0, 1, 1], [], []>} : vector<1x32xf32>, vector<32x96xf32>, vector<1x96xf32> -> vector<1x96xf32>
    %662 = arith.addf %661, %556 : vector<1x96xf32>
    %663 = vector.extract_strided_slice %660 {offsets = [0, 0], sizes = [1, 32], strides = [1, 1]} : vector<1x96xf32> to vector<1x32xf32>
    %664 = vector.extract_strided_slice %662 {offsets = [0, 0], sizes = [1, 32], strides = [1, 1]} : vector<1x96xf32> to vector<1x32xf32>
    %665 = arith.addf %663, %664 : vector<1x32xf32>
    %666 = arith.negf %665 : vector<1x32xf32>
    %667 = math.exp %666 : vector<1x32xf32>
    %cst_170 = arith.constant 1.000000e+00 : f32
    %668 = vector.broadcast %cst_170 : f32 to vector<1x32xf32>
    %669 = arith.addf %668, %667 : vector<1x32xf32>
    %670 = arith.divf %668, %669 : vector<1x32xf32>
    %671 = vector.extract_strided_slice %660 {offsets = [0, 32], sizes = [1, 32], strides = [1, 1]} : vector<1x96xf32> to vector<1x32xf32>
    %672 = vector.extract_strided_slice %662 {offsets = [0, 32], sizes = [1, 32], strides = [1, 1]} : vector<1x96xf32> to vector<1x32xf32>
    %673 = arith.addf %671, %672 : vector<1x32xf32>
    %674 = arith.negf %673 : vector<1x32xf32>
    %675 = math.exp %674 : vector<1x32xf32>
    %cst_171 = arith.constant 1.000000e+00 : f32
    %676 = vector.broadcast %cst_171 : f32 to vector<1x32xf32>
    %677 = arith.addf %676, %675 : vector<1x32xf32>
    %678 = arith.divf %676, %677 : vector<1x32xf32>
    %679 = vector.extract_strided_slice %660 {offsets = [0, 64], sizes = [1, 32], strides = [1, 1]} : vector<1x96xf32> to vector<1x32xf32>
    %680 = vector.extract_strided_slice %662 {offsets = [0, 64], sizes = [1, 32], strides = [1, 1]} : vector<1x96xf32> to vector<1x32xf32>
    %681 = arith.mulf %670, %680 : vector<1x32xf32>
    %682 = arith.addf %679, %681 : vector<1x32xf32>
    %683 = math.tanh %682 : vector<1x32xf32>
    %cst_172 = arith.constant 1.000000e+00 : f32
    %684 = vector.broadcast %cst_172 : f32 to vector<1x32xf32>
    %685 = arith.subf %684, %678 : vector<1x32xf32>
    %686 = arith.mulf %685, %683 : vector<1x32xf32>
    %687 = arith.mulf %678, %628 : vector<1x32xf32>
    %688 = arith.addf %686, %687 : vector<1x32xf32>
    %c1_173 = arith.constant 1 : index
    %c0_174 = arith.constant 0 : index
    %689 = vector.load %arg15[%c1_173, %c0_174] : memref<8x64xf32, #tpu.memory_space<vmem>>, vector<1x32xf32>
    tpu.vector_store %arg15[%c1_173, %c0_174], %659 {strides = array<i32>} : memref<8x64xf32, #tpu.memory_space<vmem>>, vector<1x32xf32>,
    %c6_175 = arith.constant 6 : index
    %c32_176 = arith.constant 32 : index
    %690 = vector.load %arg15[%c6_175, %c32_176] : memref<8x64xf32, #tpu.memory_space<vmem>>, vector<1x32xf32>
    tpu.vector_store %arg15[%c6_175, %c32_176], %688 {strides = array<i32>} : memref<8x64xf32, #tpu.memory_space<vmem>>, vector<1x32xf32>,
    %691 = vector.extract_strided_slice %563 {offsets = [2, 0], sizes = [1, 96], strides = [1, 1]} : vector<8x96xf32> to vector<1x96xf32>
    %cst_177 = arith.constant dense<0.000000e+00> : vector<1x96xf32>
    %692 = tpu.matmul %659, %550, %cst_177 {dimension_numbers = #tpu.dot_dimension_numbers<[1], [0], [0], [1], [0, 0, 1, 1], [], []>} : vector<1x32xf32>, vector<32x96xf32>, vector<1x96xf32> -> vector<1x96xf32>
    %693 = arith.addf %692, %554 : vector<1x96xf32>
    %694 = vector.extract_strided_slice %691 {offsets = [0, 0], sizes = [1, 32], strides = [1, 1]} : vector<1x96xf32> to vector<1x32xf32>
    %695 = vector.extract_strided_slice %693 {offsets = [0, 0], sizes = [1, 32], strides = [1, 1]} : vector<1x96xf32> to vector<1x32xf32>
    %696 = arith.addf %694, %695 : vector<1x32xf32>
    %697 = arith.negf %696 : vector<1x32xf32>
    %698 = math.exp %697 : vector<1x32xf32>
    %cst_178 = arith.constant 1.000000e+00 : f32
    %699 = vector.broadcast %cst_178 : f32 to vector<1x32xf32>
    %700 = arith.addf %699, %698 : vector<1x32xf32>
    %701 = arith.divf %699, %700 : vector<1x32xf32>
    %702 = vector.extract_strided_slice %691 {offsets = [0, 32], sizes = [1, 32], strides = [1, 1]} : vector<1x96xf32> to vector<1x32xf32>
    %703 = vector.extract_strided_slice %693 {offsets = [0, 32], sizes = [1, 32], strides = [1, 1]} : vector<1x96xf32> to vector<1x32xf32>
    %704 = arith.addf %702, %703 : vector<1x32xf32>
    %705 = arith.negf %704 : vector<1x32xf32>
    %706 = math.exp %705 : vector<1x32xf32>
    %cst_179 = arith.constant 1.000000e+00 : f32
    %707 = vector.broadcast %cst_179 : f32 to vector<1x32xf32>
    %708 = arith.addf %707, %706 : vector<1x32xf32>
    %709 = arith.divf %707, %708 : vector<1x32xf32>
    %710 = vector.extract_strided_slice %691 {offsets = [0, 64], sizes = [1, 32], strides = [1, 1]} : vector<1x96xf32> to vector<1x32xf32>
    %711 = vector.extract_strided_slice %693 {offsets = [0, 64], sizes = [1, 32], strides = [1, 1]} : vector<1x96xf32> to vector<1x32xf32>
    %712 = arith.mulf %701, %711 : vector<1x32xf32>
    %713 = arith.addf %710, %712 : vector<1x32xf32>
    %714 = math.tanh %713 : vector<1x32xf32>
    %cst_180 = arith.constant 1.000000e+00 : f32
    %715 = vector.broadcast %cst_180 : f32 to vector<1x32xf32>
    %716 = arith.subf %715, %709 : vector<1x32xf32>
    %717 = arith.mulf %716, %714 : vector<1x32xf32>
    %718 = arith.mulf %709, %659 : vector<1x32xf32>
    %719 = arith.addf %717, %718 : vector<1x32xf32>
    %720 = vector.extract_strided_slice %570 {offsets = [5, 0], sizes = [1, 96], strides = [1, 1]} : vector<8x96xf32> to vector<1x96xf32>
    %cst_181 = arith.constant dense<0.000000e+00> : vector<1x96xf32>
    %721 = tpu.matmul %688, %552, %cst_181 {dimension_numbers = #tpu.dot_dimension_numbers<[1], [0], [0], [1], [0, 0, 1, 1], [], []>} : vector<1x32xf32>, vector<32x96xf32>, vector<1x96xf32> -> vector<1x96xf32>
    %722 = arith.addf %721, %556 : vector<1x96xf32>
    %723 = vector.extract_strided_slice %720 {offsets = [0, 0], sizes = [1, 32], strides = [1, 1]} : vector<1x96xf32> to vector<1x32xf32>
    %724 = vector.extract_strided_slice %722 {offsets = [0, 0], sizes = [1, 32], strides = [1, 1]} : vector<1x96xf32> to vector<1x32xf32>
    %725 = arith.addf %723, %724 : vector<1x32xf32>
    %726 = arith.negf %725 : vector<1x32xf32>
    %727 = math.exp %726 : vector<1x32xf32>
    %cst_182 = arith.constant 1.000000e+00 : f32
    %728 = vector.broadcast %cst_182 : f32 to vector<1x32xf32>
    %729 = arith.addf %728, %727 : vector<1x32xf32>
    %730 = arith.divf %728, %729 : vector<1x32xf32>
    %731 = vector.extract_strided_slice %720 {offsets = [0, 32], sizes = [1, 32], strides = [1, 1]} : vector<1x96xf32> to vector<1x32xf32>
    %732 = vector.extract_strided_slice %722 {offsets = [0, 32], sizes = [1, 32], strides = [1, 1]} : vector<1x96xf32> to vector<1x32xf32>
    %733 = arith.addf %731, %732 : vector<1x32xf32>
    %734 = arith.negf %733 : vector<1x32xf32>
    %735 = math.exp %734 : vector<1x32xf32>
    %cst_183 = arith.constant 1.000000e+00 : f32
    %736 = vector.broadcast %cst_183 : f32 to vector<1x32xf32>
    %737 = arith.addf %736, %735 : vector<1x32xf32>
    %738 = arith.divf %736, %737 : vector<1x32xf32>
    %739 = vector.extract_strided_slice %720 {offsets = [0, 64], sizes = [1, 32], strides = [1, 1]} : vector<1x96xf32> to vector<1x32xf32>
    %740 = vector.extract_strided_slice %722 {offsets = [0, 64], sizes = [1, 32], strides = [1, 1]} : vector<1x96xf32> to vector<1x32xf32>
    %741 = arith.mulf %730, %740 : vector<1x32xf32>
    %742 = arith.addf %739, %741 : vector<1x32xf32>
    %743 = math.tanh %742 : vector<1x32xf32>
    %cst_184 = arith.constant 1.000000e+00 : f32
    %744 = vector.broadcast %cst_184 : f32 to vector<1x32xf32>
    %745 = arith.subf %744, %738 : vector<1x32xf32>
    %746 = arith.mulf %745, %743 : vector<1x32xf32>
    %747 = arith.mulf %738, %688 : vector<1x32xf32>
    %748 = arith.addf %746, %747 : vector<1x32xf32>
    %c2_185 = arith.constant 2 : index
    %c0_186 = arith.constant 0 : index
    %749 = vector.load %arg15[%c2_185, %c0_186] : memref<8x64xf32, #tpu.memory_space<vmem>>, vector<1x32xf32>
    tpu.vector_store %arg15[%c2_185, %c0_186], %719 {strides = array<i32>} : memref<8x64xf32, #tpu.memory_space<vmem>>, vector<1x32xf32>,
    %c5_187 = arith.constant 5 : index
    %c32_188 = arith.constant 32 : index
    %750 = vector.load %arg15[%c5_187, %c32_188] : memref<8x64xf32, #tpu.memory_space<vmem>>, vector<1x32xf32>
    tpu.vector_store %arg15[%c5_187, %c32_188], %748 {strides = array<i32>} : memref<8x64xf32, #tpu.memory_space<vmem>>, vector<1x32xf32>,
    %751 = vector.extract_strided_slice %563 {offsets = [3, 0], sizes = [1, 96], strides = [1, 1]} : vector<8x96xf32> to vector<1x96xf32>
    %cst_189 = arith.constant dense<0.000000e+00> : vector<1x96xf32>
    %752 = tpu.matmul %719, %550, %cst_189 {dimension_numbers = #tpu.dot_dimension_numbers<[1], [0], [0], [1], [0, 0, 1, 1], [], []>} : vector<1x32xf32>, vector<32x96xf32>, vector<1x96xf32> -> vector<1x96xf32>
    %753 = arith.addf %752, %554 : vector<1x96xf32>
    %754 = vector.extract_strided_slice %751 {offsets = [0, 0], sizes = [1, 32], strides = [1, 1]} : vector<1x96xf32> to vector<1x32xf32>
    %755 = vector.extract_strided_slice %753 {offsets = [0, 0], sizes = [1, 32], strides = [1, 1]} : vector<1x96xf32> to vector<1x32xf32>
    %756 = arith.addf %754, %755 : vector<1x32xf32>
    %757 = arith.negf %756 : vector<1x32xf32>
    %758 = math.exp %757 : vector<1x32xf32>
    %cst_190 = arith.constant 1.000000e+00 : f32
    %759 = vector.broadcast %cst_190 : f32 to vector<1x32xf32>
    %760 = arith.addf %759, %758 : vector<1x32xf32>
    %761 = arith.divf %759, %760 : vector<1x32xf32>
    %762 = vector.extract_strided_slice %751 {offsets = [0, 32], sizes = [1, 32], strides = [1, 1]} : vector<1x96xf32> to vector<1x32xf32>
    %763 = vector.extract_strided_slice %753 {offsets = [0, 32], sizes = [1, 32], strides = [1, 1]} : vector<1x96xf32> to vector<1x32xf32>
    %764 = arith.addf %762, %763 : vector<1x32xf32>
    %765 = arith.negf %764 : vector<1x32xf32>
    %766 = math.exp %765 : vector<1x32xf32>
    %cst_191 = arith.constant 1.000000e+00 : f32
    %767 = vector.broadcast %cst_191 : f32 to vector<1x32xf32>
    %768 = arith.addf %767, %766 : vector<1x32xf32>
    %769 = arith.divf %767, %768 : vector<1x32xf32>
    %770 = vector.extract_strided_slice %751 {offsets = [0, 64], sizes = [1, 32], strides = [1, 1]} : vector<1x96xf32> to vector<1x32xf32>
    %771 = vector.extract_strided_slice %753 {offsets = [0, 64], sizes = [1, 32], strides = [1, 1]} : vector<1x96xf32> to vector<1x32xf32>
    %772 = arith.mulf %761, %771 : vector<1x32xf32>
    %773 = arith.addf %770, %772 : vector<1x32xf32>
    %774 = math.tanh %773 : vector<1x32xf32>
    %cst_192 = arith.constant 1.000000e+00 : f32
    %775 = vector.broadcast %cst_192 : f32 to vector<1x32xf32>
    %776 = arith.subf %775, %769 : vector<1x32xf32>
    %777 = arith.mulf %776, %774 : vector<1x32xf32>
    %778 = arith.mulf %769, %719 : vector<1x32xf32>
    %779 = arith.addf %777, %778 : vector<1x32xf32>
    %780 = vector.extract_strided_slice %570 {offsets = [4, 0], sizes = [1, 96], strides = [1, 1]} : vector<8x96xf32> to vector<1x96xf32>
    %cst_193 = arith.constant dense<0.000000e+00> : vector<1x96xf32>
    %781 = tpu.matmul %748, %552, %cst_193 {dimension_numbers = #tpu.dot_dimension_numbers<[1], [0], [0], [1], [0, 0, 1, 1], [], []>} : vector<1x32xf32>, vector<32x96xf32>, vector<1x96xf32> -> vector<1x96xf32>
    %782 = arith.addf %781, %556 : vector<1x96xf32>
    %783 = vector.extract_strided_slice %780 {offsets = [0, 0], sizes = [1, 32], strides = [1, 1]} : vector<1x96xf32> to vector<1x32xf32>
    %784 = vector.extract_strided_slice %782 {offsets = [0, 0], sizes = [1, 32], strides = [1, 1]} : vector<1x96xf32> to vector<1x32xf32>
    %785 = arith.addf %783, %784 : vector<1x32xf32>
    %786 = arith.negf %785 : vector<1x32xf32>
    %787 = math.exp %786 : vector<1x32xf32>
    %cst_194 = arith.constant 1.000000e+00 : f32
    %788 = vector.broadcast %cst_194 : f32 to vector<1x32xf32>
    %789 = arith.addf %788, %787 : vector<1x32xf32>
    %790 = arith.divf %788, %789 : vector<1x32xf32>
    %791 = vector.extract_strided_slice %780 {offsets = [0, 32], sizes = [1, 32], strides = [1, 1]} : vector<1x96xf32> to vector<1x32xf32>
    %792 = vector.extract_strided_slice %782 {offsets = [0, 32], sizes = [1, 32], strides = [1, 1]} : vector<1x96xf32> to vector<1x32xf32>
    %793 = arith.addf %791, %792 : vector<1x32xf32>
    %794 = arith.negf %793 : vector<1x32xf32>
    %795 = math.exp %794 : vector<1x32xf32>
    %cst_195 = arith.constant 1.000000e+00 : f32
    %796 = vector.broadcast %cst_195 : f32 to vector<1x32xf32>
    %797 = arith.addf %796, %795 : vector<1x32xf32>
    %798 = arith.divf %796, %797 : vector<1x32xf32>
    %799 = vector.extract_strided_slice %780 {offsets = [0, 64], sizes = [1, 32], strides = [1, 1]} : vector<1x96xf32> to vector<1x32xf32>
    %800 = vector.extract_strided_slice %782 {offsets = [0, 64], sizes = [1, 32], strides = [1, 1]} : vector<1x96xf32> to vector<1x32xf32>
    %801 = arith.mulf %790, %800 : vector<1x32xf32>
    %802 = arith.addf %799, %801 : vector<1x32xf32>
    %803 = math.tanh %802 : vector<1x32xf32>
    %cst_196 = arith.constant 1.000000e+00 : f32
    %804 = vector.broadcast %cst_196 : f32 to vector<1x32xf32>
    %805 = arith.subf %804, %798 : vector<1x32xf32>
    %806 = arith.mulf %805, %803 : vector<1x32xf32>
    %807 = arith.mulf %798, %748 : vector<1x32xf32>
    %808 = arith.addf %806, %807 : vector<1x32xf32>
    %c3_197 = arith.constant 3 : index
    %c0_198 = arith.constant 0 : index
    %809 = vector.load %arg15[%c3_197, %c0_198] : memref<8x64xf32, #tpu.memory_space<vmem>>, vector<1x32xf32>
    tpu.vector_store %arg15[%c3_197, %c0_198], %779 {strides = array<i32>} : memref<8x64xf32, #tpu.memory_space<vmem>>, vector<1x32xf32>,
    %c4_199 = arith.constant 4 : index
    %c32_200 = arith.constant 32 : index
    %810 = vector.load %arg15[%c4_199, %c32_200] : memref<8x64xf32, #tpu.memory_space<vmem>>, vector<1x32xf32>
    tpu.vector_store %arg15[%c4_199, %c32_200], %808 {strides = array<i32>} : memref<8x64xf32, #tpu.memory_space<vmem>>, vector<1x32xf32>,
    %811 = vector.extract_strided_slice %563 {offsets = [4, 0], sizes = [1, 96], strides = [1, 1]} : vector<8x96xf32> to vector<1x96xf32>
    %cst_201 = arith.constant dense<0.000000e+00> : vector<1x96xf32>
    %812 = tpu.matmul %779, %550, %cst_201 {dimension_numbers = #tpu.dot_dimension_numbers<[1], [0], [0], [1], [0, 0, 1, 1], [], []>} : vector<1x32xf32>, vector<32x96xf32>, vector<1x96xf32> -> vector<1x96xf32>
    %813 = arith.addf %812, %554 : vector<1x96xf32>
    %814 = vector.extract_strided_slice %811 {offsets = [0, 0], sizes = [1, 32], strides = [1, 1]} : vector<1x96xf32> to vector<1x32xf32>
    %815 = vector.extract_strided_slice %813 {offsets = [0, 0], sizes = [1, 32], strides = [1, 1]} : vector<1x96xf32> to vector<1x32xf32>
    %816 = arith.addf %814, %815 : vector<1x32xf32>
    %817 = arith.negf %816 : vector<1x32xf32>
    %818 = math.exp %817 : vector<1x32xf32>
    %cst_202 = arith.constant 1.000000e+00 : f32
    %819 = vector.broadcast %cst_202 : f32 to vector<1x32xf32>
    %820 = arith.addf %819, %818 : vector<1x32xf32>
    %821 = arith.divf %819, %820 : vector<1x32xf32>
    %822 = vector.extract_strided_slice %811 {offsets = [0, 32], sizes = [1, 32], strides = [1, 1]} : vector<1x96xf32> to vector<1x32xf32>
    %823 = vector.extract_strided_slice %813 {offsets = [0, 32], sizes = [1, 32], strides = [1, 1]} : vector<1x96xf32> to vector<1x32xf32>
    %824 = arith.addf %822, %823 : vector<1x32xf32>
    %825 = arith.negf %824 : vector<1x32xf32>
    %826 = math.exp %825 : vector<1x32xf32>
    %cst_203 = arith.constant 1.000000e+00 : f32
    %827 = vector.broadcast %cst_203 : f32 to vector<1x32xf32>
    %828 = arith.addf %827, %826 : vector<1x32xf32>
    %829 = arith.divf %827, %828 : vector<1x32xf32>
    %830 = vector.extract_strided_slice %811 {offsets = [0, 64], sizes = [1, 32], strides = [1, 1]} : vector<1x96xf32> to vector<1x32xf32>
    %831 = vector.extract_strided_slice %813 {offsets = [0, 64], sizes = [1, 32], strides = [1, 1]} : vector<1x96xf32> to vector<1x32xf32>
    %832 = arith.mulf %821, %831 : vector<1x32xf32>
    %833 = arith.addf %830, %832 : vector<1x32xf32>
    %834 = math.tanh %833 : vector<1x32xf32>
    %cst_204 = arith.constant 1.000000e+00 : f32
    %835 = vector.broadcast %cst_204 : f32 to vector<1x32xf32>
    %836 = arith.subf %835, %829 : vector<1x32xf32>
    %837 = arith.mulf %836, %834 : vector<1x32xf32>
    %838 = arith.mulf %829, %779 : vector<1x32xf32>
    %839 = arith.addf %837, %838 : vector<1x32xf32>
    %840 = vector.extract_strided_slice %570 {offsets = [3, 0], sizes = [1, 96], strides = [1, 1]} : vector<8x96xf32> to vector<1x96xf32>
    %cst_205 = arith.constant dense<0.000000e+00> : vector<1x96xf32>
    %841 = tpu.matmul %808, %552, %cst_205 {dimension_numbers = #tpu.dot_dimension_numbers<[1], [0], [0], [1], [0, 0, 1, 1], [], []>} : vector<1x32xf32>, vector<32x96xf32>, vector<1x96xf32> -> vector<1x96xf32>
    %842 = arith.addf %841, %556 : vector<1x96xf32>
    %843 = vector.extract_strided_slice %840 {offsets = [0, 0], sizes = [1, 32], strides = [1, 1]} : vector<1x96xf32> to vector<1x32xf32>
    %844 = vector.extract_strided_slice %842 {offsets = [0, 0], sizes = [1, 32], strides = [1, 1]} : vector<1x96xf32> to vector<1x32xf32>
    %845 = arith.addf %843, %844 : vector<1x32xf32>
    %846 = arith.negf %845 : vector<1x32xf32>
    %847 = math.exp %846 : vector<1x32xf32>
    %cst_206 = arith.constant 1.000000e+00 : f32
    %848 = vector.broadcast %cst_206 : f32 to vector<1x32xf32>
    %849 = arith.addf %848, %847 : vector<1x32xf32>
    %850 = arith.divf %848, %849 : vector<1x32xf32>
    %851 = vector.extract_strided_slice %840 {offsets = [0, 32], sizes = [1, 32], strides = [1, 1]} : vector<1x96xf32> to vector<1x32xf32>
    %852 = vector.extract_strided_slice %842 {offsets = [0, 32], sizes = [1, 32], strides = [1, 1]} : vector<1x96xf32> to vector<1x32xf32>
    %853 = arith.addf %851, %852 : vector<1x32xf32>
    %854 = arith.negf %853 : vector<1x32xf32>
    %855 = math.exp %854 : vector<1x32xf32>
    %cst_207 = arith.constant 1.000000e+00 : f32
    %856 = vector.broadcast %cst_207 : f32 to vector<1x32xf32>
    %857 = arith.addf %856, %855 : vector<1x32xf32>
    %858 = arith.divf %856, %857 : vector<1x32xf32>
    %859 = vector.extract_strided_slice %840 {offsets = [0, 64], sizes = [1, 32], strides = [1, 1]} : vector<1x96xf32> to vector<1x32xf32>
    %860 = vector.extract_strided_slice %842 {offsets = [0, 64], sizes = [1, 32], strides = [1, 1]} : vector<1x96xf32> to vector<1x32xf32>
    %861 = arith.mulf %850, %860 : vector<1x32xf32>
    %862 = arith.addf %859, %861 : vector<1x32xf32>
    %863 = math.tanh %862 : vector<1x32xf32>
    %cst_208 = arith.constant 1.000000e+00 : f32
    %864 = vector.broadcast %cst_208 : f32 to vector<1x32xf32>
    %865 = arith.subf %864, %858 : vector<1x32xf32>
    %866 = arith.mulf %865, %863 : vector<1x32xf32>
    %867 = arith.mulf %858, %808 : vector<1x32xf32>
    %868 = arith.addf %866, %867 : vector<1x32xf32>
    %c4_209 = arith.constant 4 : index
    %c0_210 = arith.constant 0 : index
    %869 = vector.load %arg15[%c4_209, %c0_210] : memref<8x64xf32, #tpu.memory_space<vmem>>, vector<1x32xf32>
    tpu.vector_store %arg15[%c4_209, %c0_210], %839 {strides = array<i32>} : memref<8x64xf32, #tpu.memory_space<vmem>>, vector<1x32xf32>,
    %c3_211 = arith.constant 3 : index
    %c32_212 = arith.constant 32 : index
    %870 = vector.load %arg15[%c3_211, %c32_212] : memref<8x64xf32, #tpu.memory_space<vmem>>, vector<1x32xf32>
    tpu.vector_store %arg15[%c3_211, %c32_212], %868 {strides = array<i32>} : memref<8x64xf32, #tpu.memory_space<vmem>>, vector<1x32xf32>,
    %871 = vector.extract_strided_slice %563 {offsets = [5, 0], sizes = [1, 96], strides = [1, 1]} : vector<8x96xf32> to vector<1x96xf32>
    %cst_213 = arith.constant dense<0.000000e+00> : vector<1x96xf32>
    %872 = tpu.matmul %839, %550, %cst_213 {dimension_numbers = #tpu.dot_dimension_numbers<[1], [0], [0], [1], [0, 0, 1, 1], [], []>} : vector<1x32xf32>, vector<32x96xf32>, vector<1x96xf32> -> vector<1x96xf32>
    %873 = arith.addf %872, %554 : vector<1x96xf32>
    %874 = vector.extract_strided_slice %871 {offsets = [0, 0], sizes = [1, 32], strides = [1, 1]} : vector<1x96xf32> to vector<1x32xf32>
    %875 = vector.extract_strided_slice %873 {offsets = [0, 0], sizes = [1, 32], strides = [1, 1]} : vector<1x96xf32> to vector<1x32xf32>
    %876 = arith.addf %874, %875 : vector<1x32xf32>
    %877 = arith.negf %876 : vector<1x32xf32>
    %878 = math.exp %877 : vector<1x32xf32>
    %cst_214 = arith.constant 1.000000e+00 : f32
    %879 = vector.broadcast %cst_214 : f32 to vector<1x32xf32>
    %880 = arith.addf %879, %878 : vector<1x32xf32>
    %881 = arith.divf %879, %880 : vector<1x32xf32>
    %882 = vector.extract_strided_slice %871 {offsets = [0, 32], sizes = [1, 32], strides = [1, 1]} : vector<1x96xf32> to vector<1x32xf32>
    %883 = vector.extract_strided_slice %873 {offsets = [0, 32], sizes = [1, 32], strides = [1, 1]} : vector<1x96xf32> to vector<1x32xf32>
    %884 = arith.addf %882, %883 : vector<1x32xf32>
    %885 = arith.negf %884 : vector<1x32xf32>
    %886 = math.exp %885 : vector<1x32xf32>
    %cst_215 = arith.constant 1.000000e+00 : f32
    %887 = vector.broadcast %cst_215 : f32 to vector<1x32xf32>
    %888 = arith.addf %887, %886 : vector<1x32xf32>
    %889 = arith.divf %887, %888 : vector<1x32xf32>
    %890 = vector.extract_strided_slice %871 {offsets = [0, 64], sizes = [1, 32], strides = [1, 1]} : vector<1x96xf32> to vector<1x32xf32>
    %891 = vector.extract_strided_slice %873 {offsets = [0, 64], sizes = [1, 32], strides = [1, 1]} : vector<1x96xf32> to vector<1x32xf32>
    %892 = arith.mulf %881, %891 : vector<1x32xf32>
    %893 = arith.addf %890, %892 : vector<1x32xf32>
    %894 = math.tanh %893 : vector<1x32xf32>
    %cst_216 = arith.constant 1.000000e+00 : f32
    %895 = vector.broadcast %cst_216 : f32 to vector<1x32xf32>
    %896 = arith.subf %895, %889 : vector<1x32xf32>
    %897 = arith.mulf %896, %894 : vector<1x32xf32>
    %898 = arith.mulf %889, %839 : vector<1x32xf32>
    %899 = arith.addf %897, %898 : vector<1x32xf32>
    %900 = vector.extract_strided_slice %570 {offsets = [2, 0], sizes = [1, 96], strides = [1, 1]} : vector<8x96xf32> to vector<1x96xf32>
    %cst_217 = arith.constant dense<0.000000e+00> : vector<1x96xf32>
    %901 = tpu.matmul %868, %552, %cst_217 {dimension_numbers = #tpu.dot_dimension_numbers<[1], [0], [0], [1], [0, 0, 1, 1], [], []>} : vector<1x32xf32>, vector<32x96xf32>, vector<1x96xf32> -> vector<1x96xf32>
    %902 = arith.addf %901, %556 : vector<1x96xf32>
    %903 = vector.extract_strided_slice %900 {offsets = [0, 0], sizes = [1, 32], strides = [1, 1]} : vector<1x96xf32> to vector<1x32xf32>
    %904 = vector.extract_strided_slice %902 {offsets = [0, 0], sizes = [1, 32], strides = [1, 1]} : vector<1x96xf32> to vector<1x32xf32>
    %905 = arith.addf %903, %904 : vector<1x32xf32>
    %906 = arith.negf %905 : vector<1x32xf32>
    %907 = math.exp %906 : vector<1x32xf32>
    %cst_218 = arith.constant 1.000000e+00 : f32
    %908 = vector.broadcast %cst_218 : f32 to vector<1x32xf32>
    %909 = arith.addf %908, %907 : vector<1x32xf32>
    %910 = arith.divf %908, %909 : vector<1x32xf32>
    %911 = vector.extract_strided_slice %900 {offsets = [0, 32], sizes = [1, 32], strides = [1, 1]} : vector<1x96xf32> to vector<1x32xf32>
    %912 = vector.extract_strided_slice %902 {offsets = [0, 32], sizes = [1, 32], strides = [1, 1]} : vector<1x96xf32> to vector<1x32xf32>
    %913 = arith.addf %911, %912 : vector<1x32xf32>
    %914 = arith.negf %913 : vector<1x32xf32>
    %915 = math.exp %914 : vector<1x32xf32>
    %cst_219 = arith.constant 1.000000e+00 : f32
    %916 = vector.broadcast %cst_219 : f32 to vector<1x32xf32>
    %917 = arith.addf %916, %915 : vector<1x32xf32>
    %918 = arith.divf %916, %917 : vector<1x32xf32>
    %919 = vector.extract_strided_slice %900 {offsets = [0, 64], sizes = [1, 32], strides = [1, 1]} : vector<1x96xf32> to vector<1x32xf32>
    %920 = vector.extract_strided_slice %902 {offsets = [0, 64], sizes = [1, 32], strides = [1, 1]} : vector<1x96xf32> to vector<1x32xf32>
    %921 = arith.mulf %910, %920 : vector<1x32xf32>
    %922 = arith.addf %919, %921 : vector<1x32xf32>
    %923 = math.tanh %922 : vector<1x32xf32>
    %cst_220 = arith.constant 1.000000e+00 : f32
    %924 = vector.broadcast %cst_220 : f32 to vector<1x32xf32>
    %925 = arith.subf %924, %918 : vector<1x32xf32>
    %926 = arith.mulf %925, %923 : vector<1x32xf32>
    %927 = arith.mulf %918, %868 : vector<1x32xf32>
    %928 = arith.addf %926, %927 : vector<1x32xf32>
    %c5_221 = arith.constant 5 : index
    %c0_222 = arith.constant 0 : index
    %929 = vector.load %arg15[%c5_221, %c0_222] : memref<8x64xf32, #tpu.memory_space<vmem>>, vector<1x32xf32>
    tpu.vector_store %arg15[%c5_221, %c0_222], %899 {strides = array<i32>} : memref<8x64xf32, #tpu.memory_space<vmem>>, vector<1x32xf32>,
    %c2_223 = arith.constant 2 : index
    %c32_224 = arith.constant 32 : index
    %930 = vector.load %arg15[%c2_223, %c32_224] : memref<8x64xf32, #tpu.memory_space<vmem>>, vector<1x32xf32>
    tpu.vector_store %arg15[%c2_223, %c32_224], %928 {strides = array<i32>} : memref<8x64xf32, #tpu.memory_space<vmem>>, vector<1x32xf32>,
    %931 = vector.extract_strided_slice %563 {offsets = [6, 0], sizes = [1, 96], strides = [1, 1]} : vector<8x96xf32> to vector<1x96xf32>
    %cst_225 = arith.constant dense<0.000000e+00> : vector<1x96xf32>
    %932 = tpu.matmul %899, %550, %cst_225 {dimension_numbers = #tpu.dot_dimension_numbers<[1], [0], [0], [1], [0, 0, 1, 1], [], []>} : vector<1x32xf32>, vector<32x96xf32>, vector<1x96xf32> -> vector<1x96xf32>
    %933 = arith.addf %932, %554 : vector<1x96xf32>
    %934 = vector.extract_strided_slice %931 {offsets = [0, 0], sizes = [1, 32], strides = [1, 1]} : vector<1x96xf32> to vector<1x32xf32>
    %935 = vector.extract_strided_slice %933 {offsets = [0, 0], sizes = [1, 32], strides = [1, 1]} : vector<1x96xf32> to vector<1x32xf32>
    %936 = arith.addf %934, %935 : vector<1x32xf32>
    %937 = arith.negf %936 : vector<1x32xf32>
    %938 = math.exp %937 : vector<1x32xf32>
    %cst_226 = arith.constant 1.000000e+00 : f32
    %939 = vector.broadcast %cst_226 : f32 to vector<1x32xf32>
    %940 = arith.addf %939, %938 : vector<1x32xf32>
    %941 = arith.divf %939, %940 : vector<1x32xf32>
    %942 = vector.extract_strided_slice %931 {offsets = [0, 32], sizes = [1, 32], strides = [1, 1]} : vector<1x96xf32> to vector<1x32xf32>
    %943 = vector.extract_strided_slice %933 {offsets = [0, 32], sizes = [1, 32], strides = [1, 1]} : vector<1x96xf32> to vector<1x32xf32>
    %944 = arith.addf %942, %943 : vector<1x32xf32>
    %945 = arith.negf %944 : vector<1x32xf32>
    %946 = math.exp %945 : vector<1x32xf32>
    %cst_227 = arith.constant 1.000000e+00 : f32
    %947 = vector.broadcast %cst_227 : f32 to vector<1x32xf32>
    %948 = arith.addf %947, %946 : vector<1x32xf32>
    %949 = arith.divf %947, %948 : vector<1x32xf32>
    %950 = vector.extract_strided_slice %931 {offsets = [0, 64], sizes = [1, 32], strides = [1, 1]} : vector<1x96xf32> to vector<1x32xf32>
    %951 = vector.extract_strided_slice %933 {offsets = [0, 64], sizes = [1, 32], strides = [1, 1]} : vector<1x96xf32> to vector<1x32xf32>
    %952 = arith.mulf %941, %951 : vector<1x32xf32>
    %953 = arith.addf %950, %952 : vector<1x32xf32>
    %954 = math.tanh %953 : vector<1x32xf32>
    %cst_228 = arith.constant 1.000000e+00 : f32
    %955 = vector.broadcast %cst_228 : f32 to vector<1x32xf32>
    %956 = arith.subf %955, %949 : vector<1x32xf32>
    %957 = arith.mulf %956, %954 : vector<1x32xf32>
    %958 = arith.mulf %949, %899 : vector<1x32xf32>
    %959 = arith.addf %957, %958 : vector<1x32xf32>
    %960 = vector.extract_strided_slice %570 {offsets = [1, 0], sizes = [1, 96], strides = [1, 1]} : vector<8x96xf32> to vector<1x96xf32>
    %cst_229 = arith.constant dense<0.000000e+00> : vector<1x96xf32>
    %961 = tpu.matmul %928, %552, %cst_229 {dimension_numbers = #tpu.dot_dimension_numbers<[1], [0], [0], [1], [0, 0, 1, 1], [], []>} : vector<1x32xf32>, vector<32x96xf32>, vector<1x96xf32> -> vector<1x96xf32>
    %962 = arith.addf %961, %556 : vector<1x96xf32>
    %963 = vector.extract_strided_slice %960 {offsets = [0, 0], sizes = [1, 32], strides = [1, 1]} : vector<1x96xf32> to vector<1x32xf32>
    %964 = vector.extract_strided_slice %962 {offsets = [0, 0], sizes = [1, 32], strides = [1, 1]} : vector<1x96xf32> to vector<1x32xf32>
    %965 = arith.addf %963, %964 : vector<1x32xf32>
    %966 = arith.negf %965 : vector<1x32xf32>
    %967 = math.exp %966 : vector<1x32xf32>
    %cst_230 = arith.constant 1.000000e+00 : f32
    %968 = vector.broadcast %cst_230 : f32 to vector<1x32xf32>
    %969 = arith.addf %968, %967 : vector<1x32xf32>
    %970 = arith.divf %968, %969 : vector<1x32xf32>
    %971 = vector.extract_strided_slice %960 {offsets = [0, 32], sizes = [1, 32], strides = [1, 1]} : vector<1x96xf32> to vector<1x32xf32>
    %972 = vector.extract_strided_slice %962 {offsets = [0, 32], sizes = [1, 32], strides = [1, 1]} : vector<1x96xf32> to vector<1x32xf32>
    %973 = arith.addf %971, %972 : vector<1x32xf32>
    %974 = arith.negf %973 : vector<1x32xf32>
    %975 = math.exp %974 : vector<1x32xf32>
    %cst_231 = arith.constant 1.000000e+00 : f32
    %976 = vector.broadcast %cst_231 : f32 to vector<1x32xf32>
    %977 = arith.addf %976, %975 : vector<1x32xf32>
    %978 = arith.divf %976, %977 : vector<1x32xf32>
    %979 = vector.extract_strided_slice %960 {offsets = [0, 64], sizes = [1, 32], strides = [1, 1]} : vector<1x96xf32> to vector<1x32xf32>
    %980 = vector.extract_strided_slice %962 {offsets = [0, 64], sizes = [1, 32], strides = [1, 1]} : vector<1x96xf32> to vector<1x32xf32>
    %981 = arith.mulf %970, %980 : vector<1x32xf32>
    %982 = arith.addf %979, %981 : vector<1x32xf32>
    %983 = math.tanh %982 : vector<1x32xf32>
    %cst_232 = arith.constant 1.000000e+00 : f32
    %984 = vector.broadcast %cst_232 : f32 to vector<1x32xf32>
    %985 = arith.subf %984, %978 : vector<1x32xf32>
    %986 = arith.mulf %985, %983 : vector<1x32xf32>
    %987 = arith.mulf %978, %928 : vector<1x32xf32>
    %988 = arith.addf %986, %987 : vector<1x32xf32>
    %c6_233 = arith.constant 6 : index
    %c0_234 = arith.constant 0 : index
    %989 = vector.load %arg15[%c6_233, %c0_234] : memref<8x64xf32, #tpu.memory_space<vmem>>, vector<1x32xf32>
    tpu.vector_store %arg15[%c6_233, %c0_234], %959 {strides = array<i32>} : memref<8x64xf32, #tpu.memory_space<vmem>>, vector<1x32xf32>,
    %c1_235 = arith.constant 1 : index
    %c32_236 = arith.constant 32 : index
    %990 = vector.load %arg15[%c1_235, %c32_236] : memref<8x64xf32, #tpu.memory_space<vmem>>, vector<1x32xf32>
    tpu.vector_store %arg15[%c1_235, %c32_236], %988 {strides = array<i32>} : memref<8x64xf32, #tpu.memory_space<vmem>>, vector<1x32xf32>,
    %991 = vector.extract_strided_slice %563 {offsets = [7, 0], sizes = [1, 96], strides = [1, 1]} : vector<8x96xf32> to vector<1x96xf32>
    %cst_237 = arith.constant dense<0.000000e+00> : vector<1x96xf32>
    %992 = tpu.matmul %959, %550, %cst_237 {dimension_numbers = #tpu.dot_dimension_numbers<[1], [0], [0], [1], [0, 0, 1, 1], [], []>} : vector<1x32xf32>, vector<32x96xf32>, vector<1x96xf32> -> vector<1x96xf32>
    %993 = arith.addf %992, %554 : vector<1x96xf32>
    %994 = vector.extract_strided_slice %991 {offsets = [0, 0], sizes = [1, 32], strides = [1, 1]} : vector<1x96xf32> to vector<1x32xf32>
    %995 = vector.extract_strided_slice %993 {offsets = [0, 0], sizes = [1, 32], strides = [1, 1]} : vector<1x96xf32> to vector<1x32xf32>
    %996 = arith.addf %994, %995 : vector<1x32xf32>
    %997 = arith.negf %996 : vector<1x32xf32>
    %998 = math.exp %997 : vector<1x32xf32>
    %cst_238 = arith.constant 1.000000e+00 : f32
    %999 = vector.broadcast %cst_238 : f32 to vector<1x32xf32>
    %1000 = arith.addf %999, %998 : vector<1x32xf32>
    %1001 = arith.divf %999, %1000 : vector<1x32xf32>
    %1002 = vector.extract_strided_slice %991 {offsets = [0, 32], sizes = [1, 32], strides = [1, 1]} : vector<1x96xf32> to vector<1x32xf32>
    %1003 = vector.extract_strided_slice %993 {offsets = [0, 32], sizes = [1, 32], strides = [1, 1]} : vector<1x96xf32> to vector<1x32xf32>
    %1004 = arith.addf %1002, %1003 : vector<1x32xf32>
    %1005 = arith.negf %1004 : vector<1x32xf32>
    %1006 = math.exp %1005 : vector<1x32xf32>
    %cst_239 = arith.constant 1.000000e+00 : f32
    %1007 = vector.broadcast %cst_239 : f32 to vector<1x32xf32>
    %1008 = arith.addf %1007, %1006 : vector<1x32xf32>
    %1009 = arith.divf %1007, %1008 : vector<1x32xf32>
    %1010 = vector.extract_strided_slice %991 {offsets = [0, 64], sizes = [1, 32], strides = [1, 1]} : vector<1x96xf32> to vector<1x32xf32>
    %1011 = vector.extract_strided_slice %993 {offsets = [0, 64], sizes = [1, 32], strides = [1, 1]} : vector<1x96xf32> to vector<1x32xf32>
    %1012 = arith.mulf %1001, %1011 : vector<1x32xf32>
    %1013 = arith.addf %1010, %1012 : vector<1x32xf32>
    %1014 = math.tanh %1013 : vector<1x32xf32>
    %cst_240 = arith.constant 1.000000e+00 : f32
    %1015 = vector.broadcast %cst_240 : f32 to vector<1x32xf32>
    %1016 = arith.subf %1015, %1009 : vector<1x32xf32>
    %1017 = arith.mulf %1016, %1014 : vector<1x32xf32>
    %1018 = arith.mulf %1009, %959 : vector<1x32xf32>
    %1019 = arith.addf %1017, %1018 : vector<1x32xf32>
    %1020 = vector.extract_strided_slice %570 {offsets = [0, 0], sizes = [1, 96], strides = [1, 1]} : vector<8x96xf32> to vector<1x96xf32>
    %cst_241 = arith.constant dense<0.000000e+00> : vector<1x96xf32>
    %1021 = tpu.matmul %988, %552, %cst_241 {dimension_numbers = #tpu.dot_dimension_numbers<[1], [0], [0], [1], [0, 0, 1, 1], [], []>} : vector<1x32xf32>, vector<32x96xf32>, vector<1x96xf32> -> vector<1x96xf32>
    %1022 = arith.addf %1021, %556 : vector<1x96xf32>
    %1023 = vector.extract_strided_slice %1020 {offsets = [0, 0], sizes = [1, 32], strides = [1, 1]} : vector<1x96xf32> to vector<1x32xf32>
    %1024 = vector.extract_strided_slice %1022 {offsets = [0, 0], sizes = [1, 32], strides = [1, 1]} : vector<1x96xf32> to vector<1x32xf32>
    %1025 = arith.addf %1023, %1024 : vector<1x32xf32>
    %1026 = arith.negf %1025 : vector<1x32xf32>
    %1027 = math.exp %1026 : vector<1x32xf32>
    %cst_242 = arith.constant 1.000000e+00 : f32
    %1028 = vector.broadcast %cst_242 : f32 to vector<1x32xf32>
    %1029 = arith.addf %1028, %1027 : vector<1x32xf32>
    %1030 = arith.divf %1028, %1029 : vector<1x32xf32>
    %1031 = vector.extract_strided_slice %1020 {offsets = [0, 32], sizes = [1, 32], strides = [1, 1]} : vector<1x96xf32> to vector<1x32xf32>
    %1032 = vector.extract_strided_slice %1022 {offsets = [0, 32], sizes = [1, 32], strides = [1, 1]} : vector<1x96xf32> to vector<1x32xf32>
    %1033 = arith.addf %1031, %1032 : vector<1x32xf32>
    %1034 = arith.negf %1033 : vector<1x32xf32>
    %1035 = math.exp %1034 : vector<1x32xf32>
    %cst_243 = arith.constant 1.000000e+00 : f32
    %1036 = vector.broadcast %cst_243 : f32 to vector<1x32xf32>
    %1037 = arith.addf %1036, %1035 : vector<1x32xf32>
    %1038 = arith.divf %1036, %1037 : vector<1x32xf32>
    %1039 = vector.extract_strided_slice %1020 {offsets = [0, 64], sizes = [1, 32], strides = [1, 1]} : vector<1x96xf32> to vector<1x32xf32>
    %1040 = vector.extract_strided_slice %1022 {offsets = [0, 64], sizes = [1, 32], strides = [1, 1]} : vector<1x96xf32> to vector<1x32xf32>
    %1041 = arith.mulf %1030, %1040 : vector<1x32xf32>
    %1042 = arith.addf %1039, %1041 : vector<1x32xf32>
    %1043 = math.tanh %1042 : vector<1x32xf32>
    %cst_244 = arith.constant 1.000000e+00 : f32
    %1044 = vector.broadcast %cst_244 : f32 to vector<1x32xf32>
    %1045 = arith.subf %1044, %1038 : vector<1x32xf32>
    %1046 = arith.mulf %1045, %1043 : vector<1x32xf32>
    %1047 = arith.mulf %1038, %988 : vector<1x32xf32>
    %1048 = arith.addf %1046, %1047 : vector<1x32xf32>
    %c7_245 = arith.constant 7 : index
    %c0_246 = arith.constant 0 : index
    %1049 = vector.load %arg15[%c7_245, %c0_246] : memref<8x64xf32, #tpu.memory_space<vmem>>, vector<1x32xf32>
    tpu.vector_store %arg15[%c7_245, %c0_246], %1019 {strides = array<i32>} : memref<8x64xf32, #tpu.memory_space<vmem>>, vector<1x32xf32>,
    %c0_247 = arith.constant 0 : index
    %c32_248 = arith.constant 32 : index
    %1050 = vector.load %arg15[%c0_247, %c32_248] : memref<8x64xf32, #tpu.memory_space<vmem>>, vector<1x32xf32>
    tpu.vector_store %arg15[%c0_247, %c32_248], %1048 {strides = array<i32>} : memref<8x64xf32, #tpu.memory_space<vmem>>, vector<1x32xf32>,
    %c0_249 = arith.constant 0 : index
    %c0_250 = arith.constant 0 : index
    %1051 = vector.load %arg15[%c0_249, %c0_250] : memref<8x64xf32, #tpu.memory_space<vmem>>, vector<8x32xf32>
    %c0_251 = arith.constant 0 : index
    %c32_252 = arith.constant 32 : index
    %1052 = vector.load %arg15[%c0_251, %c32_252] : memref<8x64xf32, #tpu.memory_space<vmem>>, vector<8x32xf32>
    %1053 = arith.addf %1051, %1052 : vector<8x32xf32>
    %1054 = tpu.transpose %1053, [1, 0] : vector<8x32xf32> -> vector<32x8xf32>
    %c0_253 = arith.constant 0 : index
    %c0_254 = arith.constant 0 : index
    %c0_255 = arith.constant 0 : index
    %1055 = vector.load %arg6[%c0_253, %c0_254, %c0_255] : memref<2x64x96xf32, #tpu.memory_space<vmem>>, vector<1x32x96xf32>
    %1056 = vector.shape_cast %1055 : vector<1x32x96xf32> to vector<32x96xf32>
    %c0_256 = arith.constant 0 : index
    %c32_257 = arith.constant 32 : index
    %c0_258 = arith.constant 0 : index
    %1057 = vector.load %arg6[%c0_256, %c32_257, %c0_258] : memref<2x64x96xf32, #tpu.memory_space<vmem>>, vector<1x32x96xf32>
    %1058 = vector.shape_cast %1057 : vector<1x32x96xf32> to vector<32x96xf32>
    %c1_259 = arith.constant 1 : index
    %c0_260 = arith.constant 0 : index
    %c0_261 = arith.constant 0 : index
    %1059 = vector.load %arg6[%c1_259, %c0_260, %c0_261] : memref<2x64x96xf32, #tpu.memory_space<vmem>>, vector<1x32x96xf32>
    %1060 = vector.shape_cast %1059 : vector<1x32x96xf32> to vector<32x96xf32>
    %c1_262 = arith.constant 1 : index
    %c32_263 = arith.constant 32 : index
    %c0_264 = arith.constant 0 : index
    %1061 = vector.load %arg6[%c1_262, %c32_263, %c0_264] : memref<2x64x96xf32, #tpu.memory_space<vmem>>, vector<1x32x96xf32>
    %1062 = vector.shape_cast %1061 : vector<1x32x96xf32> to vector<32x96xf32>
    %c0_265 = arith.constant 0 : index
    %c0_266 = arith.constant 0 : index
    %c0_267 = arith.constant 0 : index
    %1063 = vector.load %arg7[%c0_265, %c0_266, %c0_267] : memref<2x2x96xf32, #tpu.memory_space<vmem>>, vector<1x1x96xf32>
    %1064 = vector.shape_cast %1063 : vector<1x1x96xf32> to vector<1x96xf32>
    %c0_268 = arith.constant 0 : index
    %c1_269 = arith.constant 1 : index
    %c0_270 = arith.constant 0 : index
    %1065 = vector.load %arg7[%c0_268, %c1_269, %c0_270] : memref<2x2x96xf32, #tpu.memory_space<vmem>>, vector<1x1x96xf32>
    %1066 = vector.shape_cast %1065 : vector<1x1x96xf32> to vector<1x96xf32>
    %c1_271 = arith.constant 1 : index
    %c0_272 = arith.constant 0 : index
    %c0_273 = arith.constant 0 : index
    %1067 = vector.load %arg7[%c1_271, %c0_272, %c0_273] : memref<2x2x96xf32, #tpu.memory_space<vmem>>, vector<1x1x96xf32>
    %1068 = vector.shape_cast %1067 : vector<1x1x96xf32> to vector<1x96xf32>
    %c1_274 = arith.constant 1 : index
    %c1_275 = arith.constant 1 : index
    %c0_276 = arith.constant 0 : index
    %1069 = vector.load %arg7[%c1_274, %c1_275, %c0_276] : memref<2x2x96xf32, #tpu.memory_space<vmem>>, vector<1x1x96xf32>
    %1070 = vector.shape_cast %1069 : vector<1x1x96xf32> to vector<1x96xf32>
    %c0_277 = arith.constant 0 : index
    %c0_278 = arith.constant 0 : index
    %1071 = vector.load %arg8[%c0_277, %c0_278] : memref<64x32xf32, #tpu.memory_space<vmem>>, vector<64x32xf32>
    %c0_279 = arith.constant 0 : index
    %c0_280 = arith.constant 0 : index
    %1072 = vector.load %arg9[%c0_279, %c0_280] : memref<1x32xf32, #tpu.memory_space<vmem>>, vector<1x32xf32>
    %c0_281 = arith.constant 0 : index
    %c0_282 = arith.constant 0 : index
    %1073 = vector.load %arg10[%c0_281, %c0_282] : memref<32x64xf32, #tpu.memory_space<vmem>>, vector<32x64xf32>
    %c0_283 = arith.constant 0 : index
    %c0_284 = arith.constant 0 : index
    %1074 = vector.load %arg11[%c0_283, %c0_284] : memref<1x64xf32, #tpu.memory_space<vmem>>, vector<1x64xf32>
    %1075 = tpu.iota {dimensions = array<i32: 1>} : vector<1x8xi32>
    %1076 = tpu.iota {dimensions = array<i32: 1>} : vector<1x6xi32>
    %c1_i32 = arith.constant 1 : i32
    %1077 = vector.broadcast %c1_i32 : i32 to vector<1x64xi32>
    %1078 = arith.cmpi eq, %2, %1077 : vector<1x64xi32>
    %1079 = arith.extui %1078 : vector<1x64xi1> to vector<1x64xi32>
    %1080 = arith.sitofp %1079 : vector<1x64xi32> to vector<1x64xf32>
    %cst_285 = arith.constant dense<0.000000e+00> : vector<1x32xf32>
    %1081 = tpu.matmul %1080, %1, %cst_285 {dimension_numbers = #tpu.dot_dimension_numbers<[1], [0], [0], [1], [0, 0, 1, 1], [], []>} : vector<1x64xf32>, vector<64x32xf32>, vector<1x32xf32> -> vector<1x32xf32>
    %c0_i32 = arith.constant 0 : i32
    %1082 = vector.broadcast %c0_i32 : i32 to vector<1x6xi32>
    %cst_286 = arith.constant 0.000000e+00 : f32
    %1083 = vector.broadcast %cst_286 : f32 to vector<1x6xf32>
    %cst_287 = arith.constant dense<0.000000e+00> : vector<1x96xf32>
    %1084 = tpu.matmul %1081, %1056, %cst_287 {dimension_numbers = #tpu.dot_dimension_numbers<[1], [0], [0], [1], [0, 0, 1, 1], [], []>} : vector<1x32xf32>, vector<32x96xf32>, vector<1x96xf32> -> vector<1x96xf32>
    %1085 = arith.addf %1084, %1064 : vector<1x96xf32>
    %cst_288 = arith.constant dense<0.000000e+00> : vector<1x96xf32>
    %1086 = tpu.matmul %516, %1058, %cst_288 {dimension_numbers = #tpu.dot_dimension_numbers<[1], [0], [0], [1], [0, 0, 1, 1], [], []>} : vector<1x32xf32>, vector<32x96xf32>, vector<1x96xf32> -> vector<1x96xf32>
    %1087 = arith.addf %1086, %1066 : vector<1x96xf32>
    %1088 = vector.extract_strided_slice %1085 {offsets = [0, 0], sizes = [1, 32], strides = [1, 1]} : vector<1x96xf32> to vector<1x32xf32>
    %1089 = vector.extract_strided_slice %1087 {offsets = [0, 0], sizes = [1, 32], strides = [1, 1]} : vector<1x96xf32> to vector<1x32xf32>
    %1090 = arith.addf %1088, %1089 : vector<1x32xf32>
    %1091 = arith.negf %1090 : vector<1x32xf32>
    %1092 = math.exp %1091 : vector<1x32xf32>
    %cst_289 = arith.constant 1.000000e+00 : f32
    %1093 = vector.broadcast %cst_289 : f32 to vector<1x32xf32>
    %1094 = arith.addf %1093, %1092 : vector<1x32xf32>
    %1095 = arith.divf %1093, %1094 : vector<1x32xf32>
    %1096 = vector.extract_strided_slice %1085 {offsets = [0, 32], sizes = [1, 32], strides = [1, 1]} : vector<1x96xf32> to vector<1x32xf32>
    %1097 = vector.extract_strided_slice %1087 {offsets = [0, 32], sizes = [1, 32], strides = [1, 1]} : vector<1x96xf32> to vector<1x32xf32>
    %1098 = arith.addf %1096, %1097 : vector<1x32xf32>
    %1099 = arith.negf %1098 : vector<1x32xf32>
    %1100 = math.exp %1099 : vector<1x32xf32>
    %cst_290 = arith.constant 1.000000e+00 : f32
    %1101 = vector.broadcast %cst_290 : f32 to vector<1x32xf32>
    %1102 = arith.addf %1101, %1100 : vector<1x32xf32>
    %1103 = arith.divf %1101, %1102 : vector<1x32xf32>
    %1104 = vector.extract_strided_slice %1085 {offsets = [0, 64], sizes = [1, 32], strides = [1, 1]} : vector<1x96xf32> to vector<1x32xf32>
    %1105 = vector.extract_strided_slice %1087 {offsets = [0, 64], sizes = [1, 32], strides = [1, 1]} : vector<1x96xf32> to vector<1x32xf32>
    %1106 = arith.mulf %1095, %1105 : vector<1x32xf32>
    %1107 = arith.addf %1104, %1106 : vector<1x32xf32>
    %1108 = math.tanh %1107 : vector<1x32xf32>
    %cst_291 = arith.constant 1.000000e+00 : f32
    %1109 = vector.broadcast %cst_291 : f32 to vector<1x32xf32>
    %1110 = arith.subf %1109, %1103 : vector<1x32xf32>
    %1111 = arith.mulf %1110, %1108 : vector<1x32xf32>
    %1112 = arith.mulf %1103, %516 : vector<1x32xf32>
    %1113 = arith.addf %1111, %1112 : vector<1x32xf32>
    %cst_292 = arith.constant dense<0.000000e+00> : vector<1x96xf32>
    %1114 = tpu.matmul %1113, %1060, %cst_292 {dimension_numbers = #tpu.dot_dimension_numbers<[1], [0], [0], [1], [0, 0, 1, 1], [], []>} : vector<1x32xf32>, vector<32x96xf32>, vector<1x96xf32> -> vector<1x96xf32>
    %1115 = arith.addf %1114, %1068 : vector<1x96xf32>
    %cst_293 = arith.constant dense<0.000000e+00> : vector<1x96xf32>
    %1116 = tpu.matmul %545, %1062, %cst_293 {dimension_numbers = #tpu.dot_dimension_numbers<[1], [0], [0], [1], [0, 0, 1, 1], [], []>} : vector<1x32xf32>, vector<32x96xf32>, vector<1x96xf32> -> vector<1x96xf32>
    %1117 = arith.addf %1116, %1070 : vector<1x96xf32>
    %1118 = vector.extract_strided_slice %1115 {offsets = [0, 0], sizes = [1, 32], strides = [1, 1]} : vector<1x96xf32> to vector<1x32xf32>
    %1119 = vector.extract_strided_slice %1117 {offsets = [0, 0], sizes = [1, 32], strides = [1, 1]} : vector<1x96xf32> to vector<1x32xf32>
    %1120 = arith.addf %1118, %1119 : vector<1x32xf32>
    %1121 = arith.negf %1120 : vector<1x32xf32>
    %1122 = math.exp %1121 : vector<1x32xf32>
    %cst_294 = arith.constant 1.000000e+00 : f32
    %1123 = vector.broadcast %cst_294 : f32 to vector<1x32xf32>
    %1124 = arith.addf %1123, %1122 : vector<1x32xf32>
    %1125 = arith.divf %1123, %1124 : vector<1x32xf32>
    %1126 = vector.extract_strided_slice %1115 {offsets = [0, 32], sizes = [1, 32], strides = [1, 1]} : vector<1x96xf32> to vector<1x32xf32>
    %1127 = vector.extract_strided_slice %1117 {offsets = [0, 32], sizes = [1, 32], strides = [1, 1]} : vector<1x96xf32> to vector<1x32xf32>
    %1128 = arith.addf %1126, %1127 : vector<1x32xf32>
    %1129 = arith.negf %1128 : vector<1x32xf32>
    %1130 = math.exp %1129 : vector<1x32xf32>
    %cst_295 = arith.constant 1.000000e+00 : f32
    %1131 = vector.broadcast %cst_295 : f32 to vector<1x32xf32>
    %1132 = arith.addf %1131, %1130 : vector<1x32xf32>
    %1133 = arith.divf %1131, %1132 : vector<1x32xf32>
    %1134 = vector.extract_strided_slice %1115 {offsets = [0, 64], sizes = [1, 32], strides = [1, 1]} : vector<1x96xf32> to vector<1x32xf32>
    %1135 = vector.extract_strided_slice %1117 {offsets = [0, 64], sizes = [1, 32], strides = [1, 1]} : vector<1x96xf32> to vector<1x32xf32>
    %1136 = arith.mulf %1125, %1135 : vector<1x32xf32>
    %1137 = arith.addf %1134, %1136 : vector<1x32xf32>
    %1138 = math.tanh %1137 : vector<1x32xf32>
    %cst_296 = arith.constant 1.000000e+00 : f32
    %1139 = vector.broadcast %cst_296 : f32 to vector<1x32xf32>
    %1140 = arith.subf %1139, %1133 : vector<1x32xf32>
    %1141 = arith.mulf %1140, %1138 : vector<1x32xf32>
    %1142 = arith.mulf %1133, %545 : vector<1x32xf32>
    %1143 = arith.addf %1141, %1142 : vector<1x32xf32>
    %cst_297 = arith.constant dense<0.000000e+00> : vector<1x8xf32>
    %1144 = tpu.matmul %1143, %1054, %cst_297 {dimension_numbers = #tpu.dot_dimension_numbers<[1], [0], [0], [1], [0, 0, 1, 1], [], []>} : vector<1x32xf32>, vector<32x8xf32>, vector<1x8xf32> -> vector<1x8xf32>
    %1145 = vector.broadcast %0 : i32 to vector<1x8xi32>
    %1146 = arith.cmpi slt, %1075, %1145 : vector<1x8xi32>
    %cst_298 = arith.constant -1.000000e+30 : f32
    %1147 = vector.broadcast %cst_298 : f32 to vector<1x8xf32>
    %1148 = arith.select %1146, %1144, %1147 : vector<1x8xi1>, vector<1x8xf32>
    %cst_299 = arith.constant dense<0xFF800000> : vector<1xf32>
    %1149 = vector.multi_reduction <maximumf>, %1148, %cst_299 [1] : vector<1x8xf32> to vector<1xf32>
    %1150 = vector.shape_cast %1149 : vector<1xf32> to vector<1x1xf32>
    %1151 = vector.broadcast %1150 : vector<1x1xf32> to vector<1x8xf32>
    %1152 = arith.subf %1148, %1151 : vector<1x8xf32>
    %1153 = math.exp %1152 : vector<1x8xf32>
    %cst_300 = arith.constant dense<0.000000e+00> : vector<1xf32>
    %1154 = vector.multi_reduction <add>, %1153, %cst_300 [1] : vector<1x8xf32> to vector<1xf32>
    %1155 = vector.shape_cast %1154 : vector<1xf32> to vector<1x1xf32>
    %1156 = tpu.reciprocal %1155 {approx = true} : vector<1x1xf32> -> vector<1x1xf32>
    %1157 = vector.broadcast %1156 : vector<1x1xf32> to vector<1x8xf32>
    %1158 = arith.mulf %1153, %1157 : vector<1x8xf32>
    %cst_301 = arith.constant dense<0.000000e+00> : vector<1x32xf32>
    %1159 = tpu.matmul %1158, %1053, %cst_301 {dimension_numbers = #tpu.dot_dimension_numbers<[1], [0], [0], [1], [0, 0, 1, 1], [], []>} : vector<1x8xf32>, vector<8x32xf32>, vector<1x32xf32> -> vector<1x32xf32>
    %1160 = tpu.concatenate %1143, %1159 in 1 : vector<1x32xf32>, vector<1x32xf32> -> vector<1x64xf32>
    %cst_302 = arith.constant dense<0.000000e+00> : vector<1x32xf32>
    %1161 = tpu.matmul %1160, %1071, %cst_302 {dimension_numbers = #tpu.dot_dimension_numbers<[1], [0], [0], [1], [0, 0, 1, 1], [], []>} : vector<1x64xf32>, vector<64x32xf32>, vector<1x32xf32> -> vector<1x32xf32>
    %1162 = arith.addf %1161, %1072 : vector<1x32xf32>
    %1163 = math.tanh %1162 : vector<1x32xf32>
    %cst_303 = arith.constant dense<0.000000e+00> : vector<1x64xf32>
    %1164 = tpu.matmul %1163, %1073, %cst_303 {dimension_numbers = #tpu.dot_dimension_numbers<[1], [0], [0], [1], [0, 0, 1, 1], [], []>} : vector<1x32xf32>, vector<32x64xf32>, vector<1x64xf32> -> vector<1x64xf32>
    %1165 = arith.addf %1164, %1074 : vector<1x64xf32>
    %cst_304 = arith.constant dense<0xFF800000> : vector<1xf32>
    %1166 = vector.multi_reduction <maximumf>, %1165, %cst_304 [1] : vector<1x64xf32> to vector<1xf32>
    %1167 = vector.shape_cast %1166 : vector<1xf32> to vector<1x1xf32>
    %1168 = vector.broadcast %1167 : vector<1x1xf32> to vector<1x64xf32>
    %1169 = arith.subf %1165, %1168 : vector<1x64xf32>
    %1170 = math.exp %1169 : vector<1x64xf32>
    %cst_305 = arith.constant dense<0.000000e+00> : vector<1xf32>
    %1171 = vector.multi_reduction <add>, %1170, %cst_305 [1] : vector<1x64xf32> to vector<1xf32>
    %1172 = vector.shape_cast %1171 : vector<1xf32> to vector<1x1xf32>
    %1173 = tpu.reciprocal %1172 {approx = true} : vector<1x1xf32> -> vector<1x1xf32>
    %1174 = vector.broadcast %1167 : vector<1x1xf32> to vector<1x64xf32>
    %1175 = arith.cmpf oeq, %1165, %1174 : vector<1x64xf32>
    %c64_i32 = arith.constant 64 : i32
    %1176 = vector.broadcast %c64_i32 : i32 to vector<1x64xi32>
    %1177 = arith.select %1175, %2, %1176 : vector<1x64xi1>, vector<1x64xi32>
    %cst_306 = arith.constant dense<2147483647> : vector<1xi32>
    %1178 = vector.multi_reduction <minsi>, %1177, %cst_306 [1] : vector<1x64xi32> to vector<1xi32>
    %1179 = vector.shape_cast %1178 : vector<1xi32> to vector<1x1xi32>
    %c0_i32_307 = arith.constant 0 : i32
    %1180 = vector.broadcast %c0_i32_307 : i32 to vector<1x6xi32>
    %1181 = arith.cmpi eq, %1076, %1180 : vector<1x6xi32>
    %1182 = vector.shape_cast %1179 : vector<1x1xi32> to vector<1x1xi32>
    %1183 = vector.broadcast %1182 : vector<1x1xi32> to vector<1x6xi32>
    %1184 = arith.select %1181, %1183, %1082 : vector<1x6xi1>, vector<1x6xi32>
    %c0_i32_308 = arith.constant 0 : i32
    %1185 = vector.broadcast %c0_i32_308 : i32 to vector<1x6xi32>
    %1186 = arith.cmpi eq, %1076, %1185 : vector<1x6xi32>
    %1187 = vector.shape_cast %1173 : vector<1x1xf32> to vector<1x1xf32>
    %1188 = vector.broadcast %1187 : vector<1x1xf32> to vector<1x6xf32>
    %1189 = arith.select %1186, %1188, %1083 : vector<1x6xi1>, vector<1x6xf32>
    %1190 = vector.broadcast %1179 : vector<1x1xi32> to vector<1x64xi32>
    %1191 = arith.cmpi eq, %2, %1190 : vector<1x64xi32>
    %1192 = arith.extui %1191 : vector<1x64xi1> to vector<1x64xi32>
    %1193 = arith.sitofp %1192 : vector<1x64xi32> to vector<1x64xf32>
    %cst_309 = arith.constant dense<0.000000e+00> : vector<1x32xf32>
    %1194 = tpu.matmul %1193, %1, %cst_309 {dimension_numbers = #tpu.dot_dimension_numbers<[1], [0], [0], [1], [0, 0, 1, 1], [], []>} : vector<1x64xf32>, vector<64x32xf32>, vector<1x32xf32> -> vector<1x32xf32>
    %cst_310 = arith.constant dense<0.000000e+00> : vector<1x96xf32>
    %1195 = tpu.matmul %1194, %1056, %cst_310 {dimension_numbers = #tpu.dot_dimension_numbers<[1], [0], [0], [1], [0, 0, 1, 1], [], []>} : vector<1x32xf32>, vector<32x96xf32>, vector<1x96xf32> -> vector<1x96xf32>
    %1196 = arith.addf %1195, %1064 : vector<1x96xf32>
    %cst_311 = arith.constant dense<0.000000e+00> : vector<1x96xf32>
    %1197 = tpu.matmul %1113, %1058, %cst_311 {dimension_numbers = #tpu.dot_dimension_numbers<[1], [0], [0], [1], [0, 0, 1, 1], [], []>} : vector<1x32xf32>, vector<32x96xf32>, vector<1x96xf32> -> vector<1x96xf32>
    %1198 = arith.addf %1197, %1066 : vector<1x96xf32>
    %1199 = vector.extract_strided_slice %1196 {offsets = [0, 0], sizes = [1, 32], strides = [1, 1]} : vector<1x96xf32> to vector<1x32xf32>
    %1200 = vector.extract_strided_slice %1198 {offsets = [0, 0], sizes = [1, 32], strides = [1, 1]} : vector<1x96xf32> to vector<1x32xf32>
    %1201 = arith.addf %1199, %1200 : vector<1x32xf32>
    %1202 = arith.negf %1201 : vector<1x32xf32>
    %1203 = math.exp %1202 : vector<1x32xf32>
    %cst_312 = arith.constant 1.000000e+00 : f32
    %1204 = vector.broadcast %cst_312 : f32 to vector<1x32xf32>
    %1205 = arith.addf %1204, %1203 : vector<1x32xf32>
    %1206 = arith.divf %1204, %1205 : vector<1x32xf32>
    %1207 = vector.extract_strided_slice %1196 {offsets = [0, 32], sizes = [1, 32], strides = [1, 1]} : vector<1x96xf32> to vector<1x32xf32>
    %1208 = vector.extract_strided_slice %1198 {offsets = [0, 32], sizes = [1, 32], strides = [1, 1]} : vector<1x96xf32> to vector<1x32xf32>
    %1209 = arith.addf %1207, %1208 : vector<1x32xf32>
    %1210 = arith.negf %1209 : vector<1x32xf32>
    %1211 = math.exp %1210 : vector<1x32xf32>
    %cst_313 = arith.constant 1.000000e+00 : f32
    %1212 = vector.broadcast %cst_313 : f32 to vector<1x32xf32>
    %1213 = arith.addf %1212, %1211 : vector<1x32xf32>
    %1214 = arith.divf %1212, %1213 : vector<1x32xf32>
    %1215 = vector.extract_strided_slice %1196 {offsets = [0, 64], sizes = [1, 32], strides = [1, 1]} : vector<1x96xf32> to vector<1x32xf32>
    %1216 = vector.extract_strided_slice %1198 {offsets = [0, 64], sizes = [1, 32], strides = [1, 1]} : vector<1x96xf32> to vector<1x32xf32>
    %1217 = arith.mulf %1206, %1216 : vector<1x32xf32>
    %1218 = arith.addf %1215, %1217 : vector<1x32xf32>
    %1219 = math.tanh %1218 : vector<1x32xf32>
    %cst_314 = arith.constant 1.000000e+00 : f32
    %1220 = vector.broadcast %cst_314 : f32 to vector<1x32xf32>
    %1221 = arith.subf %1220, %1214 : vector<1x32xf32>
    %1222 = arith.mulf %1221, %1219 : vector<1x32xf32>
    %1223 = arith.mulf %1214, %1113 : vector<1x32xf32>
    %1224 = arith.addf %1222, %1223 : vector<1x32xf32>
    %cst_315 = arith.constant dense<0.000000e+00> : vector<1x96xf32>
    %1225 = tpu.matmul %1224, %1060, %cst_315 {dimension_numbers = #tpu.dot_dimension_numbers<[1], [0], [0], [1], [0, 0, 1, 1], [], []>} : vector<1x32xf32>, vector<32x96xf32>, vector<1x96xf32> -> vector<1x96xf32>
    %1226 = arith.addf %1225, %1068 : vector<1x96xf32>
    %cst_316 = arith.constant dense<0.000000e+00> : vector<1x96xf32>
    %1227 = tpu.matmul %1143, %1062, %cst_316 {dimension_numbers = #tpu.dot_dimension_numbers<[1], [0], [0], [1], [0, 0, 1, 1], [], []>} : vector<1x32xf32>, vector<32x96xf32>, vector<1x96xf32> -> vector<1x96xf32>
    %1228 = arith.addf %1227, %1070 : vector<1x96xf32>
    %1229 = vector.extract_strided_slice %1226 {offsets = [0, 0], sizes = [1, 32], strides = [1, 1]} : vector<1x96xf32> to vector<1x32xf32>
    %1230 = vector.extract_strided_slice %1228 {offsets = [0, 0], sizes = [1, 32], strides = [1, 1]} : vector<1x96xf32> to vector<1x32xf32>
    %1231 = arith.addf %1229, %1230 : vector<1x32xf32>
    %1232 = arith.negf %1231 : vector<1x32xf32>
    %1233 = math.exp %1232 : vector<1x32xf32>
    %cst_317 = arith.constant 1.000000e+00 : f32
    %1234 = vector.broadcast %cst_317 : f32 to vector<1x32xf32>
    %1235 = arith.addf %1234, %1233 : vector<1x32xf32>
    %1236 = arith.divf %1234, %1235 : vector<1x32xf32>
    %1237 = vector.extract_strided_slice %1226 {offsets = [0, 32], sizes = [1, 32], strides = [1, 1]} : vector<1x96xf32> to vector<1x32xf32>
    %1238 = vector.extract_strided_slice %1228 {offsets = [0, 32], sizes = [1, 32], strides = [1, 1]} : vector<1x96xf32> to vector<1x32xf32>
    %1239 = arith.addf %1237, %1238 : vector<1x32xf32>
    %1240 = arith.negf %1239 : vector<1x32xf32>
    %1241 = math.exp %1240 : vector<1x32xf32>
    %cst_318 = arith.constant 1.000000e+00 : f32
    %1242 = vector.broadcast %cst_318 : f32 to vector<1x32xf32>
    %1243 = arith.addf %1242, %1241 : vector<1x32xf32>
    %1244 = arith.divf %1242, %1243 : vector<1x32xf32>
    %1245 = vector.extract_strided_slice %1226 {offsets = [0, 64], sizes = [1, 32], strides = [1, 1]} : vector<1x96xf32> to vector<1x32xf32>
    %1246 = vector.extract_strided_slice %1228 {offsets = [0, 64], sizes = [1, 32], strides = [1, 1]} : vector<1x96xf32> to vector<1x32xf32>
    %1247 = arith.mulf %1236, %1246 : vector<1x32xf32>
    %1248 = arith.addf %1245, %1247 : vector<1x32xf32>
    %1249 = math.tanh %1248 : vector<1x32xf32>
    %cst_319 = arith.constant 1.000000e+00 : f32
    %1250 = vector.broadcast %cst_319 : f32 to vector<1x32xf32>
    %1251 = arith.subf %1250, %1244 : vector<1x32xf32>
    %1252 = arith.mulf %1251, %1249 : vector<1x32xf32>
    %1253 = arith.mulf %1244, %1143 : vector<1x32xf32>
    %1254 = arith.addf %1252, %1253 : vector<1x32xf32>
    %cst_320 = arith.constant dense<0.000000e+00> : vector<1x8xf32>
    %1255 = tpu.matmul %1254, %1054, %cst_320 {dimension_numbers = #tpu.dot_dimension_numbers<[1], [0], [0], [1], [0, 0, 1, 1], [], []>} : vector<1x32xf32>, vector<32x8xf32>, vector<1x8xf32> -> vector<1x8xf32>
    %1256 = vector.broadcast %0 : i32 to vector<1x8xi32>
    %1257 = arith.cmpi slt, %1075, %1256 : vector<1x8xi32>
    %cst_321 = arith.constant -1.000000e+30 : f32
    %1258 = vector.broadcast %cst_321 : f32 to vector<1x8xf32>
    %1259 = arith.select %1257, %1255, %1258 : vector<1x8xi1>, vector<1x8xf32>
    %cst_322 = arith.constant dense<0xFF800000> : vector<1xf32>
    %1260 = vector.multi_reduction <maximumf>, %1259, %cst_322 [1] : vector<1x8xf32> to vector<1xf32>
    %1261 = vector.shape_cast %1260 : vector<1xf32> to vector<1x1xf32>
    %1262 = vector.broadcast %1261 : vector<1x1xf32> to vector<1x8xf32>
    %1263 = arith.subf %1259, %1262 : vector<1x8xf32>
    %1264 = math.exp %1263 : vector<1x8xf32>
    %cst_323 = arith.constant dense<0.000000e+00> : vector<1xf32>
    %1265 = vector.multi_reduction <add>, %1264, %cst_323 [1] : vector<1x8xf32> to vector<1xf32>
    %1266 = vector.shape_cast %1265 : vector<1xf32> to vector<1x1xf32>
    %1267 = tpu.reciprocal %1266 {approx = true} : vector<1x1xf32> -> vector<1x1xf32>
    %1268 = vector.broadcast %1267 : vector<1x1xf32> to vector<1x8xf32>
    %1269 = arith.mulf %1264, %1268 : vector<1x8xf32>
    %cst_324 = arith.constant dense<0.000000e+00> : vector<1x32xf32>
    %1270 = tpu.matmul %1269, %1053, %cst_324 {dimension_numbers = #tpu.dot_dimension_numbers<[1], [0], [0], [1], [0, 0, 1, 1], [], []>} : vector<1x8xf32>, vector<8x32xf32>, vector<1x32xf32> -> vector<1x32xf32>
    %1271 = tpu.concatenate %1254, %1270 in 1 : vector<1x32xf32>, vector<1x32xf32> -> vector<1x64xf32>
    %cst_325 = arith.constant dense<0.000000e+00> : vector<1x32xf32>
    %1272 = tpu.matmul %1271, %1071, %cst_325 {dimension_numbers = #tpu.dot_dimension_numbers<[1], [0], [0], [1], [0, 0, 1, 1], [], []>} : vector<1x64xf32>, vector<64x32xf32>, vector<1x32xf32> -> vector<1x32xf32>
    %1273 = arith.addf %1272, %1072 : vector<1x32xf32>
    %1274 = math.tanh %1273 : vector<1x32xf32>
    %cst_326 = arith.constant dense<0.000000e+00> : vector<1x64xf32>
    %1275 = tpu.matmul %1274, %1073, %cst_326 {dimension_numbers = #tpu.dot_dimension_numbers<[1], [0], [0], [1], [0, 0, 1, 1], [], []>} : vector<1x32xf32>, vector<32x64xf32>, vector<1x64xf32> -> vector<1x64xf32>
    %1276 = arith.addf %1275, %1074 : vector<1x64xf32>
    %cst_327 = arith.constant dense<0xFF800000> : vector<1xf32>
    %1277 = vector.multi_reduction <maximumf>, %1276, %cst_327 [1] : vector<1x64xf32> to vector<1xf32>
    %1278 = vector.shape_cast %1277 : vector<1xf32> to vector<1x1xf32>
    %1279 = vector.broadcast %1278 : vector<1x1xf32> to vector<1x64xf32>
    %1280 = arith.subf %1276, %1279 : vector<1x64xf32>
    %1281 = math.exp %1280 : vector<1x64xf32>
    %cst_328 = arith.constant dense<0.000000e+00> : vector<1xf32>
    %1282 = vector.multi_reduction <add>, %1281, %cst_328 [1] : vector<1x64xf32> to vector<1xf32>
    %1283 = vector.shape_cast %1282 : vector<1xf32> to vector<1x1xf32>
    %1284 = tpu.reciprocal %1283 {approx = true} : vector<1x1xf32> -> vector<1x1xf32>
    %1285 = vector.broadcast %1278 : vector<1x1xf32> to vector<1x64xf32>
    %1286 = arith.cmpf oeq, %1276, %1285 : vector<1x64xf32>
    %c64_i32_329 = arith.constant 64 : i32
    %1287 = vector.broadcast %c64_i32_329 : i32 to vector<1x64xi32>
    %1288 = arith.select %1286, %2, %1287 : vector<1x64xi1>, vector<1x64xi32>
    %cst_330 = arith.constant dense<2147483647> : vector<1xi32>
    %1289 = vector.multi_reduction <minsi>, %1288, %cst_330 [1] : vector<1x64xi32> to vector<1xi32>
    %1290 = vector.shape_cast %1289 : vector<1xi32> to vector<1x1xi32>
    %c1_i32_331 = arith.constant 1 : i32
    %1291 = vector.broadcast %c1_i32_331 : i32 to vector<1x6xi32>
    %1292 = arith.cmpi eq, %1076, %1291 : vector<1x6xi32>
    %1293 = vector.shape_cast %1290 : vector<1x1xi32> to vector<1x1xi32>
    %1294 = vector.broadcast %1293 : vector<1x1xi32> to vector<1x6xi32>
    %1295 = arith.select %1292, %1294, %1184 : vector<1x6xi1>, vector<1x6xi32>
    %c1_i32_332 = arith.constant 1 : i32
    %1296 = vector.broadcast %c1_i32_332 : i32 to vector<1x6xi32>
    %1297 = arith.cmpi eq, %1076, %1296 : vector<1x6xi32>
    %1298 = vector.shape_cast %1284 : vector<1x1xf32> to vector<1x1xf32>
    %1299 = vector.broadcast %1298 : vector<1x1xf32> to vector<1x6xf32>
    %1300 = arith.select %1297, %1299, %1189 : vector<1x6xi1>, vector<1x6xf32>
    %1301 = vector.broadcast %1290 : vector<1x1xi32> to vector<1x64xi32>
    %1302 = arith.cmpi eq, %2, %1301 : vector<1x64xi32>
    %1303 = arith.extui %1302 : vector<1x64xi1> to vector<1x64xi32>
    %1304 = arith.sitofp %1303 : vector<1x64xi32> to vector<1x64xf32>
    %cst_333 = arith.constant dense<0.000000e+00> : vector<1x32xf32>
    %1305 = tpu.matmul %1304, %1, %cst_333 {dimension_numbers = #tpu.dot_dimension_numbers<[1], [0], [0], [1], [0, 0, 1, 1], [], []>} : vector<1x64xf32>, vector<64x32xf32>, vector<1x32xf32> -> vector<1x32xf32>
    %cst_334 = arith.constant dense<0.000000e+00> : vector<1x96xf32>
    %1306 = tpu.matmul %1305, %1056, %cst_334 {dimension_numbers = #tpu.dot_dimension_numbers<[1], [0], [0], [1], [0, 0, 1, 1], [], []>} : vector<1x32xf32>, vector<32x96xf32>, vector<1x96xf32> -> vector<1x96xf32>
    %1307 = arith.addf %1306, %1064 : vector<1x96xf32>
    %cst_335 = arith.constant dense<0.000000e+00> : vector<1x96xf32>
    %1308 = tpu.matmul %1224, %1058, %cst_335 {dimension_numbers = #tpu.dot_dimension_numbers<[1], [0], [0], [1], [0, 0, 1, 1], [], []>} : vector<1x32xf32>, vector<32x96xf32>, vector<1x96xf32> -> vector<1x96xf32>
    %1309 = arith.addf %1308, %1066 : vector<1x96xf32>
    %1310 = vector.extract_strided_slice %1307 {offsets = [0, 0], sizes = [1, 32], strides = [1, 1]} : vector<1x96xf32> to vector<1x32xf32>
    %1311 = vector.extract_strided_slice %1309 {offsets = [0, 0], sizes = [1, 32], strides = [1, 1]} : vector<1x96xf32> to vector<1x32xf32>
    %1312 = arith.addf %1310, %1311 : vector<1x32xf32>
    %1313 = arith.negf %1312 : vector<1x32xf32>
    %1314 = math.exp %1313 : vector<1x32xf32>
    %cst_336 = arith.constant 1.000000e+00 : f32
    %1315 = vector.broadcast %cst_336 : f32 to vector<1x32xf32>
    %1316 = arith.addf %1315, %1314 : vector<1x32xf32>
    %1317 = arith.divf %1315, %1316 : vector<1x32xf32>
    %1318 = vector.extract_strided_slice %1307 {offsets = [0, 32], sizes = [1, 32], strides = [1, 1]} : vector<1x96xf32> to vector<1x32xf32>
    %1319 = vector.extract_strided_slice %1309 {offsets = [0, 32], sizes = [1, 32], strides = [1, 1]} : vector<1x96xf32> to vector<1x32xf32>
    %1320 = arith.addf %1318, %1319 : vector<1x32xf32>
    %1321 = arith.negf %1320 : vector<1x32xf32>
    %1322 = math.exp %1321 : vector<1x32xf32>
    %cst_337 = arith.constant 1.000000e+00 : f32
    %1323 = vector.broadcast %cst_337 : f32 to vector<1x32xf32>
    %1324 = arith.addf %1323, %1322 : vector<1x32xf32>
    %1325 = arith.divf %1323, %1324 : vector<1x32xf32>
    %1326 = vector.extract_strided_slice %1307 {offsets = [0, 64], sizes = [1, 32], strides = [1, 1]} : vector<1x96xf32> to vector<1x32xf32>
    %1327 = vector.extract_strided_slice %1309 {offsets = [0, 64], sizes = [1, 32], strides = [1, 1]} : vector<1x96xf32> to vector<1x32xf32>
    %1328 = arith.mulf %1317, %1327 : vector<1x32xf32>
    %1329 = arith.addf %1326, %1328 : vector<1x32xf32>
    %1330 = math.tanh %1329 : vector<1x32xf32>
    %cst_338 = arith.constant 1.000000e+00 : f32
    %1331 = vector.broadcast %cst_338 : f32 to vector<1x32xf32>
    %1332 = arith.subf %1331, %1325 : vector<1x32xf32>
    %1333 = arith.mulf %1332, %1330 : vector<1x32xf32>
    %1334 = arith.mulf %1325, %1224 : vector<1x32xf32>
    %1335 = arith.addf %1333, %1334 : vector<1x32xf32>
    %cst_339 = arith.constant dense<0.000000e+00> : vector<1x96xf32>
    %1336 = tpu.matmul %1335, %1060, %cst_339 {dimension_numbers = #tpu.dot_dimension_numbers<[1], [0], [0], [1], [0, 0, 1, 1], [], []>} : vector<1x32xf32>, vector<32x96xf32>, vector<1x96xf32> -> vector<1x96xf32>
    %1337 = arith.addf %1336, %1068 : vector<1x96xf32>
    %cst_340 = arith.constant dense<0.000000e+00> : vector<1x96xf32>
    %1338 = tpu.matmul %1254, %1062, %cst_340 {dimension_numbers = #tpu.dot_dimension_numbers<[1], [0], [0], [1], [0, 0, 1, 1], [], []>} : vector<1x32xf32>, vector<32x96xf32>, vector<1x96xf32> -> vector<1x96xf32>
    %1339 = arith.addf %1338, %1070 : vector<1x96xf32>
    %1340 = vector.extract_strided_slice %1337 {offsets = [0, 0], sizes = [1, 32], strides = [1, 1]} : vector<1x96xf32> to vector<1x32xf32>
    %1341 = vector.extract_strided_slice %1339 {offsets = [0, 0], sizes = [1, 32], strides = [1, 1]} : vector<1x96xf32> to vector<1x32xf32>
    %1342 = arith.addf %1340, %1341 : vector<1x32xf32>
    %1343 = arith.negf %1342 : vector<1x32xf32>
    %1344 = math.exp %1343 : vector<1x32xf32>
    %cst_341 = arith.constant 1.000000e+00 : f32
    %1345 = vector.broadcast %cst_341 : f32 to vector<1x32xf32>
    %1346 = arith.addf %1345, %1344 : vector<1x32xf32>
    %1347 = arith.divf %1345, %1346 : vector<1x32xf32>
    %1348 = vector.extract_strided_slice %1337 {offsets = [0, 32], sizes = [1, 32], strides = [1, 1]} : vector<1x96xf32> to vector<1x32xf32>
    %1349 = vector.extract_strided_slice %1339 {offsets = [0, 32], sizes = [1, 32], strides = [1, 1]} : vector<1x96xf32> to vector<1x32xf32>
    %1350 = arith.addf %1348, %1349 : vector<1x32xf32>
    %1351 = arith.negf %1350 : vector<1x32xf32>
    %1352 = math.exp %1351 : vector<1x32xf32>
    %cst_342 = arith.constant 1.000000e+00 : f32
    %1353 = vector.broadcast %cst_342 : f32 to vector<1x32xf32>
    %1354 = arith.addf %1353, %1352 : vector<1x32xf32>
    %1355 = arith.divf %1353, %1354 : vector<1x32xf32>
    %1356 = vector.extract_strided_slice %1337 {offsets = [0, 64], sizes = [1, 32], strides = [1, 1]} : vector<1x96xf32> to vector<1x32xf32>
    %1357 = vector.extract_strided_slice %1339 {offsets = [0, 64], sizes = [1, 32], strides = [1, 1]} : vector<1x96xf32> to vector<1x32xf32>
    %1358 = arith.mulf %1347, %1357 : vector<1x32xf32>
    %1359 = arith.addf %1356, %1358 : vector<1x32xf32>
    %1360 = math.tanh %1359 : vector<1x32xf32>
    %cst_343 = arith.constant 1.000000e+00 : f32
    %1361 = vector.broadcast %cst_343 : f32 to vector<1x32xf32>
    %1362 = arith.subf %1361, %1355 : vector<1x32xf32>
    %1363 = arith.mulf %1362, %1360 : vector<1x32xf32>
    %1364 = arith.mulf %1355, %1254 : vector<1x32xf32>
    %1365 = arith.addf %1363, %1364 : vector<1x32xf32>
    %cst_344 = arith.constant dense<0.000000e+00> : vector<1x8xf32>
    %1366 = tpu.matmul %1365, %1054, %cst_344 {dimension_numbers = #tpu.dot_dimension_numbers<[1], [0], [0], [1], [0, 0, 1, 1], [], []>} : vector<1x32xf32>, vector<32x8xf32>, vector<1x8xf32> -> vector<1x8xf32>
    %1367 = vector.broadcast %0 : i32 to vector<1x8xi32>
    %1368 = arith.cmpi slt, %1075, %1367 : vector<1x8xi32>
    %cst_345 = arith.constant -1.000000e+30 : f32
    %1369 = vector.broadcast %cst_345 : f32 to vector<1x8xf32>
    %1370 = arith.select %1368, %1366, %1369 : vector<1x8xi1>, vector<1x8xf32>
    %cst_346 = arith.constant dense<0xFF800000> : vector<1xf32>
    %1371 = vector.multi_reduction <maximumf>, %1370, %cst_346 [1] : vector<1x8xf32> to vector<1xf32>
    %1372 = vector.shape_cast %1371 : vector<1xf32> to vector<1x1xf32>
    %1373 = vector.broadcast %1372 : vector<1x1xf32> to vector<1x8xf32>
    %1374 = arith.subf %1370, %1373 : vector<1x8xf32>
    %1375 = math.exp %1374 : vector<1x8xf32>
    %cst_347 = arith.constant dense<0.000000e+00> : vector<1xf32>
    %1376 = vector.multi_reduction <add>, %1375, %cst_347 [1] : vector<1x8xf32> to vector<1xf32>
    %1377 = vector.shape_cast %1376 : vector<1xf32> to vector<1x1xf32>
    %1378 = tpu.reciprocal %1377 {approx = true} : vector<1x1xf32> -> vector<1x1xf32>
    %1379 = vector.broadcast %1378 : vector<1x1xf32> to vector<1x8xf32>
    %1380 = arith.mulf %1375, %1379 : vector<1x8xf32>
    %cst_348 = arith.constant dense<0.000000e+00> : vector<1x32xf32>
    %1381 = tpu.matmul %1380, %1053, %cst_348 {dimension_numbers = #tpu.dot_dimension_numbers<[1], [0], [0], [1], [0, 0, 1, 1], [], []>} : vector<1x8xf32>, vector<8x32xf32>, vector<1x32xf32> -> vector<1x32xf32>
    %1382 = tpu.concatenate %1365, %1381 in 1 : vector<1x32xf32>, vector<1x32xf32> -> vector<1x64xf32>
    %cst_349 = arith.constant dense<0.000000e+00> : vector<1x32xf32>
    %1383 = tpu.matmul %1382, %1071, %cst_349 {dimension_numbers = #tpu.dot_dimension_numbers<[1], [0], [0], [1], [0, 0, 1, 1], [], []>} : vector<1x64xf32>, vector<64x32xf32>, vector<1x32xf32> -> vector<1x32xf32>
    %1384 = arith.addf %1383, %1072 : vector<1x32xf32>
    %1385 = math.tanh %1384 : vector<1x32xf32>
    %cst_350 = arith.constant dense<0.000000e+00> : vector<1x64xf32>
    %1386 = tpu.matmul %1385, %1073, %cst_350 {dimension_numbers = #tpu.dot_dimension_numbers<[1], [0], [0], [1], [0, 0, 1, 1], [], []>} : vector<1x32xf32>, vector<32x64xf32>, vector<1x64xf32> -> vector<1x64xf32>
    %1387 = arith.addf %1386, %1074 : vector<1x64xf32>
    %cst_351 = arith.constant dense<0xFF800000> : vector<1xf32>
    %1388 = vector.multi_reduction <maximumf>, %1387, %cst_351 [1] : vector<1x64xf32> to vector<1xf32>
    %1389 = vector.shape_cast %1388 : vector<1xf32> to vector<1x1xf32>
    %1390 = vector.broadcast %1389 : vector<1x1xf32> to vector<1x64xf32>
    %1391 = arith.subf %1387, %1390 : vector<1x64xf32>
    %1392 = math.exp %1391 : vector<1x64xf32>
    %cst_352 = arith.constant dense<0.000000e+00> : vector<1xf32>
    %1393 = vector.multi_reduction <add>, %1392, %cst_352 [1] : vector<1x64xf32> to vector<1xf32>
    %1394 = vector.shape_cast %1393 : vector<1xf32> to vector<1x1xf32>
    %1395 = tpu.reciprocal %1394 {approx = true} : vector<1x1xf32> -> vector<1x1xf32>
    %1396 = vector.broadcast %1389 : vector<1x1xf32> to vector<1x64xf32>
    %1397 = arith.cmpf oeq, %1387, %1396 : vector<1x64xf32>
    %c64_i32_353 = arith.constant 64 : i32
    %1398 = vector.broadcast %c64_i32_353 : i32 to vector<1x64xi32>
    %1399 = arith.select %1397, %2, %1398 : vector<1x64xi1>, vector<1x64xi32>
    %cst_354 = arith.constant dense<2147483647> : vector<1xi32>
    %1400 = vector.multi_reduction <minsi>, %1399, %cst_354 [1] : vector<1x64xi32> to vector<1xi32>
    %1401 = vector.shape_cast %1400 : vector<1xi32> to vector<1x1xi32>
    %c2_i32 = arith.constant 2 : i32
    %1402 = vector.broadcast %c2_i32 : i32 to vector<1x6xi32>
    %1403 = arith.cmpi eq, %1076, %1402 : vector<1x6xi32>
    %1404 = vector.shape_cast %1401 : vector<1x1xi32> to vector<1x1xi32>
    %1405 = vector.broadcast %1404 : vector<1x1xi32> to vector<1x6xi32>
    %1406 = arith.select %1403, %1405, %1295 : vector<1x6xi1>, vector<1x6xi32>
    %c2_i32_355 = arith.constant 2 : i32
    %1407 = vector.broadcast %c2_i32_355 : i32 to vector<1x6xi32>
    %1408 = arith.cmpi eq, %1076, %1407 : vector<1x6xi32>
    %1409 = vector.shape_cast %1395 : vector<1x1xf32> to vector<1x1xf32>
    %1410 = vector.broadcast %1409 : vector<1x1xf32> to vector<1x6xf32>
    %1411 = arith.select %1408, %1410, %1300 : vector<1x6xi1>, vector<1x6xf32>
    %1412 = vector.broadcast %1401 : vector<1x1xi32> to vector<1x64xi32>
    %1413 = arith.cmpi eq, %2, %1412 : vector<1x64xi32>
    %1414 = arith.extui %1413 : vector<1x64xi1> to vector<1x64xi32>
    %1415 = arith.sitofp %1414 : vector<1x64xi32> to vector<1x64xf32>
    %cst_356 = arith.constant dense<0.000000e+00> : vector<1x32xf32>
    %1416 = tpu.matmul %1415, %1, %cst_356 {dimension_numbers = #tpu.dot_dimension_numbers<[1], [0], [0], [1], [0, 0, 1, 1], [], []>} : vector<1x64xf32>, vector<64x32xf32>, vector<1x32xf32> -> vector<1x32xf32>
    %cst_357 = arith.constant dense<0.000000e+00> : vector<1x96xf32>
    %1417 = tpu.matmul %1416, %1056, %cst_357 {dimension_numbers = #tpu.dot_dimension_numbers<[1], [0], [0], [1], [0, 0, 1, 1], [], []>} : vector<1x32xf32>, vector<32x96xf32>, vector<1x96xf32> -> vector<1x96xf32>
    %1418 = arith.addf %1417, %1064 : vector<1x96xf32>
    %cst_358 = arith.constant dense<0.000000e+00> : vector<1x96xf32>
    %1419 = tpu.matmul %1335, %1058, %cst_358 {dimension_numbers = #tpu.dot_dimension_numbers<[1], [0], [0], [1], [0, 0, 1, 1], [], []>} : vector<1x32xf32>, vector<32x96xf32>, vector<1x96xf32> -> vector<1x96xf32>
    %1420 = arith.addf %1419, %1066 : vector<1x96xf32>
    %1421 = vector.extract_strided_slice %1418 {offsets = [0, 0], sizes = [1, 32], strides = [1, 1]} : vector<1x96xf32> to vector<1x32xf32>
    %1422 = vector.extract_strided_slice %1420 {offsets = [0, 0], sizes = [1, 32], strides = [1, 1]} : vector<1x96xf32> to vector<1x32xf32>
    %1423 = arith.addf %1421, %1422 : vector<1x32xf32>
    %1424 = arith.negf %1423 : vector<1x32xf32>
    %1425 = math.exp %1424 : vector<1x32xf32>
    %cst_359 = arith.constant 1.000000e+00 : f32
    %1426 = vector.broadcast %cst_359 : f32 to vector<1x32xf32>
    %1427 = arith.addf %1426, %1425 : vector<1x32xf32>
    %1428 = arith.divf %1426, %1427 : vector<1x32xf32>
    %1429 = vector.extract_strided_slice %1418 {offsets = [0, 32], sizes = [1, 32], strides = [1, 1]} : vector<1x96xf32> to vector<1x32xf32>
    %1430 = vector.extract_strided_slice %1420 {offsets = [0, 32], sizes = [1, 32], strides = [1, 1]} : vector<1x96xf32> to vector<1x32xf32>
    %1431 = arith.addf %1429, %1430 : vector<1x32xf32>
    %1432 = arith.negf %1431 : vector<1x32xf32>
    %1433 = math.exp %1432 : vector<1x32xf32>
    %cst_360 = arith.constant 1.000000e+00 : f32
    %1434 = vector.broadcast %cst_360 : f32 to vector<1x32xf32>
    %1435 = arith.addf %1434, %1433 : vector<1x32xf32>
    %1436 = arith.divf %1434, %1435 : vector<1x32xf32>
    %1437 = vector.extract_strided_slice %1418 {offsets = [0, 64], sizes = [1, 32], strides = [1, 1]} : vector<1x96xf32> to vector<1x32xf32>
    %1438 = vector.extract_strided_slice %1420 {offsets = [0, 64], sizes = [1, 32], strides = [1, 1]} : vector<1x96xf32> to vector<1x32xf32>
    %1439 = arith.mulf %1428, %1438 : vector<1x32xf32>
    %1440 = arith.addf %1437, %1439 : vector<1x32xf32>
    %1441 = math.tanh %1440 : vector<1x32xf32>
    %cst_361 = arith.constant 1.000000e+00 : f32
    %1442 = vector.broadcast %cst_361 : f32 to vector<1x32xf32>
    %1443 = arith.subf %1442, %1436 : vector<1x32xf32>
    %1444 = arith.mulf %1443, %1441 : vector<1x32xf32>
    %1445 = arith.mulf %1436, %1335 : vector<1x32xf32>
    %1446 = arith.addf %1444, %1445 : vector<1x32xf32>
    %cst_362 = arith.constant dense<0.000000e+00> : vector<1x96xf32>
    %1447 = tpu.matmul %1446, %1060, %cst_362 {dimension_numbers = #tpu.dot_dimension_numbers<[1], [0], [0], [1], [0, 0, 1, 1], [], []>} : vector<1x32xf32>, vector<32x96xf32>, vector<1x96xf32> -> vector<1x96xf32>
    %1448 = arith.addf %1447, %1068 : vector<1x96xf32>
    %cst_363 = arith.constant dense<0.000000e+00> : vector<1x96xf32>
    %1449 = tpu.matmul %1365, %1062, %cst_363 {dimension_numbers = #tpu.dot_dimension_numbers<[1], [0], [0], [1], [0, 0, 1, 1], [], []>} : vector<1x32xf32>, vector<32x96xf32>, vector<1x96xf32> -> vector<1x96xf32>
    %1450 = arith.addf %1449, %1070 : vector<1x96xf32>
    %1451 = vector.extract_strided_slice %1448 {offsets = [0, 0], sizes = [1, 32], strides = [1, 1]} : vector<1x96xf32> to vector<1x32xf32>
    %1452 = vector.extract_strided_slice %1450 {offsets = [0, 0], sizes = [1, 32], strides = [1, 1]} : vector<1x96xf32> to vector<1x32xf32>
    %1453 = arith.addf %1451, %1452 : vector<1x32xf32>
    %1454 = arith.negf %1453 : vector<1x32xf32>
    %1455 = math.exp %1454 : vector<1x32xf32>
    %cst_364 = arith.constant 1.000000e+00 : f32
    %1456 = vector.broadcast %cst_364 : f32 to vector<1x32xf32>
    %1457 = arith.addf %1456, %1455 : vector<1x32xf32>
    %1458 = arith.divf %1456, %1457 : vector<1x32xf32>
    %1459 = vector.extract_strided_slice %1448 {offsets = [0, 32], sizes = [1, 32], strides = [1, 1]} : vector<1x96xf32> to vector<1x32xf32>
    %1460 = vector.extract_strided_slice %1450 {offsets = [0, 32], sizes = [1, 32], strides = [1, 1]} : vector<1x96xf32> to vector<1x32xf32>
    %1461 = arith.addf %1459, %1460 : vector<1x32xf32>
    %1462 = arith.negf %1461 : vector<1x32xf32>
    %1463 = math.exp %1462 : vector<1x32xf32>
    %cst_365 = arith.constant 1.000000e+00 : f32
    %1464 = vector.broadcast %cst_365 : f32 to vector<1x32xf32>
    %1465 = arith.addf %1464, %1463 : vector<1x32xf32>
    %1466 = arith.divf %1464, %1465 : vector<1x32xf32>
    %1467 = vector.extract_strided_slice %1448 {offsets = [0, 64], sizes = [1, 32], strides = [1, 1]} : vector<1x96xf32> to vector<1x32xf32>
    %1468 = vector.extract_strided_slice %1450 {offsets = [0, 64], sizes = [1, 32], strides = [1, 1]} : vector<1x96xf32> to vector<1x32xf32>
    %1469 = arith.mulf %1458, %1468 : vector<1x32xf32>
    %1470 = arith.addf %1467, %1469 : vector<1x32xf32>
    %1471 = math.tanh %1470 : vector<1x32xf32>
    %cst_366 = arith.constant 1.000000e+00 : f32
    %1472 = vector.broadcast %cst_366 : f32 to vector<1x32xf32>
    %1473 = arith.subf %1472, %1466 : vector<1x32xf32>
    %1474 = arith.mulf %1473, %1471 : vector<1x32xf32>
    %1475 = arith.mulf %1466, %1365 : vector<1x32xf32>
    %1476 = arith.addf %1474, %1475 : vector<1x32xf32>
    %cst_367 = arith.constant dense<0.000000e+00> : vector<1x8xf32>
    %1477 = tpu.matmul %1476, %1054, %cst_367 {dimension_numbers = #tpu.dot_dimension_numbers<[1], [0], [0], [1], [0, 0, 1, 1], [], []>} : vector<1x32xf32>, vector<32x8xf32>, vector<1x8xf32> -> vector<1x8xf32>
    %1478 = vector.broadcast %0 : i32 to vector<1x8xi32>
    %1479 = arith.cmpi slt, %1075, %1478 : vector<1x8xi32>
    %cst_368 = arith.constant -1.000000e+30 : f32
    %1480 = vector.broadcast %cst_368 : f32 to vector<1x8xf32>
    %1481 = arith.select %1479, %1477, %1480 : vector<1x8xi1>, vector<1x8xf32>
    %cst_369 = arith.constant dense<0xFF800000> : vector<1xf32>
    %1482 = vector.multi_reduction <maximumf>, %1481, %cst_369 [1] : vector<1x8xf32> to vector<1xf32>
    %1483 = vector.shape_cast %1482 : vector<1xf32> to vector<1x1xf32>
    %1484 = vector.broadcast %1483 : vector<1x1xf32> to vector<1x8xf32>
    %1485 = arith.subf %1481, %1484 : vector<1x8xf32>
    %1486 = math.exp %1485 : vector<1x8xf32>
    %cst_370 = arith.constant dense<0.000000e+00> : vector<1xf32>
    %1487 = vector.multi_reduction <add>, %1486, %cst_370 [1] : vector<1x8xf32> to vector<1xf32>
    %1488 = vector.shape_cast %1487 : vector<1xf32> to vector<1x1xf32>
    %1489 = tpu.reciprocal %1488 {approx = true} : vector<1x1xf32> -> vector<1x1xf32>
    %1490 = vector.broadcast %1489 : vector<1x1xf32> to vector<1x8xf32>
    %1491 = arith.mulf %1486, %1490 : vector<1x8xf32>
    %cst_371 = arith.constant dense<0.000000e+00> : vector<1x32xf32>
    %1492 = tpu.matmul %1491, %1053, %cst_371 {dimension_numbers = #tpu.dot_dimension_numbers<[1], [0], [0], [1], [0, 0, 1, 1], [], []>} : vector<1x8xf32>, vector<8x32xf32>, vector<1x32xf32> -> vector<1x32xf32>
    %1493 = tpu.concatenate %1476, %1492 in 1 : vector<1x32xf32>, vector<1x32xf32> -> vector<1x64xf32>
    %cst_372 = arith.constant dense<0.000000e+00> : vector<1x32xf32>
    %1494 = tpu.matmul %1493, %1071, %cst_372 {dimension_numbers = #tpu.dot_dimension_numbers<[1], [0], [0], [1], [0, 0, 1, 1], [], []>} : vector<1x64xf32>, vector<64x32xf32>, vector<1x32xf32> -> vector<1x32xf32>
    %1495 = arith.addf %1494, %1072 : vector<1x32xf32>
    %1496 = math.tanh %1495 : vector<1x32xf32>
    %cst_373 = arith.constant dense<0.000000e+00> : vector<1x64xf32>
    %1497 = tpu.matmul %1496, %1073, %cst_373 {dimension_numbers = #tpu.dot_dimension_numbers<[1], [0], [0], [1], [0, 0, 1, 1], [], []>} : vector<1x32xf32>, vector<32x64xf32>, vector<1x64xf32> -> vector<1x64xf32>
    %1498 = arith.addf %1497, %1074 : vector<1x64xf32>
    %cst_374 = arith.constant dense<0xFF800000> : vector<1xf32>
    %1499 = vector.multi_reduction <maximumf>, %1498, %cst_374 [1] : vector<1x64xf32> to vector<1xf32>
    %1500 = vector.shape_cast %1499 : vector<1xf32> to vector<1x1xf32>
    %1501 = vector.broadcast %1500 : vector<1x1xf32> to vector<1x64xf32>
    %1502 = arith.subf %1498, %1501 : vector<1x64xf32>
    %1503 = math.exp %1502 : vector<1x64xf32>
    %cst_375 = arith.constant dense<0.000000e+00> : vector<1xf32>
    %1504 = vector.multi_reduction <add>, %1503, %cst_375 [1] : vector<1x64xf32> to vector<1xf32>
    %1505 = vector.shape_cast %1504 : vector<1xf32> to vector<1x1xf32>
    %1506 = tpu.reciprocal %1505 {approx = true} : vector<1x1xf32> -> vector<1x1xf32>
    %1507 = vector.broadcast %1500 : vector<1x1xf32> to vector<1x64xf32>
    %1508 = arith.cmpf oeq, %1498, %1507 : vector<1x64xf32>
    %c64_i32_376 = arith.constant 64 : i32
    %1509 = vector.broadcast %c64_i32_376 : i32 to vector<1x64xi32>
    %1510 = arith.select %1508, %2, %1509 : vector<1x64xi1>, vector<1x64xi32>
    %cst_377 = arith.constant dense<2147483647> : vector<1xi32>
    %1511 = vector.multi_reduction <minsi>, %1510, %cst_377 [1] : vector<1x64xi32> to vector<1xi32>
    %1512 = vector.shape_cast %1511 : vector<1xi32> to vector<1x1xi32>
    %c3_i32 = arith.constant 3 : i32
    %1513 = vector.broadcast %c3_i32 : i32 to vector<1x6xi32>
    %1514 = arith.cmpi eq, %1076, %1513 : vector<1x6xi32>
    %1515 = vector.shape_cast %1512 : vector<1x1xi32> to vector<1x1xi32>
    %1516 = vector.broadcast %1515 : vector<1x1xi32> to vector<1x6xi32>
    %1517 = arith.select %1514, %1516, %1406 : vector<1x6xi1>, vector<1x6xi32>
    %c3_i32_378 = arith.constant 3 : i32
    %1518 = vector.broadcast %c3_i32_378 : i32 to vector<1x6xi32>
    %1519 = arith.cmpi eq, %1076, %1518 : vector<1x6xi32>
    %1520 = vector.shape_cast %1506 : vector<1x1xf32> to vector<1x1xf32>
    %1521 = vector.broadcast %1520 : vector<1x1xf32> to vector<1x6xf32>
    %1522 = arith.select %1519, %1521, %1411 : vector<1x6xi1>, vector<1x6xf32>
    %1523 = vector.broadcast %1512 : vector<1x1xi32> to vector<1x64xi32>
    %1524 = arith.cmpi eq, %2, %1523 : vector<1x64xi32>
    %1525 = arith.extui %1524 : vector<1x64xi1> to vector<1x64xi32>
    %1526 = arith.sitofp %1525 : vector<1x64xi32> to vector<1x64xf32>
    %cst_379 = arith.constant dense<0.000000e+00> : vector<1x32xf32>
    %1527 = tpu.matmul %1526, %1, %cst_379 {dimension_numbers = #tpu.dot_dimension_numbers<[1], [0], [0], [1], [0, 0, 1, 1], [], []>} : vector<1x64xf32>, vector<64x32xf32>, vector<1x32xf32> -> vector<1x32xf32>
    %cst_380 = arith.constant dense<0.000000e+00> : vector<1x96xf32>
    %1528 = tpu.matmul %1527, %1056, %cst_380 {dimension_numbers = #tpu.dot_dimension_numbers<[1], [0], [0], [1], [0, 0, 1, 1], [], []>} : vector<1x32xf32>, vector<32x96xf32>, vector<1x96xf32> -> vector<1x96xf32>
    %1529 = arith.addf %1528, %1064 : vector<1x96xf32>
    %cst_381 = arith.constant dense<0.000000e+00> : vector<1x96xf32>
    %1530 = tpu.matmul %1446, %1058, %cst_381 {dimension_numbers = #tpu.dot_dimension_numbers<[1], [0], [0], [1], [0, 0, 1, 1], [], []>} : vector<1x32xf32>, vector<32x96xf32>, vector<1x96xf32> -> vector<1x96xf32>
    %1531 = arith.addf %1530, %1066 : vector<1x96xf32>
    %1532 = vector.extract_strided_slice %1529 {offsets = [0, 0], sizes = [1, 32], strides = [1, 1]} : vector<1x96xf32> to vector<1x32xf32>
    %1533 = vector.extract_strided_slice %1531 {offsets = [0, 0], sizes = [1, 32], strides = [1, 1]} : vector<1x96xf32> to vector<1x32xf32>
    %1534 = arith.addf %1532, %1533 : vector<1x32xf32>
    %1535 = arith.negf %1534 : vector<1x32xf32>
    %1536 = math.exp %1535 : vector<1x32xf32>
    %cst_382 = arith.constant 1.000000e+00 : f32
    %1537 = vector.broadcast %cst_382 : f32 to vector<1x32xf32>
    %1538 = arith.addf %1537, %1536 : vector<1x32xf32>
    %1539 = arith.divf %1537, %1538 : vector<1x32xf32>
    %1540 = vector.extract_strided_slice %1529 {offsets = [0, 32], sizes = [1, 32], strides = [1, 1]} : vector<1x96xf32> to vector<1x32xf32>
    %1541 = vector.extract_strided_slice %1531 {offsets = [0, 32], sizes = [1, 32], strides = [1, 1]} : vector<1x96xf32> to vector<1x32xf32>
    %1542 = arith.addf %1540, %1541 : vector<1x32xf32>
    %1543 = arith.negf %1542 : vector<1x32xf32>
    %1544 = math.exp %1543 : vector<1x32xf32>
    %cst_383 = arith.constant 1.000000e+00 : f32
    %1545 = vector.broadcast %cst_383 : f32 to vector<1x32xf32>
    %1546 = arith.addf %1545, %1544 : vector<1x32xf32>
    %1547 = arith.divf %1545, %1546 : vector<1x32xf32>
    %1548 = vector.extract_strided_slice %1529 {offsets = [0, 64], sizes = [1, 32], strides = [1, 1]} : vector<1x96xf32> to vector<1x32xf32>
    %1549 = vector.extract_strided_slice %1531 {offsets = [0, 64], sizes = [1, 32], strides = [1, 1]} : vector<1x96xf32> to vector<1x32xf32>
    %1550 = arith.mulf %1539, %1549 : vector<1x32xf32>
    %1551 = arith.addf %1548, %1550 : vector<1x32xf32>
    %1552 = math.tanh %1551 : vector<1x32xf32>
    %cst_384 = arith.constant 1.000000e+00 : f32
    %1553 = vector.broadcast %cst_384 : f32 to vector<1x32xf32>
    %1554 = arith.subf %1553, %1547 : vector<1x32xf32>
    %1555 = arith.mulf %1554, %1552 : vector<1x32xf32>
    %1556 = arith.mulf %1547, %1446 : vector<1x32xf32>
    %1557 = arith.addf %1555, %1556 : vector<1x32xf32>
    %cst_385 = arith.constant dense<0.000000e+00> : vector<1x96xf32>
    %1558 = tpu.matmul %1557, %1060, %cst_385 {dimension_numbers = #tpu.dot_dimension_numbers<[1], [0], [0], [1], [0, 0, 1, 1], [], []>} : vector<1x32xf32>, vector<32x96xf32>, vector<1x96xf32> -> vector<1x96xf32>
    %1559 = arith.addf %1558, %1068 : vector<1x96xf32>
    %cst_386 = arith.constant dense<0.000000e+00> : vector<1x96xf32>
    %1560 = tpu.matmul %1476, %1062, %cst_386 {dimension_numbers = #tpu.dot_dimension_numbers<[1], [0], [0], [1], [0, 0, 1, 1], [], []>} : vector<1x32xf32>, vector<32x96xf32>, vector<1x96xf32> -> vector<1x96xf32>
    %1561 = arith.addf %1560, %1070 : vector<1x96xf32>
    %1562 = vector.extract_strided_slice %1559 {offsets = [0, 0], sizes = [1, 32], strides = [1, 1]} : vector<1x96xf32> to vector<1x32xf32>
    %1563 = vector.extract_strided_slice %1561 {offsets = [0, 0], sizes = [1, 32], strides = [1, 1]} : vector<1x96xf32> to vector<1x32xf32>
    %1564 = arith.addf %1562, %1563 : vector<1x32xf32>
    %1565 = arith.negf %1564 : vector<1x32xf32>
    %1566 = math.exp %1565 : vector<1x32xf32>
    %cst_387 = arith.constant 1.000000e+00 : f32
    %1567 = vector.broadcast %cst_387 : f32 to vector<1x32xf32>
    %1568 = arith.addf %1567, %1566 : vector<1x32xf32>
    %1569 = arith.divf %1567, %1568 : vector<1x32xf32>
    %1570 = vector.extract_strided_slice %1559 {offsets = [0, 32], sizes = [1, 32], strides = [1, 1]} : vector<1x96xf32> to vector<1x32xf32>
    %1571 = vector.extract_strided_slice %1561 {offsets = [0, 32], sizes = [1, 32], strides = [1, 1]} : vector<1x96xf32> to vector<1x32xf32>
    %1572 = arith.addf %1570, %1571 : vector<1x32xf32>
    %1573 = arith.negf %1572 : vector<1x32xf32>
    %1574 = math.exp %1573 : vector<1x32xf32>
    %cst_388 = arith.constant 1.000000e+00 : f32
    %1575 = vector.broadcast %cst_388 : f32 to vector<1x32xf32>
    %1576 = arith.addf %1575, %1574 : vector<1x32xf32>
    %1577 = arith.divf %1575, %1576 : vector<1x32xf32>
    %1578 = vector.extract_strided_slice %1559 {offsets = [0, 64], sizes = [1, 32], strides = [1, 1]} : vector<1x96xf32> to vector<1x32xf32>
    %1579 = vector.extract_strided_slice %1561 {offsets = [0, 64], sizes = [1, 32], strides = [1, 1]} : vector<1x96xf32> to vector<1x32xf32>
    %1580 = arith.mulf %1569, %1579 : vector<1x32xf32>
    %1581 = arith.addf %1578, %1580 : vector<1x32xf32>
    %1582 = math.tanh %1581 : vector<1x32xf32>
    %cst_389 = arith.constant 1.000000e+00 : f32
    %1583 = vector.broadcast %cst_389 : f32 to vector<1x32xf32>
    %1584 = arith.subf %1583, %1577 : vector<1x32xf32>
    %1585 = arith.mulf %1584, %1582 : vector<1x32xf32>
    %1586 = arith.mulf %1577, %1476 : vector<1x32xf32>
    %1587 = arith.addf %1585, %1586 : vector<1x32xf32>
    %cst_390 = arith.constant dense<0.000000e+00> : vector<1x8xf32>
    %1588 = tpu.matmul %1587, %1054, %cst_390 {dimension_numbers = #tpu.dot_dimension_numbers<[1], [0], [0], [1], [0, 0, 1, 1], [], []>} : vector<1x32xf32>, vector<32x8xf32>, vector<1x8xf32> -> vector<1x8xf32>
    %1589 = vector.broadcast %0 : i32 to vector<1x8xi32>
    %1590 = arith.cmpi slt, %1075, %1589 : vector<1x8xi32>
    %cst_391 = arith.constant -1.000000e+30 : f32
    %1591 = vector.broadcast %cst_391 : f32 to vector<1x8xf32>
    %1592 = arith.select %1590, %1588, %1591 : vector<1x8xi1>, vector<1x8xf32>
    %cst_392 = arith.constant dense<0xFF800000> : vector<1xf32>
    %1593 = vector.multi_reduction <maximumf>, %1592, %cst_392 [1] : vector<1x8xf32> to vector<1xf32>
    %1594 = vector.shape_cast %1593 : vector<1xf32> to vector<1x1xf32>
    %1595 = vector.broadcast %1594 : vector<1x1xf32> to vector<1x8xf32>
    %1596 = arith.subf %1592, %1595 : vector<1x8xf32>
    %1597 = math.exp %1596 : vector<1x8xf32>
    %cst_393 = arith.constant dense<0.000000e+00> : vector<1xf32>
    %1598 = vector.multi_reduction <add>, %1597, %cst_393 [1] : vector<1x8xf32> to vector<1xf32>
    %1599 = vector.shape_cast %1598 : vector<1xf32> to vector<1x1xf32>
    %1600 = tpu.reciprocal %1599 {approx = true} : vector<1x1xf32> -> vector<1x1xf32>
    %1601 = vector.broadcast %1600 : vector<1x1xf32> to vector<1x8xf32>
    %1602 = arith.mulf %1597, %1601 : vector<1x8xf32>
    %cst_394 = arith.constant dense<0.000000e+00> : vector<1x32xf32>
    %1603 = tpu.matmul %1602, %1053, %cst_394 {dimension_numbers = #tpu.dot_dimension_numbers<[1], [0], [0], [1], [0, 0, 1, 1], [], []>} : vector<1x8xf32>, vector<8x32xf32>, vector<1x32xf32> -> vector<1x32xf32>
    %1604 = tpu.concatenate %1587, %1603 in 1 : vector<1x32xf32>, vector<1x32xf32> -> vector<1x64xf32>
    %cst_395 = arith.constant dense<0.000000e+00> : vector<1x32xf32>
    %1605 = tpu.matmul %1604, %1071, %cst_395 {dimension_numbers = #tpu.dot_dimension_numbers<[1], [0], [0], [1], [0, 0, 1, 1], [], []>} : vector<1x64xf32>, vector<64x32xf32>, vector<1x32xf32> -> vector<1x32xf32>
    %1606 = arith.addf %1605, %1072 : vector<1x32xf32>
    %1607 = math.tanh %1606 : vector<1x32xf32>
    %cst_396 = arith.constant dense<0.000000e+00> : vector<1x64xf32>
    %1608 = tpu.matmul %1607, %1073, %cst_396 {dimension_numbers = #tpu.dot_dimension_numbers<[1], [0], [0], [1], [0, 0, 1, 1], [], []>} : vector<1x32xf32>, vector<32x64xf32>, vector<1x64xf32> -> vector<1x64xf32>
    %1609 = arith.addf %1608, %1074 : vector<1x64xf32>
    %cst_397 = arith.constant dense<0xFF800000> : vector<1xf32>
    %1610 = vector.multi_reduction <maximumf>, %1609, %cst_397 [1] : vector<1x64xf32> to vector<1xf32>
    %1611 = vector.shape_cast %1610 : vector<1xf32> to vector<1x1xf32>
    %1612 = vector.broadcast %1611 : vector<1x1xf32> to vector<1x64xf32>
    %1613 = arith.subf %1609, %1612 : vector<1x64xf32>
    %1614 = math.exp %1613 : vector<1x64xf32>
    %cst_398 = arith.constant dense<0.000000e+00> : vector<1xf32>
    %1615 = vector.multi_reduction <add>, %1614, %cst_398 [1] : vector<1x64xf32> to vector<1xf32>
    %1616 = vector.shape_cast %1615 : vector<1xf32> to vector<1x1xf32>
    %1617 = tpu.reciprocal %1616 {approx = true} : vector<1x1xf32> -> vector<1x1xf32>
    %1618 = vector.broadcast %1611 : vector<1x1xf32> to vector<1x64xf32>
    %1619 = arith.cmpf oeq, %1609, %1618 : vector<1x64xf32>
    %c64_i32_399 = arith.constant 64 : i32
    %1620 = vector.broadcast %c64_i32_399 : i32 to vector<1x64xi32>
    %1621 = arith.select %1619, %2, %1620 : vector<1x64xi1>, vector<1x64xi32>
    %cst_400 = arith.constant dense<2147483647> : vector<1xi32>
    %1622 = vector.multi_reduction <minsi>, %1621, %cst_400 [1] : vector<1x64xi32> to vector<1xi32>
    %1623 = vector.shape_cast %1622 : vector<1xi32> to vector<1x1xi32>
    %c4_i32 = arith.constant 4 : i32
    %1624 = vector.broadcast %c4_i32 : i32 to vector<1x6xi32>
    %1625 = arith.cmpi eq, %1076, %1624 : vector<1x6xi32>
    %1626 = vector.shape_cast %1623 : vector<1x1xi32> to vector<1x1xi32>
    %1627 = vector.broadcast %1626 : vector<1x1xi32> to vector<1x6xi32>
    %1628 = arith.select %1625, %1627, %1517 : vector<1x6xi1>, vector<1x6xi32>
    %c4_i32_401 = arith.constant 4 : i32
    %1629 = vector.broadcast %c4_i32_401 : i32 to vector<1x6xi32>
    %1630 = arith.cmpi eq, %1076, %1629 : vector<1x6xi32>
    %1631 = vector.shape_cast %1617 : vector<1x1xf32> to vector<1x1xf32>
    %1632 = vector.broadcast %1631 : vector<1x1xf32> to vector<1x6xf32>
    %1633 = arith.select %1630, %1632, %1522 : vector<1x6xi1>, vector<1x6xf32>
    %1634 = vector.broadcast %1623 : vector<1x1xi32> to vector<1x64xi32>
    %1635 = arith.cmpi eq, %2, %1634 : vector<1x64xi32>
    %1636 = arith.extui %1635 : vector<1x64xi1> to vector<1x64xi32>
    %1637 = arith.sitofp %1636 : vector<1x64xi32> to vector<1x64xf32>
    %cst_402 = arith.constant dense<0.000000e+00> : vector<1x32xf32>
    %1638 = tpu.matmul %1637, %1, %cst_402 {dimension_numbers = #tpu.dot_dimension_numbers<[1], [0], [0], [1], [0, 0, 1, 1], [], []>} : vector<1x64xf32>, vector<64x32xf32>, vector<1x32xf32> -> vector<1x32xf32>
    %cst_403 = arith.constant dense<0.000000e+00> : vector<1x96xf32>
    %1639 = tpu.matmul %1638, %1056, %cst_403 {dimension_numbers = #tpu.dot_dimension_numbers<[1], [0], [0], [1], [0, 0, 1, 1], [], []>} : vector<1x32xf32>, vector<32x96xf32>, vector<1x96xf32> -> vector<1x96xf32>
    %1640 = arith.addf %1639, %1064 : vector<1x96xf32>
    %cst_404 = arith.constant dense<0.000000e+00> : vector<1x96xf32>
    %1641 = tpu.matmul %1557, %1058, %cst_404 {dimension_numbers = #tpu.dot_dimension_numbers<[1], [0], [0], [1], [0, 0, 1, 1], [], []>} : vector<1x32xf32>, vector<32x96xf32>, vector<1x96xf32> -> vector<1x96xf32>
    %1642 = arith.addf %1641, %1066 : vector<1x96xf32>
    %1643 = vector.extract_strided_slice %1640 {offsets = [0, 0], sizes = [1, 32], strides = [1, 1]} : vector<1x96xf32> to vector<1x32xf32>
    %1644 = vector.extract_strided_slice %1642 {offsets = [0, 0], sizes = [1, 32], strides = [1, 1]} : vector<1x96xf32> to vector<1x32xf32>
    %1645 = arith.addf %1643, %1644 : vector<1x32xf32>
    %1646 = arith.negf %1645 : vector<1x32xf32>
    %1647 = math.exp %1646 : vector<1x32xf32>
    %cst_405 = arith.constant 1.000000e+00 : f32
    %1648 = vector.broadcast %cst_405 : f32 to vector<1x32xf32>
    %1649 = arith.addf %1648, %1647 : vector<1x32xf32>
    %1650 = arith.divf %1648, %1649 : vector<1x32xf32>
    %1651 = vector.extract_strided_slice %1640 {offsets = [0, 32], sizes = [1, 32], strides = [1, 1]} : vector<1x96xf32> to vector<1x32xf32>
    %1652 = vector.extract_strided_slice %1642 {offsets = [0, 32], sizes = [1, 32], strides = [1, 1]} : vector<1x96xf32> to vector<1x32xf32>
    %1653 = arith.addf %1651, %1652 : vector<1x32xf32>
    %1654 = arith.negf %1653 : vector<1x32xf32>
    %1655 = math.exp %1654 : vector<1x32xf32>
    %cst_406 = arith.constant 1.000000e+00 : f32
    %1656 = vector.broadcast %cst_406 : f32 to vector<1x32xf32>
    %1657 = arith.addf %1656, %1655 : vector<1x32xf32>
    %1658 = arith.divf %1656, %1657 : vector<1x32xf32>
    %1659 = vector.extract_strided_slice %1640 {offsets = [0, 64], sizes = [1, 32], strides = [1, 1]} : vector<1x96xf32> to vector<1x32xf32>
    %1660 = vector.extract_strided_slice %1642 {offsets = [0, 64], sizes = [1, 32], strides = [1, 1]} : vector<1x96xf32> to vector<1x32xf32>
    %1661 = arith.mulf %1650, %1660 : vector<1x32xf32>
    %1662 = arith.addf %1659, %1661 : vector<1x32xf32>
    %1663 = math.tanh %1662 : vector<1x32xf32>
    %cst_407 = arith.constant 1.000000e+00 : f32
    %1664 = vector.broadcast %cst_407 : f32 to vector<1x32xf32>
    %1665 = arith.subf %1664, %1658 : vector<1x32xf32>
    %1666 = arith.mulf %1665, %1663 : vector<1x32xf32>
    %1667 = arith.mulf %1658, %1557 : vector<1x32xf32>
    %1668 = arith.addf %1666, %1667 : vector<1x32xf32>
    %cst_408 = arith.constant dense<0.000000e+00> : vector<1x96xf32>
    %1669 = tpu.matmul %1668, %1060, %cst_408 {dimension_numbers = #tpu.dot_dimension_numbers<[1], [0], [0], [1], [0, 0, 1, 1], [], []>} : vector<1x32xf32>, vector<32x96xf32>, vector<1x96xf32> -> vector<1x96xf32>
    %1670 = arith.addf %1669, %1068 : vector<1x96xf32>
    %cst_409 = arith.constant dense<0.000000e+00> : vector<1x96xf32>
    %1671 = tpu.matmul %1587, %1062, %cst_409 {dimension_numbers = #tpu.dot_dimension_numbers<[1], [0], [0], [1], [0, 0, 1, 1], [], []>} : vector<1x32xf32>, vector<32x96xf32>, vector<1x96xf32> -> vector<1x96xf32>
    %1672 = arith.addf %1671, %1070 : vector<1x96xf32>
    %1673 = vector.extract_strided_slice %1670 {offsets = [0, 0], sizes = [1, 32], strides = [1, 1]} : vector<1x96xf32> to vector<1x32xf32>
    %1674 = vector.extract_strided_slice %1672 {offsets = [0, 0], sizes = [1, 32], strides = [1, 1]} : vector<1x96xf32> to vector<1x32xf32>
    %1675 = arith.addf %1673, %1674 : vector<1x32xf32>
    %1676 = arith.negf %1675 : vector<1x32xf32>
    %1677 = math.exp %1676 : vector<1x32xf32>
    %cst_410 = arith.constant 1.000000e+00 : f32
    %1678 = vector.broadcast %cst_410 : f32 to vector<1x32xf32>
    %1679 = arith.addf %1678, %1677 : vector<1x32xf32>
    %1680 = arith.divf %1678, %1679 : vector<1x32xf32>
    %1681 = vector.extract_strided_slice %1670 {offsets = [0, 32], sizes = [1, 32], strides = [1, 1]} : vector<1x96xf32> to vector<1x32xf32>
    %1682 = vector.extract_strided_slice %1672 {offsets = [0, 32], sizes = [1, 32], strides = [1, 1]} : vector<1x96xf32> to vector<1x32xf32>
    %1683 = arith.addf %1681, %1682 : vector<1x32xf32>
    %1684 = arith.negf %1683 : vector<1x32xf32>
    %1685 = math.exp %1684 : vector<1x32xf32>
    %cst_411 = arith.constant 1.000000e+00 : f32
    %1686 = vector.broadcast %cst_411 : f32 to vector<1x32xf32>
    %1687 = arith.addf %1686, %1685 : vector<1x32xf32>
    %1688 = arith.divf %1686, %1687 : vector<1x32xf32>
    %1689 = vector.extract_strided_slice %1670 {offsets = [0, 64], sizes = [1, 32], strides = [1, 1]} : vector<1x96xf32> to vector<1x32xf32>
    %1690 = vector.extract_strided_slice %1672 {offsets = [0, 64], sizes = [1, 32], strides = [1, 1]} : vector<1x96xf32> to vector<1x32xf32>
    %1691 = arith.mulf %1680, %1690 : vector<1x32xf32>
    %1692 = arith.addf %1689, %1691 : vector<1x32xf32>
    %1693 = math.tanh %1692 : vector<1x32xf32>
    %cst_412 = arith.constant 1.000000e+00 : f32
    %1694 = vector.broadcast %cst_412 : f32 to vector<1x32xf32>
    %1695 = arith.subf %1694, %1688 : vector<1x32xf32>
    %1696 = arith.mulf %1695, %1693 : vector<1x32xf32>
    %1697 = arith.mulf %1688, %1587 : vector<1x32xf32>
    %1698 = arith.addf %1696, %1697 : vector<1x32xf32>
    %cst_413 = arith.constant dense<0.000000e+00> : vector<1x8xf32>
    %1699 = tpu.matmul %1698, %1054, %cst_413 {dimension_numbers = #tpu.dot_dimension_numbers<[1], [0], [0], [1], [0, 0, 1, 1], [], []>} : vector<1x32xf32>, vector<32x8xf32>, vector<1x8xf32> -> vector<1x8xf32>
    %1700 = vector.broadcast %0 : i32 to vector<1x8xi32>
    %1701 = arith.cmpi slt, %1075, %1700 : vector<1x8xi32>
    %cst_414 = arith.constant -1.000000e+30 : f32
    %1702 = vector.broadcast %cst_414 : f32 to vector<1x8xf32>
    %1703 = arith.select %1701, %1699, %1702 : vector<1x8xi1>, vector<1x8xf32>
    %cst_415 = arith.constant dense<0xFF800000> : vector<1xf32>
    %1704 = vector.multi_reduction <maximumf>, %1703, %cst_415 [1] : vector<1x8xf32> to vector<1xf32>
    %1705 = vector.shape_cast %1704 : vector<1xf32> to vector<1x1xf32>
    %1706 = vector.broadcast %1705 : vector<1x1xf32> to vector<1x8xf32>
    %1707 = arith.subf %1703, %1706 : vector<1x8xf32>
    %1708 = math.exp %1707 : vector<1x8xf32>
    %cst_416 = arith.constant dense<0.000000e+00> : vector<1xf32>
    %1709 = vector.multi_reduction <add>, %1708, %cst_416 [1] : vector<1x8xf32> to vector<1xf32>
    %1710 = vector.shape_cast %1709 : vector<1xf32> to vector<1x1xf32>
    %1711 = tpu.reciprocal %1710 {approx = true} : vector<1x1xf32> -> vector<1x1xf32>
    %1712 = vector.broadcast %1711 : vector<1x1xf32> to vector<1x8xf32>
    %1713 = arith.mulf %1708, %1712 : vector<1x8xf32>
    %cst_417 = arith.constant dense<0.000000e+00> : vector<1x32xf32>
    %1714 = tpu.matmul %1713, %1053, %cst_417 {dimension_numbers = #tpu.dot_dimension_numbers<[1], [0], [0], [1], [0, 0, 1, 1], [], []>} : vector<1x8xf32>, vector<8x32xf32>, vector<1x32xf32> -> vector<1x32xf32>
    %1715 = tpu.concatenate %1698, %1714 in 1 : vector<1x32xf32>, vector<1x32xf32> -> vector<1x64xf32>
    %cst_418 = arith.constant dense<0.000000e+00> : vector<1x32xf32>
    %1716 = tpu.matmul %1715, %1071, %cst_418 {dimension_numbers = #tpu.dot_dimension_numbers<[1], [0], [0], [1], [0, 0, 1, 1], [], []>} : vector<1x64xf32>, vector<64x32xf32>, vector<1x32xf32> -> vector<1x32xf32>
    %1717 = arith.addf %1716, %1072 : vector<1x32xf32>
    %1718 = math.tanh %1717 : vector<1x32xf32>
    %cst_419 = arith.constant dense<0.000000e+00> : vector<1x64xf32>
    %1719 = tpu.matmul %1718, %1073, %cst_419 {dimension_numbers = #tpu.dot_dimension_numbers<[1], [0], [0], [1], [0, 0, 1, 1], [], []>} : vector<1x32xf32>, vector<32x64xf32>, vector<1x64xf32> -> vector<1x64xf32>
    %1720 = arith.addf %1719, %1074 : vector<1x64xf32>
    %cst_420 = arith.constant dense<0xFF800000> : vector<1xf32>
    %1721 = vector.multi_reduction <maximumf>, %1720, %cst_420 [1] : vector<1x64xf32> to vector<1xf32>
    %1722 = vector.shape_cast %1721 : vector<1xf32> to vector<1x1xf32>
    %1723 = vector.broadcast %1722 : vector<1x1xf32> to vector<1x64xf32>
    %1724 = arith.subf %1720, %1723 : vector<1x64xf32>
    %1725 = math.exp %1724 : vector<1x64xf32>
    %cst_421 = arith.constant dense<0.000000e+00> : vector<1xf32>
    %1726 = vector.multi_reduction <add>, %1725, %cst_421 [1] : vector<1x64xf32> to vector<1xf32>
    %1727 = vector.shape_cast %1726 : vector<1xf32> to vector<1x1xf32>
    %1728 = tpu.reciprocal %1727 {approx = true} : vector<1x1xf32> -> vector<1x1xf32>
    %1729 = vector.broadcast %1722 : vector<1x1xf32> to vector<1x64xf32>
    %1730 = arith.cmpf oeq, %1720, %1729 : vector<1x64xf32>
    %c64_i32_422 = arith.constant 64 : i32
    %1731 = vector.broadcast %c64_i32_422 : i32 to vector<1x64xi32>
    %1732 = arith.select %1730, %2, %1731 : vector<1x64xi1>, vector<1x64xi32>
    %cst_423 = arith.constant dense<2147483647> : vector<1xi32>
    %1733 = vector.multi_reduction <minsi>, %1732, %cst_423 [1] : vector<1x64xi32> to vector<1xi32>
    %1734 = vector.shape_cast %1733 : vector<1xi32> to vector<1x1xi32>
    %c5_i32 = arith.constant 5 : i32
    %1735 = vector.broadcast %c5_i32 : i32 to vector<1x6xi32>
    %1736 = arith.cmpi eq, %1076, %1735 : vector<1x6xi32>
    %1737 = vector.shape_cast %1734 : vector<1x1xi32> to vector<1x1xi32>
    %1738 = vector.broadcast %1737 : vector<1x1xi32> to vector<1x6xi32>
    %1739 = arith.select %1736, %1738, %1628 : vector<1x6xi1>, vector<1x6xi32>
    %c5_i32_424 = arith.constant 5 : i32
    %1740 = vector.broadcast %c5_i32_424 : i32 to vector<1x6xi32>
    %1741 = arith.cmpi eq, %1076, %1740 : vector<1x6xi32>
    %1742 = vector.shape_cast %1728 : vector<1x1xf32> to vector<1x1xf32>
    %1743 = vector.broadcast %1742 : vector<1x1xf32> to vector<1x6xf32>
    %1744 = arith.select %1741, %1743, %1633 : vector<1x6xi1>, vector<1x6xf32>
    %c0_425 = arith.constant 0 : index
    %c0_426 = arith.constant 0 : index
    %1745 = vector.load %arg12[%c0_425, %c0_426] : memref<1x6xi32, #tpu.memory_space<vmem>>, vector<1x6xi32>
    tpu.vector_store %arg12[%c0_425, %c0_426], %1739 {strides = array<i32>} : memref<1x6xi32, #tpu.memory_space<vmem>>, vector<1x6xi32>,
    %c0_427 = arith.constant 0 : index
    %c0_428 = arith.constant 0 : index
    %1746 = vector.load %arg13[%c0_427, %c0_428] : memref<1x6xf32, #tpu.memory_space<vmem>>, vector<1x6xf32>
    tpu.vector_store %arg13[%c0_427, %c0_428], %1744 {strides = array<i32>} : memref<1x6xf32, #tpu.memory_space<vmem>>, vector<1x6xf32>,
    return
  }
}

</mosaic_0001>

<llo_original>
// kernel: greedy_search_decode.1
$region0: #{greedy_search_decode.1}
  #allocation0 [shape = 'u32[]', space=smem, size = 0x4, offset = 0x4, fixed_abs, tag = 'smem constant byte address 0x4 - core index']
  #allocation1 [shape = 'u32[72,128]{1,0:T(1,128)}', space=vmem, size = 0x9000, scoped, tag = 'internal scratch']
  #allocation2 [shape = 'f32[8,64]{1,0:T(8,128)}', space=vmem, size = 0x1000, scoped, tag = 'scratch operand']
  #allocation3 [shape = 'f32[8,64]{1,0:T(8,128)}', space=vmem, size = 0x1000, scoped, tag = 'scratch operand']
  #allocation4 [shape = 's32[1]{0:T(128)S(6)}', space=smem, size = 0x200, scoped, tag = 'scoped memory for greedy_search_decode.1']
  %s0 = inlined_call_operand.<no memory space> [shape: s32[1], index: 0, kind: input, shape index: {}]
  %s1 = inlined_call_operand.vmem [shape: s32[8], index: 1, kind: input, shape index: {}]
  %s2 = inlined_call_operand.vmem [shape: f32[64,32], index: 2, kind: input, shape index: {}]
  %s3 = inlined_call_operand.hbm [shape: f32[2,96,96], index: 3, kind: input, shape index: {}]
  %s4 = inlined_call_operand.vmem [shape: f32[2,64,96], index: 4, kind: input, shape index: {}]
  %s5 = inlined_call_operand.hbm [shape: f32[2,4,96], index: 5, kind: input, shape index: {}]
  %s6 = inlined_call_operand.hbm [shape: f32[2,64,96], index: 6, kind: input, shape index: {}]
  %s7 = inlined_call_operand.hbm [shape: f32[2,2,96], index: 7, kind: input, shape index: {}]
  %s8 = inlined_call_operand.vmem [shape: f32[64,32], index: 8, kind: input, shape index: {}]
  %s9 = inlined_call_operand.vmem [shape: f32[1,32], index: 9, kind: input, shape index: {}]
  %s10 = inlined_call_operand.vmem [shape: f32[32,64], index: 10, kind: input, shape index: {}]
  %s11 = inlined_call_operand.hbm [shape: f32[1,64], index: 11, kind: input, shape index: {}]
  %s12 = inlined_call_operand.hbm [shape: s32[1,6], index: 12, kind: output, shape index: {0}]
  %s13 = inlined_call_operand.hbm [shape: f32[1,6], index: 13, kind: output, shape index: {1}]
  %14 = xla_tuple %s12, %s13
  %s15 = sld [smem:[#allocation0]]
  $region90: #{greedy_search_decode.1} parent=0
    _
  %s17 = ssub.s32 1, %s15
  %s18 = scalar_select 0, %s17, %s15
  %19 = sst [smem:[#allocation4]] %s0
  $region1: #{greedy_search_decode.1} parent=0
    #allocation5 [shape = 'u8[512]{0}', space=smem, size = 0x200, scoped, tag = 'input window, operand 1, single buffered']
    #allocation6 [shape = 's32[1]{0}', space=sflag, size = 0x4, scoped, tag = 'scoped memory for greedy_search_decode.1']
    #allocation7 [shape = 's32[1]{0}', space=sflag, size = 0x4, scoped, tag = 'scoped memory for greedy_search_decode.1']
    #allocation8 [shape = 's32[1]{0}', space=sflag, size = 0x4, scoped, tag = 'scoped memory for greedy_search_decode.1']
    #allocation9 [shape = 'u8[98304]{0}', space=vmem, size = 0x18000, scoped, tag = 'input window, operand 3, single buffered']
    #allocation10 [shape = 'u8[4096]{0}', space=vmem, size = 0x1000, scoped, tag = 'input window, operand 5, single buffered']
    #allocation11 [shape = 's32[1]{0}', space=sflag, size = 0x4, scoped, tag = 'scoped memory for greedy_search_decode.1']
    #allocation12 [shape = 'u8[65536]{0}', space=vmem, size = 0x10000, scoped, tag = 'input window, operand 6, single buffered']
    #allocation13 [shape = 'u8[2048]{0}', space=vmem, size = 0x800, scoped, tag = 'input window, operand 7, single buffered']
    #allocation14 [shape = 's32[1]{0}', space=sflag, size = 0x4, scoped, tag = 'scoped memory for greedy_search_decode.1']
    #allocation15 [shape = 'u8[512]{0}', space=vmem, size = 0x400, scoped, tag = 'input window, operand 11, single buffered']
    #allocation16 [shape = 'u8[512]{0}', space=vmem, size = 0x400, scoped, tag = 'output window, operand 0, single buffered']
    #allocation17 [shape = 'u8[512]{0}', space=vmem, size = 0x400, scoped, tag = 'output window, operand 1, single buffered']
    #allocation18 [shape = 's32[1]{0}', space=sflag, size = 0x4, scoped, tag = 'scoped memory for greedy_search_decode.1']
    %20 = vsyncpa [#allocation8], 0
    %21 = vsyncpa [#allocation6], 0
    %22 = vsyncpa [#allocation11], 0
    %23 = vsyncpa [#allocation14], 0
    %24 = vsyncpa [#allocation7], 0
    %25 = vsyncpa [#allocation18], 0
    // Predicated region
    $region2: #{greedy_search_decode.1} parent=1 // pred_check
      _
    $region3: #{greedy_search_decode.1} parent=1 // pred_check_branch
      %27 = sbr.rel (0) target = $region5
    $region4: #{greedy_search_decode.1} parent=1 // pred_region
      _
    $region5: #{greedy_search_decode.1} parent=1 // pred_fallthru
      _
    // Predicated region
    $region6: #{greedy_search_decode.1} parent=1 // pred_check
      _
    $region7: #{greedy_search_decode.1} parent=1 // pred_check_branch
      %29 = sbr.rel (0) target = $region9
    $region8: #{greedy_search_decode.1} parent=1 // pred_region
      %31 = vsyncadd [#allocation8], 0
      %s33 = sshll.u32 %s1, 4
      %s34 = int_to_ptr.vmem [resolvable:$true] %s33
      %36 = dma.vmem_to_smem %s34, 16, [#allocation5], [#allocation8]
    $region9: #{greedy_search_decode.1} parent=1 // pred_fallthru
      _
    // Predicated region
    $region10: #{greedy_search_decode.1} parent=1 // pred_check
      _
    $region11: #{greedy_search_decode.1} parent=1 // pred_check_branch
      %38 = sbr.rel (0) target = $region13
    $region12: #{greedy_search_decode.1} parent=1 // pred_region
      _
    $region13: #{greedy_search_decode.1} parent=1 // pred_fallthru
      _
    // Predicated region
    $region14: #{greedy_search_decode.1} parent=1 // pred_check
      _
    $region15: #{greedy_search_decode.1} parent=1 // pred_check_branch
      %40 = sbr.rel (0) target = $region17
    $region16: #{greedy_search_decode.1} parent=1 // pred_region
      %42 = vsyncadd [#allocation6], 0
      %s43 = sshll.u32 %s3, 4
      %s44 = int_to_ptr.hbm [resolvable:$true] %s43
      %s45 = sshll.u32 [#allocation9], 4
      %s46 = int_to_ptr.vmem [resolvable:$true] %s45
      %51 = dma.hbm_to_vmem [thread:$0]  %s44, 3072, %s46, [#allocation6], 128, 128, 8
    $region17: #{greedy_search_decode.1} parent=1 // pred_fallthru
      _
    // Predicated region
    $region18: #{greedy_search_decode.1} parent=1 // pred_check
      _
    $region19: #{greedy_search_decode.1} parent=1 // pred_check_branch
      %53 = sbr.rel (0) target = $region21
    $region20: #{greedy_search_decode.1} parent=1 // pred_region
      _
    $region21: #{greedy_search_decode.1} parent=1 // pred_fallthru
      _
    // Predicated region
    $region22: #{greedy_search_decode.1} parent=1 // pred_check
      _
    $region23: #{greedy_search_decode.1} parent=1 // pred_check_branch
      %55 = sbr.rel (0) target = $region25
    $region24: #{greedy_search_decode.1} parent=1 // pred_region
      %57 = vsyncadd [#allocation11], 0
      %s58 = sshll.u32 %s5, 4
      %s59 = int_to_ptr.hbm [resolvable:$true] %s58
      %s60 = sshll.u32 [#allocation10], 4
      %s61 = int_to_ptr.vmem [resolvable:$true] %s60
      %66 = dma.hbm_to_vmem [thread:$0]  %s59, 128, %s61, [#allocation11], 64, 64, 4
    $region25: #{greedy_search_decode.1} parent=1 // pred_fallthru
      _
    // Predicated region
    $region26: #{greedy_search_decode.1} parent=1 // pred_check
      _
    $region27: #{greedy_search_decode.1} parent=1 // pred_check_branch
      %68 = sbr.rel (0) target = $region29
    $region28: #{greedy_search_decode.1} parent=1 // pred_region
      %70 = vsyncadd [#allocation11], 0
      %s71 = sshll.u32 %s6, 4
      %s72 = int_to_ptr.hbm [resolvable:$true] %s71
      %s73 = sshll.u32 [#allocation12], 4
      %s74 = int_to_ptr.vmem [resolvable:$true] %s73
      %79 = dma.hbm_to_vmem [thread:$0]  %s72, 2048, %s74, [#allocation11], 128, 128, 8
    $region29: #{greedy_search_decode.1} parent=1 // pred_fallthru
      _
    // Predicated region
    $region30: #{greedy_search_decode.1} parent=1 // pred_check
      _
    $region31: #{greedy_search_decode.1} parent=1 // pred_check_branch
      %81 = sbr.rel (0) target = $region33
    $region32: #{greedy_search_decode.1} parent=1 // pred_region
      %83 = vsyncadd [#allocation14], 0
      %s84 = sshll.u32 %s7, 4
      %s85 = int_to_ptr.hbm [resolvable:$true] %s84
      %s86 = sshll.u32 [#allocation13], 4
      %s87 = int_to_ptr.vmem [resolvable:$true] %s86
      %92 = dma.hbm_to_vmem [thread:$0]  %s85, 64, %s87, [#allocation14], 32, 32, 2
    $region33: #{greedy_search_decode.1} parent=1 // pred_fallthru
      _
    // Predicated region
    $region34: #{greedy_search_decode.1} parent=1 // pred_check
      _
    $region35: #{greedy_search_decode.1} parent=1 // pred_check_branch
      %94 = sbr.rel (0) target = $region37
    $region36: #{greedy_search_decode.1} parent=1 // pred_region
      _
    $region37: #{greedy_search_decode.1} parent=1 // pred_fallthru
      _
    // Predicated region
    $region38: #{greedy_search_decode.1} parent=1 // pred_check
      _
    $region39: #{greedy_search_decode.1} parent=1 // pred_check_branch
      %96 = sbr.rel (0) target = $region41
    $region40: #{greedy_search_decode.1} parent=1 // pred_region
      _
    $region41: #{greedy_search_decode.1} parent=1 // pred_fallthru
      _
    // Predicated region
    $region42: #{greedy_search_decode.1} parent=1 // pred_check
      _
    $region43: #{greedy_search_decode.1} parent=1 // pred_check_branch
      %98 = sbr.rel (0) target = $region45
    $region44: #{greedy_search_decode.1} parent=1 // pred_region
      _
    $region45: #{greedy_search_decode.1} parent=1 // pred_fallthru
      _
    // Predicated region
    $region46: #{greedy_search_decode.1} parent=1 // pred_check
      _
    $region47: #{greedy_search_decode.1} parent=1 // pred_check_branch
      %100 = sbr.rel (0) target = $region49
    $region48: #{greedy_search_decode.1} parent=1 // pred_region
      %102 = vsyncadd [#allocation14], 0
      %s104 = sshll.u32 %s11, 4
      %s105 = int_to_ptr.hbm [resolvable:$true] %s104
      %s106 = sshll.u32 [#allocation15], 4
      %s107 = int_to_ptr.vmem [resolvable:$true] %s106
      %109 = dma.hbm_to_vmem [thread:$0]  %s105, 16, %s107, [#allocation14]
    $region49: #{greedy_search_decode.1} parent=1 // pred_fallthru
      _
    // Predicated region
    $region50: #{greedy_search_decode.1} parent=1 // pred_check
      _
    $region51: #{greedy_search_decode.1} parent=1 // pred_check_branch
      %111 = sbr.rel (0) target = $region53
    $region52: #{greedy_search_decode.1} parent=1 // pred_region
      %113 = dma.done [#allocation8], 16
    $region53: #{greedy_search_decode.1} parent=1 // pred_fallthru
      _
    // Predicated region
    $region54: #{greedy_search_decode.1} parent=1 // pred_check
      _
    $region55: #{greedy_search_decode.1} parent=1 // pred_check_branch
      %115 = sbr.rel (0) target = $region57
    $region56: #{greedy_search_decode.1} parent=1 // pred_region
      %117 = dma.done [#allocation6], 3072
    $region57: #{greedy_search_decode.1} parent=1 // pred_fallthru
      _
    // Predicated region
    $region58: #{greedy_search_decode.1} parent=1 // pred_check
      _
    $region59: #{greedy_search_decode.1} parent=1 // pred_check_branch
      %119 = sbr.rel (0) target = $region61
    $region60: #{greedy_search_decode.1} parent=1 // pred_region
      %121 = dma.done [#allocation11], 128
    $region61: #{greedy_search_decode.1} parent=1 // pred_fallthru
      _
    // Predicated region
    $region62: #{greedy_search_decode.1} parent=1 // pred_check
      _
    $region63: #{greedy_search_decode.1} parent=1 // pred_check_branch
      %123 = sbr.rel (0) target = $region65
    $region64: #{greedy_search_decode.1} parent=1 // pred_region
      %125 = dma.done [#allocation11], 2048
    $region65: #{greedy_search_decode.1} parent=1 // pred_fallthru
      _
    // Predicated region
    $region66: #{greedy_search_decode.1} parent=1 // pred_check
      _
    $region67: #{greedy_search_decode.1} parent=1 // pred_check_branch
      %127 = sbr.rel (0) target = $region69
    $region68: #{greedy_search_decode.1} parent=1 // pred_region
      %129 = dma.done [#allocation14], 64
    $region69: #{greedy_search_decode.1} parent=1 // pred_fallthru
      _
    // Predicated region
    $region70: #{greedy_search_decode.1} parent=1 // pred_check
      _
    $region71: #{greedy_search_decode.1} parent=1 // pred_check_branch
      %131 = sbr.rel (0) target = $region73
    $region72: #{greedy_search_decode.1} parent=1 // pred_region
      %133 = dma.done [#allocation14], 16
    $region73: #{greedy_search_decode.1} parent=1 // pred_fallthru
      _
    %134 = sfence
    %s135 = sld [smem:[#allocation4]]
    %v136 = vld [vmem:[%s2] sm:$0xff]
    %v137 = vld [vmem:[%s2 + $0x8] sm:$0xff]
    %v138 = vld [vmem:[%s2 + $0x10] sm:$0xff]
    %v139 = vld [vmem:[%s2 + $0x18] sm:$0xff]
    %v140 = vld [vmem:[%s2 + $0x20] sm:$0xff]
    %v141 = vld [vmem:[%s2 + $0x28] sm:$0xff]
    %v142 = vld [vmem:[%s2 + $0x30] sm:$0xff]
    %v143 = vld [vmem:[%s2 + $0x38] sm:$0xff]
    %v144 = vlaneseq
    %v145 = vand.u32 %v144, 127
    %s146 = sld [smem:[#allocation5]]
    %v147 = vstv %s146
    %vm148 = vcmp.eq.s32.totalorder %v145, %v147
    %v149 = vsel %vm148, 1, 0
    %v150 = vcvt.s32.f32 %v149
    %s151 = sld [smem:[#allocation5 + $0x1]]
    %v152 = vstv %s151
    %vm153 = vcmp.eq.s32.totalorder %v145, %v152
    %v154 = vsel %vm153, 1, 0
    %v155 = vcvt.s32.f32 %v154
    %s156 = sld [smem:[#allocation5 + $0x2]]
    %v157 = vstv %s156
    %vm158 = vcmp.eq.s32.totalorder %v145, %v157
    %v159 = vsel %vm158, 1, 0
    %v160 = vcvt.s32.f32 %v159
    %s161 = sld [smem:[#allocation5 + $0x3]]
    %v162 = vstv %s161
    %vm163 = vcmp.eq.s32.totalorder %v145, %v162
    %v164 = vsel %vm163, 1, 0
    %v165 = vcvt.s32.f32 %v164
    %s166 = sld [smem:[#allocation5 + $0x4]]
    %v167 = vstv %s166
    %vm168 = vcmp.eq.s32.totalorder %v145, %v167
    %v169 = vsel %vm168, 1, 0
    %v170 = vcvt.s32.f32 %v169
    %s171 = sld [smem:[#allocation5 + $0x5]]
    %v172 = vstv %s171
    %vm173 = vcmp.eq.s32.totalorder %v145, %v172
    %v174 = vsel %vm173, 1, 0
    %v175 = vcvt.s32.f32 %v174
    %s176 = sld [smem:[#allocation5 + $0x6]]
    %v177 = vstv %s176
    %vm178 = vcmp.eq.s32.totalorder %v145, %v177
    %v179 = vsel %vm178, 1, 0
    %v180 = vcvt.s32.f32 %v179
    %s181 = sld [smem:[#allocation5 + $0x7]]
    %v182 = vstv %s181
    %vm183 = vcmp.eq.s32.totalorder %v145, %v182
    %v184 = vsel %vm183, 1, 0
    %v185 = vcvt.s32.f32 %v184
    %vm186 = vcmask 1040384
    %v187 = vsel %vm186, %v150, %v155
    %vm188 = vcmask 1041408
    %v189 = vsel %vm188, %v187, %v160
    %vm190 = vcmask 1042432
    %v191 = vsel %vm190, %v189, %v165
    %vm192 = vcmask 1043456
    %v193 = vsel %vm192, %v191, %v170
    %vm194 = vcmask 1044480
    %v195 = vsel %vm194, %v193, %v175
    %vm196 = vcmask 1045504
    %v197 = vsel %vm196, %v195, %v180
    %vm198 = vcmask 1046528
    %v199 = vsel %vm198, %v197, %v185
    %vm200 = vcmask 523264
    %v202 = vsel %vm200, %v199, 0
    %204 = vmatpush.msra.mxu0 0.0
    %205 = vmatpush.msra.mxu0 0.0
    %206 = vmatpush.msra.mxu0 0.0
    %207 = vmatpush.msra.mxu0 0.0
    %208 = vmatpush.msra.mxu0 0.0
    %209 = vmatpush.msra.mxu0 0.0
    %210 = vmatpush.msra.mxu0 0.0
    %211 = vmatpush.msra.mxu0 0.0
    %212 = vmatpush.msra.mxu0 %v143
    %213 = vmatpush.msra.mxu0 %v142
    %214 = vmatpush.msra.mxu0 %v141
    %215 = vmatpush.msra.mxu0 %v140
    %216 = vmatpush.msra.mxu0 %v139
    %217 = vmatpush.msra.mxu0 %v138
    %218 = vmatpush.msra.mxu0 %v137
    %219 = vmatpush.msra.mxu0 %v136
    %220 = vmatmul.f32.gmra.mxu0 %v202
    %v221 = vpop.f32.mrf.mxu0
    %v222 = vadd.f32 0.0, %v221
    %223 = vdwg.mxu0
    %v224 = vld [vmem:[%s4] sm:$0xff]
    %v225 = vld [vmem:[%s4 + $0x8] sm:$0xff]
    %v226 = vld [vmem:[%s4 + $0x10] sm:$0xff]
    %v227 = vld [vmem:[%s4 + $0x18] sm:$0xff]
    %s228 = scalar_lea.vmem %s4, 64
    %v229 = vld [vmem:[%s228] sm:$0xff]
    %v230 = vld [vmem:[%s228 + $0x8] sm:$0xff]
    %v231 = vld [vmem:[%s228 + $0x10] sm:$0xff]
    %v232 = vld [vmem:[%s228 + $0x18] sm:$0xff]
    %v233 = vld [vmem:[#allocation10 + $0x1] sm:$0x1]
    %s234 = scalar_lea.vmem [#allocation10], 4
    %v235 = vld [vmem:[%s234 + $0x1] sm:$0x1]
    %v236 = vld [vmem:[#allocation9] sm:$0xff]
    %v237 = vld [vmem:[#allocation9 + $0x8] sm:$0xff]
    %v238 = vld [vmem:[#allocation9 + $0x10] sm:$0xff]
    %v239 = vld [vmem:[#allocation9 + $0x18] sm:$0xff]
    %v240 = vld [vmem:[#allocation10] sm:$0x1]
    %v241 = vperm.slane %v240, 0
    %vm242 = vcmask 261120
    %v244 = vsel %vm242, %v222, 0
    %246 = vmatpush.msra.mxu0 0.0
    %247 = vmatpush.msra.mxu0 0.0
    %248 = vmatpush.msra.mxu0 0.0
    %249 = vmatpush.msra.mxu0 0.0
    %250 = vmatpush.msra.mxu0 0.0
    %251 = vmatpush.msra.mxu0 0.0
    %252 = vmatpush.msra.mxu0 0.0
    %253 = vmatpush.msra.mxu0 0.0
    %254 = vmatpush.msra.mxu0 0.0
    %255 = vmatpush.msra.mxu0 0.0
    %256 = vmatpush.msra.mxu0 0.0
    %257 = vmatpush.msra.mxu0 0.0
    %258 = vmatpush.msra.mxu0 %v239
    %259 = vmatpush.msra.mxu0 %v238
    %260 = vmatpush.msra.mxu0 %v237
    %261 = vmatpush.msra.mxu0 %v236
    %262 = vmatmul.f32.gmra.mxu0 %v244
    %v263 = vpop.f32.mrf.mxu0
    %v264 = vadd.f32 %v241, %v263
    %265 = vdwg.mxu0
    %s266 = scalar_lea.vmem [#allocation9], 96
    %v267 = vld [vmem:[%s266] sm:$0xff]
    %v268 = vld [vmem:[%s266 + $0x8] sm:$0xff]
    %v269 = vld [vmem:[%s266 + $0x10] sm:$0xff]
    %v270 = vld [vmem:[%s266 + $0x18] sm:$0xff]
    %v271 = vld [vmem:[%s234] sm:$0x1]
    %v272 = vperm.slane %v271, 0
    %273 = vmatpush.msra.mxu0 0.0
    %274 = vmatpush.msra.mxu0 0.0
    %275 = vmatpush.msra.mxu0 0.0
    %276 = vmatpush.msra.mxu0 0.0
    %277 = vmatpush.msra.mxu0 0.0
    %278 = vmatpush.msra.mxu0 0.0
    %279 = vmatpush.msra.mxu0 0.0
    %280 = vmatpush.msra.mxu0 0.0
    %281 = vmatpush.msra.mxu0 0.0
    %282 = vmatpush.msra.mxu0 0.0
    %283 = vmatpush.msra.mxu0 0.0
    %284 = vmatpush.msra.mxu0 0.0
    %285 = vmatpush.msra.mxu0 %v270
    %286 = vmatpush.msra.mxu0 %v269
    %287 = vmatpush.msra.mxu0 %v268
    %288 = vmatpush.msra.mxu0 %v267
    %289 = vmatmul.f32.gmra.mxu0 %v244
    %v290 = vpop.f32.mrf.mxu0
    %v291 = vadd.f32 %v272, %v290
    %292 = vdwg.mxu0
    %v294 = vsel %vm242, 0.0, 0
    %296 = vmatpush.msra.mxu0 0.0
    %297 = vmatpush.msra.mxu0 0.0
    %298 = vmatpush.msra.mxu0 0.0
    %299 = vmatpush.msra.mxu0 0.0
    %300 = vmatpush.msra.mxu0 0.0
    %301 = vmatpush.msra.mxu0 0.0
    %302 = vmatpush.msra.mxu0 0.0
    %303 = vmatpush.msra.mxu0 0.0
    %304 = vmatpush.msra.mxu0 0.0
    %305 = vmatpush.msra.mxu0 0.0
    %306 = vmatpush.msra.mxu0 0.0
    %307 = vmatpush.msra.mxu0 0.0
    %308 = vmatpush.msra.mxu0 %v227
    %309 = vmatpush.msra.mxu0 %v226
    %310 = vmatpush.msra.mxu0 %v225
    %311 = vmatpush.msra.mxu0 %v224
    %312 = vmatmul.f32.gmra.mxu0 %v294
    %v313 = vpop.f32.mrf.mxu0
    %v314 = vadd.f32 %v233, %v313
    %315 = vdwg.mxu0
    %v316 = vadd.f32 %v264, %v314
    %v317 = vxor.u32 %v316, 2147483648
    %v318 = vmul.f32 %v317, 1.442695
    %v319 = vpow.pop %v318
    %v320 = vadd.f32 %v319, 1.0
    %v321 = vrcp.pop %v320
    %v322 = vmul.f32 %v320, %v321
    %v323 = vsub.f32 1.0, %v322
    %v324 = vmul.f32 %v321, %v323
    %v325 = vadd.f32 %v321, %v324
    %vm326 = vweird.f32 %v320
    %vm327 = vweird.f32 %v321
    %vm328 = vmor %vm326, %vm327
    %v329 = vsel %vm328, %v321, %v325
    %v330 = vand.u32 2147483647, %v320
    %vm331 = vcmp.eq.f32.partialorder %v330, 8.507059e+37
    %v332 = vand.u32 %v320, 2147483648
    %v333 = vor.u32 1.1754944e-38, %v332
    %v334 = vsel %vm331, %v333, %v329
    %v335 = vmul.f32 1.0, %v334
    %337 = vrot.lane.b32.xlu0 %v314, 64
    %v338 = vpop.permute.xlu0 %337
    %v340 = vmul.f32 %v335, %v338
    %342 = vrot.lane.b32.xlu0 %v340, 64
    %v343 = vpop.permute.xlu0 %342
    %v345 = vadd.f32 %v264, %v343
    %v346 = vtanh.pop %v345
    %v347 = vsub.f32 1.0, %v335
    %349 = vrot.lane.b32.xlu0 %v346, 96
    %v350 = vpop.permute.xlu0 %349
    %v352 = vmul.f32 %v347, %v350
    %v353 = vmul.f32 %v335, 0.0
    %v354 = vadd.f32 %v352, %v353
    %355 = vmatpush.msra.mxu0 0.0
    %356 = vmatpush.msra.mxu0 0.0
    %357 = vmatpush.msra.mxu0 0.0
    %358 = vmatpush.msra.mxu0 0.0
    %359 = vmatpush.msra.mxu0 0.0
    %360 = vmatpush.msra.mxu0 0.0
    %361 = vmatpush.msra.mxu0 0.0
    %362 = vmatpush.msra.mxu0 0.0
    %363 = vmatpush.msra.mxu0 0.0
    %364 = vmatpush.msra.mxu0 0.0
    %365 = vmatpush.msra.mxu0 0.0
    %366 = vmatpush.msra.mxu0 0.0
    %367 = vmatpush.msra.mxu0 %v232
    %368 = vmatpush.msra.mxu0 %v231
    %369 = vmatpush.msra.mxu0 %v230
    %370 = vmatpush.msra.mxu0 %v229
    %371 = vmatmul.f32.gmra.mxu0 %v294
    %v372 = vpop.f32.mrf.mxu0
    %v373 = vadd.f32 %v235, %v372
    %374 = vdwg.mxu0
    %v376 = vrot.slane %v373, 1
    %v378 = vadd.f32 %v291, %v376
    %v379 = vxor.u32 %v378, 2147483648
    %v380 = vmul.f32 %v379, 1.442695
    %v381 = vpow.pop %v380
    %v382 = vadd.f32 %v381, 1.0
    %v383 = vrcp.pop %v382
    %v384 = vmul.f32 %v382, %v383
    %v385 = vsub.f32 1.0, %v384
    %v386 = vmul.f32 %v383, %v385
    %v387 = vadd.f32 %v383, %v386
    %vm388 = vweird.f32 %v382
    %vm389 = vweird.f32 %v383
    %vm390 = vmor %vm388, %vm389
    %v391 = vsel %vm390, %v383, %v387
    %v392 = vand.u32 2147483647, %v382
    %vm393 = vcmp.eq.f32.partialorder %v392, 8.507059e+37
    %v394 = vand.u32 %v382, 2147483648
    %v395 = vor.u32 1.1754944e-38, %v394
    %v396 = vsel %vm393, %v395, %v391
    %v397 = vmul.f32 1.0, %v396
    %398 = vrot.lane.b32.xlu0 %v376, 64
    %v399 = vpop.permute.xlu0 %398
    %v401 = vmul.f32 %v397, %v399
    %403 = vrot.lane.b32.xlu0 %v401, 64
    %v404 = vpop.permute.xlu0 %403
    %v406 = vadd.f32 %v291, %v404
    %v407 = vtanh.pop %v406
    %v408 = vsub.f32 1.0, %v397
    %410 = vrot.lane.b32.xlu0 %v407, 96
    %v411 = vpop.permute.xlu0 %410
    %v413 = vmul.f32 %v408, %v411
    %v414 = vmul.f32 %v397, 0.0
    %v415 = vadd.f32 %v413, %v414
    %417 = vrot.lane.b32.xlu0 %v354, 96
    %v418 = vpop.permute.xlu0 %417
    %vm420 = vcmask 253952
    %421 = vst.msk [vmem:[#allocation2] sm:$0x1] %vm420, %v418
    %vm422 = vcmask 523527
    %423 = vst.msk [vmem:[#allocation2] sm:$0x80] %vm422, %v415
    %v424 = vsel %vm242, %v418, 0
    %426 = vmatpush.msra.mxu0 0.0
    %427 = vmatpush.msra.mxu0 0.0
    %428 = vmatpush.msra.mxu0 0.0
    %429 = vmatpush.msra.mxu0 0.0
    %430 = vmatpush.msra.mxu0 0.0
    %431 = vmatpush.msra.mxu0 0.0
    %432 = vmatpush.msra.mxu0 0.0
    %433 = vmatpush.msra.mxu0 0.0
    %434 = vmatpush.msra.mxu0 0.0
    %435 = vmatpush.msra.mxu0 0.0
    %436 = vmatpush.msra.mxu0 0.0
    %437 = vmatpush.msra.mxu0 0.0
    %438 = vmatpush.msra.mxu0 %v227
    %439 = vmatpush.msra.mxu0 %v226
    %440 = vmatpush.msra.mxu0 %v225
    %441 = vmatpush.msra.mxu0 %v224
    %442 = vmatmul.f32.gmra.mxu0 %v424
    %v443 = vpop.f32.mrf.mxu0
    %v444 = vadd.f32 %v233, %v443
    %445 = vdwg.mxu0
    %v447 = vrot.slane %v444, 7
    %v449 = vadd.f32 %v264, %v447
    %v450 = vxor.u32 %v449, 2147483648
    %v451 = vmul.f32 %v450, 1.442695
    %v452 = vpow.pop %v451
    %v453 = vadd.f32 %v452, 1.0
    %v454 = vrcp.pop %v453
    %v455 = vmul.f32 %v453, %v454
    %v456 = vsub.f32 1.0, %v455
    %v457 = vmul.f32 %v454, %v456
    %v458 = vadd.f32 %v454, %v457
    %vm459 = vweird.f32 %v453
    %vm460 = vweird.f32 %v454
    %vm461 = vmor %vm459, %vm460
    %v462 = vsel %vm461, %v454, %v458
    %v463 = vand.u32 2147483647, %v453
    %vm464 = vcmp.eq.f32.partialorder %v463, 8.507059e+37
    %v465 = vand.u32 %v453, 2147483648
    %v466 = vor.u32 1.1754944e-38, %v465
    %v467 = vsel %vm464, %v466, %v462
    %v468 = vmul.f32 1.0, %v467
    %469 = vrot.lane.b32.xlu0 %v447, 64
    %v470 = vpop.permute.xlu0 %469
    %v472 = vmul.f32 %v468, %v470
    %474 = vrot.lane.b32.xlu0 %v472, 64
    %v475 = vpop.permute.xlu0 %474
    %v477 = vadd.f32 %v264, %v475
    %v478 = vtanh.pop %v477
    %v479 = vsub.f32 1.0, %v468
    %481 = vrot.lane.b32.xlu0 %v478, 96
    %v482 = vpop.permute.xlu0 %481
    %v484 = vmul.f32 %v479, %v482
    %v485 = vrot.slane %v354, 7
    %v487 = vmul.f32 %v468, %v485
    %v488 = vadd.f32 %v484, %v487
    %v490 = vrot.slane %v415, 7
    %491 = vrot.lane.b32.xlu0 %v490, 96
    %v492 = vpop.permute.xlu0 %491
    %v493 = vsel %vm242, %v492, 0
    %495 = vmatpush.msra.mxu0 0.0
    %496 = vmatpush.msra.mxu0 0.0
    %497 = vmatpush.msra.mxu0 0.0
    %498 = vmatpush.msra.mxu0 0.0
    %499 = vmatpush.msra.mxu0 0.0
    %500 = vmatpush.msra.mxu0 0.0
    %501 = vmatpush.msra.mxu0 0.0
    %502 = vmatpush.msra.mxu0 0.0
    %503 = vmatpush.msra.mxu0 0.0
    %504 = vmatpush.msra.mxu0 0.0
    %505 = vmatpush.msra.mxu0 0.0
    %506 = vmatpush.msra.mxu0 0.0
    %507 = vmatpush.msra.mxu0 %v232
    %508 = vmatpush.msra.mxu0 %v231
    %509 = vmatpush.msra.mxu0 %v230
    %510 = vmatpush.msra.mxu0 %v229
    %511 = vmatmul.f32.gmra.mxu0 %v493
    %v512 = vpop.f32.mrf.mxu0
    %v513 = vadd.f32 %v235, %v512
    %514 = vdwg.mxu0
    %v516 = vrot.slane %v513, 2
    %v518 = vadd.f32 %v291, %v516
    %v519 = vxor.u32 %v518, 2147483648
    %v520 = vmul.f32 %v519, 1.442695
    %v521 = vpow.pop %v520
    %v522 = vadd.f32 %v521, 1.0
    %v523 = vrcp.pop %v522
    %v524 = vmul.f32 %v522, %v523
    %v525 = vsub.f32 1.0, %v524
    %v526 = vmul.f32 %v523, %v525
    %v527 = vadd.f32 %v523, %v526
    %vm528 = vweird.f32 %v522
    %vm529 = vweird.f32 %v523
    %vm530 = vmor %vm528, %vm529
    %v531 = vsel %vm530, %v523, %v527
    %v532 = vand.u32 2147483647, %v522
    %vm533 = vcmp.eq.f32.partialorder %v532, 8.507059e+37
    %v534 = vand.u32 %v522, 2147483648
    %v535 = vor.u32 1.1754944e-38, %v534
    %v536 = vsel %vm533, %v535, %v531
    %v537 = vmul.f32 1.0, %v536
    %538 = vrot.lane.b32.xlu0 %v516, 64
    %v539 = vpop.permute.xlu0 %538
    %v541 = vmul.f32 %v537, %v539
    %543 = vrot.lane.b32.xlu0 %v541, 64
    %v544 = vpop.permute.xlu0 %543
    %v546 = vadd.f32 %v291, %v544
    %v547 = vtanh.pop %v546
    %v548 = vsub.f32 1.0, %v537
    %550 = vrot.lane.b32.xlu0 %v547, 96
    %v551 = vpop.permute.xlu0 %550
    %v553 = vmul.f32 %v548, %v551
    %v554 = vrot.slane %v415, 1
    %v556 = vmul.f32 %v537, %v554
    %v557 = vadd.f32 %v553, %v556
    %559 = vrot.lane.b32.xlu0 %v488, 96
    %v560 = vpop.permute.xlu0 %559
    %vm562 = vcmask 254977
    %563 = vst.msk [vmem:[#allocation2] sm:$0x2] %vm562, %v560
    %vm564 = vcmask 522502
    %565 = vst.msk [vmem:[#allocation2] sm:$0x40] %vm564, %v557
    %v566 = vrot.slane %v488, 1
    %567 = vrot.lane.b32.xlu0 %v566, 96
    %v568 = vpop.permute.xlu0 %567
    %v569 = vsel %vm242, %v568, 0
    %571 = vmatpush.msra.mxu0 0.0
    %572 = vmatpush.msra.mxu0 0.0
    %573 = vmatpush.msra.mxu0 0.0
    %574 = vmatpush.msra.mxu0 0.0
    %575 = vmatpush.msra.mxu0 0.0
    %576 = vmatpush.msra.mxu0 0.0
    %577 = vmatpush.msra.mxu0 0.0
    %578 = vmatpush.msra.mxu0 0.0
    %579 = vmatpush.msra.mxu0 0.0
    %580 = vmatpush.msra.mxu0 0.0
    %581 = vmatpush.msra.mxu0 0.0
    %582 = vmatpush.msra.mxu0 0.0
    %583 = vmatpush.msra.mxu0 %v227
    %584 = vmatpush.msra.mxu0 %v226
    %585 = vmatpush.msra.mxu0 %v225
    %586 = vmatpush.msra.mxu0 %v224
    %587 = vmatmul.f32.gmra.mxu0 %v569
    %v588 = vpop.f32.mrf.mxu0
    %v589 = vadd.f32 %v233, %v588
    %590 = vdwg.mxu0
    %v592 = vrot.slane %v589, 6
    %v594 = vadd.f32 %v264, %v592
    %v595 = vxor.u32 %v594, 2147483648
    %v596 = vmul.f32 %v595, 1.442695
    %v597 = vpow.pop %v596
    %v598 = vadd.f32 %v597, 1.0
    %v599 = vrcp.pop %v598
    %v600 = vmul.f32 %v598, %v599
    %v601 = vsub.f32 1.0, %v600
    %v602 = vmul.f32 %v599, %v601
    %v603 = vadd.f32 %v599, %v602
    %vm604 = vweird.f32 %v598
    %vm605 = vweird.f32 %v599
    %vm606 = vmor %vm604, %vm605
    %v607 = vsel %vm606, %v599, %v603
    %v608 = vand.u32 2147483647, %v598
    %vm609 = vcmp.eq.f32.partialorder %v608, 8.507059e+37
    %v610 = vand.u32 %v598, 2147483648
    %v611 = vor.u32 1.1754944e-38, %v610
    %v612 = vsel %vm609, %v611, %v607
    %v613 = vmul.f32 1.0, %v612
    %614 = vrot.lane.b32.xlu0 %v592, 64
    %v615 = vpop.permute.xlu0 %614
    %v617 = vmul.f32 %v613, %v615
    %619 = vrot.lane.b32.xlu0 %v617, 64
    %v620 = vpop.permute.xlu0 %619
    %v622 = vadd.f32 %v264, %v620
    %v623 = vtanh.pop %v622
    %v624 = vsub.f32 1.0, %v613
    %626 = vrot.lane.b32.xlu0 %v623, 96
    %v627 = vpop.permute.xlu0 %626
    %v629 = vmul.f32 %v624, %v627
    %v630 = vrot.slane %v488, 7
    %v632 = vmul.f32 %v613, %v630
    %v633 = vadd.f32 %v629, %v632
    %v635 = vrot.slane %v557, 6
    %636 = vrot.lane.b32.xlu0 %v635, 96
    %v637 = vpop.permute.xlu0 %636
    %v638 = vsel %vm242, %v637, 0
    %640 = vmatpush.msra.mxu0 0.0
    %641 = vmatpush.msra.mxu0 0.0
    %642 = vmatpush.msra.mxu0 0.0
    %643 = vmatpush.msra.mxu0 0.0
    %644 = vmatpush.msra.mxu0 0.0
    %645 = vmatpush.msra.mxu0 0.0
    %646 = vmatpush.msra.mxu0 0.0
    %647 = vmatpush.msra.mxu0 0.0
    %648 = vmatpush.msra.mxu0 0.0
    %649 = vmatpush.msra.mxu0 0.0
    %650 = vmatpush.msra.mxu0 0.0
    %651 = vmatpush.msra.mxu0 0.0
    %652 = vmatpush.msra.mxu0 %v232
    %653 = vmatpush.msra.mxu0 %v231
    %654 = vmatpush.msra.mxu0 %v230
    %655 = vmatpush.msra.mxu0 %v229
    %656 = vmatmul.f32.gmra.mxu0 %v638
    %v657 = vpop.f32.mrf.mxu0
    %v658 = vadd.f32 %v235, %v657
    %659 = vdwg.mxu0
    %v661 = vrot.slane %v658, 3
    %v663 = vadd.f32 %v291, %v661
    %v664 = vxor.u32 %v663, 2147483648
    %v665 = vmul.f32 %v664, 1.442695
    %v666 = vpow.pop %v665
    %v667 = vadd.f32 %v666, 1.0
    %v668 = vrcp.pop %v667
    %v669 = vmul.f32 %v667, %v668
    %v670 = vsub.f32 1.0, %v669
    %v671 = vmul.f32 %v668, %v670
    %v672 = vadd.f32 %v668, %v671
    %vm673 = vweird.f32 %v667
    %vm674 = vweird.f32 %v668
    %vm675 = vmor %vm673, %vm674
    %v676 = vsel %vm675, %v668, %v672
    %v677 = vand.u32 2147483647, %v667
    %vm678 = vcmp.eq.f32.partialorder %v677, 8.507059e+37
    %v679 = vand.u32 %v667, 2147483648
    %v680 = vor.u32 1.1754944e-38, %v679
    %v681 = vsel %vm678, %v680, %v676
    %v682 = vmul.f32 1.0, %v681
    %683 = vrot.lane.b32.xlu0 %v661, 64
    %v684 = vpop.permute.xlu0 %683
    %v686 = vmul.f32 %v682, %v684
    %688 = vrot.lane.b32.xlu0 %v686, 64
    %v689 = vpop.permute.xlu0 %688
    %v691 = vadd.f32 %v291, %v689
    %v692 = vtanh.pop %v691
    %v693 = vsub.f32 1.0, %v682
    %695 = vrot.lane.b32.xlu0 %v692, 96
    %v696 = vpop.permute.xlu0 %695
    %v698 = vmul.f32 %v693, %v696
    %v699 = vrot.slane %v557, 1
    %v701 = vmul.f32 %v682, %v699
    %v702 = vadd.f32 %v698, %v701
    %704 = vrot.lane.b32.xlu0 %v633, 96
    %v705 = vpop.permute.xlu0 %704
    %vm707 = vcmask 256002
    %708 = vst.msk [vmem:[#allocation2] sm:$0x4] %vm707, %v705
    %vm709 = vcmask 521477
    %710 = vst.msk [vmem:[#allocation2] sm:$0x20] %vm709, %v702
    %v711 = vrot.slane %v633, 2
    %712 = vrot.lane.b32.xlu0 %v711, 96
    %v713 = vpop.permute.xlu0 %712
    %v714 = vsel %vm242, %v713, 0
    %716 = vmatpush.msra.mxu0 0.0
    %717 = vmatpush.msra.mxu0 0.0
    %718 = vmatpush.msra.mxu0 0.0
    %719 = vmatpush.msra.mxu0 0.0
    %720 = vmatpush.msra.mxu0 0.0
    %721 = vmatpush.msra.mxu0 0.0
    %722 = vmatpush.msra.mxu0 0.0
    %723 = vmatpush.msra.mxu0 0.0
    %724 = vmatpush.msra.mxu0 0.0
    %725 = vmatpush.msra.mxu0 0.0
    %726 = vmatpush.msra.mxu0 0.0
    %727 = vmatpush.msra.mxu0 0.0
    %728 = vmatpush.msra.mxu0 %v227
    %729 = vmatpush.msra.mxu0 %v226
    %730 = vmatpush.msra.mxu0 %v225
    %731 = vmatpush.msra.mxu0 %v224
    %732 = vmatmul.f32.gmra.mxu0 %v714
    %v733 = vpop.f32.mrf.mxu0
    %v734 = vadd.f32 %v233, %v733
    %735 = vdwg.mxu0
    %v737 = vrot.slane %v734, 5
    %v739 = vadd.f32 %v264, %v737
    %v740 = vxor.u32 %v739, 2147483648
    %v741 = vmul.f32 %v740, 1.442695
    %v742 = vpow.pop %v741
    %v743 = vadd.f32 %v742, 1.0
    %v744 = vrcp.pop %v743
    %v745 = vmul.f32 %v743, %v744
    %v746 = vsub.f32 1.0, %v745
    %v747 = vmul.f32 %v744, %v746
    %v748 = vadd.f32 %v744, %v747
    %vm749 = vweird.f32 %v743
    %vm750 = vweird.f32 %v744
    %vm751 = vmor %vm749, %vm750
    %v752 = vsel %vm751, %v744, %v748
    %v753 = vand.u32 2147483647, %v743
    %vm754 = vcmp.eq.f32.partialorder %v753, 8.507059e+37
    %v755 = vand.u32 %v743, 2147483648
    %v756 = vor.u32 1.1754944e-38, %v755
    %v757 = vsel %vm754, %v756, %v752
    %v758 = vmul.f32 1.0, %v757
    %759 = vrot.lane.b32.xlu0 %v737, 64
    %v760 = vpop.permute.xlu0 %759
    %v762 = vmul.f32 %v758, %v760
    %764 = vrot.lane.b32.xlu0 %v762, 64
    %v765 = vpop.permute.xlu0 %764
    %v767 = vadd.f32 %v264, %v765
    %v768 = vtanh.pop %v767
    %v769 = vsub.f32 1.0, %v758
    %771 = vrot.lane.b32.xlu0 %v768, 96
    %v772 = vpop.permute.xlu0 %771
    %v774 = vmul.f32 %v769, %v772
    %v775 = vrot.slane %v633, 7
    %v777 = vmul.f32 %v758, %v775
    %v778 = vadd.f32 %v774, %v777
    %v780 = vrot.slane %v702, 5
    %781 = vrot.lane.b32.xlu0 %v780, 96
    %v782 = vpop.permute.xlu0 %781
    %v783 = vsel %vm242, %v782, 0
    %785 = vmatpush.msra.mxu0 0.0
    %786 = vmatpush.msra.mxu0 0.0
    %787 = vmatpush.msra.mxu0 0.0
    %788 = vmatpush.msra.mxu0 0.0
    %789 = vmatpush.msra.mxu0 0.0
    %790 = vmatpush.msra.mxu0 0.0
    %791 = vmatpush.msra.mxu0 0.0
    %792 = vmatpush.msra.mxu0 0.0
    %793 = vmatpush.msra.mxu0 0.0
    %794 = vmatpush.msra.mxu0 0.0
    %795 = vmatpush.msra.mxu0 0.0
    %796 = vmatpush.msra.mxu0 0.0
    %797 = vmatpush.msra.mxu0 %v232
    %798 = vmatpush.msra.mxu0 %v231
    %799 = vmatpush.msra.mxu0 %v230
    %800 = vmatpush.msra.mxu0 %v229
    %801 = vmatmul.f32.gmra.mxu0 %v783
    %v802 = vpop.f32.mrf.mxu0
    %v803 = vadd.f32 %v235, %v802
    %804 = vdwg.mxu0
    %v806 = vrot.slane %v803, 4
    %v808 = vadd.f32 %v291, %v806
    %v809 = vxor.u32 %v808, 2147483648
    %v810 = vmul.f32 %v809, 1.442695
    %v811 = vpow.pop %v810
    %v812 = vadd.f32 %v811, 1.0
    %v813 = vrcp.pop %v812
    %v814 = vmul.f32 %v812, %v813
    %v815 = vsub.f32 1.0, %v814
    %v816 = vmul.f32 %v813, %v815
    %v817 = vadd.f32 %v813, %v816
    %vm818 = vweird.f32 %v812
    %vm819 = vweird.f32 %v813
    %vm820 = vmor %vm818, %vm819
    %v821 = vsel %vm820, %v813, %v817
    %v822 = vand.u32 2147483647, %v812
    %vm823 = vcmp.eq.f32.partialorder %v822, 8.507059e+37
    %v824 = vand.u32 %v812, 2147483648
    %v825 = vor.u32 1.1754944e-38, %v824
    %v826 = vsel %vm823, %v825, %v821
    %v827 = vmul.f32 1.0, %v826
    %828 = vrot.lane.b32.xlu0 %v806, 64
    %v829 = vpop.permute.xlu0 %828
    %v831 = vmul.f32 %v827, %v829
    %833 = vrot.lane.b32.xlu0 %v831, 64
    %v834 = vpop.permute.xlu0 %833
    %v836 = vadd.f32 %v291, %v834
    %v837 = vtanh.pop %v836
    %v838 = vsub.f32 1.0, %v827
    %840 = vrot.lane.b32.xlu0 %v837, 96
    %v841 = vpop.permute.xlu0 %840
    %v843 = vmul.f32 %v838, %v841
    %v844 = vrot.slane %v702, 1
    %v846 = vmul.f32 %v827, %v844
    %v847 = vadd.f32 %v843, %v846
    %849 = vrot.lane.b32.xlu0 %v778, 96
    %v850 = vpop.permute.xlu0 %849
    %vm852 = vcmask 257027
    %853 = vst.msk [vmem:[#allocation2] sm:$0x8] %vm852, %v850
    %vm854 = vcmask 520452
    %855 = vst.msk [vmem:[#allocation2] sm:$0x10] %vm854, %v847
    %v856 = vrot.slane %v778, 3
    %857 = vrot.lane.b32.xlu0 %v856, 96
    %v858 = vpop.permute.xlu0 %857
    %v859 = vsel %vm242, %v858, 0
    %861 = vmatpush.msra.mxu0 0.0
    %862 = vmatpush.msra.mxu0 0.0
    %863 = vmatpush.msra.mxu0 0.0
    %864 = vmatpush.msra.mxu0 0.0
    %865 = vmatpush.msra.mxu0 0.0
    %866 = vmatpush.msra.mxu0 0.0
    %867 = vmatpush.msra.mxu0 0.0
    %868 = vmatpush.msra.mxu0 0.0
    %869 = vmatpush.msra.mxu0 0.0
    %870 = vmatpush.msra.mxu0 0.0
    %871 = vmatpush.msra.mxu0 0.0
    %872 = vmatpush.msra.mxu0 0.0
    %873 = vmatpush.msra.mxu0 %v227
    %874 = vmatpush.msra.mxu0 %v226
    %875 = vmatpush.msra.mxu0 %v225
    %876 = vmatpush.msra.mxu0 %v224
    %877 = vmatmul.f32.gmra.mxu0 %v859
    %v878 = vpop.f32.mrf.mxu0
    %v879 = vadd.f32 %v233, %v878
    %880 = vdwg.mxu0
    %v882 = vrot.slane %v879, 4
    %v884 = vadd.f32 %v264, %v882
    %v885 = vxor.u32 %v884, 2147483648
    %v886 = vmul.f32 %v885, 1.442695
    %v887 = vpow.pop %v886
    %v888 = vadd.f32 %v887, 1.0
    %v889 = vrcp.pop %v888
    %v890 = vmul.f32 %v888, %v889
    %v891 = vsub.f32 1.0, %v890
    %v892 = vmul.f32 %v889, %v891
    %v893 = vadd.f32 %v889, %v892
    %vm894 = vweird.f32 %v888
    %vm895 = vweird.f32 %v889
    %vm896 = vmor %vm894, %vm895
    %v897 = vsel %vm896, %v889, %v893
    %v898 = vand.u32 2147483647, %v888
    %vm899 = vcmp.eq.f32.partialorder %v898, 8.507059e+37
    %v900 = vand.u32 %v888, 2147483648
    %v901 = vor.u32 1.1754944e-38, %v900
    %v902 = vsel %vm899, %v901, %v897
    %v903 = vmul.f32 1.0, %v902
    %904 = vrot.lane.b32.xlu0 %v882, 64
    %v905 = vpop.permute.xlu0 %904
    %v907 = vmul.f32 %v903, %v905
    %909 = vrot.lane.b32.xlu0 %v907, 64
    %v910 = vpop.permute.xlu0 %909
    %v912 = vadd.f32 %v264, %v910
    %v913 = vtanh.pop %v912
    %v914 = vsub.f32 1.0, %v903
    %916 = vrot.lane.b32.xlu0 %v913, 96
    %v917 = vpop.permute.xlu0 %916
    %v919 = vmul.f32 %v914, %v917
    %v920 = vrot.slane %v778, 7
    %v922 = vmul.f32 %v903, %v920
    %v923 = vadd.f32 %v919, %v922
    %v925 = vrot.slane %v847, 4
    %926 = vrot.lane.b32.xlu0 %v925, 96
    %v927 = vpop.permute.xlu0 %926
    %v928 = vsel %vm242, %v927, 0
    %930 = vmatpush.msra.mxu0 0.0
    %931 = vmatpush.msra.mxu0 0.0
    %932 = vmatpush.msra.mxu0 0.0
    %933 = vmatpush.msra.mxu0 0.0
    %934 = vmatpush.msra.mxu0 0.0
    %935 = vmatpush.msra.mxu0 0.0
    %936 = vmatpush.msra.mxu0 0.0
    %937 = vmatpush.msra.mxu0 0.0
    %938 = vmatpush.msra.mxu0 0.0
    %939 = vmatpush.msra.mxu0 0.0
    %940 = vmatpush.msra.mxu0 0.0
    %941 = vmatpush.msra.mxu0 0.0
    %942 = vmatpush.msra.mxu0 %v232
    %943 = vmatpush.msra.mxu0 %v231
    %944 = vmatpush.msra.mxu0 %v230
    %945 = vmatpush.msra.mxu0 %v229
    %946 = vmatmul.f32.gmra.mxu0 %v928
    %v947 = vpop.f32.mrf.mxu0
    %v948 = vadd.f32 %v235, %v947
    %949 = vdwg.mxu0
    %v951 = vrot.slane %v948, 5
    %v953 = vadd.f32 %v291, %v951
    %v954 = vxor.u32 %v953, 2147483648
    %v955 = vmul.f32 %v954, 1.442695
    %v956 = vpow.pop %v955
    %v957 = vadd.f32 %v956, 1.0
    %v958 = vrcp.pop %v957
    %v959 = vmul.f32 %v957, %v958
    %v960 = vsub.f32 1.0, %v959
    %v961 = vmul.f32 %v958, %v960
    %v962 = vadd.f32 %v958, %v961
    %vm963 = vweird.f32 %v957
    %vm964 = vweird.f32 %v958
    %vm965 = vmor %vm963, %vm964
    %v966 = vsel %vm965, %v958, %v962
    %v967 = vand.u32 2147483647, %v957
    %vm968 = vcmp.eq.f32.partialorder %v967, 8.507059e+37
    %v969 = vand.u32 %v957, 2147483648
    %v970 = vor.u32 1.1754944e-38, %v969
    %v971 = vsel %vm968, %v970, %v966
    %v972 = vmul.f32 1.0, %v971
    %973 = vrot.lane.b32.xlu0 %v951, 64
    %v974 = vpop.permute.xlu0 %973
    %v976 = vmul.f32 %v972, %v974
    %978 = vrot.lane.b32.xlu0 %v976, 64
    %v979 = vpop.permute.xlu0 %978
    %v981 = vadd.f32 %v291, %v979
    %v982 = vtanh.pop %v981
    %v983 = vsub.f32 1.0, %v972
    %985 = vrot.lane.b32.xlu0 %v982, 96
    %v986 = vpop.permute.xlu0 %985
    %v988 = vmul.f32 %v983, %v986
    %v989 = vrot.slane %v847, 1
    %v991 = vmul.f32 %v972, %v989
    %v992 = vadd.f32 %v988, %v991
    %994 = vrot.lane.b32.xlu0 %v923, 96
    %v995 = vpop.permute.xlu0 %994
    %vm997 = vcmask 258052
    %998 = vst.msk [vmem:[#allocation2] sm:$0x10] %vm997, %v995
    %vm999 = vcmask 519427
    %1000 = vst.msk [vmem:[#allocation2] sm:$0x8] %vm999, %v992
    %v1001 = vrot.slane %v923, 4
    %1002 = vrot.lane.b32.xlu0 %v1001, 96
    %v1003 = vpop.permute.xlu0 %1002
    %v1004 = vsel %vm242, %v1003, 0
    %1006 = vmatpush.msra.mxu0 0.0
    %1007 = vmatpush.msra.mxu0 0.0
    %1008 = vmatpush.msra.mxu0 0.0
    %1009 = vmatpush.msra.mxu0 0.0
    %1010 = vmatpush.msra.mxu0 0.0
    %1011 = vmatpush.msra.mxu0 0.0
    %1012 = vmatpush.msra.mxu0 0.0
    %1013 = vmatpush.msra.mxu0 0.0
    %1014 = vmatpush.msra.mxu0 0.0
    %1015 = vmatpush.msra.mxu0 0.0
    %1016 = vmatpush.msra.mxu0 0.0
    %1017 = vmatpush.msra.mxu0 0.0
    %1018 = vmatpush.msra.mxu0 %v227
    %1019 = vmatpush.msra.mxu0 %v226
    %1020 = vmatpush.msra.mxu0 %v225
    %1021 = vmatpush.msra.mxu0 %v224
    %1022 = vmatmul.f32.gmra.mxu0 %v1004
    %v1023 = vpop.f32.mrf.mxu0
    %v1024 = vadd.f32 %v233, %v1023
    %1025 = vdwg.mxu0
    %v1027 = vrot.slane %v1024, 3
    %v1029 = vadd.f32 %v264, %v1027
    %v1030 = vxor.u32 %v1029, 2147483648
    %v1031 = vmul.f32 %v1030, 1.442695
    %v1032 = vpow.pop %v1031
    %v1033 = vadd.f32 %v1032, 1.0
    %v1034 = vrcp.pop %v1033
    %v1035 = vmul.f32 %v1033, %v1034
    %v1036 = vsub.f32 1.0, %v1035
    %v1037 = vmul.f32 %v1034, %v1036
    %v1038 = vadd.f32 %v1034, %v1037
    %vm1039 = vweird.f32 %v1033
    %vm1040 = vweird.f32 %v1034
    %vm1041 = vmor %vm1039, %vm1040
    %v1042 = vsel %vm1041, %v1034, %v1038
    %v1043 = vand.u32 2147483647, %v1033
    %vm1044 = vcmp.eq.f32.partialorder %v1043, 8.507059e+37
    %v1045 = vand.u32 %v1033, 2147483648
    %v1046 = vor.u32 1.1754944e-38, %v1045
    %v1047 = vsel %vm1044, %v1046, %v1042
    %v1048 = vmul.f32 1.0, %v1047
    %1049 = vrot.lane.b32.xlu0 %v1027, 64
    %v1050 = vpop.permute.xlu0 %1049
    %v1052 = vmul.f32 %v1048, %v1050
    %1054 = vrot.lane.b32.xlu0 %v1052, 64
    %v1055 = vpop.permute.xlu0 %1054
    %v1057 = vadd.f32 %v264, %v1055
    %v1058 = vtanh.pop %v1057
    %v1059 = vsub.f32 1.0, %v1048
    %1061 = vrot.lane.b32.xlu0 %v1058, 96
    %v1062 = vpop.permute.xlu0 %1061
    %v1064 = vmul.f32 %v1059, %v1062
    %v1065 = vrot.slane %v923, 7
    %v1067 = vmul.f32 %v1048, %v1065
    %v1068 = vadd.f32 %v1064, %v1067
    %v1070 = vrot.slane %v992, 3
    %1071 = vrot.lane.b32.xlu0 %v1070, 96
    %v1072 = vpop.permute.xlu0 %1071
    %v1073 = vsel %vm242, %v1072, 0
    %1075 = vmatpush.msra.mxu0 0.0
    %1076 = vmatpush.msra.mxu0 0.0
    %1077 = vmatpush.msra.mxu0 0.0
    %1078 = vmatpush.msra.mxu0 0.0
    %1079 = vmatpush.msra.mxu0 0.0
    %1080 = vmatpush.msra.mxu0 0.0
    %1081 = vmatpush.msra.mxu0 0.0
    %1082 = vmatpush.msra.mxu0 0.0
    %1083 = vmatpush.msra.mxu0 0.0
    %1084 = vmatpush.msra.mxu0 0.0
    %1085 = vmatpush.msra.mxu0 0.0
    %1086 = vmatpush.msra.mxu0 0.0
    %1087 = vmatpush.msra.mxu0 %v232
    %1088 = vmatpush.msra.mxu0 %v231
    %1089 = vmatpush.msra.mxu0 %v230
    %1090 = vmatpush.msra.mxu0 %v229
    %1091 = vmatmul.f32.gmra.mxu0 %v1073
    %v1092 = vpop.f32.mrf.mxu0
    %v1093 = vadd.f32 %v235, %v1092
    %1094 = vdwg.mxu0
    %v1096 = vrot.slane %v1093, 6
    %v1098 = vadd.f32 %v291, %v1096
    %v1099 = vxor.u32 %v1098, 2147483648
    %v1100 = vmul.f32 %v1099, 1.442695
    %v1101 = vpow.pop %v1100
    %v1102 = vadd.f32 %v1101, 1.0
    %v1103 = vrcp.pop %v1102
    %v1104 = vmul.f32 %v1102, %v1103
    %v1105 = vsub.f32 1.0, %v1104
    %v1106 = vmul.f32 %v1103, %v1105
    %v1107 = vadd.f32 %v1103, %v1106
    %vm1108 = vweird.f32 %v1102
    %vm1109 = vweird.f32 %v1103
    %vm1110 = vmor %vm1108, %vm1109
    %v1111 = vsel %vm1110, %v1103, %v1107
    %v1112 = vand.u32 2147483647, %v1102
    %vm1113 = vcmp.eq.f32.partialorder %v1112, 8.507059e+37
    %v1114 = vand.u32 %v1102, 2147483648
    %v1115 = vor.u32 1.1754944e-38, %v1114
    %v1116 = vsel %vm1113, %v1115, %v1111
    %v1117 = vmul.f32 1.0, %v1116
    %1118 = vrot.lane.b32.xlu0 %v1096, 64
    %v1119 = vpop.permute.xlu0 %1118
    %v1121 = vmul.f32 %v1117, %v1119
    %1123 = vrot.lane.b32.xlu0 %v1121, 64
    %v1124 = vpop.permute.xlu0 %1123
    %v1126 = vadd.f32 %v291, %v1124
    %v1127 = vtanh.pop %v1126
    %v1128 = vsub.f32 1.0, %v1117
    %1130 = vrot.lane.b32.xlu0 %v1127, 96
    %v1131 = vpop.permute.xlu0 %1130
    %v1133 = vmul.f32 %v1128, %v1131
    %v1134 = vrot.slane %v992, 1
    %v1136 = vmul.f32 %v1117, %v1134
    %v1137 = vadd.f32 %v1133, %v1136
    %1139 = vrot.lane.b32.xlu0 %v1068, 96
    %v1140 = vpop.permute.xlu0 %1139
    %vm1142 = vcmask 259077
    %1143 = vst.msk [vmem:[#allocation2] sm:$0x20] %vm1142, %v1140
    %vm1144 = vcmask 518402
    %1145 = vst.msk [vmem:[#allocation2] sm:$0x4] %vm1144, %v1137
    %v1146 = vrot.slane %v1068, 5
    %1147 = vrot.lane.b32.xlu0 %v1146, 96
    %v1148 = vpop.permute.xlu0 %1147
    %v1149 = vsel %vm242, %v1148, 0
    %1151 = vmatpush.msra.mxu0 0.0
    %1152 = vmatpush.msra.mxu0 0.0
    %1153 = vmatpush.msra.mxu0 0.0
    %1154 = vmatpush.msra.mxu0 0.0
    %1155 = vmatpush.msra.mxu0 0.0
    %1156 = vmatpush.msra.mxu0 0.0
    %1157 = vmatpush.msra.mxu0 0.0
    %1158 = vmatpush.msra.mxu0 0.0
    %1159 = vmatpush.msra.mxu0 0.0
    %1160 = vmatpush.msra.mxu0 0.0
    %1161 = vmatpush.msra.mxu0 0.0
    %1162 = vmatpush.msra.mxu0 0.0
    %1163 = vmatpush.msra.mxu0 %v227
    %1164 = vmatpush.msra.mxu0 %v226
    %1165 = vmatpush.msra.mxu0 %v225
    %1166 = vmatpush.msra.mxu0 %v224
    %1167 = vmatmul.f32.gmra.mxu0 %v1149
    %v1168 = vpop.f32.mrf.mxu0
    %v1169 = vadd.f32 %v233, %v1168
    %1170 = vdwg.mxu0
    %v1172 = vrot.slane %v1169, 2
    %v1174 = vadd.f32 %v264, %v1172
    %v1175 = vxor.u32 %v1174, 2147483648
    %v1176 = vmul.f32 %v1175, 1.442695
    %v1177 = vpow.pop %v1176
    %v1178 = vadd.f32 %v1177, 1.0
    %v1179 = vrcp.pop %v1178
    %v1180 = vmul.f32 %v1178, %v1179
    %v1181 = vsub.f32 1.0, %v1180
    %v1182 = vmul.f32 %v1179, %v1181
    %v1183 = vadd.f32 %v1179, %v1182
    %vm1184 = vweird.f32 %v1178
    %vm1185 = vweird.f32 %v1179
    %vm1186 = vmor %vm1184, %vm1185
    %v1187 = vsel %vm1186, %v1179, %v1183
    %v1188 = vand.u32 2147483647, %v1178
    %vm1189 = vcmp.eq.f32.partialorder %v1188, 8.507059e+37
    %v1190 = vand.u32 %v1178, 2147483648
    %v1191 = vor.u32 1.1754944e-38, %v1190
    %v1192 = vsel %vm1189, %v1191, %v1187
    %v1193 = vmul.f32 1.0, %v1192
    %1194 = vrot.lane.b32.xlu0 %v1172, 64
    %v1195 = vpop.permute.xlu0 %1194
    %v1197 = vmul.f32 %v1193, %v1195
    %1199 = vrot.lane.b32.xlu0 %v1197, 64
    %v1200 = vpop.permute.xlu0 %1199
    %v1202 = vadd.f32 %v264, %v1200
    %v1203 = vtanh.pop %v1202
    %v1204 = vsub.f32 1.0, %v1193
    %1206 = vrot.lane.b32.xlu0 %v1203, 96
    %v1207 = vpop.permute.xlu0 %1206
    %v1209 = vmul.f32 %v1204, %v1207
    %v1210 = vrot.slane %v1068, 7
    %v1212 = vmul.f32 %v1193, %v1210
    %v1213 = vadd.f32 %v1209, %v1212
    %v1215 = vrot.slane %v1137, 2
    %1216 = vrot.lane.b32.xlu0 %v1215, 96
    %v1217 = vpop.permute.xlu0 %1216
    %v1218 = vsel %vm242, %v1217, 0
    %1220 = vmatpush.msra.mxu0 0.0
    %1221 = vmatpush.msra.mxu0 0.0
    %1222 = vmatpush.msra.mxu0 0.0
    %1223 = vmatpush.msra.mxu0 0.0
    %1224 = vmatpush.msra.mxu0 0.0
    %1225 = vmatpush.msra.mxu0 0.0
    %1226 = vmatpush.msra.mxu0 0.0
    %1227 = vmatpush.msra.mxu0 0.0
    %1228 = vmatpush.msra.mxu0 0.0
    %1229 = vmatpush.msra.mxu0 0.0
    %1230 = vmatpush.msra.mxu0 0.0
    %1231 = vmatpush.msra.mxu0 0.0
    %1232 = vmatpush.msra.mxu0 %v232
    %1233 = vmatpush.msra.mxu0 %v231
    %1234 = vmatpush.msra.mxu0 %v230
    %1235 = vmatpush.msra.mxu0 %v229
    %1236 = vmatmul.f32.gmra.mxu0 %v1218
    %v1237 = vpop.f32.mrf.mxu0
    %v1238 = vadd.f32 %v235, %v1237
    %1239 = vdwg.mxu0
    %v1241 = vrot.slane %v1238, 7
    %v1243 = vadd.f32 %v291, %v1241
    %v1244 = vxor.u32 %v1243, 2147483648
    %v1245 = vmul.f32 %v1244, 1.442695
    %v1246 = vpow.pop %v1245
    %v1247 = vadd.f32 %v1246, 1.0
    %v1248 = vrcp.pop %v1247
    %v1249 = vmul.f32 %v1247, %v1248
    %v1250 = vsub.f32 1.0, %v1249
    %v1251 = vmul.f32 %v1248, %v1250
    %v1252 = vadd.f32 %v1248, %v1251
    %vm1253 = vweird.f32 %v1247
    %vm1254 = vweird.f32 %v1248
    %vm1255 = vmor %vm1253, %vm1254
    %v1256 = vsel %vm1255, %v1248, %v1252
    %v1257 = vand.u32 2147483647, %v1247
    %vm1258 = vcmp.eq.f32.partialorder %v1257, 8.507059e+37
    %v1259 = vand.u32 %v1247, 2147483648
    %v1260 = vor.u32 1.1754944e-38, %v1259
    %v1261 = vsel %vm1258, %v1260, %v1256
    %v1262 = vmul.f32 1.0, %v1261
    %1263 = vrot.lane.b32.xlu0 %v1241, 64
    %v1264 = vpop.permute.xlu0 %1263
    %v1266 = vmul.f32 %v1262, %v1264
    %1268 = vrot.lane.b32.xlu0 %v1266, 64
    %v1269 = vpop.permute.xlu0 %1268
    %v1271 = vadd.f32 %v291, %v1269
    %v1272 = vtanh.pop %v1271
    %v1273 = vsub.f32 1.0, %v1262
    %1275 = vrot.lane.b32.xlu0 %v1272, 96
    %v1276 = vpop.permute.xlu0 %1275
    %v1278 = vmul.f32 %v1273, %v1276
    %v1279 = vrot.slane %v1137, 1
    %v1281 = vmul.f32 %v1262, %v1279
    %v1282 = vadd.f32 %v1278, %v1281
    %1284 = vrot.lane.b32.xlu0 %v1213, 96
    %v1285 = vpop.permute.xlu0 %1284
    %vm1287 = vcmask 260102
    %1288 = vst.msk [vmem:[#allocation2] sm:$0x40] %vm1287, %v1285
    %vm1289 = vcmask 517377
    %1290 = vst.msk [vmem:[#allocation2] sm:$0x2] %vm1289, %v1282
    %v1291 = vrot.slane %v1213, 6
    %1292 = vrot.lane.b32.xlu0 %v1291, 96
    %v1293 = vpop.permute.xlu0 %1292
    %v1294 = vsel %vm242, %v1293, 0
    %1296 = vmatpush.msra.mxu0 0.0
    %1297 = vmatpush.msra.mxu0 0.0
    %1298 = vmatpush.msra.mxu0 0.0
    %1299 = vmatpush.msra.mxu0 0.0
    %1300 = vmatpush.msra.mxu0 0.0
    %1301 = vmatpush.msra.mxu0 0.0
    %1302 = vmatpush.msra.mxu0 0.0
    %1303 = vmatpush.msra.mxu0 0.0
    %1304 = vmatpush.msra.mxu0 0.0
    %1305 = vmatpush.msra.mxu0 0.0
    %1306 = vmatpush.msra.mxu0 0.0
    %1307 = vmatpush.msra.mxu0 0.0
    %1308 = vmatpush.msra.mxu0 %v227
    %1309 = vmatpush.msra.mxu0 %v226
    %1310 = vmatpush.msra.mxu0 %v225
    %1311 = vmatpush.msra.mxu0 %v224
    %1312 = vmatmul.f32.gmra.mxu0 %v1294
    %v1313 = vpop.f32.mrf.mxu0
    %v1314 = vadd.f32 %v233, %v1313
    %1315 = vdwg.mxu0
    %v1317 = vrot.slane %v1314, 1
    %v1319 = vadd.f32 %v264, %v1317
    %v1320 = vxor.u32 %v1319, 2147483648
    %v1321 = vmul.f32 %v1320, 1.442695
    %v1322 = vpow.pop %v1321
    %v1323 = vadd.f32 %v1322, 1.0
    %v1324 = vrcp.pop %v1323
    %v1325 = vmul.f32 %v1323, %v1324
    %v1326 = vsub.f32 1.0, %v1325
    %v1327 = vmul.f32 %v1324, %v1326
    %v1328 = vadd.f32 %v1324, %v1327
    %vm1329 = vweird.f32 %v1323
    %vm1330 = vweird.f32 %v1324
    %vm1331 = vmor %vm1329, %vm1330
    %v1332 = vsel %vm1331, %v1324, %v1328
    %v1333 = vand.u32 2147483647, %v1323
    %vm1334 = vcmp.eq.f32.partialorder %v1333, 8.507059e+37
    %v1335 = vand.u32 %v1323, 2147483648
    %v1336 = vor.u32 1.1754944e-38, %v1335
    %v1337 = vsel %vm1334, %v1336, %v1332
    %v1338 = vmul.f32 1.0, %v1337
    %1339 = vrot.lane.b32.xlu0 %v1317, 64
    %v1340 = vpop.permute.xlu0 %1339
    %v1342 = vmul.f32 %v1338, %v1340
    %1344 = vrot.lane.b32.xlu0 %v1342, 64
    %v1345 = vpop.permute.xlu0 %1344
    %v1347 = vadd.f32 %v264, %v1345
    %v1348 = vtanh.pop %v1347
    %v1349 = vsub.f32 1.0, %v1338
    %1351 = vrot.lane.b32.xlu0 %v1348, 96
    %v1352 = vpop.permute.xlu0 %1351
    %v1354 = vmul.f32 %v1349, %v1352
    %v1355 = vrot.slane %v1213, 7
    %v1357 = vmul.f32 %v1338, %v1355
    %v1358 = vadd.f32 %v1354, %v1357
    %v1360 = vrot.slane %v1282, 1
    %1361 = vrot.lane.b32.xlu0 %v1360, 96
    %v1362 = vpop.permute.xlu0 %1361
    %v1363 = vsel %vm242, %v1362, 0
    %1365 = vmatpush.msra.mxu0 0.0
    %1366 = vmatpush.msra.mxu0 0.0
    %1367 = vmatpush.msra.mxu0 0.0
    %1368 = vmatpush.msra.mxu0 0.0
    %1369 = vmatpush.msra.mxu0 0.0
    %1370 = vmatpush.msra.mxu0 0.0
    %1371 = vmatpush.msra.mxu0 0.0
    %1372 = vmatpush.msra.mxu0 0.0
    %1373 = vmatpush.msra.mxu0 0.0
    %1374 = vmatpush.msra.mxu0 0.0
    %1375 = vmatpush.msra.mxu0 0.0
    %1376 = vmatpush.msra.mxu0 0.0
    %1377 = vmatpush.msra.mxu0 %v232
    %1378 = vmatpush.msra.mxu0 %v231
    %1379 = vmatpush.msra.mxu0 %v230
    %1380 = vmatpush.msra.mxu0 %v229
    %1381 = vmatmul.f32.gmra.mxu0 %v1363
    %v1382 = vpop.f32.mrf.mxu0
    %v1383 = vadd.f32 %v235, %v1382
    %1384 = vdwg.mxu0
    %v1385 = vadd.f32 %v291, %v1383
    %v1386 = vxor.u32 %v1385, 2147483648
    %v1387 = vmul.f32 %v1386, 1.442695
    %v1388 = vpow.pop %v1387
    %v1389 = vadd.f32 %v1388, 1.0
    %v1390 = vrcp.pop %v1389
    %v1391 = vmul.f32 %v1389, %v1390
    %v1392 = vsub.f32 1.0, %v1391
    %v1393 = vmul.f32 %v1390, %v1392
    %v1394 = vadd.f32 %v1390, %v1393
    %vm1395 = vweird.f32 %v1389
    %vm1396 = vweird.f32 %v1390
    %vm1397 = vmor %vm1395, %vm1396
    %v1398 = vsel %vm1397, %v1390, %v1394
    %v1399 = vand.u32 2147483647, %v1389
    %vm1400 = vcmp.eq.f32.partialorder %v1399, 8.507059e+37
    %v1401 = vand.u32 %v1389, 2147483648
    %v1402 = vor.u32 1.1754944e-38, %v1401
    %v1403 = vsel %vm1400, %v1402, %v1398
    %v1404 = vmul.f32 1.0, %v1403
    %1406 = vrot.lane.b32.xlu0 %v1383, 64
    %v1407 = vpop.permute.xlu0 %1406
    %v1409 = vmul.f32 %v1404, %v1407
    %1411 = vrot.lane.b32.xlu0 %v1409, 64
    %v1412 = vpop.permute.xlu0 %1411
    %v1414 = vadd.f32 %v291, %v1412
    %v1415 = vtanh.pop %v1414
    %v1416 = vsub.f32 1.0, %v1404
    %1418 = vrot.lane.b32.xlu0 %v1415, 96
    %v1419 = vpop.permute.xlu0 %1418
    %v1421 = vmul.f32 %v1416, %v1419
    %v1423 = vmul.f32 %v1404, %v1360
    %v1424 = vadd.f32 %v1421, %v1423
    %1426 = vrot.lane.b32.xlu0 %v1358, 96
    %v1427 = vpop.permute.xlu0 %1426
    %vm1429 = vcmask 261127
    %1430 = vst.msk [vmem:[#allocation2] sm:$0x80] %vm1429, %v1427
    %vm1431 = vcmask 516352
    %1432 = vst.msk [vmem:[#allocation2] sm:$0x1] %vm1431, %v1424
    %v1433 = vld [vmem:[#allocation2] sm:$0xff]
    %v1434 = vld [vmem:[%s4 + $0x20] sm:$0xff]
    %v1435 = vld [vmem:[%s4 + $0x28] sm:$0xff]
    %v1436 = vld [vmem:[%s4 + $0x30] sm:$0xff]
    %v1437 = vld [vmem:[%s4 + $0x38] sm:$0xff]
    %v1438 = vld [vmem:[%s228 + $0x20] sm:$0xff]
    %v1439 = vld [vmem:[%s228 + $0x28] sm:$0xff]
    %v1440 = vld [vmem:[%s228 + $0x30] sm:$0xff]
    %v1441 = vld [vmem:[%s228 + $0x38] sm:$0xff]
    %v1442 = vld [vmem:[#allocation10 + $0x3] sm:$0x1]
    %v1443 = vld [vmem:[%s234 + $0x3] sm:$0x1]
    %v1444 = vld [vmem:[#allocation9 + $0x20] sm:$0xff]
    %v1445 = vld [vmem:[#allocation9 + $0x28] sm:$0xff]
    %v1446 = vld [vmem:[#allocation9 + $0x30] sm:$0xff]
    %v1447 = vld [vmem:[#allocation9 + $0x38] sm:$0xff]
    %v1448 = vld [vmem:[#allocation9 + $0x40] sm:$0xff]
    %v1449 = vld [vmem:[#allocation9 + $0x48] sm:$0xff]
    %v1450 = vld [vmem:[#allocation9 + $0x50] sm:$0xff]
    %v1451 = vld [vmem:[#allocation9 + $0x58] sm:$0xff]
    %v1452 = vld [vmem:[#allocation10 + $0x2] sm:$0x1]
    %v1453 = vperm.slane %v1452, 0
    %v1455 = vsel %vm200, %v1433, 0
    %1457 = vmatpush.msra.mxu0 0.0
    %1458 = vmatpush.msra.mxu0 0.0
    %1459 = vmatpush.msra.mxu0 0.0
    %1460 = vmatpush.msra.mxu0 0.0
    %1461 = vmatpush.msra.mxu0 0.0
    %1462 = vmatpush.msra.mxu0 0.0
    %1463 = vmatpush.msra.mxu0 0.0
    %1464 = vmatpush.msra.mxu0 0.0
    %1465 = vmatpush.msra.mxu0 %v1451
    %1466 = vmatpush.msra.mxu0 %v1450
    %1467 = vmatpush.msra.mxu0 %v1449
    %1468 = vmatpush.msra.mxu0 %v1448
    %1469 = vmatpush.msra.mxu0 %v1447
    %1470 = vmatpush.msra.mxu0 %v1446
    %1471 = vmatpush.msra.mxu0 %v1445
    %1472 = vmatpush.msra.mxu0 %v1444
    %1473 = vmatmul.f32.gmra.mxu0 %v1455
    %v1474 = vpop.f32.mrf.mxu0
    %v1475 = vadd.f32 %v1453, %v1474
    %1476 = vdwg.mxu0
    %v1477 = vld [vmem:[%s266 + $0x20] sm:$0xff]
    %v1478 = vld [vmem:[%s266 + $0x28] sm:$0xff]
    %v1479 = vld [vmem:[%s266 + $0x30] sm:$0xff]
    %v1480 = vld [vmem:[%s266 + $0x38] sm:$0xff]
    %v1481 = vld [vmem:[%s266 + $0x40] sm:$0xff]
    %v1482 = vld [vmem:[%s266 + $0x48] sm:$0xff]
    %v1483 = vld [vmem:[%s266 + $0x50] sm:$0xff]
    %v1484 = vld [vmem:[%s266 + $0x58] sm:$0xff]
    %v1485 = vld [vmem:[%s234 + $0x2] sm:$0x1]
    %v1486 = vperm.slane %v1485, 0
    %1487 = vmatpush.msra.mxu0 0.0
    %1488 = vmatpush.msra.mxu0 0.0
    %1489 = vmatpush.msra.mxu0 0.0
    %1490 = vmatpush.msra.mxu0 0.0
    %1491 = vmatpush.msra.mxu0 0.0
    %1492 = vmatpush.msra.mxu0 0.0
    %1493 = vmatpush.msra.mxu0 0.0
    %1494 = vmatpush.msra.mxu0 0.0
    %1495 = vmatpush.msra.mxu0 %v1484
    %1496 = vmatpush.msra.mxu0 %v1483
    %1497 = vmatpush.msra.mxu0 %v1482
    %1498 = vmatpush.msra.mxu0 %v1481
    %1499 = vmatpush.msra.mxu0 %v1480
    %1500 = vmatpush.msra.mxu0 %v1479
    %1501 = vmatpush.msra.mxu0 %v1478
    %1502 = vmatpush.msra.mxu0 %v1477
    %1503 = vmatmul.f32.gmra.mxu0 %v1455
    %v1504 = vpop.f32.mrf.mxu0
    %v1505 = vadd.f32 %v1486, %v1504
    %1506 = vdwg.mxu0
    %1507 = vmatpush.msra.mxu0 0.0
    %1508 = vmatpush.msra.mxu0 0.0
    %1509 = vmatpush.msra.mxu0 0.0
    %1510 = vmatpush.msra.mxu0 0.0
    %1511 = vmatpush.msra.mxu0 0.0
    %1512 = vmatpush.msra.mxu0 0.0
    %1513 = vmatpush.msra.mxu0 0.0
    %1514 = vmatpush.msra.mxu0 0.0
    %1515 = vmatpush.msra.mxu0 0.0
    %1516 = vmatpush.msra.mxu0 0.0
    %1517 = vmatpush.msra.mxu0 0.0
    %1518 = vmatpush.msra.mxu0 0.0
    %1519 = vmatpush.msra.mxu0 %v1437
    %1520 = vmatpush.msra.mxu0 %v1436
    %1521 = vmatpush.msra.mxu0 %v1435
    %1522 = vmatpush.msra.mxu0 %v1434
    %1523 = vmatmul.f32.gmra.mxu0 %v294
    %v1524 = vpop.f32.mrf.mxu0
    %v1525 = vadd.f32 %v1442, %v1524
    %1526 = vdwg.mxu0
    %v1527 = vadd.f32 %v1475, %v1525
    %v1528 = vxor.u32 %v1527, 2147483648
    %v1529 = vmul.f32 %v1528, 1.442695
    %v1530 = vpow.pop %v1529
    %v1531 = vadd.f32 %v1530, 1.0
    %v1532 = vrcp.pop %v1531
    %v1533 = vmul.f32 %v1531, %v1532
    %v1534 = vsub.f32 1.0, %v1533
    %v1535 = vmul.f32 %v1532, %v1534
    %v1536 = vadd.f32 %v1532, %v1535
    %vm1537 = vweird.f32 %v1531
    %vm1538 = vweird.f32 %v1532
    %vm1539 = vmor %vm1537, %vm1538
    %v1540 = vsel %vm1539, %v1532, %v1536
    %v1541 = vand.u32 2147483647, %v1531
    %vm1542 = vcmp.eq.f32.partialorder %v1541, 8.507059e+37
    %v1543 = vand.u32 %v1531, 2147483648
    %v1544 = vor.u32 1.1754944e-38, %v1543
    %v1545 = vsel %vm1542, %v1544, %v1540
    %v1546 = vmul.f32 1.0, %v1545
    %1548 = vrot.lane.b32.xlu0 %v1525, 64
    %v1549 = vpop.permute.xlu0 %1548
    %v1551 = vmul.f32 %v1546, %v1549
    %1553 = vrot.lane.b32.xlu0 %v1551, 64
    %v1554 = vpop.permute.xlu0 %1553
    %v1556 = vadd.f32 %v1475, %v1554
    %v1557 = vtanh.pop %v1556
    %v1558 = vsub.f32 1.0, %v1546
    %1560 = vrot.lane.b32.xlu0 %v1557, 96
    %v1561 = vpop.permute.xlu0 %1560
    %v1563 = vmul.f32 %v1558, %v1561
    %v1564 = vmul.f32 %v1546, 0.0
    %v1565 = vadd.f32 %v1563, %v1564
    %1566 = vmatpush.msra.mxu0 0.0
    %1567 = vmatpush.msra.mxu0 0.0
    %1568 = vmatpush.msra.mxu0 0.0
    %1569 = vmatpush.msra.mxu0 0.0
    %1570 = vmatpush.msra.mxu0 0.0
    %1571 = vmatpush.msra.mxu0 0.0
    %1572 = vmatpush.msra.mxu0 0.0
    %1573 = vmatpush.msra.mxu0 0.0
    %1574 = vmatpush.msra.mxu0 0.0
    %1575 = vmatpush.msra.mxu0 0.0
    %1576 = vmatpush.msra.mxu0 0.0
    %1577 = vmatpush.msra.mxu0 0.0
    %1578 = vmatpush.msra.mxu0 %v1441
    %1579 = vmatpush.msra.mxu0 %v1440
    %1580 = vmatpush.msra.mxu0 %v1439
    %1581 = vmatpush.msra.mxu0 %v1438
    %1582 = vmatmul.f32.gmra.mxu0 %v294
    %v1583 = vpop.f32.mrf.mxu0
    %v1584 = vadd.f32 %v1443, %v1583
    %1585 = vdwg.mxu0
    %v1587 = vrot.slane %v1584, 1
    %v1589 = vadd.f32 %v1505, %v1587
    %v1590 = vxor.u32 %v1589, 2147483648
    %v1591 = vmul.f32 %v1590, 1.442695
    %v1592 = vpow.pop %v1591
    %v1593 = vadd.f32 %v1592, 1.0
    %v1594 = vrcp.pop %v1593
    %v1595 = vmul.f32 %v1593, %v1594
    %v1596 = vsub.f32 1.0, %v1595
    %v1597 = vmul.f32 %v1594, %v1596
    %v1598 = vadd.f32 %v1594, %v1597
    %vm1599 = vweird.f32 %v1593
    %vm1600 = vweird.f32 %v1594
    %vm1601 = vmor %vm1599, %vm1600
    %v1602 = vsel %vm1601, %v1594, %v1598
    %v1603 = vand.u32 2147483647, %v1593
    %vm1604 = vcmp.eq.f32.partialorder %v1603, 8.507059e+37
    %v1605 = vand.u32 %v1593, 2147483648
    %v1606 = vor.u32 1.1754944e-38, %v1605
    %v1607 = vsel %vm1604, %v1606, %v1602
    %v1608 = vmul.f32 1.0, %v1607
    %1609 = vrot.lane.b32.xlu0 %v1587, 64
    %v1610 = vpop.permute.xlu0 %1609
    %v1612 = vmul.f32 %v1608, %v1610
    %1614 = vrot.lane.b32.xlu0 %v1612, 64
    %v1615 = vpop.permute.xlu0 %1614
    %v1617 = vadd.f32 %v1505, %v1615
    %v1618 = vtanh.pop %v1617
    %v1619 = vsub.f32 1.0, %v1608
    %1621 = vrot.lane.b32.xlu0 %v1618, 96
    %v1622 = vpop.permute.xlu0 %1621
    %v1624 = vmul.f32 %v1619, %v1622
    %v1625 = vmul.f32 %v1608, 0.0
    %v1626 = vadd.f32 %v1624, %v1625
    %1628 = vrot.lane.b32.xlu0 %v1565, 96
    %v1629 = vpop.permute.xlu0 %1628
    %1631 = vst.msk [vmem:[#allocation3] sm:$0x1] %vm420, %v1629
    %1632 = vst.msk [vmem:[#allocation3] sm:$0x80] %vm422, %v1626
    %v1633 = vsel %vm242, %v1629, 0
    %1635 = vmatpush.msra.mxu0 0.0
    %1636 = vmatpush.msra.mxu0 0.0
    %1637 = vmatpush.msra.mxu0 0.0
    %1638 = vmatpush.msra.mxu0 0.0
    %1639 = vmatpush.msra.mxu0 0.0
    %1640 = vmatpush.msra.mxu0 0.0
    %1641 = vmatpush.msra.mxu0 0.0
    %1642 = vmatpush.msra.mxu0 0.0
    %1643 = vmatpush.msra.mxu0 0.0
    %1644 = vmatpush.msra.mxu0 0.0
    %1645 = vmatpush.msra.mxu0 0.0
    %1646 = vmatpush.msra.mxu0 0.0
    %1647 = vmatpush.msra.mxu0 %v1437
    %1648 = vmatpush.msra.mxu0 %v1436
    %1649 = vmatpush.msra.mxu0 %v1435
    %1650 = vmatpush.msra.mxu0 %v1434
    %1651 = vmatmul.f32.gmra.mxu0 %v1633
    %v1652 = vpop.f32.mrf.mxu0
    %v1653 = vadd.f32 %v1442, %v1652
    %1654 = vdwg.mxu0
    %v1656 = vrot.slane %v1653, 7
    %v1658 = vadd.f32 %v1475, %v1656
    %v1659 = vxor.u32 %v1658, 2147483648
    %v1660 = vmul.f32 %v1659, 1.442695
    %v1661 = vpow.pop %v1660
    %v1662 = vadd.f32 %v1661, 1.0
    %v1663 = vrcp.pop %v1662
    %v1664 = vmul.f32 %v1662, %v1663
    %v1665 = vsub.f32 1.0, %v1664
    %v1666 = vmul.f32 %v1663, %v1665
    %v1667 = vadd.f32 %v1663, %v1666
    %vm1668 = vweird.f32 %v1662
    %vm1669 = vweird.f32 %v1663
    %vm1670 = vmor %vm1668, %vm1669
    %v1671 = vsel %vm1670, %v1663, %v1667
    %v1672 = vand.u32 2147483647, %v1662
    %vm1673 = vcmp.eq.f32.partialorder %v1672, 8.507059e+37
    %v1674 = vand.u32 %v1662, 2147483648
    %v1675 = vor.u32 1.1754944e-38, %v1674
    %v1676 = vsel %vm1673, %v1675, %v1671
    %v1677 = vmul.f32 1.0, %v1676
    %1678 = vrot.lane.b32.xlu0 %v1656, 64
    %v1679 = vpop.permute.xlu0 %1678
    %v1681 = vmul.f32 %v1677, %v1679
    %1683 = vrot.lane.b32.xlu0 %v1681, 64
    %v1684 = vpop.permute.xlu0 %1683
    %v1686 = vadd.f32 %v1475, %v1684
    %v1687 = vtanh.pop %v1686
    %v1688 = vsub.f32 1.0, %v1677
    %1690 = vrot.lane.b32.xlu0 %v1687, 96
    %v1691 = vpop.permute.xlu0 %1690
    %v1693 = vmul.f32 %v1688, %v1691
    %v1694 = vrot.slane %v1565, 7
    %v1696 = vmul.f32 %v1677, %v1694
    %v1697 = vadd.f32 %v1693, %v1696
    %v1699 = vrot.slane %v1626, 7
    %1700 = vrot.lane.b32.xlu0 %v1699, 96
    %v1701 = vpop.permute.xlu0 %1700
    %v1702 = vsel %vm242, %v1701, 0
    %1704 = vmatpush.msra.mxu0 0.0
    %1705 = vmatpush.msra.mxu0 0.0
    %1706 = vmatpush.msra.mxu0 0.0
    %1707 = vmatpush.msra.mxu0 0.0
    %1708 = vmatpush.msra.mxu0 0.0
    %1709 = vmatpush.msra.mxu0 0.0
    %1710 = vmatpush.msra.mxu0 0.0
    %1711 = vmatpush.msra.mxu0 0.0
    %1712 = vmatpush.msra.mxu0 0.0
    %1713 = vmatpush.msra.mxu0 0.0
    %1714 = vmatpush.msra.mxu0 0.0
    %1715 = vmatpush.msra.mxu0 0.0
    %1716 = vmatpush.msra.mxu0 %v1441
    %1717 = vmatpush.msra.mxu0 %v1440
    %1718 = vmatpush.msra.mxu0 %v1439
    %1719 = vmatpush.msra.mxu0 %v1438
    %1720 = vmatmul.f32.gmra.mxu0 %v1702
    %v1721 = vpop.f32.mrf.mxu0
    %v1722 = vadd.f32 %v1443, %v1721
    %1723 = vdwg.mxu0
    %v1725 = vrot.slane %v1722, 2
    %v1727 = vadd.f32 %v1505, %v1725
    %v1728 = vxor.u32 %v1727, 2147483648
    %v1729 = vmul.f32 %v1728, 1.442695
    %v1730 = vpow.pop %v1729
    %v1731 = vadd.f32 %v1730, 1.0
    %v1732 = vrcp.pop %v1731
    %v1733 = vmul.f32 %v1731, %v1732
    %v1734 = vsub.f32 1.0, %v1733
    %v1735 = vmul.f32 %v1732, %v1734
    %v1736 = vadd.f32 %v1732, %v1735
    %vm1737 = vweird.f32 %v1731
    %vm1738 = vweird.f32 %v1732
    %vm1739 = vmor %vm1737, %vm1738
    %v1740 = vsel %vm1739, %v1732, %v1736
    %v1741 = vand.u32 2147483647, %v1731
    %vm1742 = vcmp.eq.f32.partialorder %v1741, 8.507059e+37
    %v1743 = vand.u32 %v1731, 2147483648
    %v1744 = vor.u32 1.1754944e-38, %v1743
    %v1745 = vsel %vm1742, %v1744, %v1740
    %v1746 = vmul.f32 1.0, %v1745
    %1747 = vrot.lane.b32.xlu0 %v1725, 64
    %v1748 = vpop.permute.xlu0 %1747
    %v1750 = vmul.f32 %v1746, %v1748
    %1752 = vrot.lane.b32.xlu0 %v1750, 64
    %v1753 = vpop.permute.xlu0 %1752
    %v1755 = vadd.f32 %v1505, %v1753
    %v1756 = vtanh.pop %v1755
    %v1757 = vsub.f32 1.0, %v1746
    %1759 = vrot.lane.b32.xlu0 %v1756, 96
    %v1760 = vpop.permute.xlu0 %1759
    %v1762 = vmul.f32 %v1757, %v1760
    %v1763 = vrot.slane %v1626, 1
    %v1765 = vmul.f32 %v1746, %v1763
    %v1766 = vadd.f32 %v1762, %v1765
    %1768 = vrot.lane.b32.xlu0 %v1697, 96
    %v1769 = vpop.permute.xlu0 %1768
    %1771 = vst.msk [vmem:[#allocation3] sm:$0x2] %vm562, %v1769
    %1772 = vst.msk [vmem:[#allocation3] sm:$0x40] %vm564, %v1766
    %v1773 = vrot.slane %v1697, 1
    %1774 = vrot.lane.b32.xlu0 %v1773, 96
    %v1775 = vpop.permute.xlu0 %1774
    %v1776 = vsel %vm242, %v1775, 0
    %1778 = vmatpush.msra.mxu0 0.0
    %1779 = vmatpush.msra.mxu0 0.0
    %1780 = vmatpush.msra.mxu0 0.0
    %1781 = vmatpush.msra.mxu0 0.0
    %1782 = vmatpush.msra.mxu0 0.0
    %1783 = vmatpush.msra.mxu0 0.0
    %1784 = vmatpush.msra.mxu0 0.0
    %1785 = vmatpush.msra.mxu0 0.0
    %1786 = vmatpush.msra.mxu0 0.0
    %1787 = vmatpush.msra.mxu0 0.0
    %1788 = vmatpush.msra.mxu0 0.0
    %1789 = vmatpush.msra.mxu0 0.0
    %1790 = vmatpush.msra.mxu0 %v1437
    %1791 = vmatpush.msra.mxu0 %v1436
    %1792 = vmatpush.msra.mxu0 %v1435
    %1793 = vmatpush.msra.mxu0 %v1434
    %1794 = vmatmul.f32.gmra.mxu0 %v1776
    %v1795 = vpop.f32.mrf.mxu0
    %v1796 = vadd.f32 %v1442, %v1795
    %1797 = vdwg.mxu0
    %v1799 = vrot.slane %v1796, 6
    %v1801 = vadd.f32 %v1475, %v1799
    %v1802 = vxor.u32 %v1801, 2147483648
    %v1803 = vmul.f32 %v1802, 1.442695
    %v1804 = vpow.pop %v1803
    %v1805 = vadd.f32 %v1804, 1.0
    %v1806 = vrcp.pop %v1805
    %v1807 = vmul.f32 %v1805, %v1806
    %v1808 = vsub.f32 1.0, %v1807
    %v1809 = vmul.f32 %v1806, %v1808
    %v1810 = vadd.f32 %v1806, %v1809
    %vm1811 = vweird.f32 %v1805
    %vm1812 = vweird.f32 %v1806
    %vm1813 = vmor %vm1811, %vm1812
    %v1814 = vsel %vm1813, %v1806, %v1810
    %v1815 = vand.u32 2147483647, %v1805
    %vm1816 = vcmp.eq.f32.partialorder %v1815, 8.507059e+37
    %v1817 = vand.u32 %v1805, 2147483648
    %v1818 = vor.u32 1.1754944e-38, %v1817
    %v1819 = vsel %vm1816, %v1818, %v1814
    %v1820 = vmul.f32 1.0, %v1819
    %1821 = vrot.lane.b32.xlu0 %v1799, 64
    %v1822 = vpop.permute.xlu0 %1821
    %v1824 = vmul.f32 %v1820, %v1822
    %1826 = vrot.lane.b32.xlu0 %v1824, 64
    %v1827 = vpop.permute.xlu0 %1826
    %v1829 = vadd.f32 %v1475, %v1827
    %v1830 = vtanh.pop %v1829
    %v1831 = vsub.f32 1.0, %v1820
    %1833 = vrot.lane.b32.xlu0 %v1830, 96
    %v1834 = vpop.permute.xlu0 %1833
    %v1836 = vmul.f32 %v1831, %v1834
    %v1837 = vrot.slane %v1697, 7
    %v1839 = vmul.f32 %v1820, %v1837
    %v1840 = vadd.f32 %v1836, %v1839
    %v1842 = vrot.slane %v1766, 6
    %1843 = vrot.lane.b32.xlu0 %v1842, 96
    %v1844 = vpop.permute.xlu0 %1843
    %v1845 = vsel %vm242, %v1844, 0
    %1847 = vmatpush.msra.mxu0 0.0
    %1848 = vmatpush.msra.mxu0 0.0
    %1849 = vmatpush.msra.mxu0 0.0
    %1850 = vmatpush.msra.mxu0 0.0
    %1851 = vmatpush.msra.mxu0 0.0
    %1852 = vmatpush.msra.mxu0 0.0
    %1853 = vmatpush.msra.mxu0 0.0
    %1854 = vmatpush.msra.mxu0 0.0
    %1855 = vmatpush.msra.mxu0 0.0
    %1856 = vmatpush.msra.mxu0 0.0
    %1857 = vmatpush.msra.mxu0 0.0
    %1858 = vmatpush.msra.mxu0 0.0
    %1859 = vmatpush.msra.mxu0 %v1441
    %1860 = vmatpush.msra.mxu0 %v1440
    %1861 = vmatpush.msra.mxu0 %v1439
    %1862 = vmatpush.msra.mxu0 %v1438
    %1863 = vmatmul.f32.gmra.mxu0 %v1845
    %v1864 = vpop.f32.mrf.mxu0
    %v1865 = vadd.f32 %v1443, %v1864
    %1866 = vdwg.mxu0
    %v1868 = vrot.slane %v1865, 3
    %v1870 = vadd.f32 %v1505, %v1868
    %v1871 = vxor.u32 %v1870, 2147483648
    %v1872 = vmul.f32 %v1871, 1.442695
    %v1873 = vpow.pop %v1872
    %v1874 = vadd.f32 %v1873, 1.0
    %v1875 = vrcp.pop %v1874
    %v1876 = vmul.f32 %v1874, %v1875
    %v1877 = vsub.f32 1.0, %v1876
    %v1878 = vmul.f32 %v1875, %v1877
    %v1879 = vadd.f32 %v1875, %v1878
    %vm1880 = vweird.f32 %v1874
    %vm1881 = vweird.f32 %v1875
    %vm1882 = vmor %vm1880, %vm1881
    %v1883 = vsel %vm1882, %v1875, %v1879
    %v1884 = vand.u32 2147483647, %v1874
    %vm1885 = vcmp.eq.f32.partialorder %v1884, 8.507059e+37
    %v1886 = vand.u32 %v1874, 2147483648
    %v1887 = vor.u32 1.1754944e-38, %v1886
    %v1888 = vsel %vm1885, %v1887, %v1883
    %v1889 = vmul.f32 1.0, %v1888
    %1890 = vrot.lane.b32.xlu0 %v1868, 64
    %v1891 = vpop.permute.xlu0 %1890
    %v1893 = vmul.f32 %v1889, %v1891
    %1895 = vrot.lane.b32.xlu0 %v1893, 64
    %v1896 = vpop.permute.xlu0 %1895
    %v1898 = vadd.f32 %v1505, %v1896
    %v1899 = vtanh.pop %v1898
    %v1900 = vsub.f32 1.0, %v1889
    %1902 = vrot.lane.b32.xlu0 %v1899, 96
    %v1903 = vpop.permute.xlu0 %1902
    %v1905 = vmul.f32 %v1900, %v1903
    %v1906 = vrot.slane %v1766, 1
    %v1908 = vmul.f32 %v1889, %v1906
    %v1909 = vadd.f32 %v1905, %v1908
    %1911 = vrot.lane.b32.xlu0 %v1840, 96
    %v1912 = vpop.permute.xlu0 %1911
    %1914 = vst.msk [vmem:[#allocation3] sm:$0x4] %vm707, %v1912
    %1915 = vst.msk [vmem:[#allocation3] sm:$0x20] %vm709, %v1909
    %v1916 = vrot.slane %v1840, 2
    %1917 = vrot.lane.b32.xlu0 %v1916, 96
    %v1918 = vpop.permute.xlu0 %1917
    %v1919 = vsel %vm242, %v1918, 0
    %1921 = vmatpush.msra.mxu0 0.0
    %1922 = vmatpush.msra.mxu0 0.0
    %1923 = vmatpush.msra.mxu0 0.0
    %1924 = vmatpush.msra.mxu0 0.0
    %1925 = vmatpush.msra.mxu0 0.0
    %1926 = vmatpush.msra.mxu0 0.0
    %1927 = vmatpush.msra.mxu0 0.0
    %1928 = vmatpush.msra.mxu0 0.0
    %1929 = vmatpush.msra.mxu0 0.0
    %1930 = vmatpush.msra.mxu0 0.0
    %1931 = vmatpush.msra.mxu0 0.0
    %1932 = vmatpush.msra.mxu0 0.0
    %1933 = vmatpush.msra.mxu0 %v1437
    %1934 = vmatpush.msra.mxu0 %v1436
    %1935 = vmatpush.msra.mxu0 %v1435
    %1936 = vmatpush.msra.mxu0 %v1434
    %1937 = vmatmul.f32.gmra.mxu0 %v1919
    %v1938 = vpop.f32.mrf.mxu0
    %v1939 = vadd.f32 %v1442, %v1938
    %1940 = vdwg.mxu0
    %v1942 = vrot.slane %v1939, 5
    %v1944 = vadd.f32 %v1475, %v1942
    %v1945 = vxor.u32 %v1944, 2147483648
    %v1946 = vmul.f32 %v1945, 1.442695
    %v1947 = vpow.pop %v1946
    %v1948 = vadd.f32 %v1947, 1.0
    %v1949 = vrcp.pop %v1948
    %v1950 = vmul.f32 %v1948, %v1949
    %v1951 = vsub.f32 1.0, %v1950
    %v1952 = vmul.f32 %v1949, %v1951
    %v1953 = vadd.f32 %v1949, %v1952
    %vm1954 = vweird.f32 %v1948
    %vm1955 = vweird.f32 %v1949
    %vm1956 = vmor %vm1954, %vm1955
    %v1957 = vsel %vm1956, %v1949, %v1953
    %v1958 = vand.u32 2147483647, %v1948
    %vm1959 = vcmp.eq.f32.partialorder %v1958, 8.507059e+37
    %v1960 = vand.u32 %v1948, 2147483648
    %v1961 = vor.u32 1.1754944e-38, %v1960
    %v1962 = vsel %vm1959, %v1961, %v1957
    %v1963 = vmul.f32 1.0, %v1962
    %1964 = vrot.lane.b32.xlu0 %v1942, 64
    %v1965 = vpop.permute.xlu0 %1964
    %v1967 = vmul.f32 %v1963, %v1965
    %1969 = vrot.lane.b32.xlu0 %v1967, 64
    %v1970 = vpop.permute.xlu0 %1969
    %v1972 = vadd.f32 %v1475, %v1970
    %v1973 = vtanh.pop %v1972
    %v1974 = vsub.f32 1.0, %v1963
    %1976 = vrot.lane.b32.xlu0 %v1973, 96
    %v1977 = vpop.permute.xlu0 %1976
    %v1979 = vmul.f32 %v1974, %v1977
    %v1980 = vrot.slane %v1840, 7
    %v1982 = vmul.f32 %v1963, %v1980
    %v1983 = vadd.f32 %v1979, %v1982
    %v1985 = vrot.slane %v1909, 5
    %1986 = vrot.lane.b32.xlu0 %v1985, 96
    %v1987 = vpop.permute.xlu0 %1986
    %v1988 = vsel %vm242, %v1987, 0
    %1990 = vmatpush.msra.mxu0 0.0
    %1991 = vmatpush.msra.mxu0 0.0
    %1992 = vmatpush.msra.mxu0 0.0
    %1993 = vmatpush.msra.mxu0 0.0
    %1994 = vmatpush.msra.mxu0 0.0
    %1995 = vmatpush.msra.mxu0 0.0
    %1996 = vmatpush.msra.mxu0 0.0
    %1997 = vmatpush.msra.mxu0 0.0
    %1998 = vmatpush.msra.mxu0 0.0
    %1999 = vmatpush.msra.mxu0 0.0
    %2000 = vmatpush.msra.mxu0 0.0
    %2001 = vmatpush.msra.mxu0 0.0
    %2002 = vmatpush.msra.mxu0 %v1441
    %2003 = vmatpush.msra.mxu0 %v1440
    %2004 = vmatpush.msra.mxu0 %v1439
    %2005 = vmatpush.msra.mxu0 %v1438
    %2006 = vmatmul.f32.gmra.mxu0 %v1988
    %v2007 = vpop.f32.mrf.mxu0
    %v2008 = vadd.f32 %v1443, %v2007
    %2009 = vdwg.mxu0
    %v2011 = vrot.slane %v2008, 4
    %v2013 = vadd.f32 %v1505, %v2011
    %v2014 = vxor.u32 %v2013, 2147483648
    %v2015 = vmul.f32 %v2014, 1.442695
    %v2016 = vpow.pop %v2015
    %v2017 = vadd.f32 %v2016, 1.0
    %v2018 = vrcp.pop %v2017
    %v2019 = vmul.f32 %v2017, %v2018
    %v2020 = vsub.f32 1.0, %v2019
    %v2021 = vmul.f32 %v2018, %v2020
    %v2022 = vadd.f32 %v2018, %v2021
    %vm2023 = vweird.f32 %v2017
    %vm2024 = vweird.f32 %v2018
    %vm2025 = vmor %vm2023, %vm2024
    %v2026 = vsel %vm2025, %v2018, %v2022
    %v2027 = vand.u32 2147483647, %v2017
    %vm2028 = vcmp.eq.f32.partialorder %v2027, 8.507059e+37
    %v2029 = vand.u32 %v2017, 2147483648
    %v2030 = vor.u32 1.1754944e-38, %v2029
    %v2031 = vsel %vm2028, %v2030, %v2026
    %v2032 = vmul.f32 1.0, %v2031
    %2033 = vrot.lane.b32.xlu0 %v2011, 64
    %v2034 = vpop.permute.xlu0 %2033
    %v2036 = vmul.f32 %v2032, %v2034
    %2038 = vrot.lane.b32.xlu0 %v2036, 64
    %v2039 = vpop.permute.xlu0 %2038
    %v2041 = vadd.f32 %v1505, %v2039
    %v2042 = vtanh.pop %v2041
    %v2043 = vsub.f32 1.0, %v2032
    %2045 = vrot.lane.b32.xlu0 %v2042, 96
    %v2046 = vpop.permute.xlu0 %2045
    %v2048 = vmul.f32 %v2043, %v2046
    %v2049 = vrot.slane %v1909, 1
    %v2051 = vmul.f32 %v2032, %v2049
    %v2052 = vadd.f32 %v2048, %v2051
    %2054 = vrot.lane.b32.xlu0 %v1983, 96
    %v2055 = vpop.permute.xlu0 %2054
    %2057 = vst.msk [vmem:[#allocation3] sm:$0x8] %vm852, %v2055
    %2058 = vst.msk [vmem:[#allocation3] sm:$0x10] %vm854, %v2052
    %v2059 = vrot.slane %v1983, 3
    %2060 = vrot.lane.b32.xlu0 %v2059, 96
    %v2061 = vpop.permute.xlu0 %2060
    %v2062 = vsel %vm242, %v2061, 0
    %2064 = vmatpush.msra.mxu0 0.0
    %2065 = vmatpush.msra.mxu0 0.0
    %2066 = vmatpush.msra.mxu0 0.0
    %2067 = vmatpush.msra.mxu0 0.0
    %2068 = vmatpush.msra.mxu0 0.0
    %2069 = vmatpush.msra.mxu0 0.0
    %2070 = vmatpush.msra.mxu0 0.0
    %2071 = vmatpush.msra.mxu0 0.0
    %2072 = vmatpush.msra.mxu0 0.0
    %2073 = vmatpush.msra.mxu0 0.0
    %2074 = vmatpush.msra.mxu0 0.0
    %2075 = vmatpush.msra.mxu0 0.0
    %2076 = vmatpush.msra.mxu0 %v1437
    %2077 = vmatpush.msra.mxu0 %v1436
    %2078 = vmatpush.msra.mxu0 %v1435
    %2079 = vmatpush.msra.mxu0 %v1434
    %2080 = vmatmul.f32.gmra.mxu0 %v2062
    %v2081 = vpop.f32.mrf.mxu0
    %v2082 = vadd.f32 %v1442, %v2081
    %2083 = vdwg.mxu0
    %v2085 = vrot.slane %v2082, 4
    %v2087 = vadd.f32 %v1475, %v2085
    %v2088 = vxor.u32 %v2087, 2147483648
    %v2089 = vmul.f32 %v2088, 1.442695
    %v2090 = vpow.pop %v2089
    %v2091 = vadd.f32 %v2090, 1.0
    %v2092 = vrcp.pop %v2091
    %v2093 = vmul.f32 %v2091, %v2092
    %v2094 = vsub.f32 1.0, %v2093
    %v2095 = vmul.f32 %v2092, %v2094
    %v2096 = vadd.f32 %v2092, %v2095
    %vm2097 = vweird.f32 %v2091
    %vm2098 = vweird.f32 %v2092
    %vm2099 = vmor %vm2097, %vm2098
    %v2100 = vsel %vm2099, %v2092, %v2096
    %v2101 = vand.u32 2147483647, %v2091
    %vm2102 = vcmp.eq.f32.partialorder %v2101, 8.507059e+37
    %v2103 = vand.u32 %v2091, 2147483648
    %v2104 = vor.u32 1.1754944e-38, %v2103
    %v2105 = vsel %vm2102, %v2104, %v2100
    %v2106 = vmul.f32 1.0, %v2105
    %2107 = vrot.lane.b32.xlu0 %v2085, 64
    %v2108 = vpop.permute.xlu0 %2107
    %v2110 = vmul.f32 %v2106, %v2108
    %2112 = vrot.lane.b32.xlu0 %v2110, 64
    %v2113 = vpop.permute.xlu0 %2112
    %v2115 = vadd.f32 %v1475, %v2113
    %v2116 = vtanh.pop %v2115
    %v2117 = vsub.f32 1.0, %v2106
    %2119 = vrot.lane.b32.xlu0 %v2116, 96
    %v2120 = vpop.permute.xlu0 %2119
    %v2122 = vmul.f32 %v2117, %v2120
    %v2123 = vrot.slane %v1983, 7
    %v2125 = vmul.f32 %v2106, %v2123
    %v2126 = vadd.f32 %v2122, %v2125
    %v2128 = vrot.slane %v2052, 4
    %2129 = vrot.lane.b32.xlu0 %v2128, 96
    %v2130 = vpop.permute.xlu0 %2129
    %v2131 = vsel %vm242, %v2130, 0
    %2133 = vmatpush.msra.mxu0 0.0
    %2134 = vmatpush.msra.mxu0 0.0
    %2135 = vmatpush.msra.mxu0 0.0
    %2136 = vmatpush.msra.mxu0 0.0
    %2137 = vmatpush.msra.mxu0 0.0
    %2138 = vmatpush.msra.mxu0 0.0
    %2139 = vmatpush.msra.mxu0 0.0
    %2140 = vmatpush.msra.mxu0 0.0
    %2141 = vmatpush.msra.mxu0 0.0
    %2142 = vmatpush.msra.mxu0 0.0
    %2143 = vmatpush.msra.mxu0 0.0
    %2144 = vmatpush.msra.mxu0 0.0
    %2145 = vmatpush.msra.mxu0 %v1441
    %2146 = vmatpush.msra.mxu0 %v1440
    %2147 = vmatpush.msra.mxu0 %v1439
    %2148 = vmatpush.msra.mxu0 %v1438
    %2149 = vmatmul.f32.gmra.mxu0 %v2131
    %v2150 = vpop.f32.mrf.mxu0
    %v2151 = vadd.f32 %v1443, %v2150
    %2152 = vdwg.mxu0
    %v2154 = vrot.slane %v2151, 5
    %v2156 = vadd.f32 %v1505, %v2154
    %v2157 = vxor.u32 %v2156, 2147483648
    %v2158 = vmul.f32 %v2157, 1.442695
    %v2159 = vpow.pop %v2158
    %v2160 = vadd.f32 %v2159, 1.0
    %v2161 = vrcp.pop %v2160
    %v2162 = vmul.f32 %v2160, %v2161
    %v2163 = vsub.f32 1.0, %v2162
    %v2164 = vmul.f32 %v2161, %v2163
    %v2165 = vadd.f32 %v2161, %v2164
    %vm2166 = vweird.f32 %v2160
    %vm2167 = vweird.f32 %v2161
    %vm2168 = vmor %vm2166, %vm2167
    %v2169 = vsel %vm2168, %v2161, %v2165
    %v2170 = vand.u32 2147483647, %v2160
    %vm2171 = vcmp.eq.f32.partialorder %v2170, 8.507059e+37
    %v2172 = vand.u32 %v2160, 2147483648
    %v2173 = vor.u32 1.1754944e-38, %v2172
    %v2174 = vsel %vm2171, %v2173, %v2169
    %v2175 = vmul.f32 1.0, %v2174
    %2176 = vrot.lane.b32.xlu0 %v2154, 64
    %v2177 = vpop.permute.xlu0 %2176
    %v2179 = vmul.f32 %v2175, %v2177
    %2181 = vrot.lane.b32.xlu0 %v2179, 64
    %v2182 = vpop.permute.xlu0 %2181
    %v2184 = vadd.f32 %v1505, %v2182
    %v2185 = vtanh.pop %v2184
    %v2186 = vsub.f32 1.0, %v2175
    %2188 = vrot.lane.b32.xlu0 %v2185, 96
    %v2189 = vpop.permute.xlu0 %2188
    %v2191 = vmul.f32 %v2186, %v2189
    %v2192 = vrot.slane %v2052, 1
    %v2194 = vmul.f32 %v2175, %v2192
    %v2195 = vadd.f32 %v2191, %v2194
    %2197 = vrot.lane.b32.xlu0 %v2126, 96
    %v2198 = vpop.permute.xlu0 %2197
    %2200 = vst.msk [vmem:[#allocation3] sm:$0x10] %vm997, %v2198
    %2201 = vst.msk [vmem:[#allocation3] sm:$0x8] %vm999, %v2195
    %v2202 = vrot.slane %v2126, 4
    %2203 = vrot.lane.b32.xlu0 %v2202, 96
    %v2204 = vpop.permute.xlu0 %2203
    %v2205 = vsel %vm242, %v2204, 0
    %2207 = vmatpush.msra.mxu0 0.0
    %2208 = vmatpush.msra.mxu0 0.0
    %2209 = vmatpush.msra.mxu0 0.0
    %2210 = vmatpush.msra.mxu0 0.0
    %2211 = vmatpush.msra.mxu0 0.0
    %2212 = vmatpush.msra.mxu0 0.0
    %2213 = vmatpush.msra.mxu0 0.0
    %2214 = vmatpush.msra.mxu0 0.0
    %2215 = vmatpush.msra.mxu0 0.0
    %2216 = vmatpush.msra.mxu0 0.0
    %2217 = vmatpush.msra.mxu0 0.0
    %2218 = vmatpush.msra.mxu0 0.0
    %2219 = vmatpush.msra.mxu0 %v1437
    %2220 = vmatpush.msra.mxu0 %v1436
    %2221 = vmatpush.msra.mxu0 %v1435
    %2222 = vmatpush.msra.mxu0 %v1434
    %2223 = vmatmul.f32.gmra.mxu0 %v2205
    %v2224 = vpop.f32.mrf.mxu0
    %v2225 = vadd.f32 %v1442, %v2224
    %2226 = vdwg.mxu0
    %v2228 = vrot.slane %v2225, 3
    %v2230 = vadd.f32 %v1475, %v2228
    %v2231 = vxor.u32 %v2230, 2147483648
    %v2232 = vmul.f32 %v2231, 1.442695
    %v2233 = vpow.pop %v2232
    %v2234 = vadd.f32 %v2233, 1.0
    %v2235 = vrcp.pop %v2234
    %v2236 = vmul.f32 %v2234, %v2235
    %v2237 = vsub.f32 1.0, %v2236
    %v2238 = vmul.f32 %v2235, %v2237
    %v2239 = vadd.f32 %v2235, %v2238
    %vm2240 = vweird.f32 %v2234
    %vm2241 = vweird.f32 %v2235
    %vm2242 = vmor %vm2240, %vm2241
    %v2243 = vsel %vm2242, %v2235, %v2239
    %v2244 = vand.u32 2147483647, %v2234
    %vm2245 = vcmp.eq.f32.partialorder %v2244, 8.507059e+37
    %v2246 = vand.u32 %v2234, 2147483648
    %v2247 = vor.u32 1.1754944e-38, %v2246
    %v2248 = vsel %vm2245, %v2247, %v2243
    %v2249 = vmul.f32 1.0, %v2248
    %2250 = vrot.lane.b32.xlu0 %v2228, 64
    %v2251 = vpop.permute.xlu0 %2250
    %v2253 = vmul.f32 %v2249, %v2251
    %2255 = vrot.lane.b32.xlu0 %v2253, 64
    %v2256 = vpop.permute.xlu0 %2255
    %v2258 = vadd.f32 %v1475, %v2256
    %v2259 = vtanh.pop %v2258
    %v2260 = vsub.f32 1.0, %v2249
    %2262 = vrot.lane.b32.xlu0 %v2259, 96
    %v2263 = vpop.permute.xlu0 %2262
    %v2265 = vmul.f32 %v2260, %v2263
    %v2266 = vrot.slane %v2126, 7
    %v2268 = vmul.f32 %v2249, %v2266
    %v2269 = vadd.f32 %v2265, %v2268
    %v2271 = vrot.slane %v2195, 3
    %2272 = vrot.lane.b32.xlu0 %v2271, 96
    %v2273 = vpop.permute.xlu0 %2272
    %v2274 = vsel %vm242, %v2273, 0
    %2276 = vmatpush.msra.mxu0 0.0
    %2277 = vmatpush.msra.mxu0 0.0
    %2278 = vmatpush.msra.mxu0 0.0
    %2279 = vmatpush.msra.mxu0 0.0
    %2280 = vmatpush.msra.mxu0 0.0
    %2281 = vmatpush.msra.mxu0 0.0
    %2282 = vmatpush.msra.mxu0 0.0
    %2283 = vmatpush.msra.mxu0 0.0
    %2284 = vmatpush.msra.mxu0 0.0
    %2285 = vmatpush.msra.mxu0 0.0
    %2286 = vmatpush.msra.mxu0 0.0
    %2287 = vmatpush.msra.mxu0 0.0
    %2288 = vmatpush.msra.mxu0 %v1441
    %2289 = vmatpush.msra.mxu0 %v1440
    %2290 = vmatpush.msra.mxu0 %v1439
    %2291 = vmatpush.msra.mxu0 %v1438
    %2292 = vmatmul.f32.gmra.mxu0 %v2274
    %v2293 = vpop.f32.mrf.mxu0
    %v2294 = vadd.f32 %v1443, %v2293
    %2295 = vdwg.mxu0
    %v2297 = vrot.slane %v2294, 6
    %v2299 = vadd.f32 %v1505, %v2297
    %v2300 = vxor.u32 %v2299, 2147483648
    %v2301 = vmul.f32 %v2300, 1.442695
    %v2302 = vpow.pop %v2301
    %v2303 = vadd.f32 %v2302, 1.0
    %v2304 = vrcp.pop %v2303
    %v2305 = vmul.f32 %v2303, %v2304
    %v2306 = vsub.f32 1.0, %v2305
    %v2307 = vmul.f32 %v2304, %v2306
    %v2308 = vadd.f32 %v2304, %v2307
    %vm2309 = vweird.f32 %v2303
    %vm2310 = vweird.f32 %v2304
    %vm2311 = vmor %vm2309, %vm2310
    %v2312 = vsel %vm2311, %v2304, %v2308
    %v2313 = vand.u32 2147483647, %v2303
    %vm2314 = vcmp.eq.f32.partialorder %v2313, 8.507059e+37
    %v2315 = vand.u32 %v2303, 2147483648
    %v2316 = vor.u32 1.1754944e-38, %v2315
    %v2317 = vsel %vm2314, %v2316, %v2312
    %v2318 = vmul.f32 1.0, %v2317
    %2319 = vrot.lane.b32.xlu0 %v2297, 64
    %v2320 = vpop.permute.xlu0 %2319
    %v2322 = vmul.f32 %v2318, %v2320
    %2324 = vrot.lane.b32.xlu0 %v2322, 64
    %v2325 = vpop.permute.xlu0 %2324
    %v2327 = vadd.f32 %v1505, %v2325
    %v2328 = vtanh.pop %v2327
    %v2329 = vsub.f32 1.0, %v2318
    %2331 = vrot.lane.b32.xlu0 %v2328, 96
    %v2332 = vpop.permute.xlu0 %2331
    %v2334 = vmul.f32 %v2329, %v2332
    %v2335 = vrot.slane %v2195, 1
    %v2337 = vmul.f32 %v2318, %v2335
    %v2338 = vadd.f32 %v2334, %v2337
    %2340 = vrot.lane.b32.xlu0 %v2269, 96
    %v2341 = vpop.permute.xlu0 %2340
    %2343 = vst.msk [vmem:[#allocation3] sm:$0x20] %vm1142, %v2341
    %2344 = vst.msk [vmem:[#allocation3] sm:$0x4] %vm1144, %v2338
    %v2345 = vrot.slane %v2269, 5
    %2346 = vrot.lane.b32.xlu0 %v2345, 96
    %v2347 = vpop.permute.xlu0 %2346
    %v2348 = vsel %vm242, %v2347, 0
    %2350 = vmatpush.msra.mxu0 0.0
    %2351 = vmatpush.msra.mxu0 0.0
    %2352 = vmatpush.msra.mxu0 0.0
    %2353 = vmatpush.msra.mxu0 0.0
    %2354 = vmatpush.msra.mxu0 0.0
    %2355 = vmatpush.msra.mxu0 0.0
    %2356 = vmatpush.msra.mxu0 0.0
    %2357 = vmatpush.msra.mxu0 0.0
    %2358 = vmatpush.msra.mxu0 0.0
    %2359 = vmatpush.msra.mxu0 0.0
    %2360 = vmatpush.msra.mxu0 0.0
    %2361 = vmatpush.msra.mxu0 0.0
    %2362 = vmatpush.msra.mxu0 %v1437
    %2363 = vmatpush.msra.mxu0 %v1436
    %2364 = vmatpush.msra.mxu0 %v1435
    %2365 = vmatpush.msra.mxu0 %v1434
    %2366 = vmatmul.f32.gmra.mxu0 %v2348
    %v2367 = vpop.f32.mrf.mxu0
    %v2368 = vadd.f32 %v1442, %v2367
    %2369 = vdwg.mxu0
    %v2371 = vrot.slane %v2368, 2
    %v2373 = vadd.f32 %v1475, %v2371
    %v2374 = vxor.u32 %v2373, 2147483648
    %v2375 = vmul.f32 %v2374, 1.442695
    %v2376 = vpow.pop %v2375
    %v2377 = vadd.f32 %v2376, 1.0
    %v2378 = vrcp.pop %v2377
    %v2379 = vmul.f32 %v2377, %v2378
    %v2380 = vsub.f32 1.0, %v2379
    %v2381 = vmul.f32 %v2378, %v2380
    %v2382 = vadd.f32 %v2378, %v2381
    %vm2383 = vweird.f32 %v2377
    %vm2384 = vweird.f32 %v2378
    %vm2385 = vmor %vm2383, %vm2384
    %v2386 = vsel %vm2385, %v2378, %v2382
    %v2387 = vand.u32 2147483647, %v2377
    %vm2388 = vcmp.eq.f32.partialorder %v2387, 8.507059e+37
    %v2389 = vand.u32 %v2377, 2147483648
    %v2390 = vor.u32 1.1754944e-38, %v2389
    %v2391 = vsel %vm2388, %v2390, %v2386
    %v2392 = vmul.f32 1.0, %v2391
    %2393 = vrot.lane.b32.xlu0 %v2371, 64
    %v2394 = vpop.permute.xlu0 %2393
    %v2396 = vmul.f32 %v2392, %v2394
    %2398 = vrot.lane.b32.xlu0 %v2396, 64
    %v2399 = vpop.permute.xlu0 %2398
    %v2401 = vadd.f32 %v1475, %v2399
    %v2402 = vtanh.pop %v2401
    %v2403 = vsub.f32 1.0, %v2392
    %2405 = vrot.lane.b32.xlu0 %v2402, 96
    %v2406 = vpop.permute.xlu0 %2405
    %v2408 = vmul.f32 %v2403, %v2406
    %v2409 = vrot.slane %v2269, 7
    %v2411 = vmul.f32 %v2392, %v2409
    %v2412 = vadd.f32 %v2408, %v2411
    %v2414 = vrot.slane %v2338, 2
    %2415 = vrot.lane.b32.xlu0 %v2414, 96
    %v2416 = vpop.permute.xlu0 %2415
    %v2417 = vsel %vm242, %v2416, 0
    %2419 = vmatpush.msra.mxu0 0.0
    %2420 = vmatpush.msra.mxu0 0.0
    %2421 = vmatpush.msra.mxu0 0.0
    %2422 = vmatpush.msra.mxu0 0.0
    %2423 = vmatpush.msra.mxu0 0.0
    %2424 = vmatpush.msra.mxu0 0.0
    %2425 = vmatpush.msra.mxu0 0.0
    %2426 = vmatpush.msra.mxu0 0.0
    %2427 = vmatpush.msra.mxu0 0.0
    %2428 = vmatpush.msra.mxu0 0.0
    %2429 = vmatpush.msra.mxu0 0.0
    %2430 = vmatpush.msra.mxu0 0.0
    %2431 = vmatpush.msra.mxu0 %v1441
    %2432 = vmatpush.msra.mxu0 %v1440
    %2433 = vmatpush.msra.mxu0 %v1439
    %2434 = vmatpush.msra.mxu0 %v1438
    %2435 = vmatmul.f32.gmra.mxu0 %v2417
    %v2436 = vpop.f32.mrf.mxu0
    %v2437 = vadd.f32 %v1443, %v2436
    %2438 = vdwg.mxu0
    %v2440 = vrot.slane %v2437, 7
    %v2442 = vadd.f32 %v1505, %v2440
    %v2443 = vxor.u32 %v2442, 2147483648
    %v2444 = vmul.f32 %v2443, 1.442695
    %v2445 = vpow.pop %v2444
    %v2446 = vadd.f32 %v2445, 1.0
    %v2447 = vrcp.pop %v2446
    %v2448 = vmul.f32 %v2446, %v2447
    %v2449 = vsub.f32 1.0, %v2448
    %v2450 = vmul.f32 %v2447, %v2449
    %v2451 = vadd.f32 %v2447, %v2450
    %vm2452 = vweird.f32 %v2446
    %vm2453 = vweird.f32 %v2447
    %vm2454 = vmor %vm2452, %vm2453
    %v2455 = vsel %vm2454, %v2447, %v2451
    %v2456 = vand.u32 2147483647, %v2446
    %vm2457 = vcmp.eq.f32.partialorder %v2456, 8.507059e+37
    %v2458 = vand.u32 %v2446, 2147483648
    %v2459 = vor.u32 1.1754944e-38, %v2458
    %v2460 = vsel %vm2457, %v2459, %v2455
    %v2461 = vmul.f32 1.0, %v2460
    %2462 = vrot.lane.b32.xlu0 %v2440, 64
    %v2463 = vpop.permute.xlu0 %2462
    %v2465 = vmul.f32 %v2461, %v2463
    %2467 = vrot.lane.b32.xlu0 %v2465, 64
    %v2468 = vpop.permute.xlu0 %2467
    %v2470 = vadd.f32 %v1505, %v2468
    %v2471 = vtanh.pop %v2470
    %v2472 = vsub.f32 1.0, %v2461
    %2474 = vrot.lane.b32.xlu0 %v2471, 96
    %v2475 = vpop.permute.xlu0 %2474
    %v2477 = vmul.f32 %v2472, %v2475
    %v2478 = vrot.slane %v2338, 1
    %v2480 = vmul.f32 %v2461, %v2478
    %v2481 = vadd.f32 %v2477, %v2480
    %2483 = vrot.lane.b32.xlu0 %v2412, 96
    %v2484 = vpop.permute.xlu0 %2483
    %2486 = vst.msk [vmem:[#allocation3] sm:$0x40] %vm1287, %v2484
    %2487 = vst.msk [vmem:[#allocation3] sm:$0x2] %vm1289, %v2481
    %v2488 = vrot.slane %v2412, 6
    %2489 = vrot.lane.b32.xlu0 %v2488, 96
    %v2490 = vpop.permute.xlu0 %2489
    %v2491 = vsel %vm242, %v2490, 0
    %2493 = vmatpush.msra.mxu0 0.0
    %2494 = vmatpush.msra.mxu0 0.0
    %2495 = vmatpush.msra.mxu0 0.0
    %2496 = vmatpush.msra.mxu0 0.0
    %2497 = vmatpush.msra.mxu0 0.0
    %2498 = vmatpush.msra.mxu0 0.0
    %2499 = vmatpush.msra.mxu0 0.0
    %2500 = vmatpush.msra.mxu0 0.0
    %2501 = vmatpush.msra.mxu0 0.0
    %2502 = vmatpush.msra.mxu0 0.0
    %2503 = vmatpush.msra.mxu0 0.0
    %2504 = vmatpush.msra.mxu0 0.0
    %2505 = vmatpush.msra.mxu0 %v1437
    %2506 = vmatpush.msra.mxu0 %v1436
    %2507 = vmatpush.msra.mxu0 %v1435
    %2508 = vmatpush.msra.mxu0 %v1434
    %2509 = vmatmul.f32.gmra.mxu0 %v2491
    %v2510 = vpop.f32.mrf.mxu0
    %v2511 = vadd.f32 %v1442, %v2510
    %2512 = vdwg.mxu0
    %v2514 = vrot.slane %v2511, 1
    %v2516 = vadd.f32 %v1475, %v2514
    %v2517 = vxor.u32 %v2516, 2147483648
    %v2518 = vmul.f32 %v2517, 1.442695
    %v2519 = vpow.pop %v2518
    %v2520 = vadd.f32 %v2519, 1.0
    %v2521 = vrcp.pop %v2520
    %v2522 = vmul.f32 %v2520, %v2521
    %v2523 = vsub.f32 1.0, %v2522
    %v2524 = vmul.f32 %v2521, %v2523
    %v2525 = vadd.f32 %v2521, %v2524
    %vm2526 = vweird.f32 %v2520
    %vm2527 = vweird.f32 %v2521
    %vm2528 = vmor %vm2526, %vm2527
    %v2529 = vsel %vm2528, %v2521, %v2525
    %v2530 = vand.u32 2147483647, %v2520
    %vm2531 = vcmp.eq.f32.partialorder %v2530, 8.507059e+37
    %v2532 = vand.u32 %v2520, 2147483648
    %v2533 = vor.u32 1.1754944e-38, %v2532
    %v2534 = vsel %vm2531, %v2533, %v2529
    %v2535 = vmul.f32 1.0, %v2534
    %2536 = vrot.lane.b32.xlu0 %v2514, 64
    %v2537 = vpop.permute.xlu0 %2536
    %v2539 = vmul.f32 %v2535, %v2537
    %2541 = vrot.lane.b32.xlu0 %v2539, 64
    %v2542 = vpop.permute.xlu0 %2541
    %v2544 = vadd.f32 %v1475, %v2542
    %v2545 = vtanh.pop %v2544
    %v2546 = vsub.f32 1.0, %v2535
    %2548 = vrot.lane.b32.xlu0 %v2545, 96
    %v2549 = vpop.permute.xlu0 %2548
    %v2551 = vmul.f32 %v2546, %v2549
    %v2552 = vrot.slane %v2412, 7
    %v2554 = vmul.f32 %v2535, %v2552
    %v2555 = vadd.f32 %v2551, %v2554
    %v2557 = vrot.slane %v2481, 1
    %2558 = vrot.lane.b32.xlu0 %v2557, 96
    %v2559 = vpop.permute.xlu0 %2558
    %v2560 = vsel %vm242, %v2559, 0
    %2562 = vmatpush.msra.mxu0 0.0
    %2563 = vmatpush.msra.mxu0 0.0
    %2564 = vmatpush.msra.mxu0 0.0
    %2565 = vmatpush.msra.mxu0 0.0
    %2566 = vmatpush.msra.mxu0 0.0
    %2567 = vmatpush.msra.mxu0 0.0
    %2568 = vmatpush.msra.mxu0 0.0
    %2569 = vmatpush.msra.mxu0 0.0
    %2570 = vmatpush.msra.mxu0 0.0
    %2571 = vmatpush.msra.mxu0 0.0
    %2572 = vmatpush.msra.mxu0 0.0
    %2573 = vmatpush.msra.mxu0 0.0
    %2574 = vmatpush.msra.mxu0 %v1441
    %2575 = vmatpush.msra.mxu0 %v1440
    %2576 = vmatpush.msra.mxu0 %v1439
    %2577 = vmatpush.msra.mxu0 %v1438
    %2578 = vmatmul.f32.gmra.mxu0 %v2560
    %v2579 = vpop.f32.mrf.mxu0
    %v2580 = vadd.f32 %v1443, %v2579
    %2581 = vdwg.mxu0
    %v2582 = vadd.f32 %v1505, %v2580
    %v2583 = vxor.u32 %v2582, 2147483648
    %v2584 = vmul.f32 %v2583, 1.442695
    %v2585 = vpow.pop %v2584
    %v2586 = vadd.f32 %v2585, 1.0
    %v2587 = vrcp.pop %v2586
    %v2588 = vmul.f32 %v2586, %v2587
    %v2589 = vsub.f32 1.0, %v2588
    %v2590 = vmul.f32 %v2587, %v2589
    %v2591 = vadd.f32 %v2587, %v2590
    %vm2592 = vweird.f32 %v2586
    %vm2593 = vweird.f32 %v2587
    %vm2594 = vmor %vm2592, %vm2593
    %v2595 = vsel %vm2594, %v2587, %v2591
    %v2596 = vand.u32 2147483647, %v2586
    %vm2597 = vcmp.eq.f32.partialorder %v2596, 8.507059e+37
    %v2598 = vand.u32 %v2586, 2147483648
    %v2599 = vor.u32 1.1754944e-38, %v2598
    %v2600 = vsel %vm2597, %v2599, %v2595
    %v2601 = vmul.f32 1.0, %v2600
    %2603 = vrot.lane.b32.xlu0 %v2580, 64
    %v2604 = vpop.permute.xlu0 %2603
    %v2606 = vmul.f32 %v2601, %v2604
    %2608 = vrot.lane.b32.xlu0 %v2606, 64
    %v2609 = vpop.permute.xlu0 %2608
    %v2611 = vadd.f32 %v1505, %v2609
    %v2612 = vtanh.pop %v2611
    %v2613 = vsub.f32 1.0, %v2601
    %2615 = vrot.lane.b32.xlu0 %v2612, 96
    %v2616 = vpop.permute.xlu0 %2615
    %v2618 = vmul.f32 %v2613, %v2616
    %v2620 = vmul.f32 %v2601, %v2557
    %v2621 = vadd.f32 %v2618, %v2620
    %2623 = vrot.lane.b32.xlu0 %v2555, 96
    %v2624 = vpop.permute.xlu0 %2623
    %2626 = vst.msk [vmem:[#allocation3] sm:$0x80] %vm1429, %v2624
    %2627 = vst.msk [vmem:[#allocation3] sm:$0x1] %vm1431, %v2621
    %v2628 = vld [vmem:[#allocation3] sm:$0xff]
    %2630 = vrot.lane.b32.xlu0 %v2628, 96
    %v2631 = vpop.permute.xlu0 %2630
    %v2633 = vadd.f32 %v2628, %v2631
    %v2634 = vld [vmem:[#allocation12] sm:$0xff]
    %v2635 = vld [vmem:[#allocation12 + $0x8] sm:$0xff]
    %v2636 = vld [vmem:[#allocation12 + $0x10] sm:$0xff]
    %v2637 = vld [vmem:[#allocation12 + $0x18] sm:$0xff]
    %v2638 = vld [vmem:[#allocation12 + $0x20] sm:$0xff]
    %v2639 = vld [vmem:[#allocation12 + $0x28] sm:$0xff]
    %v2640 = vld [vmem:[#allocation12 + $0x30] sm:$0xff]
    %v2641 = vld [vmem:[#allocation12 + $0x38] sm:$0xff]
    %s2642 = scalar_lea.vmem [#allocation12], 64
    %v2643 = vld [vmem:[%s2642] sm:$0xff]
    %v2644 = vld [vmem:[%s2642 + $0x8] sm:$0xff]
    %v2645 = vld [vmem:[%s2642 + $0x10] sm:$0xff]
    %v2646 = vld [vmem:[%s2642 + $0x18] sm:$0xff]
    %v2647 = vld [vmem:[%s2642 + $0x20] sm:$0xff]
    %v2648 = vld [vmem:[%s2642 + $0x28] sm:$0xff]
    %v2649 = vld [vmem:[%s2642 + $0x30] sm:$0xff]
    %v2650 = vld [vmem:[%s2642 + $0x38] sm:$0xff]
    %v2651 = vld [vmem:[#allocation13] sm:$0x1]
    %v2652 = vld [vmem:[#allocation13 + $0x1] sm:$0x1]
    %s2653 = scalar_lea.vmem [#allocation13], 2
    %v2654 = vld [vmem:[%s2653] sm:$0x1]
    %v2655 = vld [vmem:[%s2653 + $0x1] sm:$0x1]
    %v2656 = vld [vmem:[%s8] sm:$0xff]
    %v2657 = vld [vmem:[%s8 + $0x8] sm:$0xff]
    %v2658 = vld [vmem:[%s8 + $0x10] sm:$0xff]
    %v2659 = vld [vmem:[%s8 + $0x18] sm:$0xff]
    %v2660 = vld [vmem:[%s8 + $0x20] sm:$0xff]
    %v2661 = vld [vmem:[%s8 + $0x28] sm:$0xff]
    %v2662 = vld [vmem:[%s8 + $0x30] sm:$0xff]
    %v2663 = vld [vmem:[%s8 + $0x38] sm:$0xff]
    %v2664 = vld [vmem:[%s9] sm:$0x1]
    %v2665 = vld [vmem:[%s10] sm:$0xff]
    %v2666 = vld [vmem:[%s10 + $0x8] sm:$0xff]
    %v2667 = vld [vmem:[%s10 + $0x10] sm:$0xff]
    %v2668 = vld [vmem:[%s10 + $0x18] sm:$0xff]
    %v2669 = vld [vmem:[#allocation15] sm:$0x1]
    %vm2670 = vcmp.eq.s32.totalorder %v145, 1
    %v2671 = vsel %vm2670, 1, 0
    %v2672 = vcvt.s32.f32 %v2671
    %v2674 = vsel %vm200, %v2672, 0
    %2676 = vmatpush.msra.mxu0 0.0
    %2677 = vmatpush.msra.mxu0 0.0
    %2678 = vmatpush.msra.mxu0 0.0
    %2679 = vmatpush.msra.mxu0 0.0
    %2680 = vmatpush.msra.mxu0 0.0
    %2681 = vmatpush.msra.mxu0 0.0
    %2682 = vmatpush.msra.mxu0 0.0
    %2683 = vmatpush.msra.mxu0 0.0
    %2684 = vmatpush.msra.mxu0 %v143
    %2685 = vmatpush.msra.mxu0 %v142
    %2686 = vmatpush.msra.mxu0 %v141
    %2687 = vmatpush.msra.mxu0 %v140
    %2688 = vmatpush.msra.mxu0 %v139
    %2689 = vmatpush.msra.mxu0 %v138
    %2690 = vmatpush.msra.mxu0 %v137
    %2691 = vmatpush.msra.mxu0 %v136
    %2692 = vmatmul.f32.gmra.mxu0 %v2674
    %v2693 = vpop.f32.mrf.mxu0
    %v2694 = vadd.f32 0.0, %v2693
    %2695 = vdwg.mxu0
    %v2697 = vsel %vm242, %v2694, 0
    %2699 = vmatpush.msra.mxu0 0.0
    %2700 = vmatpush.msra.mxu0 0.0
    %2701 = vmatpush.msra.mxu0 0.0
    %2702 = vmatpush.msra.mxu0 0.0
    %2703 = vmatpush.msra.mxu0 0.0
    %2704 = vmatpush.msra.mxu0 0.0
    %2705 = vmatpush.msra.mxu0 0.0
    %2706 = vmatpush.msra.mxu0 0.0
    %2707 = vmatpush.msra.mxu0 0.0
    %2708 = vmatpush.msra.mxu0 0.0
    %2709 = vmatpush.msra.mxu0 0.0
    %2710 = vmatpush.msra.mxu0 0.0
    %2711 = vmatpush.msra.mxu0 %v2637
    %2712 = vmatpush.msra.mxu0 %v2636
    %2713 = vmatpush.msra.mxu0 %v2635
    %2714 = vmatpush.msra.mxu0 %v2634
    %2715 = vmatmul.f32.gmra.mxu0 %v2697
    %v2716 = vpop.f32.mrf.mxu0
    %v2717 = vadd.f32 %v2651, %v2716
    %2718 = vdwg.mxu0
    %v2719 = vrot.slane %v1358, 7
    %2720 = vrot.lane.b32.xlu0 %v2719, 96
    %v2721 = vpop.permute.xlu0 %2720
    %v2722 = vsel %vm242, %v2721, 0
    %2724 = vmatpush.msra.mxu0 0.0
    %2725 = vmatpush.msra.mxu0 0.0
    %2726 = vmatpush.msra.mxu0 0.0
    %2727 = vmatpush.msra.mxu0 0.0
    %2728 = vmatpush.msra.mxu0 0.0
    %2729 = vmatpush.msra.mxu0 0.0
    %2730 = vmatpush.msra.mxu0 0.0
    %2731 = vmatpush.msra.mxu0 0.0
    %2732 = vmatpush.msra.mxu0 0.0
    %2733 = vmatpush.msra.mxu0 0.0
    %2734 = vmatpush.msra.mxu0 0.0
    %2735 = vmatpush.msra.mxu0 0.0
    %2736 = vmatpush.msra.mxu0 %v2641
    %2737 = vmatpush.msra.mxu0 %v2640
    %2738 = vmatpush.msra.mxu0 %v2639
    %2739 = vmatpush.msra.mxu0 %v2638
    %2740 = vmatmul.f32.gmra.mxu0 %v2722
    %v2741 = vpop.f32.mrf.mxu0
    %v2742 = vadd.f32 %v2652, %v2741
    %2743 = vdwg.mxu0
    %v2744 = vadd.f32 %v2717, %v2742
    %v2745 = vxor.u32 %v2744, 2147483648
    %v2746 = vmul.f32 %v2745, 1.442695
    %v2747 = vpow.pop %v2746
    %v2748 = vadd.f32 %v2747, 1.0
    %v2749 = vrcp.pop %v2748
    %v2750 = vmul.f32 %v2748, %v2749
    %v2751 = vsub.f32 1.0, %v2750
    %v2752 = vmul.f32 %v2749, %v2751
    %v2753 = vadd.f32 %v2749, %v2752
    %vm2754 = vweird.f32 %v2748
    %vm2755 = vweird.f32 %v2749
    %vm2756 = vmor %vm2754, %vm2755
    %v2757 = vsel %vm2756, %v2749, %v2753
    %v2758 = vand.u32 2147483647, %v2748
    %vm2759 = vcmp.eq.f32.partialorder %v2758, 8.507059e+37
    %v2760 = vand.u32 %v2748, 2147483648
    %v2761 = vor.u32 1.1754944e-38, %v2760
    %v2762 = vsel %vm2759, %v2761, %v2757
    %v2763 = vmul.f32 1.0, %v2762
    %2765 = vrot.lane.b32.xlu0 %v2742, 64
    %v2766 = vpop.permute.xlu0 %2765
    %v2768 = vmul.f32 %v2763, %v2766
    %2770 = vrot.lane.b32.xlu0 %v2768, 64
    %v2771 = vpop.permute.xlu0 %2770
    %v2773 = vadd.f32 %v2717, %v2771
    %v2774 = vtanh.pop %v2773
    %v2775 = vsub.f32 1.0, %v2763
    %2777 = vrot.lane.b32.xlu0 %v2774, 96
    %v2778 = vpop.permute.xlu0 %2777
    %v2780 = vmul.f32 %v2775, %v2778
    %v2782 = vmul.f32 %v2763, %v2719
    %v2783 = vadd.f32 %v2780, %v2782
    %2785 = vrot.lane.b32.xlu0 %v2783, 96
    %v2786 = vpop.permute.xlu0 %2785
    %v2787 = vsel %vm242, %v2786, 0
    %2789 = vmatpush.msra.mxu0 0.0
    %2790 = vmatpush.msra.mxu0 0.0
    %2791 = vmatpush.msra.mxu0 0.0
    %2792 = vmatpush.msra.mxu0 0.0
    %2793 = vmatpush.msra.mxu0 0.0
    %2794 = vmatpush.msra.mxu0 0.0
    %2795 = vmatpush.msra.mxu0 0.0
    %2796 = vmatpush.msra.mxu0 0.0
    %2797 = vmatpush.msra.mxu0 0.0
    %2798 = vmatpush.msra.mxu0 0.0
    %2799 = vmatpush.msra.mxu0 0.0
    %2800 = vmatpush.msra.mxu0 0.0
    %2801 = vmatpush.msra.mxu0 %v2646
    %2802 = vmatpush.msra.mxu0 %v2645
    %2803 = vmatpush.msra.mxu0 %v2644
    %2804 = vmatpush.msra.mxu0 %v2643
    %2805 = vmatmul.f32.gmra.mxu0 %v2787
    %v2806 = vpop.f32.mrf.mxu0
    %v2807 = vadd.f32 %v2654, %v2806
    %2808 = vdwg.mxu0
    %2810 = vrot.lane.b32.xlu0 %v1424, 96
    %v2811 = vpop.permute.xlu0 %2810
    %v2812 = vsel %vm242, %v2811, 0
    %2814 = vmatpush.msra.mxu0 0.0
    %2815 = vmatpush.msra.mxu0 0.0
    %2816 = vmatpush.msra.mxu0 0.0
    %2817 = vmatpush.msra.mxu0 0.0
    %2818 = vmatpush.msra.mxu0 0.0
    %2819 = vmatpush.msra.mxu0 0.0
    %2820 = vmatpush.msra.mxu0 0.0
    %2821 = vmatpush.msra.mxu0 0.0
    %2822 = vmatpush.msra.mxu0 0.0
    %2823 = vmatpush.msra.mxu0 0.0
    %2824 = vmatpush.msra.mxu0 0.0
    %2825 = vmatpush.msra.mxu0 0.0
    %2826 = vmatpush.msra.mxu0 %v2650
    %2827 = vmatpush.msra.mxu0 %v2649
    %2828 = vmatpush.msra.mxu0 %v2648
    %2829 = vmatpush.msra.mxu0 %v2647
    %2830 = vmatmul.f32.gmra.mxu0 %v2812
    %v2831 = vpop.f32.mrf.mxu0
    %v2832 = vadd.f32 %v2655, %v2831
    %2833 = vdwg.mxu0
    %v2834 = vadd.f32 %v2807, %v2832
    %v2835 = vxor.u32 %v2834, 2147483648
    %v2836 = vmul.f32 %v2835, 1.442695
    %v2837 = vpow.pop %v2836
    %v2838 = vadd.f32 %v2837, 1.0
    %v2839 = vrcp.pop %v2838
    %v2840 = vmul.f32 %v2838, %v2839
    %v2841 = vsub.f32 1.0, %v2840
    %v2842 = vmul.f32 %v2839, %v2841
    %v2843 = vadd.f32 %v2839, %v2842
    %vm2844 = vweird.f32 %v2838
    %vm2845 = vweird.f32 %v2839
    %vm2846 = vmor %vm2844, %vm2845
    %v2847 = vsel %vm2846, %v2839, %v2843
    %v2848 = vand.u32 2147483647, %v2838
    %vm2849 = vcmp.eq.f32.partialorder %v2848, 8.507059e+37
    %v2850 = vand.u32 %v2838, 2147483648
    %v2851 = vor.u32 1.1754944e-38, %v2850
    %v2852 = vsel %vm2849, %v2851, %v2847
    %v2853 = vmul.f32 1.0, %v2852
    %2855 = vrot.lane.b32.xlu0 %v2832, 64
    %v2856 = vpop.permute.xlu0 %2855
    %v2858 = vmul.f32 %v2853, %v2856
    %2860 = vrot.lane.b32.xlu0 %v2858, 64
    %v2861 = vpop.permute.xlu0 %2860
    %v2863 = vadd.f32 %v2807, %v2861
    %v2864 = vtanh.pop %v2863
    %v2865 = vsub.f32 1.0, %v2853
    %2867 = vrot.lane.b32.xlu0 %v2864, 96
    %v2868 = vpop.permute.xlu0 %2867
    %v2870 = vmul.f32 %v2865, %v2868
    %v2871 = vmul.f32 %v2853, %v1424
    %v2872 = vadd.f32 %v2870, %v2871
    %2874 = vrot.lane.b32.xlu0 %v2872, 96
    %v2875 = vpop.permute.xlu0 %2874
    %v2876 = vsel %vm242, %v2875, 0
    %v2879 = vsel %vm242, %v2633, 0
    %2881 = vmatpush.xpose.msra.mxu0 0.0
    %2882 = vmatpush.xpose.msra.mxu0 0.0
    %2883 = vmatpush.xpose.msra.mxu0 0.0
    %2884 = vmatpush.xpose.msra.mxu0 0.0
    %2885 = vmatpush.xpose.msra.mxu0 0.0
    %2886 = vmatpush.xpose.msra.mxu0 0.0
    %2887 = vmatpush.xpose.msra.mxu0 0.0
    %2888 = vmatpush.xpose.msra.mxu0 0.0
    %2889 = vmatpush.xpose.msra.mxu0 0.0
    %2890 = vmatpush.xpose.msra.mxu0 0.0
    %2891 = vmatpush.xpose.msra.mxu0 0.0
    %2892 = vmatpush.xpose.msra.mxu0 0.0
    %2893 = vmatpush.xpose.msra.mxu0 0.0
    %2894 = vmatpush.xpose.msra.mxu0 0.0
    %2895 = vmatpush.xpose.msra.mxu0 0.0
    %2896 = vmatpush.xpose.msra.mxu0 %v2879
    %2897 = vmatmul.f32.gmra.mxu0 %v2876
    %v2898 = vpop.f32.mrf.mxu0
    %v2899 = vadd.f32 0.0, %v2898
    %2900 = vdwg.mxu0
    %v2901 = vstv %s135
    %vm2902 = vcmp.lt.s32.totalorder %v145, %v2901
    %v2903 = vsel %vm2902, %v2899, -1e+30
    %vm2904 = vcmask 57344
    %v2905 = vsel %vm2904, %v2903, -inf
    %2906 = vmax.xlane.f32.xlu0 %v2905
    %v2907 = vpop.xlane.xlu0 %2906
    %v2908 = vsub.f32 %v2903, %v2907
    %v2909 = vmul.f32 %v2908, 1.442695
    %v2910 = vpow.pop %v2909
    %v2911 = vsel %vm2904, %v2910, 0.0
    %2912 = vadd.xlane.f32.xlu0 %v2911
    %v2913 = vpop.xlane.xlu0 %2912
    %v2914 = vrcp.pop %v2913
    %v2915 = vmul.f32 %v2910, %v2914
    %vm2916 = vcmask 64512
    %v2918 = vsel %vm2916, %v2915, 0
    %2920 = vmatpush.msra.mxu0 0.0
    %2921 = vmatpush.msra.mxu0 0.0
    %2922 = vmatpush.msra.mxu0 0.0
    %2923 = vmatpush.msra.mxu0 0.0
    %2924 = vmatpush.msra.mxu0 0.0
    %2925 = vmatpush.msra.mxu0 0.0
    %2926 = vmatpush.msra.mxu0 0.0
    %2927 = vmatpush.msra.mxu0 0.0
    %2928 = vmatpush.msra.mxu0 0.0
    %2929 = vmatpush.msra.mxu0 0.0
    %2930 = vmatpush.msra.mxu0 0.0
    %2931 = vmatpush.msra.mxu0 0.0
    %2932 = vmatpush.msra.mxu0 0.0
    %2933 = vmatpush.msra.mxu0 0.0
    %2934 = vmatpush.msra.mxu0 0.0
    %2935 = vmatpush.msra.mxu0 %v2633
    %2936 = vmatmul.f32.gmra.mxu0 %v2918
    %v2937 = vpop.f32.mrf.mxu0
    %v2938 = vadd.f32 0.0, %v2937
    %2939 = vdwg.mxu0
    %2942 = vrot.lane.b32.xlu0 %v2938, 32
    %v2943 = vpop.permute.xlu0 %2942
    %v2945 = vsel %vm242, %v2875, %v2943
    %v2947 = vsel %vm200, %v2945, 0
    %2949 = vmatpush.msra.mxu0 0.0
    %2950 = vmatpush.msra.mxu0 0.0
    %2951 = vmatpush.msra.mxu0 0.0
    %2952 = vmatpush.msra.mxu0 0.0
    %2953 = vmatpush.msra.mxu0 0.0
    %2954 = vmatpush.msra.mxu0 0.0
    %2955 = vmatpush.msra.mxu0 0.0
    %2956 = vmatpush.msra.mxu0 0.0
    %2957 = vmatpush.msra.mxu0 %v2663
    %2958 = vmatpush.msra.mxu0 %v2662
    %2959 = vmatpush.msra.mxu0 %v2661
    %2960 = vmatpush.msra.mxu0 %v2660
    %2961 = vmatpush.msra.mxu0 %v2659
    %2962 = vmatpush.msra.mxu0 %v2658
    %2963 = vmatpush.msra.mxu0 %v2657
    %2964 = vmatpush.msra.mxu0 %v2656
    %2965 = vmatmul.f32.gmra.mxu0 %v2947
    %v2966 = vpop.f32.mrf.mxu0
    %v2967 = vadd.f32 %v2664, %v2966
    %2968 = vdwg.mxu0
    %v2969 = vtanh.pop %v2967
    %v2971 = vsel %vm242, %v2969, 0
    %2973 = vmatpush.msra.mxu0 0.0
    %2974 = vmatpush.msra.mxu0 0.0
    %2975 = vmatpush.msra.mxu0 0.0
    %2976 = vmatpush.msra.mxu0 0.0
    %2977 = vmatpush.msra.mxu0 0.0
    %2978 = vmatpush.msra.mxu0 0.0
    %2979 = vmatpush.msra.mxu0 0.0
    %2980 = vmatpush.msra.mxu0 0.0
    %2981 = vmatpush.msra.mxu0 0.0
    %2982 = vmatpush.msra.mxu0 0.0
    %2983 = vmatpush.msra.mxu0 0.0
    %2984 = vmatpush.msra.mxu0 0.0
    %2985 = vmatpush.msra.mxu0 %v2668
    %2986 = vmatpush.msra.mxu0 %v2667
    %2987 = vmatpush.msra.mxu0 %v2666
    %2988 = vmatpush.msra.mxu0 %v2665
    %2989 = vmatmul.f32.gmra.mxu0 %v2971
    %v2990 = vpop.f32.mrf.mxu0
    %v2991 = vadd.f32 %v2669, %v2990
    %2992 = vdwg.mxu0
    %vm2993 = vcmask 516096
    %v2994 = vsel %vm2993, %v2991, -inf
    %2995 = vmax.xlane.f32.xlu0 %v2994
    %v2996 = vpop.xlane.xlu0 %2995
    %v2997 = vsub.f32 %v2991, %v2996
    %v2998 = vmul.f32 %v2997, 1.442695
    %v2999 = vpow.pop %v2998
    %v3000 = vsel %vm2993, %v2999, 0.0
    %3001 = vadd.xlane.f32.xlu0 %v3000
    %v3002 = vpop.xlane.xlu0 %3001
    %v3003 = vrcp.pop %v3002
    %vm3004 = vcmp.eq.f32.partialorder %v2991, %v2996
    %v3005 = vsel %vm3004, %v145, 64
    %v3006 = vsel %vm2993, %v3005, 2147483647
    %v3007 = vand.u32 %v3006, 65535
    %v3008 = vshra.s32 %v3006, 16
    %v3009 = vcvt.s32.f32 %v3007
    %v3010 = vcvt.s32.f32 %v3008
    %3011 = vmin.xlane.f32.xlu0 %v3010
    %v3012 = vpop.xlane.xlu0 %3011
    %vm3013 = vcmp.eq.f32.partialorder %v3010, %v3012
    %v3014 = vsel %vm3013, %v3009, inf
    %3015 = vmin.xlane.f32.xlu0 %v3014
    %v3016 = vpop.xlane.xlu0 %3015
    %v3017 = vcvt.f32.s32 %v3016
    %v3018 = vcvt.f32.s32 %v3012
    %v3019 = vshll.u32 %v3018, 16
    %v3020 = vadd.s32 %v3019, %v3017
    %vm3021 = vcmp.eq.s32.totalorder %v145, 0
    %v3022 = vsel %vm3021, %v3020, 0
    %v3023 = vsel %vm3021, %v3003, 0.0
    %vm3024 = vcmp.eq.s32.totalorder %v145, %v3020
    %v3025 = vsel %vm3024, 1, 0
    %v3026 = vcvt.s32.f32 %v3025
    %v3028 = vsel %vm200, %v3026, 0
    %3030 = vmatpush.msra.mxu0 0.0
    %3031 = vmatpush.msra.mxu0 0.0
    %3032 = vmatpush.msra.mxu0 0.0
    %3033 = vmatpush.msra.mxu0 0.0
    %3034 = vmatpush.msra.mxu0 0.0
    %3035 = vmatpush.msra.mxu0 0.0
    %3036 = vmatpush.msra.mxu0 0.0
    %3037 = vmatpush.msra.mxu0 0.0
    %3038 = vmatpush.msra.mxu0 %v143
    %3039 = vmatpush.msra.mxu0 %v142
    %3040 = vmatpush.msra.mxu0 %v141
    %3041 = vmatpush.msra.mxu0 %v140
    %3042 = vmatpush.msra.mxu0 %v139
    %3043 = vmatpush.msra.mxu0 %v138
    %3044 = vmatpush.msra.mxu0 %v137
    %3045 = vmatpush.msra.mxu0 %v136
    %3046 = vmatmul.f32.gmra.mxu0 %v3028
    %v3047 = vpop.f32.mrf.mxu0
    %v3048 = vadd.f32 0.0, %v3047
    %3049 = vdwg.mxu0
    %v3051 = vsel %vm242, %v3048, 0
    %3053 = vmatpush.msra.mxu0 0.0
    %3054 = vmatpush.msra.mxu0 0.0
    %3055 = vmatpush.msra.mxu0 0.0
    %3056 = vmatpush.msra.mxu0 0.0
    %3057 = vmatpush.msra.mxu0 0.0
    %3058 = vmatpush.msra.mxu0 0.0
    %3059 = vmatpush.msra.mxu0 0.0
    %3060 = vmatpush.msra.mxu0 0.0
    %3061 = vmatpush.msra.mxu0 0.0
    %3062 = vmatpush.msra.mxu0 0.0
    %3063 = vmatpush.msra.mxu0 0.0
    %3064 = vmatpush.msra.mxu0 0.0
    %3065 = vmatpush.msra.mxu0 %v2637
    %3066 = vmatpush.msra.mxu0 %v2636
    %3067 = vmatpush.msra.mxu0 %v2635
    %3068 = vmatpush.msra.mxu0 %v2634
    %3069 = vmatmul.f32.gmra.mxu0 %v3051
    %v3070 = vpop.f32.mrf.mxu0
    %v3071 = vadd.f32 %v2651, %v3070
    %3072 = vdwg.mxu0
    %3073 = vmatpush.msra.mxu0 0.0
    %3074 = vmatpush.msra.mxu0 0.0
    %3075 = vmatpush.msra.mxu0 0.0
    %3076 = vmatpush.msra.mxu0 0.0
    %3077 = vmatpush.msra.mxu0 0.0
    %3078 = vmatpush.msra.mxu0 0.0
    %3079 = vmatpush.msra.mxu0 0.0
    %3080 = vmatpush.msra.mxu0 0.0
    %3081 = vmatpush.msra.mxu0 0.0
    %3082 = vmatpush.msra.mxu0 0.0
    %3083 = vmatpush.msra.mxu0 0.0
    %3084 = vmatpush.msra.mxu0 0.0
    %3085 = vmatpush.msra.mxu0 %v2641
    %3086 = vmatpush.msra.mxu0 %v2640
    %3087 = vmatpush.msra.mxu0 %v2639
    %3088 = vmatpush.msra.mxu0 %v2638
    %3089 = vmatmul.f32.gmra.mxu0 %v2787
    %v3090 = vpop.f32.mrf.mxu0
    %v3091 = vadd.f32 %v2652, %v3090
    %3092 = vdwg.mxu0
    %v3093 = vadd.f32 %v3071, %v3091
    %v3094 = vxor.u32 %v3093, 2147483648
    %v3095 = vmul.f32 %v3094, 1.442695
    %v3096 = vpow.pop %v3095
    %v3097 = vadd.f32 %v3096, 1.0
    %v3098 = vrcp.pop %v3097
    %v3099 = vmul.f32 %v3097, %v3098
    %v3100 = vsub.f32 1.0, %v3099
    %v3101 = vmul.f32 %v3098, %v3100
    %v3102 = vadd.f32 %v3098, %v3101
    %vm3103 = vweird.f32 %v3097
    %vm3104 = vweird.f32 %v3098
    %vm3105 = vmor %vm3103, %vm3104
    %v3106 = vsel %vm3105, %v3098, %v3102
    %v3107 = vand.u32 2147483647, %v3097
    %vm3108 = vcmp.eq.f32.partialorder %v3107, 8.507059e+37
    %v3109 = vand.u32 %v3097, 2147483648
    %v3110 = vor.u32 1.1754944e-38, %v3109
    %v3111 = vsel %vm3108, %v3110, %v3106
    %v3112 = vmul.f32 1.0, %v3111
    %3114 = vrot.lane.b32.xlu0 %v3091, 64
    %v3115 = vpop.permute.xlu0 %3114
    %v3117 = vmul.f32 %v3112, %v3115
    %3119 = vrot.lane.b32.xlu0 %v3117, 64
    %v3120 = vpop.permute.xlu0 %3119
    %v3122 = vadd.f32 %v3071, %v3120
    %v3123 = vtanh.pop %v3122
    %v3124 = vsub.f32 1.0, %v3112
    %3126 = vrot.lane.b32.xlu0 %v3123, 96
    %v3127 = vpop.permute.xlu0 %3126
    %v3129 = vmul.f32 %v3124, %v3127
    %v3130 = vmul.f32 %v3112, %v2783
    %v3131 = vadd.f32 %v3129, %v3130
    %3133 = vrot.lane.b32.xlu0 %v3131, 96
    %v3134 = vpop.permute.xlu0 %3133
    %v3135 = vsel %vm242, %v3134, 0
    %3137 = vmatpush.msra.mxu0 0.0
    %3138 = vmatpush.msra.mxu0 0.0
    %3139 = vmatpush.msra.mxu0 0.0
    %3140 = vmatpush.msra.mxu0 0.0
    %3141 = vmatpush.msra.mxu0 0.0
    %3142 = vmatpush.msra.mxu0 0.0
    %3143 = vmatpush.msra.mxu0 0.0
    %3144 = vmatpush.msra.mxu0 0.0
    %3145 = vmatpush.msra.mxu0 0.0
    %3146 = vmatpush.msra.mxu0 0.0
    %3147 = vmatpush.msra.mxu0 0.0
    %3148 = vmatpush.msra.mxu0 0.0
    %3149 = vmatpush.msra.mxu0 %v2646
    %3150 = vmatpush.msra.mxu0 %v2645
    %3151 = vmatpush.msra.mxu0 %v2644
    %3152 = vmatpush.msra.mxu0 %v2643
    %3153 = vmatmul.f32.gmra.mxu0 %v3135
    %v3154 = vpop.f32.mrf.mxu0
    %v3155 = vadd.f32 %v2654, %v3154
    %3156 = vdwg.mxu0
    %3157 = vmatpush.msra.mxu0 0.0
    %3158 = vmatpush.msra.mxu0 0.0
    %3159 = vmatpush.msra.mxu0 0.0
    %3160 = vmatpush.msra.mxu0 0.0
    %3161 = vmatpush.msra.mxu0 0.0
    %3162 = vmatpush.msra.mxu0 0.0
    %3163 = vmatpush.msra.mxu0 0.0
    %3164 = vmatpush.msra.mxu0 0.0
    %3165 = vmatpush.msra.mxu0 0.0
    %3166 = vmatpush.msra.mxu0 0.0
    %3167 = vmatpush.msra.mxu0 0.0
    %3168 = vmatpush.msra.mxu0 0.0
    %3169 = vmatpush.msra.mxu0 %v2650
    %3170 = vmatpush.msra.mxu0 %v2649
    %3171 = vmatpush.msra.mxu0 %v2648
    %3172 = vmatpush.msra.mxu0 %v2647
    %3173 = vmatmul.f32.gmra.mxu0 %v2876
    %v3174 = vpop.f32.mrf.mxu0
    %v3175 = vadd.f32 %v2655, %v3174
    %3176 = vdwg.mxu0
    %v3177 = vadd.f32 %v3155, %v3175
    %v3178 = vxor.u32 %v3177, 2147483648
    %v3179 = vmul.f32 %v3178, 1.442695
    %v3180 = vpow.pop %v3179
    %v3181 = vadd.f32 %v3180, 1.0
    %v3182 = vrcp.pop %v3181
    %v3183 = vmul.f32 %v3181, %v3182
    %v3184 = vsub.f32 1.0, %v3183
    %v3185 = vmul.f32 %v3182, %v3184
    %v3186 = vadd.f32 %v3182, %v3185
    %vm3187 = vweird.f32 %v3181
    %vm3188 = vweird.f32 %v3182
    %vm3189 = vmor %vm3187, %vm3188
    %v3190 = vsel %vm3189, %v3182, %v3186
    %v3191 = vand.u32 2147483647, %v3181
    %vm3192 = vcmp.eq.f32.partialorder %v3191, 8.507059e+37
    %v3193 = vand.u32 %v3181, 2147483648
    %v3194 = vor.u32 1.1754944e-38, %v3193
    %v3195 = vsel %vm3192, %v3194, %v3190
    %v3196 = vmul.f32 1.0, %v3195
    %3198 = vrot.lane.b32.xlu0 %v3175, 64
    %v3199 = vpop.permute.xlu0 %3198
    %v3201 = vmul.f32 %v3196, %v3199
    %3203 = vrot.lane.b32.xlu0 %v3201, 64
    %v3204 = vpop.permute.xlu0 %3203
    %v3206 = vadd.f32 %v3155, %v3204
    %v3207 = vtanh.pop %v3206
    %v3208 = vsub.f32 1.0, %v3196
    %3210 = vrot.lane.b32.xlu0 %v3207, 96
    %v3211 = vpop.permute.xlu0 %3210
    %v3213 = vmul.f32 %v3208, %v3211
    %v3214 = vmul.f32 %v3196, %v2872
    %v3215 = vadd.f32 %v3213, %v3214
    %3217 = vrot.lane.b32.xlu0 %v3215, 96
    %v3218 = vpop.permute.xlu0 %3217
    %v3219 = vsel %vm242, %v3218, 0
    %3221 = vmatpush.xpose.msra.mxu0 0.0
    %3222 = vmatpush.xpose.msra.mxu0 0.0
    %3223 = vmatpush.xpose.msra.mxu0 0.0
    %3224 = vmatpush.xpose.msra.mxu0 0.0
    %3225 = vmatpush.xpose.msra.mxu0 0.0
    %3226 = vmatpush.xpose.msra.mxu0 0.0
    %3227 = vmatpush.xpose.msra.mxu0 0.0
    %3228 = vmatpush.xpose.msra.mxu0 0.0
    %3229 = vmatpush.xpose.msra.mxu0 0.0
    %3230 = vmatpush.xpose.msra.mxu0 0.0
    %3231 = vmatpush.xpose.msra.mxu0 0.0
    %3232 = vmatpush.xpose.msra.mxu0 0.0
    %3233 = vmatpush.xpose.msra.mxu0 0.0
    %3234 = vmatpush.xpose.msra.mxu0 0.0
    %3235 = vmatpush.xpose.msra.mxu0 0.0
    %3236 = vmatpush.xpose.msra.mxu0 %v2879
    %3237 = vmatmul.f32.gmra.mxu0 %v3219
    %v3238 = vpop.f32.mrf.mxu0
    %v3239 = vadd.f32 0.0, %v3238
    %3240 = vdwg.mxu0
    %v3241 = vsel %vm2902, %v3239, -1e+30
    %v3242 = vsel %vm2904, %v3241, -inf
    %3243 = vmax.xlane.f32.xlu0 %v3242
    %v3244 = vpop.xlane.xlu0 %3243
    %v3245 = vsub.f32 %v3241, %v3244
    %v3246 = vmul.f32 %v3245, 1.442695
    %v3247 = vpow.pop %v3246
    %v3248 = vsel %vm2904, %v3247, 0.0
    %3249 = vadd.xlane.f32.xlu0 %v3248
    %v3250 = vpop.xlane.xlu0 %3249
    %v3251 = vrcp.pop %v3250
    %v3252 = vmul.f32 %v3247, %v3251
    %v3254 = vsel %vm2916, %v3252, 0
    %3256 = vmatpush.msra.mxu0 0.0
    %3257 = vmatpush.msra.mxu0 0.0
    %3258 = vmatpush.msra.mxu0 0.0
    %3259 = vmatpush.msra.mxu0 0.0
    %3260 = vmatpush.msra.mxu0 0.0
    %3261 = vmatpush.msra.mxu0 0.0
    %3262 = vmatpush.msra.mxu0 0.0
    %3263 = vmatpush.msra.mxu0 0.0
    %3264 = vmatpush.msra.mxu0 0.0
    %3265 = vmatpush.msra.mxu0 0.0
    %3266 = vmatpush.msra.mxu0 0.0
    %3267 = vmatpush.msra.mxu0 0.0
    %3268 = vmatpush.msra.mxu0 0.0
    %3269 = vmatpush.msra.mxu0 0.0
    %3270 = vmatpush.msra.mxu0 0.0
    %3271 = vmatpush.msra.mxu0 %v2633
    %3272 = vmatmul.f32.gmra.mxu0 %v3254
    %v3273 = vpop.f32.mrf.mxu0
    %v3274 = vadd.f32 0.0, %v3273
    %3275 = vdwg.mxu0
    %3278 = vrot.lane.b32.xlu0 %v3274, 32
    %v3279 = vpop.permute.xlu0 %3278
    %v3281 = vsel %vm242, %v3218, %v3279
    %v3283 = vsel %vm200, %v3281, 0
    %3285 = vmatpush.msra.mxu0 0.0
    %3286 = vmatpush.msra.mxu0 0.0
    %3287 = vmatpush.msra.mxu0 0.0
    %3288 = vmatpush.msra.mxu0 0.0
    %3289 = vmatpush.msra.mxu0 0.0
    %3290 = vmatpush.msra.mxu0 0.0
    %3291 = vmatpush.msra.mxu0 0.0
    %3292 = vmatpush.msra.mxu0 0.0
    %3293 = vmatpush.msra.mxu0 %v2663
    %3294 = vmatpush.msra.mxu0 %v2662
    %3295 = vmatpush.msra.mxu0 %v2661
    %3296 = vmatpush.msra.mxu0 %v2660
    %3297 = vmatpush.msra.mxu0 %v2659
    %3298 = vmatpush.msra.mxu0 %v2658
    %3299 = vmatpush.msra.mxu0 %v2657
    %3300 = vmatpush.msra.mxu0 %v2656
    %3301 = vmatmul.f32.gmra.mxu0 %v3283
    %v3302 = vpop.f32.mrf.mxu0
    %v3303 = vadd.f32 %v2664, %v3302
    %3304 = vdwg.mxu0
    %v3305 = vtanh.pop %v3303
    %v3307 = vsel %vm242, %v3305, 0
    %3309 = vmatpush.msra.mxu0 0.0
    %3310 = vmatpush.msra.mxu0 0.0
    %3311 = vmatpush.msra.mxu0 0.0
    %3312 = vmatpush.msra.mxu0 0.0
    %3313 = vmatpush.msra.mxu0 0.0
    %3314 = vmatpush.msra.mxu0 0.0
    %3315 = vmatpush.msra.mxu0 0.0
    %3316 = vmatpush.msra.mxu0 0.0
    %3317 = vmatpush.msra.mxu0 0.0
    %3318 = vmatpush.msra.mxu0 0.0
    %3319 = vmatpush.msra.mxu0 0.0
    %3320 = vmatpush.msra.mxu0 0.0
    %3321 = vmatpush.msra.mxu0 %v2668
    %3322 = vmatpush.msra.mxu0 %v2667
    %3323 = vmatpush.msra.mxu0 %v2666
    %3324 = vmatpush.msra.mxu0 %v2665
    %3325 = vmatmul.f32.gmra.mxu0 %v3307
    %v3326 = vpop.f32.mrf.mxu0
    %v3327 = vadd.f32 %v2669, %v3326
    %3328 = vdwg.mxu0
    %v3329 = vsel %vm2993, %v3327, -inf
    %3330 = vmax.xlane.f32.xlu0 %v3329
    %v3331 = vpop.xlane.xlu0 %3330
    %v3332 = vsub.f32 %v3327, %v3331
    %v3333 = vmul.f32 %v3332, 1.442695
    %v3334 = vpow.pop %v3333
    %v3335 = vsel %vm2993, %v3334, 0.0
    %3336 = vadd.xlane.f32.xlu0 %v3335
    %v3337 = vpop.xlane.xlu0 %3336
    %v3338 = vrcp.pop %v3337
    %vm3339 = vcmp.eq.f32.partialorder %v3327, %v3331
    %v3340 = vsel %vm3339, %v145, 64
    %v3341 = vsel %vm2993, %v3340, 2147483647
    %v3342 = vand.u32 %v3341, 65535
    %v3343 = vshra.s32 %v3341, 16
    %v3344 = vcvt.s32.f32 %v3342
    %v3345 = vcvt.s32.f32 %v3343
    %3346 = vmin.xlane.f32.xlu0 %v3345
    %v3347 = vpop.xlane.xlu0 %3346
    %vm3348 = vcmp.eq.f32.partialorder %v3345, %v3347
    %v3349 = vsel %vm3348, %v3344, inf
    %3350 = vmin.xlane.f32.xlu0 %v3349
    %v3351 = vpop.xlane.xlu0 %3350
    %v3352 = vcvt.f32.s32 %v3351
    %v3353 = vcvt.f32.s32 %v3347
    %v3354 = vshll.u32 %v3353, 16
    %v3355 = vadd.s32 %v3354, %v3352
    %v3356 = vsel %vm2670, %v3355, %v3022
    %v3357 = vsel %vm2670, %v3338, %v3023
    %vm3358 = vcmp.eq.s32.totalorder %v145, %v3355
    %v3359 = vsel %vm3358, 1, 0
    %v3360 = vcvt.s32.f32 %v3359
    %v3362 = vsel %vm200, %v3360, 0
    %3364 = vmatpush.msra.mxu0 0.0
    %3365 = vmatpush.msra.mxu0 0.0
    %3366 = vmatpush.msra.mxu0 0.0
    %3367 = vmatpush.msra.mxu0 0.0
    %3368 = vmatpush.msra.mxu0 0.0
    %3369 = vmatpush.msra.mxu0 0.0
    %3370 = vmatpush.msra.mxu0 0.0
    %3371 = vmatpush.msra.mxu0 0.0
    %3372 = vmatpush.msra.mxu0 %v143
    %3373 = vmatpush.msra.mxu0 %v142
    %3374 = vmatpush.msra.mxu0 %v141
    %3375 = vmatpush.msra.mxu0 %v140
    %3376 = vmatpush.msra.mxu0 %v139
    %3377 = vmatpush.msra.mxu0 %v138
    %3378 = vmatpush.msra.mxu0 %v137
    %3379 = vmatpush.msra.mxu0 %v136
    %3380 = vmatmul.f32.gmra.mxu0 %v3362
    %v3381 = vpop.f32.mrf.mxu0
    %v3382 = vadd.f32 0.0, %v3381
    %3383 = vdwg.mxu0
    %v3385 = vsel %vm242, %v3382, 0
    %3387 = vmatpush.msra.mxu0 0.0
    %3388 = vmatpush.msra.mxu0 0.0
    %3389 = vmatpush.msra.mxu0 0.0
    %3390 = vmatpush.msra.mxu0 0.0
    %3391 = vmatpush.msra.mxu0 0.0
    %3392 = vmatpush.msra.mxu0 0.0
    %3393 = vmatpush.msra.mxu0 0.0
    %3394 = vmatpush.msra.mxu0 0.0
    %3395 = vmatpush.msra.mxu0 0.0
    %3396 = vmatpush.msra.mxu0 0.0
    %3397 = vmatpush.msra.mxu0 0.0
    %3398 = vmatpush.msra.mxu0 0.0
    %3399 = vmatpush.msra.mxu0 %v2637
    %3400 = vmatpush.msra.mxu0 %v2636
    %3401 = vmatpush.msra.mxu0 %v2635
    %3402 = vmatpush.msra.mxu0 %v2634
    %3403 = vmatmul.f32.gmra.mxu0 %v3385
    %v3404 = vpop.f32.mrf.mxu0
    %v3405 = vadd.f32 %v2651, %v3404
    %3406 = vdwg.mxu0
    %3407 = vmatpush.msra.mxu0 0.0
    %3408 = vmatpush.msra.mxu0 0.0
    %3409 = vmatpush.msra.mxu0 0.0
    %3410 = vmatpush.msra.mxu0 0.0
    %3411 = vmatpush.msra.mxu0 0.0
    %3412 = vmatpush.msra.mxu0 0.0
    %3413 = vmatpush.msra.mxu0 0.0
    %3414 = vmatpush.msra.mxu0 0.0
    %3415 = vmatpush.msra.mxu0 0.0
    %3416 = vmatpush.msra.mxu0 0.0
    %3417 = vmatpush.msra.mxu0 0.0
    %3418 = vmatpush.msra.mxu0 0.0
    %3419 = vmatpush.msra.mxu0 %v2641
    %3420 = vmatpush.msra.mxu0 %v2640
    %3421 = vmatpush.msra.mxu0 %v2639
    %3422 = vmatpush.msra.mxu0 %v2638
    %3423 = vmatmul.f32.gmra.mxu0 %v3135
    %v3424 = vpop.f32.mrf.mxu0
    %v3425 = vadd.f32 %v2652, %v3424
    %3426 = vdwg.mxu0
    %v3427 = vadd.f32 %v3405, %v3425
    %v3428 = vxor.u32 %v3427, 2147483648
    %v3429 = vmul.f32 %v3428, 1.442695
    %v3430 = vpow.pop %v3429
    %v3431 = vadd.f32 %v3430, 1.0
    %v3432 = vrcp.pop %v3431
    %v3433 = vmul.f32 %v3431, %v3432
    %v3434 = vsub.f32 1.0, %v3433
    %v3435 = vmul.f32 %v3432, %v3434
    %v3436 = vadd.f32 %v3432, %v3435
    %vm3437 = vweird.f32 %v3431
    %vm3438 = vweird.f32 %v3432
    %vm3439 = vmor %vm3437, %vm3438
    %v3440 = vsel %vm3439, %v3432, %v3436
    %v3441 = vand.u32 2147483647, %v3431
    %vm3442 = vcmp.eq.f32.partialorder %v3441, 8.507059e+37
    %v3443 = vand.u32 %v3431, 2147483648
    %v3444 = vor.u32 1.1754944e-38, %v3443
    %v3445 = vsel %vm3442, %v3444, %v3440
    %v3446 = vmul.f32 1.0, %v3445
    %3448 = vrot.lane.b32.xlu0 %v3425, 64
    %v3449 = vpop.permute.xlu0 %3448
    %v3451 = vmul.f32 %v3446, %v3449
    %3453 = vrot.lane.b32.xlu0 %v3451, 64
    %v3454 = vpop.permute.xlu0 %3453
    %v3456 = vadd.f32 %v3405, %v3454
    %v3457 = vtanh.pop %v3456
    %v3458 = vsub.f32 1.0, %v3446
    %3460 = vrot.lane.b32.xlu0 %v3457, 96
    %v3461 = vpop.permute.xlu0 %3460
    %v3463 = vmul.f32 %v3458, %v3461
    %v3464 = vmul.f32 %v3446, %v3131
    %v3465 = vadd.f32 %v3463, %v3464
    %3467 = vrot.lane.b32.xlu0 %v3465, 96
    %v3468 = vpop.permute.xlu0 %3467
    %v3469 = vsel %vm242, %v3468, 0
    %3471 = vmatpush.msra.mxu0 0.0
    %3472 = vmatpush.msra.mxu0 0.0
    %3473 = vmatpush.msra.mxu0 0.0
    %3474 = vmatpush.msra.mxu0 0.0
    %3475 = vmatpush.msra.mxu0 0.0
    %3476 = vmatpush.msra.mxu0 0.0
    %3477 = vmatpush.msra.mxu0 0.0
    %3478 = vmatpush.msra.mxu0 0.0
    %3479 = vmatpush.msra.mxu0 0.0
    %3480 = vmatpush.msra.mxu0 0.0
    %3481 = vmatpush.msra.mxu0 0.0
    %3482 = vmatpush.msra.mxu0 0.0
    %3483 = vmatpush.msra.mxu0 %v2646
    %3484 = vmatpush.msra.mxu0 %v2645
    %3485 = vmatpush.msra.mxu0 %v2644
    %3486 = vmatpush.msra.mxu0 %v2643
    %3487 = vmatmul.f32.gmra.mxu0 %v3469
    %v3488 = vpop.f32.mrf.mxu0
    %v3489 = vadd.f32 %v2654, %v3488
    %3490 = vdwg.mxu0
    %3491 = vmatpush.msra.mxu0 0.0
    %3492 = vmatpush.msra.mxu0 0.0
    %3493 = vmatpush.msra.mxu0 0.0
    %3494 = vmatpush.msra.mxu0 0.0
    %3495 = vmatpush.msra.mxu0 0.0
    %3496 = vmatpush.msra.mxu0 0.0
    %3497 = vmatpush.msra.mxu0 0.0
    %3498 = vmatpush.msra.mxu0 0.0
    %3499 = vmatpush.msra.mxu0 0.0
    %3500 = vmatpush.msra.mxu0 0.0
    %3501 = vmatpush.msra.mxu0 0.0
    %3502 = vmatpush.msra.mxu0 0.0
    %3503 = vmatpush.msra.mxu0 %v2650
    %3504 = vmatpush.msra.mxu0 %v2649
    %3505 = vmatpush.msra.mxu0 %v2648
    %3506 = vmatpush.msra.mxu0 %v2647
    %3507 = vmatmul.f32.gmra.mxu0 %v3219
    %v3508 = vpop.f32.mrf.mxu0
    %v3509 = vadd.f32 %v2655, %v3508
    %3510 = vdwg.mxu0
    %v3511 = vadd.f32 %v3489, %v3509
    %v3512 = vxor.u32 %v3511, 2147483648
    %v3513 = vmul.f32 %v3512, 1.442695
    %v3514 = vpow.pop %v3513
    %v3515 = vadd.f32 %v3514, 1.0
    %v3516 = vrcp.pop %v3515
    %v3517 = vmul.f32 %v3515, %v3516
    %v3518 = vsub.f32 1.0, %v3517
    %v3519 = vmul.f32 %v3516, %v3518
    %v3520 = vadd.f32 %v3516, %v3519
    %vm3521 = vweird.f32 %v3515
    %vm3522 = vweird.f32 %v3516
    %vm3523 = vmor %vm3521, %vm3522
    %v3524 = vsel %vm3523, %v3516, %v3520
    %v3525 = vand.u32 2147483647, %v3515
    %vm3526 = vcmp.eq.f32.partialorder %v3525, 8.507059e+37
    %v3527 = vand.u32 %v3515, 2147483648
    %v3528 = vor.u32 1.1754944e-38, %v3527
    %v3529 = vsel %vm3526, %v3528, %v3524
    %v3530 = vmul.f32 1.0, %v3529
    %3532 = vrot.lane.b32.xlu0 %v3509, 64
    %v3533 = vpop.permute.xlu0 %3532
    %v3535 = vmul.f32 %v3530, %v3533
    %3537 = vrot.lane.b32.xlu0 %v3535, 64
    %v3538 = vpop.permute.xlu0 %3537
    %v3540 = vadd.f32 %v3489, %v3538
    %v3541 = vtanh.pop %v3540
    %v3542 = vsub.f32 1.0, %v3530
    %3544 = vrot.lane.b32.xlu0 %v3541, 96
    %v3545 = vpop.permute.xlu0 %3544
    %v3547 = vmul.f32 %v3542, %v3545
    %v3548 = vmul.f32 %v3530, %v3215
    %v3549 = vadd.f32 %v3547, %v3548
    %3551 = vrot.lane.b32.xlu0 %v3549, 96
    %v3552 = vpop.permute.xlu0 %3551
    %v3553 = vsel %vm242, %v3552, 0
    %3555 = vmatpush.xpose.msra.mxu0 0.0
    %3556 = vmatpush.xpose.msra.mxu0 0.0
    %3557 = vmatpush.xpose.msra.mxu0 0.0
    %3558 = vmatpush.xpose.msra.mxu0 0.0
    %3559 = vmatpush.xpose.msra.mxu0 0.0
    %3560 = vmatpush.xpose.msra.mxu0 0.0
    %3561 = vmatpush.xpose.msra.mxu0 0.0
    %3562 = vmatpush.xpose.msra.mxu0 0.0
    %3563 = vmatpush.xpose.msra.mxu0 0.0
    %3564 = vmatpush.xpose.msra.mxu0 0.0
    %3565 = vmatpush.xpose.msra.mxu0 0.0
    %3566 = vmatpush.xpose.msra.mxu0 0.0
    %3567 = vmatpush.xpose.msra.mxu0 0.0
    %3568 = vmatpush.xpose.msra.mxu0 0.0
    %3569 = vmatpush.xpose.msra.mxu0 0.0
    %3570 = vmatpush.xpose.msra.mxu0 %v2879
    %3571 = vmatmul.f32.gmra.mxu0 %v3553
    %v3572 = vpop.f32.mrf.mxu0
    %v3573 = vadd.f32 0.0, %v3572
    %3574 = vdwg.mxu0
    %v3575 = vsel %vm2902, %v3573, -1e+30
    %v3576 = vsel %vm2904, %v3575, -inf
    %3577 = vmax.xlane.f32.xlu0 %v3576
    %v3578 = vpop.xlane.xlu0 %3577
    %v3579 = vsub.f32 %v3575, %v3578
    %v3580 = vmul.f32 %v3579, 1.442695
    %v3581 = vpow.pop %v3580
    %v3582 = vsel %vm2904, %v3581, 0.0
    %3583 = vadd.xlane.f32.xlu0 %v3582
    %v3584 = vpop.xlane.xlu0 %3583
    %v3585 = vrcp.pop %v3584
    %v3586 = vmul.f32 %v3581, %v3585
    %v3588 = vsel %vm2916, %v3586, 0
    %3590 = vmatpush.msra.mxu0 0.0
    %3591 = vmatpush.msra.mxu0 0.0
    %3592 = vmatpush.msra.mxu0 0.0
    %3593 = vmatpush.msra.mxu0 0.0
    %3594 = vmatpush.msra.mxu0 0.0
    %3595 = vmatpush.msra.mxu0 0.0
    %3596 = vmatpush.msra.mxu0 0.0
    %3597 = vmatpush.msra.mxu0 0.0
    %3598 = vmatpush.msra.mxu0 0.0
    %3599 = vmatpush.msra.mxu0 0.0
    %3600 = vmatpush.msra.mxu0 0.0
    %3601 = vmatpush.msra.mxu0 0.0
    %3602 = vmatpush.msra.mxu0 0.0
    %3603 = vmatpush.msra.mxu0 0.0
    %3604 = vmatpush.msra.mxu0 0.0
    %3605 = vmatpush.msra.mxu0 %v2633
    %3606 = vmatmul.f32.gmra.mxu0 %v3588
    %v3607 = vpop.f32.mrf.mxu0
    %v3608 = vadd.f32 0.0, %v3607
    %3609 = vdwg.mxu0
    %3612 = vrot.lane.b32.xlu0 %v3608, 32
    %v3613 = vpop.permute.xlu0 %3612
    %v3615 = vsel %vm242, %v3552, %v3613
    %v3617 = vsel %vm200, %v3615, 0
    %3619 = vmatpush.msra.mxu0 0.0
    %3620 = vmatpush.msra.mxu0 0.0
    %3621 = vmatpush.msra.mxu0 0.0
    %3622 = vmatpush.msra.mxu0 0.0
    %3623 = vmatpush.msra.mxu0 0.0
    %3624 = vmatpush.msra.mxu0 0.0
    %3625 = vmatpush.msra.mxu0 0.0
    %3626 = vmatpush.msra.mxu0 0.0
    %3627 = vmatpush.msra.mxu0 %v2663
    %3628 = vmatpush.msra.mxu0 %v2662
    %3629 = vmatpush.msra.mxu0 %v2661
    %3630 = vmatpush.msra.mxu0 %v2660
    %3631 = vmatpush.msra.mxu0 %v2659
    %3632 = vmatpush.msra.mxu0 %v2658
    %3633 = vmatpush.msra.mxu0 %v2657
    %3634 = vmatpush.msra.mxu0 %v2656
    %3635 = vmatmul.f32.gmra.mxu0 %v3617
    %v3636 = vpop.f32.mrf.mxu0
    %v3637 = vadd.f32 %v2664, %v3636
    %3638 = vdwg.mxu0
    %v3639 = vtanh.pop %v3637
    %v3641 = vsel %vm242, %v3639, 0
    %3643 = vmatpush.msra.mxu0 0.0
    %3644 = vmatpush.msra.mxu0 0.0
    %3645 = vmatpush.msra.mxu0 0.0
    %3646 = vmatpush.msra.mxu0 0.0
    %3647 = vmatpush.msra.mxu0 0.0
    %3648 = vmatpush.msra.mxu0 0.0
    %3649 = vmatpush.msra.mxu0 0.0
    %3650 = vmatpush.msra.mxu0 0.0
    %3651 = vmatpush.msra.mxu0 0.0
    %3652 = vmatpush.msra.mxu0 0.0
    %3653 = vmatpush.msra.mxu0 0.0
    %3654 = vmatpush.msra.mxu0 0.0
    %3655 = vmatpush.msra.mxu0 %v2668
    %3656 = vmatpush.msra.mxu0 %v2667
    %3657 = vmatpush.msra.mxu0 %v2666
    %3658 = vmatpush.msra.mxu0 %v2665
    %3659 = vmatmul.f32.gmra.mxu0 %v3641
    %v3660 = vpop.f32.mrf.mxu0
    %v3661 = vadd.f32 %v2669, %v3660
    %3662 = vdwg.mxu0
    %v3663 = vsel %vm2993, %v3661, -inf
    %3664 = vmax.xlane.f32.xlu0 %v3663
    %v3665 = vpop.xlane.xlu0 %3664
    %v3666 = vsub.f32 %v3661, %v3665
    %v3667 = vmul.f32 %v3666, 1.442695
    %v3668 = vpow.pop %v3667
    %v3669 = vsel %vm2993, %v3668, 0.0
    %3670 = vadd.xlane.f32.xlu0 %v3669
    %v3671 = vpop.xlane.xlu0 %3670
    %v3672 = vrcp.pop %v3671
    %vm3673 = vcmp.eq.f32.partialorder %v3661, %v3665
    %v3674 = vsel %vm3673, %v145, 64
    %v3675 = vsel %vm2993, %v3674, 2147483647
    %v3676 = vand.u32 %v3675, 65535
    %v3677 = vshra.s32 %v3675, 16
    %v3678 = vcvt.s32.f32 %v3676
    %v3679 = vcvt.s32.f32 %v3677
    %3680 = vmin.xlane.f32.xlu0 %v3679
    %v3681 = vpop.xlane.xlu0 %3680
    %vm3682 = vcmp.eq.f32.partialorder %v3679, %v3681
    %v3683 = vsel %vm3682, %v3678, inf
    %3684 = vmin.xlane.f32.xlu0 %v3683
    %v3685 = vpop.xlane.xlu0 %3684
    %v3686 = vcvt.f32.s32 %v3685
    %v3687 = vcvt.f32.s32 %v3681
    %v3688 = vshll.u32 %v3687, 16
    %v3689 = vadd.s32 %v3688, %v3686
    %vm3690 = vcmp.eq.s32.totalorder %v145, 2
    %v3691 = vsel %vm3690, %v3689, %v3356
    %v3692 = vsel %vm3690, %v3672, %v3357
    %vm3693 = vcmp.eq.s32.totalorder %v145, %v3689
    %v3694 = vsel %vm3693, 1, 0
    %v3695 = vcvt.s32.f32 %v3694
    %v3697 = vsel %vm200, %v3695, 0
    %3699 = vmatpush.msra.mxu0 0.0
    %3700 = vmatpush.msra.mxu0 0.0
    %3701 = vmatpush.msra.mxu0 0.0
    %3702 = vmatpush.msra.mxu0 0.0
    %3703 = vmatpush.msra.mxu0 0.0
    %3704 = vmatpush.msra.mxu0 0.0
    %3705 = vmatpush.msra.mxu0 0.0
    %3706 = vmatpush.msra.mxu0 0.0
    %3707 = vmatpush.msra.mxu0 %v143
    %3708 = vmatpush.msra.mxu0 %v142
    %3709 = vmatpush.msra.mxu0 %v141
    %3710 = vmatpush.msra.mxu0 %v140
    %3711 = vmatpush.msra.mxu0 %v139
    %3712 = vmatpush.msra.mxu0 %v138
    %3713 = vmatpush.msra.mxu0 %v137
    %3714 = vmatpush.msra.mxu0 %v136
    %3715 = vmatmul.f32.gmra.mxu0 %v3697
    %v3716 = vpop.f32.mrf.mxu0
    %v3717 = vadd.f32 0.0, %v3716
    %3718 = vdwg.mxu0
    %v3720 = vsel %vm242, %v3717, 0
    %3722 = vmatpush.msra.mxu0 0.0
    %3723 = vmatpush.msra.mxu0 0.0
    %3724 = vmatpush.msra.mxu0 0.0
    %3725 = vmatpush.msra.mxu0 0.0
    %3726 = vmatpush.msra.mxu0 0.0
    %3727 = vmatpush.msra.mxu0 0.0
    %3728 = vmatpush.msra.mxu0 0.0
    %3729 = vmatpush.msra.mxu0 0.0
    %3730 = vmatpush.msra.mxu0 0.0
    %3731 = vmatpush.msra.mxu0 0.0
    %3732 = vmatpush.msra.mxu0 0.0
    %3733 = vmatpush.msra.mxu0 0.0
    %3734 = vmatpush.msra.mxu0 %v2637
    %3735 = vmatpush.msra.mxu0 %v2636
    %3736 = vmatpush.msra.mxu0 %v2635
    %3737 = vmatpush.msra.mxu0 %v2634
    %3738 = vmatmul.f32.gmra.mxu0 %v3720
    %v3739 = vpop.f32.mrf.mxu0
    %v3740 = vadd.f32 %v2651, %v3739
    %3741 = vdwg.mxu0
    %3742 = vmatpush.msra.mxu0 0.0
    %3743 = vmatpush.msra.mxu0 0.0
    %3744 = vmatpush.msra.mxu0 0.0
    %3745 = vmatpush.msra.mxu0 0.0
    %3746 = vmatpush.msra.mxu0 0.0
    %3747 = vmatpush.msra.mxu0 0.0
    %3748 = vmatpush.msra.mxu0 0.0
    %3749 = vmatpush.msra.mxu0 0.0
    %3750 = vmatpush.msra.mxu0 0.0
    %3751 = vmatpush.msra.mxu0 0.0
    %3752 = vmatpush.msra.mxu0 0.0
    %3753 = vmatpush.msra.mxu0 0.0
    %3754 = vmatpush.msra.mxu0 %v2641
    %3755 = vmatpush.msra.mxu0 %v2640
    %3756 = vmatpush.msra.mxu0 %v2639
    %3757 = vmatpush.msra.mxu0 %v2638
    %3758 = vmatmul.f32.gmra.mxu0 %v3469
    %v3759 = vpop.f32.mrf.mxu0
    %v3760 = vadd.f32 %v2652, %v3759
    %3761 = vdwg.mxu0
    %v3762 = vadd.f32 %v3740, %v3760
    %v3763 = vxor.u32 %v3762, 2147483648
    %v3764 = vmul.f32 %v3763, 1.442695
    %v3765 = vpow.pop %v3764
    %v3766 = vadd.f32 %v3765, 1.0
    %v3767 = vrcp.pop %v3766
    %v3768 = vmul.f32 %v3766, %v3767
    %v3769 = vsub.f32 1.0, %v3768
    %v3770 = vmul.f32 %v3767, %v3769
    %v3771 = vadd.f32 %v3767, %v3770
    %vm3772 = vweird.f32 %v3766
    %vm3773 = vweird.f32 %v3767
    %vm3774 = vmor %vm3772, %vm3773
    %v3775 = vsel %vm3774, %v3767, %v3771
    %v3776 = vand.u32 2147483647, %v3766
    %vm3777 = vcmp.eq.f32.partialorder %v3776, 8.507059e+37
    %v3778 = vand.u32 %v3766, 2147483648
    %v3779 = vor.u32 1.1754944e-38, %v3778
    %v3780 = vsel %vm3777, %v3779, %v3775
    %v3781 = vmul.f32 1.0, %v3780
    %3783 = vrot.lane.b32.xlu0 %v3760, 64
    %v3784 = vpop.permute.xlu0 %3783
    %v3786 = vmul.f32 %v3781, %v3784
    %3788 = vrot.lane.b32.xlu0 %v3786, 64
    %v3789 = vpop.permute.xlu0 %3788
    %v3791 = vadd.f32 %v3740, %v3789
    %v3792 = vtanh.pop %v3791
    %v3793 = vsub.f32 1.0, %v3781
    %3795 = vrot.lane.b32.xlu0 %v3792, 96
    %v3796 = vpop.permute.xlu0 %3795
    %v3798 = vmul.f32 %v3793, %v3796
    %v3799 = vmul.f32 %v3781, %v3465
    %v3800 = vadd.f32 %v3798, %v3799
    %3802 = vrot.lane.b32.xlu0 %v3800, 96
    %v3803 = vpop.permute.xlu0 %3802
    %v3804 = vsel %vm242, %v3803, 0
    %3806 = vmatpush.msra.mxu0 0.0
    %3807 = vmatpush.msra.mxu0 0.0
    %3808 = vmatpush.msra.mxu0 0.0
    %3809 = vmatpush.msra.mxu0 0.0
    %3810 = vmatpush.msra.mxu0 0.0
    %3811 = vmatpush.msra.mxu0 0.0
    %3812 = vmatpush.msra.mxu0 0.0
    %3813 = vmatpush.msra.mxu0 0.0
    %3814 = vmatpush.msra.mxu0 0.0
    %3815 = vmatpush.msra.mxu0 0.0
    %3816 = vmatpush.msra.mxu0 0.0
    %3817 = vmatpush.msra.mxu0 0.0
    %3818 = vmatpush.msra.mxu0 %v2646
    %3819 = vmatpush.msra.mxu0 %v2645
    %3820 = vmatpush.msra.mxu0 %v2644
    %3821 = vmatpush.msra.mxu0 %v2643
    %3822 = vmatmul.f32.gmra.mxu0 %v3804
    %v3823 = vpop.f32.mrf.mxu0
    %v3824 = vadd.f32 %v2654, %v3823
    %3825 = vdwg.mxu0
    %3826 = vmatpush.msra.mxu0 0.0
    %3827 = vmatpush.msra.mxu0 0.0
    %3828 = vmatpush.msra.mxu0 0.0
    %3829 = vmatpush.msra.mxu0 0.0
    %3830 = vmatpush.msra.mxu0 0.0
    %3831 = vmatpush.msra.mxu0 0.0
    %3832 = vmatpush.msra.mxu0 0.0
    %3833 = vmatpush.msra.mxu0 0.0
    %3834 = vmatpush.msra.mxu0 0.0
    %3835 = vmatpush.msra.mxu0 0.0
    %3836 = vmatpush.msra.mxu0 0.0
    %3837 = vmatpush.msra.mxu0 0.0
    %3838 = vmatpush.msra.mxu0 %v2650
    %3839 = vmatpush.msra.mxu0 %v2649
    %3840 = vmatpush.msra.mxu0 %v2648
    %3841 = vmatpush.msra.mxu0 %v2647
    %3842 = vmatmul.f32.gmra.mxu0 %v3553
    %v3843 = vpop.f32.mrf.mxu0
    %v3844 = vadd.f32 %v2655, %v3843
    %3845 = vdwg.mxu0
    %v3846 = vadd.f32 %v3824, %v3844
    %v3847 = vxor.u32 %v3846, 2147483648
    %v3848 = vmul.f32 %v3847, 1.442695
    %v3849 = vpow.pop %v3848
    %v3850 = vadd.f32 %v3849, 1.0
    %v3851 = vrcp.pop %v3850
    %v3852 = vmul.f32 %v3850, %v3851
    %v3853 = vsub.f32 1.0, %v3852
    %v3854 = vmul.f32 %v3851, %v3853
    %v3855 = vadd.f32 %v3851, %v3854
    %vm3856 = vweird.f32 %v3850
    %vm3857 = vweird.f32 %v3851
    %vm3858 = vmor %vm3856, %vm3857
    %v3859 = vsel %vm3858, %v3851, %v3855
    %v3860 = vand.u32 2147483647, %v3850
    %vm3861 = vcmp.eq.f32.partialorder %v3860, 8.507059e+37
    %v3862 = vand.u32 %v3850, 2147483648
    %v3863 = vor.u32 1.1754944e-38, %v3862
    %v3864 = vsel %vm3861, %v3863, %v3859
    %v3865 = vmul.f32 1.0, %v3864
    %3867 = vrot.lane.b32.xlu0 %v3844, 64
    %v3868 = vpop.permute.xlu0 %3867
    %v3870 = vmul.f32 %v3865, %v3868
    %3872 = vrot.lane.b32.xlu0 %v3870, 64
    %v3873 = vpop.permute.xlu0 %3872
    %v3875 = vadd.f32 %v3824, %v3873
    %v3876 = vtanh.pop %v3875
    %v3877 = vsub.f32 1.0, %v3865
    %3879 = vrot.lane.b32.xlu0 %v3876, 96
    %v3880 = vpop.permute.xlu0 %3879
    %v3882 = vmul.f32 %v3877, %v3880
    %v3883 = vmul.f32 %v3865, %v3549
    %v3884 = vadd.f32 %v3882, %v3883
    %3886 = vrot.lane.b32.xlu0 %v3884, 96
    %v3887 = vpop.permute.xlu0 %3886
    %v3888 = vsel %vm242, %v3887, 0
    %3890 = vmatpush.xpose.msra.mxu0 0.0
    %3891 = vmatpush.xpose.msra.mxu0 0.0
    %3892 = vmatpush.xpose.msra.mxu0 0.0
    %3893 = vmatpush.xpose.msra.mxu0 0.0
    %3894 = vmatpush.xpose.msra.mxu0 0.0
    %3895 = vmatpush.xpose.msra.mxu0 0.0
    %3896 = vmatpush.xpose.msra.mxu0 0.0
    %3897 = vmatpush.xpose.msra.mxu0 0.0
    %3898 = vmatpush.xpose.msra.mxu0 0.0
    %3899 = vmatpush.xpose.msra.mxu0 0.0
    %3900 = vmatpush.xpose.msra.mxu0 0.0
    %3901 = vmatpush.xpose.msra.mxu0 0.0
    %3902 = vmatpush.xpose.msra.mxu0 0.0
    %3903 = vmatpush.xpose.msra.mxu0 0.0
    %3904 = vmatpush.xpose.msra.mxu0 0.0
    %3905 = vmatpush.xpose.msra.mxu0 %v2879
    %3906 = vmatmul.f32.gmra.mxu0 %v3888
    %v3907 = vpop.f32.mrf.mxu0
    %v3908 = vadd.f32 0.0, %v3907
    %3909 = vdwg.mxu0
    %v3910 = vsel %vm2902, %v3908, -1e+30
    %v3911 = vsel %vm2904, %v3910, -inf
    %3912 = vmax.xlane.f32.xlu0 %v3911
    %v3913 = vpop.xlane.xlu0 %3912
    %v3914 = vsub.f32 %v3910, %v3913
    %v3915 = vmul.f32 %v3914, 1.442695
    %v3916 = vpow.pop %v3915
    %v3917 = vsel %vm2904, %v3916, 0.0
    %3918 = vadd.xlane.f32.xlu0 %v3917
    %v3919 = vpop.xlane.xlu0 %3918
    %v3920 = vrcp.pop %v3919
    %v3921 = vmul.f32 %v3916, %v3920
    %v3923 = vsel %vm2916, %v3921, 0
    %3925 = vmatpush.msra.mxu0 0.0
    %3926 = vmatpush.msra.mxu0 0.0
    %3927 = vmatpush.msra.mxu0 0.0
    %3928 = vmatpush.msra.mxu0 0.0
    %3929 = vmatpush.msra.mxu0 0.0
    %3930 = vmatpush.msra.mxu0 0.0
    %3931 = vmatpush.msra.mxu0 0.0
    %3932 = vmatpush.msra.mxu0 0.0
    %3933 = vmatpush.msra.mxu0 0.0
    %3934 = vmatpush.msra.mxu0 0.0
    %3935 = vmatpush.msra.mxu0 0.0
    %3936 = vmatpush.msra.mxu0 0.0
    %3937 = vmatpush.msra.mxu0 0.0
    %3938 = vmatpush.msra.mxu0 0.0
    %3939 = vmatpush.msra.mxu0 0.0
    %3940 = vmatpush.msra.mxu0 %v2633
    %3941 = vmatmul.f32.gmra.mxu0 %v3923
    %v3942 = vpop.f32.mrf.mxu0
    %v3943 = vadd.f32 0.0, %v3942
    %3944 = vdwg.mxu0
    %3947 = vrot.lane.b32.xlu0 %v3943, 32
    %v3948 = vpop.permute.xlu0 %3947
    %v3950 = vsel %vm242, %v3887, %v3948
    %v3952 = vsel %vm200, %v3950, 0
    %3954 = vmatpush.msra.mxu0 0.0
    %3955 = vmatpush.msra.mxu0 0.0
    %3956 = vmatpush.msra.mxu0 0.0
    %3957 = vmatpush.msra.mxu0 0.0
    %3958 = vmatpush.msra.mxu0 0.0
    %3959 = vmatpush.msra.mxu0 0.0
    %3960 = vmatpush.msra.mxu0 0.0
    %3961 = vmatpush.msra.mxu0 0.0
    %3962 = vmatpush.msra.mxu0 %v2663
    %3963 = vmatpush.msra.mxu0 %v2662
    %3964 = vmatpush.msra.mxu0 %v2661
    %3965 = vmatpush.msra.mxu0 %v2660
    %3966 = vmatpush.msra.mxu0 %v2659
    %3967 = vmatpush.msra.mxu0 %v2658
    %3968 = vmatpush.msra.mxu0 %v2657
    %3969 = vmatpush.msra.mxu0 %v2656
    %3970 = vmatmul.f32.gmra.mxu0 %v3952
    %v3971 = vpop.f32.mrf.mxu0
    %v3972 = vadd.f32 %v2664, %v3971
    %3973 = vdwg.mxu0
    %v3974 = vtanh.pop %v3972
    %v3976 = vsel %vm242, %v3974, 0
    %3978 = vmatpush.msra.mxu0 0.0
    %3979 = vmatpush.msra.mxu0 0.0
    %3980 = vmatpush.msra.mxu0 0.0
    %3981 = vmatpush.msra.mxu0 0.0
    %3982 = vmatpush.msra.mxu0 0.0
    %3983 = vmatpush.msra.mxu0 0.0
    %3984 = vmatpush.msra.mxu0 0.0
    %3985 = vmatpush.msra.mxu0 0.0
    %3986 = vmatpush.msra.mxu0 0.0
    %3987 = vmatpush.msra.mxu0 0.0
    %3988 = vmatpush.msra.mxu0 0.0
    %3989 = vmatpush.msra.mxu0 0.0
    %3990 = vmatpush.msra.mxu0 %v2668
    %3991 = vmatpush.msra.mxu0 %v2667
    %3992 = vmatpush.msra.mxu0 %v2666
    %3993 = vmatpush.msra.mxu0 %v2665
    %3994 = vmatmul.f32.gmra.mxu0 %v3976
    %v3995 = vpop.f32.mrf.mxu0
    %v3996 = vadd.f32 %v2669, %v3995
    %3997 = vdwg.mxu0
    %v3998 = vsel %vm2993, %v3996, -inf
    %3999 = vmax.xlane.f32.xlu0 %v3998
    %v4000 = vpop.xlane.xlu0 %3999
    %v4001 = vsub.f32 %v3996, %v4000
    %v4002 = vmul.f32 %v4001, 1.442695
    %v4003 = vpow.pop %v4002
    %v4004 = vsel %vm2993, %v4003, 0.0
    %4005 = vadd.xlane.f32.xlu0 %v4004
    %v4006 = vpop.xlane.xlu0 %4005
    %v4007 = vrcp.pop %v4006
    %vm4008 = vcmp.eq.f32.partialorder %v3996, %v4000
    %v4009 = vsel %vm4008, %v145, 64
    %v4010 = vsel %vm2993, %v4009, 2147483647
    %v4011 = vand.u32 %v4010, 65535
    %v4012 = vshra.s32 %v4010, 16
    %v4013 = vcvt.s32.f32 %v4011
    %v4014 = vcvt.s32.f32 %v4012
    %4015 = vmin.xlane.f32.xlu0 %v4014
    %v4016 = vpop.xlane.xlu0 %4015
    %vm4017 = vcmp.eq.f32.partialorder %v4014, %v4016
    %v4018 = vsel %vm4017, %v4013, inf
    %4019 = vmin.xlane.f32.xlu0 %v4018
    %v4020 = vpop.xlane.xlu0 %4019
    %v4021 = vcvt.f32.s32 %v4020
    %v4022 = vcvt.f32.s32 %v4016
    %v4023 = vshll.u32 %v4022, 16
    %v4024 = vadd.s32 %v4023, %v4021
    %vm4025 = vcmp.eq.s32.totalorder %v145, 3
    %v4026 = vsel %vm4025, %v4024, %v3691
    %v4027 = vsel %vm4025, %v4007, %v3692
    %vm4028 = vcmp.eq.s32.totalorder %v145, %v4024
    %v4029 = vsel %vm4028, 1, 0
    %v4030 = vcvt.s32.f32 %v4029
    %v4032 = vsel %vm200, %v4030, 0
    %4034 = vmatpush.msra.mxu0 0.0
    %4035 = vmatpush.msra.mxu0 0.0
    %4036 = vmatpush.msra.mxu0 0.0
    %4037 = vmatpush.msra.mxu0 0.0
    %4038 = vmatpush.msra.mxu0 0.0
    %4039 = vmatpush.msra.mxu0 0.0
    %4040 = vmatpush.msra.mxu0 0.0
    %4041 = vmatpush.msra.mxu0 0.0
    %4042 = vmatpush.msra.mxu0 %v143
    %4043 = vmatpush.msra.mxu0 %v142
    %4044 = vmatpush.msra.mxu0 %v141
    %4045 = vmatpush.msra.mxu0 %v140
    %4046 = vmatpush.msra.mxu0 %v139
    %4047 = vmatpush.msra.mxu0 %v138
    %4048 = vmatpush.msra.mxu0 %v137
    %4049 = vmatpush.msra.mxu0 %v136
    %4050 = vmatmul.f32.gmra.mxu0 %v4032
    %v4051 = vpop.f32.mrf.mxu0
    %v4052 = vadd.f32 0.0, %v4051
    %4053 = vdwg.mxu0
    %v4055 = vsel %vm242, %v4052, 0
    %4057 = vmatpush.msra.mxu0 0.0
    %4058 = vmatpush.msra.mxu0 0.0
    %4059 = vmatpush.msra.mxu0 0.0
    %4060 = vmatpush.msra.mxu0 0.0
    %4061 = vmatpush.msra.mxu0 0.0
    %4062 = vmatpush.msra.mxu0 0.0
    %4063 = vmatpush.msra.mxu0 0.0
    %4064 = vmatpush.msra.mxu0 0.0
    %4065 = vmatpush.msra.mxu0 0.0
    %4066 = vmatpush.msra.mxu0 0.0
    %4067 = vmatpush.msra.mxu0 0.0
    %4068 = vmatpush.msra.mxu0 0.0
    %4069 = vmatpush.msra.mxu0 %v2637
    %4070 = vmatpush.msra.mxu0 %v2636
    %4071 = vmatpush.msra.mxu0 %v2635
    %4072 = vmatpush.msra.mxu0 %v2634
    %4073 = vmatmul.f32.gmra.mxu0 %v4055
    %v4074 = vpop.f32.mrf.mxu0
    %v4075 = vadd.f32 %v2651, %v4074
    %4076 = vdwg.mxu0
    %4077 = vmatpush.msra.mxu0 0.0
    %4078 = vmatpush.msra.mxu0 0.0
    %4079 = vmatpush.msra.mxu0 0.0
    %4080 = vmatpush.msra.mxu0 0.0
    %4081 = vmatpush.msra.mxu0 0.0
    %4082 = vmatpush.msra.mxu0 0.0
    %4083 = vmatpush.msra.mxu0 0.0
    %4084 = vmatpush.msra.mxu0 0.0
    %4085 = vmatpush.msra.mxu0 0.0
    %4086 = vmatpush.msra.mxu0 0.0
    %4087 = vmatpush.msra.mxu0 0.0
    %4088 = vmatpush.msra.mxu0 0.0
    %4089 = vmatpush.msra.mxu0 %v2641
    %4090 = vmatpush.msra.mxu0 %v2640
    %4091 = vmatpush.msra.mxu0 %v2639
    %4092 = vmatpush.msra.mxu0 %v2638
    %4093 = vmatmul.f32.gmra.mxu0 %v3804
    %v4094 = vpop.f32.mrf.mxu0
    %v4095 = vadd.f32 %v2652, %v4094
    %4096 = vdwg.mxu0
    %v4097 = vadd.f32 %v4075, %v4095
    %v4098 = vxor.u32 %v4097, 2147483648
    %v4099 = vmul.f32 %v4098, 1.442695
    %v4100 = vpow.pop %v4099
    %v4101 = vadd.f32 %v4100, 1.0
    %v4102 = vrcp.pop %v4101
    %v4103 = vmul.f32 %v4101, %v4102
    %v4104 = vsub.f32 1.0, %v4103
    %v4105 = vmul.f32 %v4102, %v4104
    %v4106 = vadd.f32 %v4102, %v4105
    %vm4107 = vweird.f32 %v4101
    %vm4108 = vweird.f32 %v4102
    %vm4109 = vmor %vm4107, %vm4108
    %v4110 = vsel %vm4109, %v4102, %v4106
    %v4111 = vand.u32 2147483647, %v4101
    %vm4112 = vcmp.eq.f32.partialorder %v4111, 8.507059e+37
    %v4113 = vand.u32 %v4101, 2147483648
    %v4114 = vor.u32 1.1754944e-38, %v4113
    %v4115 = vsel %vm4112, %v4114, %v4110
    %v4116 = vmul.f32 1.0, %v4115
    %4118 = vrot.lane.b32.xlu0 %v4095, 64
    %v4119 = vpop.permute.xlu0 %4118
    %v4121 = vmul.f32 %v4116, %v4119
    %4123 = vrot.lane.b32.xlu0 %v4121, 64
    %v4124 = vpop.permute.xlu0 %4123
    %v4126 = vadd.f32 %v4075, %v4124
    %v4127 = vtanh.pop %v4126
    %v4128 = vsub.f32 1.0, %v4116
    %4130 = vrot.lane.b32.xlu0 %v4127, 96
    %v4131 = vpop.permute.xlu0 %4130
    %v4133 = vmul.f32 %v4128, %v4131
    %v4134 = vmul.f32 %v4116, %v3800
    %v4135 = vadd.f32 %v4133, %v4134
    %4137 = vrot.lane.b32.xlu0 %v4135, 96
    %v4138 = vpop.permute.xlu0 %4137
    %v4139 = vsel %vm242, %v4138, 0
    %4141 = vmatpush.msra.mxu0 0.0
    %4142 = vmatpush.msra.mxu0 0.0
    %4143 = vmatpush.msra.mxu0 0.0
    %4144 = vmatpush.msra.mxu0 0.0
    %4145 = vmatpush.msra.mxu0 0.0
    %4146 = vmatpush.msra.mxu0 0.0
    %4147 = vmatpush.msra.mxu0 0.0
    %4148 = vmatpush.msra.mxu0 0.0
    %4149 = vmatpush.msra.mxu0 0.0
    %4150 = vmatpush.msra.mxu0 0.0
    %4151 = vmatpush.msra.mxu0 0.0
    %4152 = vmatpush.msra.mxu0 0.0
    %4153 = vmatpush.msra.mxu0 %v2646
    %4154 = vmatpush.msra.mxu0 %v2645
    %4155 = vmatpush.msra.mxu0 %v2644
    %4156 = vmatpush.msra.mxu0 %v2643
    %4157 = vmatmul.f32.gmra.mxu0 %v4139
    %v4158 = vpop.f32.mrf.mxu0
    %v4159 = vadd.f32 %v2654, %v4158
    %4160 = vdwg.mxu0
    %4161 = vmatpush.msra.mxu0 0.0
    %4162 = vmatpush.msra.mxu0 0.0
    %4163 = vmatpush.msra.mxu0 0.0
    %4164 = vmatpush.msra.mxu0 0.0
    %4165 = vmatpush.msra.mxu0 0.0
    %4166 = vmatpush.msra.mxu0 0.0
    %4167 = vmatpush.msra.mxu0 0.0
    %4168 = vmatpush.msra.mxu0 0.0
    %4169 = vmatpush.msra.mxu0 0.0
    %4170 = vmatpush.msra.mxu0 0.0
    %4171 = vmatpush.msra.mxu0 0.0
    %4172 = vmatpush.msra.mxu0 0.0
    %4173 = vmatpush.msra.mxu0 %v2650
    %4174 = vmatpush.msra.mxu0 %v2649
    %4175 = vmatpush.msra.mxu0 %v2648
    %4176 = vmatpush.msra.mxu0 %v2647
    %4177 = vmatmul.f32.gmra.mxu0 %v3888
    %v4178 = vpop.f32.mrf.mxu0
    %v4179 = vadd.f32 %v2655, %v4178
    %4180 = vdwg.mxu0
    %v4181 = vadd.f32 %v4159, %v4179
    %v4182 = vxor.u32 %v4181, 2147483648
    %v4183 = vmul.f32 %v4182, 1.442695
    %v4184 = vpow.pop %v4183
    %v4185 = vadd.f32 %v4184, 1.0
    %v4186 = vrcp.pop %v4185
    %v4187 = vmul.f32 %v4185, %v4186
    %v4188 = vsub.f32 1.0, %v4187
    %v4189 = vmul.f32 %v4186, %v4188
    %v4190 = vadd.f32 %v4186, %v4189
    %vm4191 = vweird.f32 %v4185
    %vm4192 = vweird.f32 %v4186
    %vm4193 = vmor %vm4191, %vm4192
    %v4194 = vsel %vm4193, %v4186, %v4190
    %v4195 = vand.u32 2147483647, %v4185
    %vm4196 = vcmp.eq.f32.partialorder %v4195, 8.507059e+37
    %v4197 = vand.u32 %v4185, 2147483648
    %v4198 = vor.u32 1.1754944e-38, %v4197
    %v4199 = vsel %vm4196, %v4198, %v4194
    %v4200 = vmul.f32 1.0, %v4199
    %4202 = vrot.lane.b32.xlu0 %v4179, 64
    %v4203 = vpop.permute.xlu0 %4202
    %v4205 = vmul.f32 %v4200, %v4203
    %4207 = vrot.lane.b32.xlu0 %v4205, 64
    %v4208 = vpop.permute.xlu0 %4207
    %v4210 = vadd.f32 %v4159, %v4208
    %v4211 = vtanh.pop %v4210
    %v4212 = vsub.f32 1.0, %v4200
    %4214 = vrot.lane.b32.xlu0 %v4211, 96
    %v4215 = vpop.permute.xlu0 %4214
    %v4217 = vmul.f32 %v4212, %v4215
    %v4218 = vmul.f32 %v4200, %v3884
    %v4219 = vadd.f32 %v4217, %v4218
    %4221 = vrot.lane.b32.xlu0 %v4219, 96
    %v4222 = vpop.permute.xlu0 %4221
    %v4223 = vsel %vm242, %v4222, 0
    %4225 = vmatpush.xpose.msra.mxu0 0.0
    %4226 = vmatpush.xpose.msra.mxu0 0.0
    %4227 = vmatpush.xpose.msra.mxu0 0.0
    %4228 = vmatpush.xpose.msra.mxu0 0.0
    %4229 = vmatpush.xpose.msra.mxu0 0.0
    %4230 = vmatpush.xpose.msra.mxu0 0.0
    %4231 = vmatpush.xpose.msra.mxu0 0.0
    %4232 = vmatpush.xpose.msra.mxu0 0.0
    %4233 = vmatpush.xpose.msra.mxu0 0.0
    %4234 = vmatpush.xpose.msra.mxu0 0.0
    %4235 = vmatpush.xpose.msra.mxu0 0.0
    %4236 = vmatpush.xpose.msra.mxu0 0.0
    %4237 = vmatpush.xpose.msra.mxu0 0.0
    %4238 = vmatpush.xpose.msra.mxu0 0.0
    %4239 = vmatpush.xpose.msra.mxu0 0.0
    %4240 = vmatpush.xpose.msra.mxu0 %v2879
    %4241 = vmatmul.f32.gmra.mxu0 %v4223
    %v4242 = vpop.f32.mrf.mxu0
    %v4243 = vadd.f32 0.0, %v4242
    %4244 = vdwg.mxu0
    %v4245 = vsel %vm2902, %v4243, -1e+30
    %v4246 = vsel %vm2904, %v4245, -inf
    %4247 = vmax.xlane.f32.xlu0 %v4246
    %v4248 = vpop.xlane.xlu0 %4247
    %v4249 = vsub.f32 %v4245, %v4248
    %v4250 = vmul.f32 %v4249, 1.442695
    %v4251 = vpow.pop %v4250
    %v4252 = vsel %vm2904, %v4251, 0.0
    %4253 = vadd.xlane.f32.xlu0 %v4252
    %v4254 = vpop.xlane.xlu0 %4253
    %v4255 = vrcp.pop %v4254
    %v4256 = vmul.f32 %v4251, %v4255
    %v4258 = vsel %vm2916, %v4256, 0
    %4260 = vmatpush.msra.mxu0 0.0
    %4261 = vmatpush.msra.mxu0 0.0
    %4262 = vmatpush.msra.mxu0 0.0
    %4263 = vmatpush.msra.mxu0 0.0
    %4264 = vmatpush.msra.mxu0 0.0
    %4265 = vmatpush.msra.mxu0 0.0
    %4266 = vmatpush.msra.mxu0 0.0
    %4267 = vmatpush.msra.mxu0 0.0
    %4268 = vmatpush.msra.mxu0 0.0
    %4269 = vmatpush.msra.mxu0 0.0
    %4270 = vmatpush.msra.mxu0 0.0
    %4271 = vmatpush.msra.mxu0 0.0
    %4272 = vmatpush.msra.mxu0 0.0
    %4273 = vmatpush.msra.mxu0 0.0
    %4274 = vmatpush.msra.mxu0 0.0
    %4275 = vmatpush.msra.mxu0 %v2633
    %4276 = vmatmul.f32.gmra.mxu0 %v4258
    %v4277 = vpop.f32.mrf.mxu0
    %v4278 = vadd.f32 0.0, %v4277
    %4279 = vdwg.mxu0
    %4282 = vrot.lane.b32.xlu0 %v4278, 32
    %v4283 = vpop.permute.xlu0 %4282
    %v4285 = vsel %vm242, %v4222, %v4283
    %v4287 = vsel %vm200, %v4285, 0
    %4289 = vmatpush.msra.mxu0 0.0
    %4290 = vmatpush.msra.mxu0 0.0
    %4291 = vmatpush.msra.mxu0 0.0
    %4292 = vmatpush.msra.mxu0 0.0
    %4293 = vmatpush.msra.mxu0 0.0
    %4294 = vmatpush.msra.mxu0 0.0
    %4295 = vmatpush.msra.mxu0 0.0
    %4296 = vmatpush.msra.mxu0 0.0
    %4297 = vmatpush.msra.mxu0 %v2663
    %4298 = vmatpush.msra.mxu0 %v2662
    %4299 = vmatpush.msra.mxu0 %v2661
    %4300 = vmatpush.msra.mxu0 %v2660
    %4301 = vmatpush.msra.mxu0 %v2659
    %4302 = vmatpush.msra.mxu0 %v2658
    %4303 = vmatpush.msra.mxu0 %v2657
    %4304 = vmatpush.msra.mxu0 %v2656
    %4305 = vmatmul.f32.gmra.mxu0 %v4287
    %v4306 = vpop.f32.mrf.mxu0
    %v4307 = vadd.f32 %v2664, %v4306
    %4308 = vdwg.mxu0
    %v4309 = vtanh.pop %v4307
    %v4311 = vsel %vm242, %v4309, 0
    %4313 = vmatpush.msra.mxu0 0.0
    %4314 = vmatpush.msra.mxu0 0.0
    %4315 = vmatpush.msra.mxu0 0.0
    %4316 = vmatpush.msra.mxu0 0.0
    %4317 = vmatpush.msra.mxu0 0.0
    %4318 = vmatpush.msra.mxu0 0.0
    %4319 = vmatpush.msra.mxu0 0.0
    %4320 = vmatpush.msra.mxu0 0.0
    %4321 = vmatpush.msra.mxu0 0.0
    %4322 = vmatpush.msra.mxu0 0.0
    %4323 = vmatpush.msra.mxu0 0.0
    %4324 = vmatpush.msra.mxu0 0.0
    %4325 = vmatpush.msra.mxu0 %v2668
    %4326 = vmatpush.msra.mxu0 %v2667
    %4327 = vmatpush.msra.mxu0 %v2666
    %4328 = vmatpush.msra.mxu0 %v2665
    %4329 = vmatmul.f32.gmra.mxu0 %v4311
    %v4330 = vpop.f32.mrf.mxu0
    %v4331 = vadd.f32 %v2669, %v4330
    %4332 = vdwg.mxu0
    %v4333 = vsel %vm2993, %v4331, -inf
    %4334 = vmax.xlane.f32.xlu0 %v4333
    %v4335 = vpop.xlane.xlu0 %4334
    %v4336 = vsub.f32 %v4331, %v4335
    %v4337 = vmul.f32 %v4336, 1.442695
    %v4338 = vpow.pop %v4337
    %v4339 = vsel %vm2993, %v4338, 0.0
    %4340 = vadd.xlane.f32.xlu0 %v4339
    %v4341 = vpop.xlane.xlu0 %4340
    %v4342 = vrcp.pop %v4341
    %vm4343 = vcmp.eq.f32.partialorder %v4331, %v4335
    %v4344 = vsel %vm4343, %v145, 64
    %v4345 = vsel %vm2993, %v4344, 2147483647
    %v4346 = vand.u32 %v4345, 65535
    %v4347 = vshra.s32 %v4345, 16
    %v4348 = vcvt.s32.f32 %v4346
    %v4349 = vcvt.s32.f32 %v4347
    %4350 = vmin.xlane.f32.xlu0 %v4349
    %v4351 = vpop.xlane.xlu0 %4350
    %vm4352 = vcmp.eq.f32.partialorder %v4349, %v4351
    %v4353 = vsel %vm4352, %v4348, inf
    %4354 = vmin.xlane.f32.xlu0 %v4353
    %v4355 = vpop.xlane.xlu0 %4354
    %v4356 = vcvt.f32.s32 %v4355
    %v4357 = vcvt.f32.s32 %v4351
    %v4358 = vshll.u32 %v4357, 16
    %v4359 = vadd.s32 %v4358, %v4356
    %vm4360 = vcmp.eq.s32.totalorder %v145, 4
    %v4361 = vsel %vm4360, %v4359, %v4026
    %v4362 = vsel %vm4360, %v4342, %v4027
    %vm4363 = vcmp.eq.s32.totalorder %v145, %v4359
    %v4364 = vsel %vm4363, 1, 0
    %v4365 = vcvt.s32.f32 %v4364
    %v4367 = vsel %vm200, %v4365, 0
    %4369 = vmatpush.msra.mxu0 0.0
    %4370 = vmatpush.msra.mxu0 0.0
    %4371 = vmatpush.msra.mxu0 0.0
    %4372 = vmatpush.msra.mxu0 0.0
    %4373 = vmatpush.msra.mxu0 0.0
    %4374 = vmatpush.msra.mxu0 0.0
    %4375 = vmatpush.msra.mxu0 0.0
    %4376 = vmatpush.msra.mxu0 0.0
    %4377 = vmatpush.msra.mxu0 %v143
    %4378 = vmatpush.msra.mxu0 %v142
    %4379 = vmatpush.msra.mxu0 %v141
    %4380 = vmatpush.msra.mxu0 %v140
    %4381 = vmatpush.msra.mxu0 %v139
    %4382 = vmatpush.msra.mxu0 %v138
    %4383 = vmatpush.msra.mxu0 %v137
    %4384 = vmatpush.msra.mxu0 %v136
    %4385 = vmatmul.f32.gmra.mxu0 %v4367
    %v4386 = vpop.f32.mrf.mxu0
    %v4387 = vadd.f32 0.0, %v4386
    %4388 = vdwg.mxu0
    %v4390 = vsel %vm242, %v4387, 0
    %4392 = vmatpush.msra.mxu0 0.0
    %4393 = vmatpush.msra.mxu0 0.0
    %4394 = vmatpush.msra.mxu0 0.0
    %4395 = vmatpush.msra.mxu0 0.0
    %4396 = vmatpush.msra.mxu0 0.0
    %4397 = vmatpush.msra.mxu0 0.0
    %4398 = vmatpush.msra.mxu0 0.0
    %4399 = vmatpush.msra.mxu0 0.0
    %4400 = vmatpush.msra.mxu0 0.0
    %4401 = vmatpush.msra.mxu0 0.0
    %4402 = vmatpush.msra.mxu0 0.0
    %4403 = vmatpush.msra.mxu0 0.0
    %4404 = vmatpush.msra.mxu0 %v2637
    %4405 = vmatpush.msra.mxu0 %v2636
    %4406 = vmatpush.msra.mxu0 %v2635
    %4407 = vmatpush.msra.mxu0 %v2634
    %4408 = vmatmul.f32.gmra.mxu0 %v4390
    %v4409 = vpop.f32.mrf.mxu0
    %v4410 = vadd.f32 %v2651, %v4409
    %4411 = vdwg.mxu0
    %4412 = vmatpush.msra.mxu0 0.0
    %4413 = vmatpush.msra.mxu0 0.0
    %4414 = vmatpush.msra.mxu0 0.0
    %4415 = vmatpush.msra.mxu0 0.0
    %4416 = vmatpush.msra.mxu0 0.0
    %4417 = vmatpush.msra.mxu0 0.0
    %4418 = vmatpush.msra.mxu0 0.0
    %4419 = vmatpush.msra.mxu0 0.0
    %4420 = vmatpush.msra.mxu0 0.0
    %4421 = vmatpush.msra.mxu0 0.0
    %4422 = vmatpush.msra.mxu0 0.0
    %4423 = vmatpush.msra.mxu0 0.0
    %4424 = vmatpush.msra.mxu0 %v2641
    %4425 = vmatpush.msra.mxu0 %v2640
    %4426 = vmatpush.msra.mxu0 %v2639
    %4427 = vmatpush.msra.mxu0 %v2638
    %4428 = vmatmul.f32.gmra.mxu0 %v4139
    %v4429 = vpop.f32.mrf.mxu0
    %v4430 = vadd.f32 %v2652, %v4429
    %4431 = vdwg.mxu0
    %v4432 = vadd.f32 %v4410, %v4430
    %v4433 = vxor.u32 %v4432, 2147483648
    %v4434 = vmul.f32 %v4433, 1.442695
    %v4435 = vpow.pop %v4434
    %v4436 = vadd.f32 %v4435, 1.0
    %v4437 = vrcp.pop %v4436
    %v4438 = vmul.f32 %v4436, %v4437
    %v4439 = vsub.f32 1.0, %v4438
    %v4440 = vmul.f32 %v4437, %v4439
    %v4441 = vadd.f32 %v4437, %v4440
    %vm4442 = vweird.f32 %v4436
    %vm4443 = vweird.f32 %v4437
    %vm4444 = vmor %vm4442, %vm4443
    %v4445 = vsel %vm4444, %v4437, %v4441
    %v4446 = vand.u32 2147483647, %v4436
    %vm4447 = vcmp.eq.f32.partialorder %v4446, 8.507059e+37
    %v4448 = vand.u32 %v4436, 2147483648
    %v4449 = vor.u32 1.1754944e-38, %v4448
    %v4450 = vsel %vm4447, %v4449, %v4445
    %v4451 = vmul.f32 1.0, %v4450
    %4453 = vrot.lane.b32.xlu0 %v4430, 64
    %v4454 = vpop.permute.xlu0 %4453
    %v4456 = vmul.f32 %v4451, %v4454
    %4458 = vrot.lane.b32.xlu0 %v4456, 64
    %v4459 = vpop.permute.xlu0 %4458
    %v4461 = vadd.f32 %v4410, %v4459
    %v4462 = vtanh.pop %v4461
    %v4463 = vsub.f32 1.0, %v4451
    %4465 = vrot.lane.b32.xlu0 %v4462, 96
    %v4466 = vpop.permute.xlu0 %4465
    %v4468 = vmul.f32 %v4463, %v4466
    %v4469 = vmul.f32 %v4451, %v4135
    %v4470 = vadd.f32 %v4468, %v4469
    %4472 = vrot.lane.b32.xlu0 %v4470, 96
    %v4473 = vpop.permute.xlu0 %4472
    %v4474 = vsel %vm242, %v4473, 0
    %4476 = vmatpush.msra.mxu0 0.0
    %4477 = vmatpush.msra.mxu0 0.0
    %4478 = vmatpush.msra.mxu0 0.0
    %4479 = vmatpush.msra.mxu0 0.0
    %4480 = vmatpush.msra.mxu0 0.0
    %4481 = vmatpush.msra.mxu0 0.0
    %4482 = vmatpush.msra.mxu0 0.0
    %4483 = vmatpush.msra.mxu0 0.0
    %4484 = vmatpush.msra.mxu0 0.0
    %4485 = vmatpush.msra.mxu0 0.0
    %4486 = vmatpush.msra.mxu0 0.0
    %4487 = vmatpush.msra.mxu0 0.0
    %4488 = vmatpush.msra.mxu0 %v2646
    %4489 = vmatpush.msra.mxu0 %v2645
    %4490 = vmatpush.msra.mxu0 %v2644
    %4491 = vmatpush.msra.mxu0 %v2643
    %4492 = vmatmul.f32.gmra.mxu0 %v4474
    %v4493 = vpop.f32.mrf.mxu0
    %v4494 = vadd.f32 %v2654, %v4493
    %4495 = vdwg.mxu0
    %4496 = vmatpush.msra.mxu0 0.0
    %4497 = vmatpush.msra.mxu0 0.0
    %4498 = vmatpush.msra.mxu0 0.0
    %4499 = vmatpush.msra.mxu0 0.0
    %4500 = vmatpush.msra.mxu0 0.0
    %4501 = vmatpush.msra.mxu0 0.0
    %4502 = vmatpush.msra.mxu0 0.0
    %4503 = vmatpush.msra.mxu0 0.0
    %4504 = vmatpush.msra.mxu0 0.0
    %4505 = vmatpush.msra.mxu0 0.0
    %4506 = vmatpush.msra.mxu0 0.0
    %4507 = vmatpush.msra.mxu0 0.0
    %4508 = vmatpush.msra.mxu0 %v2650
    %4509 = vmatpush.msra.mxu0 %v2649
    %4510 = vmatpush.msra.mxu0 %v2648
    %4511 = vmatpush.msra.mxu0 %v2647
    %4512 = vmatmul.f32.gmra.mxu0 %v4223
    %v4513 = vpop.f32.mrf.mxu0
    %v4514 = vadd.f32 %v2655, %v4513
    %4515 = vdwg.mxu0
    %v4516 = vadd.f32 %v4494, %v4514
    %v4517 = vxor.u32 %v4516, 2147483648
    %v4518 = vmul.f32 %v4517, 1.442695
    %v4519 = vpow.pop %v4518
    %v4520 = vadd.f32 %v4519, 1.0
    %v4521 = vrcp.pop %v4520
    %v4522 = vmul.f32 %v4520, %v4521
    %v4523 = vsub.f32 1.0, %v4522
    %v4524 = vmul.f32 %v4521, %v4523
    %v4525 = vadd.f32 %v4521, %v4524
    %vm4526 = vweird.f32 %v4520
    %vm4527 = vweird.f32 %v4521
    %vm4528 = vmor %vm4526, %vm4527
    %v4529 = vsel %vm4528, %v4521, %v4525
    %v4530 = vand.u32 2147483647, %v4520
    %vm4531 = vcmp.eq.f32.partialorder %v4530, 8.507059e+37
    %v4532 = vand.u32 %v4520, 2147483648
    %v4533 = vor.u32 1.1754944e-38, %v4532
    %v4534 = vsel %vm4531, %v4533, %v4529
    %v4535 = vmul.f32 1.0, %v4534
    %4537 = vrot.lane.b32.xlu0 %v4514, 64
    %v4538 = vpop.permute.xlu0 %4537
    %v4540 = vmul.f32 %v4535, %v4538
    %4542 = vrot.lane.b32.xlu0 %v4540, 64
    %v4543 = vpop.permute.xlu0 %4542
    %v4545 = vadd.f32 %v4494, %v4543
    %v4546 = vtanh.pop %v4545
    %v4547 = vsub.f32 1.0, %v4535
    %4549 = vrot.lane.b32.xlu0 %v4546, 96
    %v4550 = vpop.permute.xlu0 %4549
    %v4552 = vmul.f32 %v4547, %v4550
    %v4553 = vmul.f32 %v4535, %v4219
    %v4554 = vadd.f32 %v4552, %v4553
    %4556 = vrot.lane.b32.xlu0 %v4554, 96
    %v4557 = vpop.permute.xlu0 %4556
    %v4558 = vsel %vm242, %v4557, 0
    %4560 = vmatpush.xpose.msra.mxu0 0.0
    %4561 = vmatpush.xpose.msra.mxu0 0.0
    %4562 = vmatpush.xpose.msra.mxu0 0.0
    %4563 = vmatpush.xpose.msra.mxu0 0.0
    %4564 = vmatpush.xpose.msra.mxu0 0.0
    %4565 = vmatpush.xpose.msra.mxu0 0.0
    %4566 = vmatpush.xpose.msra.mxu0 0.0
    %4567 = vmatpush.xpose.msra.mxu0 0.0
    %4568 = vmatpush.xpose.msra.mxu0 0.0
    %4569 = vmatpush.xpose.msra.mxu0 0.0
    %4570 = vmatpush.xpose.msra.mxu0 0.0
    %4571 = vmatpush.xpose.msra.mxu0 0.0
    %4572 = vmatpush.xpose.msra.mxu0 0.0
    %4573 = vmatpush.xpose.msra.mxu0 0.0
    %4574 = vmatpush.xpose.msra.mxu0 0.0
    %4575 = vmatpush.xpose.msra.mxu0 %v2879
    %4576 = vmatmul.f32.gmra.mxu0 %v4558
    %v4577 = vpop.f32.mrf.mxu0
    %v4578 = vadd.f32 0.0, %v4577
    %4579 = vdwg.mxu0
    %v4580 = vsel %vm2902, %v4578, -1e+30
    %v4581 = vsel %vm2904, %v4580, -inf
    %4582 = vmax.xlane.f32.xlu0 %v4581
    %v4583 = vpop.xlane.xlu0 %4582
    %v4584 = vsub.f32 %v4580, %v4583
    %v4585 = vmul.f32 %v4584, 1.442695
    %v4586 = vpow.pop %v4585
    %v4587 = vsel %vm2904, %v4586, 0.0
    %4588 = vadd.xlane.f32.xlu0 %v4587
    %v4589 = vpop.xlane.xlu0 %4588
    %v4590 = vrcp.pop %v4589
    %v4591 = vmul.f32 %v4586, %v4590
    %v4593 = vsel %vm2916, %v4591, 0
    %4595 = vmatpush.msra.mxu0 0.0
    %4596 = vmatpush.msra.mxu0 0.0
    %4597 = vmatpush.msra.mxu0 0.0
    %4598 = vmatpush.msra.mxu0 0.0
    %4599 = vmatpush.msra.mxu0 0.0
    %4600 = vmatpush.msra.mxu0 0.0
    %4601 = vmatpush.msra.mxu0 0.0
    %4602 = vmatpush.msra.mxu0 0.0
    %4603 = vmatpush.msra.mxu0 0.0
    %4604 = vmatpush.msra.mxu0 0.0
    %4605 = vmatpush.msra.mxu0 0.0
    %4606 = vmatpush.msra.mxu0 0.0
    %4607 = vmatpush.msra.mxu0 0.0
    %4608 = vmatpush.msra.mxu0 0.0
    %4609 = vmatpush.msra.mxu0 0.0
    %4610 = vmatpush.msra.mxu0 %v2633
    %4611 = vmatmul.f32.gmra.mxu0 %v4593
    %v4612 = vpop.f32.mrf.mxu0
    %v4613 = vadd.f32 0.0, %v4612
    %4614 = vdwg.mxu0
    %4617 = vrot.lane.b32.xlu0 %v4613, 32
    %v4618 = vpop.permute.xlu0 %4617
    %v4620 = vsel %vm242, %v4557, %v4618
    %v4622 = vsel %vm200, %v4620, 0
    %4624 = vmatpush.msra.mxu0 0.0
    %4625 = vmatpush.msra.mxu0 0.0
    %4626 = vmatpush.msra.mxu0 0.0
    %4627 = vmatpush.msra.mxu0 0.0
    %4628 = vmatpush.msra.mxu0 0.0
    %4629 = vmatpush.msra.mxu0 0.0
    %4630 = vmatpush.msra.mxu0 0.0
    %4631 = vmatpush.msra.mxu0 0.0
    %4632 = vmatpush.msra.mxu0 %v2663
    %4633 = vmatpush.msra.mxu0 %v2662
    %4634 = vmatpush.msra.mxu0 %v2661
    %4635 = vmatpush.msra.mxu0 %v2660
    %4636 = vmatpush.msra.mxu0 %v2659
    %4637 = vmatpush.msra.mxu0 %v2658
    %4638 = vmatpush.msra.mxu0 %v2657
    %4639 = vmatpush.msra.mxu0 %v2656
    %4640 = vmatmul.f32.gmra.mxu0 %v4622
    %v4641 = vpop.f32.mrf.mxu0
    %v4642 = vadd.f32 %v2664, %v4641
    %4643 = vdwg.mxu0
    %v4644 = vtanh.pop %v4642
    %v4646 = vsel %vm242, %v4644, 0
    %4648 = vmatpush.msra.mxu0 0.0
    %4649 = vmatpush.msra.mxu0 0.0
    %4650 = vmatpush.msra.mxu0 0.0
    %4651 = vmatpush.msra.mxu0 0.0
    %4652 = vmatpush.msra.mxu0 0.0
    %4653 = vmatpush.msra.mxu0 0.0
    %4654 = vmatpush.msra.mxu0 0.0
    %4655 = vmatpush.msra.mxu0 0.0
    %4656 = vmatpush.msra.mxu0 0.0
    %4657 = vmatpush.msra.mxu0 0.0
    %4658 = vmatpush.msra.mxu0 0.0
    %4659 = vmatpush.msra.mxu0 0.0
    %4660 = vmatpush.msra.mxu0 %v2668
    %4661 = vmatpush.msra.mxu0 %v2667
    %4662 = vmatpush.msra.mxu0 %v2666
    %4663 = vmatpush.msra.mxu0 %v2665
    %4664 = vmatmul.f32.gmra.mxu0 %v4646
    %v4665 = vpop.f32.mrf.mxu0
    %v4666 = vadd.f32 %v2669, %v4665
    %4667 = vdwg.mxu0
    %v4668 = vsel %vm2993, %v4666, -inf
    %4669 = vmax.xlane.f32.xlu0 %v4668
    %v4670 = vpop.xlane.xlu0 %4669
    %v4671 = vsub.f32 %v4666, %v4670
    %v4672 = vmul.f32 %v4671, 1.442695
    %v4673 = vpow.pop %v4672
    %v4674 = vsel %vm2993, %v4673, 0.0
    %4675 = vadd.xlane.f32.xlu0 %v4674
    %v4676 = vpop.xlane.xlu0 %4675
    %v4677 = vrcp.pop %v4676
    %vm4678 = vcmp.eq.f32.partialorder %v4666, %v4670
    %v4679 = vsel %vm4678, %v145, 64
    %v4680 = vsel %vm2993, %v4679, 2147483647
    %v4681 = vand.u32 %v4680, 65535
    %v4682 = vshra.s32 %v4680, 16
    %v4683 = vcvt.s32.f32 %v4681
    %v4684 = vcvt.s32.f32 %v4682
    %4685 = vmin.xlane.f32.xlu0 %v4684
    %v4686 = vpop.xlane.xlu0 %4685
    %vm4687 = vcmp.eq.f32.partialorder %v4684, %v4686
    %v4688 = vsel %vm4687, %v4683, inf
    %4689 = vmin.xlane.f32.xlu0 %v4688
    %v4690 = vpop.xlane.xlu0 %4689
    %v4691 = vcvt.f32.s32 %v4690
    %v4692 = vcvt.f32.s32 %v4686
    %v4693 = vshll.u32 %v4692, 16
    %v4694 = vadd.s32 %v4693, %v4691
    %vm4695 = vcmp.eq.s32.totalorder %v145, 5
    %v4696 = vsel %vm4695, %v4694, %v4361
    %v4697 = vsel %vm4695, %v4677, %v4362
    %vm4698 = vcmask 40960
    %4699 = vst.msk [vmem:[#allocation16] sm:$0x1] %vm4698, %v4696
    %4700 = vst.msk [vmem:[#allocation17] sm:$0x1] %vm4698, %v4697
    // Predicated region
    $region74: #{greedy_search_decode.1} parent=1 // pred_check
      _
    $region75: #{greedy_search_decode.1} parent=1 // pred_check_branch
      %4702 = sbr.rel (0) target = $region77
    $region76: #{greedy_search_decode.1} parent=1 // pred_region
      %4704 = vsyncadd [#allocation7], 0
      %s4706 = sshll.u32 [#allocation16], 4
      %s4707 = int_to_ptr.vmem [resolvable:$true] %s4706
      %s4708 = sshll.u32 %s12, 4
      %s4709 = int_to_ptr.hbm [resolvable:$true] %s4708
      %4711 = dma.vmem_to_hbm [thread:$0]  %s4707, 16, %s4709, [#allocation7]
    $region77: #{greedy_search_decode.1} parent=1 // pred_fallthru
      _
    // Predicated region
    $region78: #{greedy_search_decode.1} parent=1 // pred_check
      _
    $region79: #{greedy_search_decode.1} parent=1 // pred_check_branch
      %4713 = sbr.rel (0) target = $region81
    $region80: #{greedy_search_decode.1} parent=1 // pred_region
      %4715 = vsyncadd [#allocation18], 0
      %s4717 = sshll.u32 [#allocation17], 4
      %s4718 = int_to_ptr.vmem [resolvable:$true] %s4717
      %s4719 = sshll.u32 %s13, 4
      %s4720 = int_to_ptr.hbm [resolvable:$true] %s4719
      %4722 = dma.vmem_to_hbm [thread:$0]  %s4718, 16, %s4720, [#allocation18]
    $region81: #{greedy_search_decode.1} parent=1 // pred_fallthru
      _
    // Predicated region
    $region82: #{greedy_search_decode.1} parent=1 // pred_check
      _
    $region83: #{greedy_search_decode.1} parent=1 // pred_check_branch
      %4724 = sbr.rel (0) target = $region85
    $region84: #{greedy_search_decode.1} parent=1 // pred_region
      %4726 = dma.done [#allocation7], 16
    $region85: #{greedy_search_decode.1} parent=1 // pred_fallthru
      _
    // Predicated region
    $region86: #{greedy_search_decode.1} parent=1 // pred_check
      _
    $region87: #{greedy_search_decode.1} parent=1 // pred_check_branch
      %4728 = sbr.rel (0) target = $region89
    $region88: #{greedy_search_decode.1} parent=1 // pred_region
      %4730 = dma.done [#allocation18], 16
    $region89: #{greedy_search_decode.1} parent=1 // pred_fallthru
      _
    %4731 = vsyncpa [#allocation6], 1
    %4732 = vsyncpa [#allocation11], 1
    %4733 = vsyncpa [#allocation14], 1
    %4734 = vsyncpa [#allocation7], 1
    %4735 = vsyncpa [#allocation18], 1
    %4736 = vsyncpa [#allocation8], 1

</llo_original>
